<compile_context>
chip_gen: v7x
topology: tpu7x:2x2x1
jax: 0.10.0
libtpu: 0.0.40
codegen_flags: <defaults>
</compile_context>

<pallas_src>
import functools

import jax
import jax.numpy as jnp
import numpy as np
from jax.experimental import pallas as pl
from jax.experimental.pallas import tpu as pltpu


# ----------------------- host-side folding helpers ------------------------ #
def _reflect(i, n):
    if i < 0:
        return -i
    if i > n - 1:
        return 2 * (n - 1) - i
    return i


def _row_shift_matrix(H, dy):
    """R (H,H) 0/1 such that (R @ y)[h, :] == y[reflect(h + dy - 1), :]."""
    R = np.zeros((H, H), np.float32)
    for h in range(H):
        R[h, _reflect(h + dy - 1, H)] = 1.0
    return R


def _down_row_select(H, dy):
    """S (H//2, H) 0/1 such that (S @ y)[ho, :] == y[2*ho + dy, :]."""
    Ho = H // 2
    S = np.zeros((Ho, H), np.float32)
    for ho in range(Ho):
        S[ho, 2 * ho + dy] = 1.0
    return S


def _fold_conv3x3(w_hwio, W):
    """Per-dy (W*Cin, W*Cout) matrices: horizontal reflect taps + channel mix."""
    Cin, Cout = w_hwio.shape[2], w_hwio.shape[3]
    E = np.zeros((3, W, W), np.float32)            # E[dx, w_src, w_out]
    for dx in range(3):
        for w in range(W):
            E[dx, _reflect(w + dx - 1, W), w] += 1.0
    Ej = jnp.asarray(E)
    return [jnp.einsum("dab,dio->aibo", Ej, w_hwio[dy]).reshape(W * Cin, W * Cout)
            for dy in range(3)]


def _fold_down2x2(w_hwio, W):
    """Per-dy (W*Cin, (W//2)*Cout) matrices for the 2x2 / stride-2 conv."""
    Cin, Cout = w_hwio.shape[2], w_hwio.shape[3]
    Wo = W // 2
    E = np.zeros((2, W, Wo), np.float32)           # E[dx, w_src, w_out]
    for dx in range(2):
        for wo in range(Wo):
            E[dx, 2 * wo + dx, wo] = 1.0
    Ej = jnp.asarray(E)
    return [jnp.einsum("dab,dio->aibo", Ej, w_hwio[dy]).reshape(W * Cin, Wo * Cout)
            for dy in range(2)]


# ------------------------------ Pallas kernel ------------------------------ #
def _fused_disc_kernel(*refs, n_in, num_scales, block_depth):
    ins, outs = refs[:n_in], refs[n_in:]
    pos = 0

    def nxt():
        nonlocal pos
        r = ins[pos]
        pos += 1
        return r

    def mm(a, b):
        return jnp.dot(a, b, preferred_element_type=jnp.float32)

    y = nxt()[0]                              # (H0, W0*C0) for this batch element
    for s in range(num_scales):
        if s > 0:                             # 2x2 / stride-2 downsampler (no ReLU)
            S0 = nxt()[...]
            S1 = nxt()[...]
            D0 = nxt()[...]
            D1 = nxt()[...]
            bd = nxt()[...]
            y = mm(mm(S0, y), D0) + mm(mm(S1, y), D1) + bd
        R0 = nxt()[...]                       # vertical reflect shifts (dy=0, dy=2)
        R2 = nxt()[...]
        for _ in range(block_depth):          # 3x3 reflect 'same' conv + ReLU
            W0 = nxt()[...]
            W1 = nxt()[...]
            W2 = nxt()[...]
            bb = nxt()[...]
            acc = mm(mm(R0, y), W0) + mm(y, W1) + mm(mm(R2, y), W2) + bb
            y = jnp.maximum(acc, 0.0)
        outs[s][0] = y                        # per-scale (H_s, W_s*C_s) feature map


# ------------------------------ parameters --------------------------------- #
def init_params(key, target_channels, conv_channels, encode_depth=4,
                block_depth=2):
    enc_ch = [conv_channels * (2 ** n) for n in range(encode_depth)]

    def conv_init(k, kh, kw, cin, cout):
        kw_, kb_ = jax.random.split(k)
        bound = 1.0 / np.sqrt(cin * kh * kw)           # PyTorch-style bound
        w = jax.random.uniform(kw_, (kh, kw, cin, cout), jnp.float32,
                               -bound, bound)
        b = jax.random.uniform(kb_, (cout,), jnp.float32, -bound, bound)
        return w, b

    keys = iter(jax.random.split(key, 64))
    params = {"input": [], "downsamplers": [], "encoders": []}

    cin = target_channels
    for _ in range(block_depth):
        params["input"].append(conv_init(next(keys), 3, 3, cin, enc_ch[0]))
        cin = enc_ch[0]

    for n in range(encode_depth - 1):
        params["downsamplers"].append(
            conv_init(next(keys), 2, 2, enc_ch[n], enc_ch[n + 1]))
        block, cin = [], enc_ch[n + 1]
        for _ in range(block_depth):
            block.append(conv_init(next(keys), 3, 3, cin, enc_ch[n + 1]))
            cin = enc_ch[n + 1]
        params["encoders"].append(block)
    return params


# ------------------------------- forward ----------------------------------- #
def discriminator_forward(params, x_nchw):
    N, C0, H0, W0 = x_nchw.shape
    block_depth = len(params["input"])
    num_scales = len(params["downsamplers"]) + 1

    # Activation layout: (N, H, W*C); rows -> sublanes, (W,C) -> lanes.
    x3 = jnp.transpose(x_nchw, (0, 2, 3, 1)).reshape(N, H0, W0 * C0)

    inputs = [x3]
    in_specs = [pl.BlockSpec((1, H0, W0 * C0), lambda n: (n, 0, 0))]

    def add_shared(arr):
        inputs.append(arr)
        in_specs.append(pl.BlockSpec(arr.shape,
                                     lambda n, nd=arr.ndim: (0,) * nd))

    out_shapes, out_specs, scale_dims = [], [], []

    Hs, Ws = H0, W0
    for s in range(num_scales):
        if s > 0:
            wd, bd = params["downsamplers"][s - 1]
            Cd = wd.shape[3]
            add_shared(jnp.asarray(_down_row_select(Hs, 0)))
            add_shared(jnp.asarray(_down_row_select(Hs, 1)))
            for f in _fold_down2x2(wd, Ws):
                add_shared(f)
            Hs, Ws = Hs // 2, Ws // 2
            add_shared(jnp.tile(bd, Ws).reshape(1, Ws * Cd))
        add_shared(jnp.asarray(_row_shift_matrix(Hs, 0)))
        add_shared(jnp.asarray(_row_shift_matrix(Hs, 2)))
        block = params["input"] if s == 0 else params["encoders"][s - 1]
        for (w, b) in block:
            for f in _fold_conv3x3(w, Ws):
                add_shared(f)
            add_shared(jnp.tile(b, Ws).reshape(1, Ws * b.shape[0]))
        Cs = block[-1][0].shape[3]
        scale_dims.append((Hs, Ws, Cs))
        out_shapes.append(jax.ShapeDtypeStruct((N, Hs, Ws * Cs), jnp.float32))
        out_specs.append(pl.BlockSpec((1, Hs, Ws * Cs), lambda n: (n, 0, 0)))

    kern = functools.partial(_fused_disc_kernel, n_in=len(inputs),
                             num_scales=num_scales, block_depth=block_depth)
    outs = pl.pallas_call(
        kern,
        grid=(N,),
        in_specs=in_specs,
        out_specs=tuple(out_specs),
        out_shape=tuple(out_shapes),
        compiler_params=pltpu.CompilerParams(
            dimension_semantics=("parallel",)),
    )(*inputs)

    # Epilogue (tiny XLA glue): match torch's NCHW flatten() + concat order.
    feats = []
    for (Hs, Ws, Cs), y in zip(scale_dims, outs):
        y = y.reshape(N, Hs, Ws, Cs)
        feats.append(jnp.transpose(y, (0, 3, 1, 2)).reshape(-1))
    return jnp.concatenate(feats)


# ------------------------ pure-JAX reference check ------------------------- #
def _ref_forward(params, x_nchw):
    def conv(x, w, b, stride, reflect):
        if reflect:
            x = jnp.pad(x, ((0, 0), (1, 1), (1, 1), (0, 0)), mode="reflect")
        y = jax.lax.conv_general_dilated(
            x, w, (stride, stride), "VALID",
            dimension_numbers=("NHWC", "HWIO", "NHWC"))
        return y + b

    y = jnp.transpose(x_nchw, (0, 2, 3, 1))
    for w, b in params["input"]:
        y = jnp.maximum(conv(y, w, b, 1, True), 0.0)
    feats = [jnp.transpose(y, (0, 3, 1, 2)).reshape(-1)]
    for (dw, db), block in zip(params["downsamplers"], params["encoders"]):
        y = conv(y, dw, db, 2, False)
        for w, b in block:
            y = jnp.maximum(conv(y, w, b, 1, True), 0.0)
        feats.append(jnp.transpose(y, (0, 3, 1, 2)).reshape(-1))
    return jnp.concatenate(feats)


# --------------------------------- main ------------------------------------ #
if __name__ == "__main__":
    target_channels, conv_channels = 4, 4
    encode_depth, block_depth = 4, 2

    key = jax.random.PRNGKey(0)
    kp, kx = jax.random.split(key)
    params = init_params(kp, target_channels, conv_channels,
                         encode_depth, block_depth)
    x = jax.random.normal(kx, (2, target_channels, 16, 16), jnp.float32)

    fwd = jax.jit(discriminator_forward)
    out = fwd(params, x)
    jax.block_until_ready(out)

    ref = _ref_forward(params, x)
    assert out.shape == ref.shape, (out.shape, ref.shape)
    # 8 chained conv layers of MXU matmuls vs XLA convs -> loose-ish tolerance.
    err = float(np.max(np.abs(np.asarray(out) - np.asarray(ref))))
    assert np.allclose(np.asarray(out), np.asarray(ref),
                       atol=2e-2, rtol=2e-2), err

    print("KERNEL_OK")
</pallas_src>

<mosaic_0001>
module attributes {stable_mosaic.version = 11 : i64} {
  func.func @_fused_disc_kernel(%arg0: i32, %arg1: memref<1x16x64xf32, #tpu.memory_space<vmem>>, %arg2: memref<16x16xf32, #tpu.memory_space<vmem>>, %arg3: memref<16x16xf32, #tpu.memory_space<vmem>>, %arg4: memref<64x64xf32, #tpu.memory_space<vmem>>, %arg5: memref<64x64xf32, #tpu.memory_space<vmem>>, %arg6: memref<64x64xf32, #tpu.memory_space<vmem>>, %arg7: memref<1x64xf32, #tpu.memory_space<vmem>>, %arg8: memref<64x64xf32, #tpu.memory_space<vmem>>, %arg9: memref<64x64xf32, #tpu.memory_space<vmem>>, %arg10: memref<64x64xf32, #tpu.memory_space<vmem>>, %arg11: memref<1x64xf32, #tpu.memory_space<vmem>>, %arg12: memref<8x16xf32, #tpu.memory_space<vmem>>, %arg13: memref<8x16xf32, #tpu.memory_space<vmem>>, %arg14: memref<64x64xf32, #tpu.memory_space<vmem>>, %arg15: memref<64x64xf32, #tpu.memory_space<vmem>>, %arg16: memref<1x64xf32, #tpu.memory_space<vmem>>, %arg17: memref<8x8xf32, #tpu.memory_space<vmem>>, %arg18: memref<8x8xf32, #tpu.memory_space<vmem>>, %arg19: memref<64x64xf32, #tpu.memory_space<vmem>>, %arg20: memref<64x64xf32, #tpu.memory_space<vmem>>, %arg21: memref<64x64xf32, #tpu.memory_space<vmem>>, %arg22: memref<1x64xf32, #tpu.memory_space<vmem>>, %arg23: memref<64x64xf32, #tpu.memory_space<vmem>>, %arg24: memref<64x64xf32, #tpu.memory_space<vmem>>, %arg25: memref<64x64xf32, #tpu.memory_space<vmem>>, %arg26: memref<1x64xf32, #tpu.memory_space<vmem>>, %arg27: memref<4x8xf32, #tpu.memory_space<vmem>>, %arg28: memref<4x8xf32, #tpu.memory_space<vmem>>, %arg29: memref<64x64xf32, #tpu.memory_space<vmem>>, %arg30: memref<64x64xf32, #tpu.memory_space<vmem>>, %arg31: memref<1x64xf32, #tpu.memory_space<vmem>>, %arg32: memref<4x4xf32, #tpu.memory_space<vmem>>, %arg33: memref<4x4xf32, #tpu.memory_space<vmem>>, %arg34: memref<64x64xf32, #tpu.memory_space<vmem>>, %arg35: memref<64x64xf32, #tpu.memory_space<vmem>>, %arg36: memref<64x64xf32, #tpu.memory_space<vmem>>, %arg37: memref<1x64xf32, #tpu.memory_space<vmem>>, %arg38: memref<64x64xf32, #tpu.memory_space<vmem>>, %arg39: memref<64x64xf32, #tpu.memory_space<vmem>>, %arg40: memref<64x64xf32, #tpu.memory_space<vmem>>, %arg41: memref<1x64xf32, #tpu.memory_space<vmem>>, %arg42: memref<2x4xf32, #tpu.memory_space<vmem>>, %arg43: memref<2x4xf32, #tpu.memory_space<vmem>>, %arg44: memref<64x64xf32, #tpu.memory_space<vmem>>, %arg45: memref<64x64xf32, #tpu.memory_space<vmem>>, %arg46: memref<1x64xf32, #tpu.memory_space<vmem>>, %arg47: memref<2x2xf32, #tpu.memory_space<vmem>>, %arg48: memref<2x2xf32, #tpu.memory_space<vmem>>, %arg49: memref<64x64xf32, #tpu.memory_space<vmem>>, %arg50: memref<64x64xf32, #tpu.memory_space<vmem>>, %arg51: memref<64x64xf32, #tpu.memory_space<vmem>>, %arg52: memref<1x64xf32, #tpu.memory_space<vmem>>, %arg53: memref<64x64xf32, #tpu.memory_space<vmem>>, %arg54: memref<64x64xf32, #tpu.memory_space<vmem>>, %arg55: memref<64x64xf32, #tpu.memory_space<vmem>>, %arg56: memref<1x64xf32, #tpu.memory_space<vmem>>, %arg57: memref<1x16x64xf32, #tpu.memory_space<vmem>>, %arg58: memref<1x8x64xf32, #tpu.memory_space<vmem>>, %arg59: memref<1x4x64xf32, #tpu.memory_space<vmem>>, %arg60: memref<1x2x64xf32, #tpu.memory_space<vmem>>) attributes {dimension_semantics = [#tpu.dimension_semantics<parallel>], iteration_bounds = array<i64: 2>, scalar_prefetch = 0 : i64, scratch_operands = 0 : i64, tpu.core_type = #tpu.core_type<tc>, window_params = [{transform_indices = @transform_0, window_bounds = array<i64: 1, 16, 64>}, {pipeline_mode = #tpu.pipeline_mode<synchronous>, transform_indices = @transform_1, window_bounds = array<i64: 16, 16>}, {pipeline_mode = #tpu.pipeline_mode<synchronous>, transform_indices = @transform_2, window_bounds = array<i64: 16, 16>}, {pipeline_mode = #tpu.pipeline_mode<synchronous>, transform_indices = @transform_3, window_bounds = array<i64: 64, 64>}, {pipeline_mode = #tpu.pipeline_mode<synchronous>, transform_indices = @transform_4, window_bounds = array<i64: 64, 64>}, {pipeline_mode = #tpu.pipeline_mode<synchronous>, transform_indices = @transform_5, window_bounds = array<i64: 64, 64>}, {pipeline_mode = #tpu.pipeline_mode<synchronous>, transform_indices = @transform_6, window_bounds = array<i64: 1, 64>}, {pipeline_mode = #tpu.pipeline_mode<synchronous>, transform_indices = @transform_7, window_bounds = array<i64: 64, 64>}, {pipeline_mode = #tpu.pipeline_mode<synchronous>, transform_indices = @transform_8, window_bounds = array<i64: 64, 64>}, {pipeline_mode = #tpu.pipeline_mode<synchronous>, transform_indices = @transform_9, window_bounds = array<i64: 64, 64>}, {pipeline_mode = #tpu.pipeline_mode<synchronous>, transform_indices = @transform_10, window_bounds = array<i64: 1, 64>}, {pipeline_mode = #tpu.pipeline_mode<synchronous>, transform_indices = @transform_11, window_bounds = array<i64: 8, 16>}, {pipeline_mode = #tpu.pipeline_mode<synchronous>, transform_indices = @transform_12, window_bounds = array<i64: 8, 16>}, {pipeline_mode = #tpu.pipeline_mode<synchronous>, transform_indices = @transform_13, window_bounds = array<i64: 64, 64>}, {pipeline_mode = #tpu.pipeline_mode<synchronous>, transform_indices = @transform_14, window_bounds = array<i64: 64, 64>}, {pipeline_mode = #tpu.pipeline_mode<synchronous>, transform_indices = @transform_15, window_bounds = array<i64: 1, 64>}, {pipeline_mode = #tpu.pipeline_mode<synchronous>, transform_indices = @transform_16, window_bounds = array<i64: 8, 8>}, {pipeline_mode = #tpu.pipeline_mode<synchronous>, transform_indices = @transform_17, window_bounds = array<i64: 8, 8>}, {pipeline_mode = #tpu.pipeline_mode<synchronous>, transform_indices = @transform_18, window_bounds = array<i64: 64, 64>}, {pipeline_mode = #tpu.pipeline_mode<synchronous>, transform_indices = @transform_19, window_bounds = array<i64: 64, 64>}, {pipeline_mode = #tpu.pipeline_mode<synchronous>, transform_indices = @transform_20, window_bounds = array<i64: 64, 64>}, {pipeline_mode = #tpu.pipeline_mode<synchronous>, transform_indices = @transform_21, window_bounds = array<i64: 1, 64>}, {pipeline_mode = #tpu.pipeline_mode<synchronous>, transform_indices = @transform_22, window_bounds = array<i64: 64, 64>}, {pipeline_mode = #tpu.pipeline_mode<synchronous>, transform_indices = @transform_23, window_bounds = array<i64: 64, 64>}, {pipeline_mode = #tpu.pipeline_mode<synchronous>, transform_indices = @transform_24, window_bounds = array<i64: 64, 64>}, {pipeline_mode = #tpu.pipeline_mode<synchronous>, transform_indices = @transform_25, window_bounds = array<i64: 1, 64>}, {pipeline_mode = #tpu.pipeline_mode<synchronous>, transform_indices = @transform_26, window_bounds = array<i64: 4, 8>}, {pipeline_mode = #tpu.pipeline_mode<synchronous>, transform_indices = @transform_27, window_bounds = array<i64: 4, 8>}, {pipeline_mode = #tpu.pipeline_mode<synchronous>, transform_indices = @transform_28, window_bounds = array<i64: 64, 64>}, {pipeline_mode = #tpu.pipeline_mode<synchronous>, transform_indices = @transform_29, window_bounds = array<i64: 64, 64>}, {pipeline_mode = #tpu.pipeline_mode<synchronous>, transform_indices = @transform_30, window_bounds = array<i64: 1, 64>}, {pipeline_mode = #tpu.pipeline_mode<synchronous>, transform_indices = @transform_31, window_bounds = array<i64: 4, 4>}, {pipeline_mode = #tpu.pipeline_mode<synchronous>, transform_indices = @transform_32, window_bounds = array<i64: 4, 4>}, {pipeline_mode = #tpu.pipeline_mode<synchronous>, transform_indices = @transform_33, window_bounds = array<i64: 64, 64>}, {pipeline_mode = #tpu.pipeline_mode<synchronous>, transform_indices = @transform_34, window_bounds = array<i64: 64, 64>}, {pipeline_mode = #tpu.pipeline_mode<synchronous>, transform_indices = @transform_35, window_bounds = array<i64: 64, 64>}, {pipeline_mode = #tpu.pipeline_mode<synchronous>, transform_indices = @transform_36, window_bounds = array<i64: 1, 64>}, {pipeline_mode = #tpu.pipeline_mode<synchronous>, transform_indices = @transform_37, window_bounds = array<i64: 64, 64>}, {pipeline_mode = #tpu.pipeline_mode<synchronous>, transform_indices = @transform_38, window_bounds = array<i64: 64, 64>}, {pipeline_mode = #tpu.pipeline_mode<synchronous>, transform_indices = @transform_39, window_bounds = array<i64: 64, 64>}, {pipeline_mode = #tpu.pipeline_mode<synchronous>, transform_indices = @transform_40, window_bounds = array<i64: 1, 64>}, {pipeline_mode = #tpu.pipeline_mode<synchronous>, transform_indices = @transform_41, window_bounds = array<i64: 2, 4>}, {pipeline_mode = #tpu.pipeline_mode<synchronous>, transform_indices = @transform_42, window_bounds = array<i64: 2, 4>}, {pipeline_mode = #tpu.pipeline_mode<synchronous>, transform_indices = @transform_43, window_bounds = array<i64: 64, 64>}, {pipeline_mode = #tpu.pipeline_mode<synchronous>, transform_indices = @transform_44, window_bounds = array<i64: 64, 64>}, {pipeline_mode = #tpu.pipeline_mode<synchronous>, transform_indices = @transform_45, window_bounds = array<i64: 1, 64>}, {pipeline_mode = #tpu.pipeline_mode<synchronous>, transform_indices = @transform_46, window_bounds = array<i64: 2, 2>}, {pipeline_mode = #tpu.pipeline_mode<synchronous>, transform_indices = @transform_47, window_bounds = array<i64: 2, 2>}, {pipeline_mode = #tpu.pipeline_mode<synchronous>, transform_indices = @transform_48, window_bounds = array<i64: 64, 64>}, {pipeline_mode = #tpu.pipeline_mode<synchronous>, transform_indices = @transform_49, window_bounds = array<i64: 64, 64>}, {pipeline_mode = #tpu.pipeline_mode<synchronous>, transform_indices = @transform_50, window_bounds = array<i64: 64, 64>}, {pipeline_mode = #tpu.pipeline_mode<synchronous>, transform_indices = @transform_51, window_bounds = array<i64: 1, 64>}, {pipeline_mode = #tpu.pipeline_mode<synchronous>, transform_indices = @transform_52, window_bounds = array<i64: 64, 64>}, {pipeline_mode = #tpu.pipeline_mode<synchronous>, transform_indices = @transform_53, window_bounds = array<i64: 64, 64>}, {pipeline_mode = #tpu.pipeline_mode<synchronous>, transform_indices = @transform_54, window_bounds = array<i64: 64, 64>}, {pipeline_mode = #tpu.pipeline_mode<synchronous>, transform_indices = @transform_55, window_bounds = array<i64: 1, 64>}, {transform_indices = @transform_56, window_bounds = array<i64: 1, 16, 64>}, {transform_indices = @transform_57, window_bounds = array<i64: 1, 8, 64>}, {transform_indices = @transform_58, window_bounds = array<i64: 1, 4, 64>}, {transform_indices = @transform_59, window_bounds = array<i64: 1, 2, 64>}]} {
    %c0 = arith.constant 0 : index
    %c0_0 = arith.constant 0 : index
    %c0_1 = arith.constant 0 : index
    %0 = vector.load %arg1[%c0, %c0_0, %c0_1] : memref<1x16x64xf32, #tpu.memory_space<vmem>>, vector<1x16x64xf32>
    %1 = vector.shape_cast %0 : vector<1x16x64xf32> to vector<16x64xf32>
    %c0_2 = arith.constant 0 : index
    %c0_3 = arith.constant 0 : index
    %2 = vector.load %arg2[%c0_2, %c0_3] : memref<16x16xf32, #tpu.memory_space<vmem>>, vector<16x16xf32>
    %c0_4 = arith.constant 0 : index
    %c0_5 = arith.constant 0 : index
    %3 = vector.load %arg3[%c0_4, %c0_5] : memref<16x16xf32, #tpu.memory_space<vmem>>, vector<16x16xf32>
    %c0_6 = arith.constant 0 : index
    %c0_7 = arith.constant 0 : index
    %4 = vector.load %arg4[%c0_6, %c0_7] : memref<64x64xf32, #tpu.memory_space<vmem>>, vector<64x64xf32>
    %c0_8 = arith.constant 0 : index
    %c0_9 = arith.constant 0 : index
    %5 = vector.load %arg5[%c0_8, %c0_9] : memref<64x64xf32, #tpu.memory_space<vmem>>, vector<64x64xf32>
    %c0_10 = arith.constant 0 : index
    %c0_11 = arith.constant 0 : index
    %6 = vector.load %arg6[%c0_10, %c0_11] : memref<64x64xf32, #tpu.memory_space<vmem>>, vector<64x64xf32>
    %c0_12 = arith.constant 0 : index
    %c0_13 = arith.constant 0 : index
    %7 = vector.load %arg7[%c0_12, %c0_13] : memref<1x64xf32, #tpu.memory_space<vmem>>, vector<1x64xf32>
    %cst = arith.constant dense<0.000000e+00> : vector<16x64xf32>
    %8 = tpu.matmul %2, %1, %cst {dimension_numbers = #tpu.dot_dimension_numbers<[1], [0], [0], [1], [0, 0, 1, 1], [], []>} : vector<16x16xf32>, vector<16x64xf32>, vector<16x64xf32> -> vector<16x64xf32>
    %cst_14 = arith.constant dense<0.000000e+00> : vector<16x64xf32>
    %9 = tpu.matmul %8, %4, %cst_14 {dimension_numbers = #tpu.dot_dimension_numbers<[1], [0], [0], [1], [0, 0, 1, 1], [], []>} : vector<16x64xf32>, vector<64x64xf32>, vector<16x64xf32> -> vector<16x64xf32>
    %cst_15 = arith.constant dense<0.000000e+00> : vector<16x64xf32>
    %10 = tpu.matmul %1, %5, %cst_15 {dimension_numbers = #tpu.dot_dimension_numbers<[1], [0], [0], [1], [0, 0, 1, 1], [], []>} : vector<16x64xf32>, vector<64x64xf32>, vector<16x64xf32> -> vector<16x64xf32>
    %11 = arith.addf %9, %10 : vector<16x64xf32>
    %cst_16 = arith.constant dense<0.000000e+00> : vector<16x64xf32>
    %12 = tpu.matmul %3, %1, %cst_16 {dimension_numbers = #tpu.dot_dimension_numbers<[1], [0], [0], [1], [0, 0, 1, 1], [], []>} : vector<16x16xf32>, vector<16x64xf32>, vector<16x64xf32> -> vector<16x64xf32>
    %cst_17 = arith.constant dense<0.000000e+00> : vector<16x64xf32>
    %13 = tpu.matmul %12, %6, %cst_17 {dimension_numbers = #tpu.dot_dimension_numbers<[1], [0], [0], [1], [0, 0, 1, 1], [], []>} : vector<16x64xf32>, vector<64x64xf32>, vector<16x64xf32> -> vector<16x64xf32>
    %14 = arith.addf %11, %13 : vector<16x64xf32>
    %15 = vector.broadcast %7 : vector<1x64xf32> to vector<16x64xf32>
    %16 = arith.addf %14, %15 : vector<16x64xf32>
    %cst_18 = arith.constant 0.000000e+00 : f32
    %17 = vector.broadcast %cst_18 : f32 to vector<16x64xf32>
    %18 = arith.maximumf %16, %17 : vector<16x64xf32>
    %c0_19 = arith.constant 0 : index
    %c0_20 = arith.constant 0 : index
    %19 = vector.load %arg8[%c0_19, %c0_20] : memref<64x64xf32, #tpu.memory_space<vmem>>, vector<64x64xf32>
    %c0_21 = arith.constant 0 : index
    %c0_22 = arith.constant 0 : index
    %20 = vector.load %arg9[%c0_21, %c0_22] : memref<64x64xf32, #tpu.memory_space<vmem>>, vector<64x64xf32>
    %c0_23 = arith.constant 0 : index
    %c0_24 = arith.constant 0 : index
    %21 = vector.load %arg10[%c0_23, %c0_24] : memref<64x64xf32, #tpu.memory_space<vmem>>, vector<64x64xf32>
    %c0_25 = arith.constant 0 : index
    %c0_26 = arith.constant 0 : index
    %22 = vector.load %arg11[%c0_25, %c0_26] : memref<1x64xf32, #tpu.memory_space<vmem>>, vector<1x64xf32>
    %cst_27 = arith.constant dense<0.000000e+00> : vector<16x64xf32>
    %23 = tpu.matmul %2, %18, %cst_27 {dimension_numbers = #tpu.dot_dimension_numbers<[1], [0], [0], [1], [0, 0, 1, 1], [], []>} : vector<16x16xf32>, vector<16x64xf32>, vector<16x64xf32> -> vector<16x64xf32>
    %cst_28 = arith.constant dense<0.000000e+00> : vector<16x64xf32>
    %24 = tpu.matmul %23, %19, %cst_28 {dimension_numbers = #tpu.dot_dimension_numbers<[1], [0], [0], [1], [0, 0, 1, 1], [], []>} : vector<16x64xf32>, vector<64x64xf32>, vector<16x64xf32> -> vector<16x64xf32>
    %cst_29 = arith.constant dense<0.000000e+00> : vector<16x64xf32>
    %25 = tpu.matmul %18, %20, %cst_29 {dimension_numbers = #tpu.dot_dimension_numbers<[1], [0], [0], [1], [0, 0, 1, 1], [], []>} : vector<16x64xf32>, vector<64x64xf32>, vector<16x64xf32> -> vector<16x64xf32>
    %26 = arith.addf %24, %25 : vector<16x64xf32>
    %cst_30 = arith.constant dense<0.000000e+00> : vector<16x64xf32>
    %27 = tpu.matmul %3, %18, %cst_30 {dimension_numbers = #tpu.dot_dimension_numbers<[1], [0], [0], [1], [0, 0, 1, 1], [], []>} : vector<16x16xf32>, vector<16x64xf32>, vector<16x64xf32> -> vector<16x64xf32>
    %cst_31 = arith.constant dense<0.000000e+00> : vector<16x64xf32>
    %28 = tpu.matmul %27, %21, %cst_31 {dimension_numbers = #tpu.dot_dimension_numbers<[1], [0], [0], [1], [0, 0, 1, 1], [], []>} : vector<16x64xf32>, vector<64x64xf32>, vector<16x64xf32> -> vector<16x64xf32>
    %29 = arith.addf %26, %28 : vector<16x64xf32>
    %30 = vector.broadcast %22 : vector<1x64xf32> to vector<16x64xf32>
    %31 = arith.addf %29, %30 : vector<16x64xf32>
    %cst_32 = arith.constant 0.000000e+00 : f32
    %32 = vector.broadcast %cst_32 : f32 to vector<16x64xf32>
    %33 = arith.maximumf %31, %32 : vector<16x64xf32>
    %c0_33 = arith.constant 0 : index
    %c0_34 = arith.constant 0 : index
    %c0_35 = arith.constant 0 : index
    %34 = vector.load %arg57[%c0_33, %c0_34, %c0_35] : memref<1x16x64xf32, #tpu.memory_space<vmem>>, vector<1x16x64xf32>
    %35 = vector.shape_cast %34 : vector<1x16x64xf32> to vector<16x64xf32>
    %36 = vector.shape_cast %33 : vector<16x64xf32> to vector<1x16x64xf32>
    tpu.vector_store %arg57[%c0_33, %c0_34, %c0_35], %36 {strides = array<i32>} : memref<1x16x64xf32, #tpu.memory_space<vmem>>, vector<1x16x64xf32>,
    %c0_36 = arith.constant 0 : index
    %c0_37 = arith.constant 0 : index
    %37 = vector.load %arg12[%c0_36, %c0_37] : memref<8x16xf32, #tpu.memory_space<vmem>>, vector<8x16xf32>
    %c0_38 = arith.constant 0 : index
    %c0_39 = arith.constant 0 : index
    %38 = vector.load %arg13[%c0_38, %c0_39] : memref<8x16xf32, #tpu.memory_space<vmem>>, vector<8x16xf32>
    %c0_40 = arith.constant 0 : index
    %c0_41 = arith.constant 0 : index
    %39 = vector.load %arg14[%c0_40, %c0_41] : memref<64x64xf32, #tpu.memory_space<vmem>>, vector<64x64xf32>
    %c0_42 = arith.constant 0 : index
    %c0_43 = arith.constant 0 : index
    %40 = vector.load %arg15[%c0_42, %c0_43] : memref<64x64xf32, #tpu.memory_space<vmem>>, vector<64x64xf32>
    %c0_44 = arith.constant 0 : index
    %c0_45 = arith.constant 0 : index
    %41 = vector.load %arg16[%c0_44, %c0_45] : memref<1x64xf32, #tpu.memory_space<vmem>>, vector<1x64xf32>
    %cst_46 = arith.constant dense<0.000000e+00> : vector<8x64xf32>
    %42 = tpu.matmul %37, %33, %cst_46 {dimension_numbers = #tpu.dot_dimension_numbers<[1], [0], [0], [1], [0, 0, 1, 1], [], []>} : vector<8x16xf32>, vector<16x64xf32>, vector<8x64xf32> -> vector<8x64xf32>
    %cst_47 = arith.constant dense<0.000000e+00> : vector<8x64xf32>
    %43 = tpu.matmul %42, %39, %cst_47 {dimension_numbers = #tpu.dot_dimension_numbers<[1], [0], [0], [1], [0, 0, 1, 1], [], []>} : vector<8x64xf32>, vector<64x64xf32>, vector<8x64xf32> -> vector<8x64xf32>
    %cst_48 = arith.constant dense<0.000000e+00> : vector<8x64xf32>
    %44 = tpu.matmul %38, %33, %cst_48 {dimension_numbers = #tpu.dot_dimension_numbers<[1], [0], [0], [1], [0, 0, 1, 1], [], []>} : vector<8x16xf32>, vector<16x64xf32>, vector<8x64xf32> -> vector<8x64xf32>
    %cst_49 = arith.constant dense<0.000000e+00> : vector<8x64xf32>
    %45 = tpu.matmul %44, %40, %cst_49 {dimension_numbers = #tpu.dot_dimension_numbers<[1], [0], [0], [1], [0, 0, 1, 1], [], []>} : vector<8x64xf32>, vector<64x64xf32>, vector<8x64xf32> -> vector<8x64xf32>
    %46 = arith.addf %43, %45 : vector<8x64xf32>
    %47 = vector.broadcast %41 : vector<1x64xf32> to vector<8x64xf32>
    %48 = arith.addf %46, %47 : vector<8x64xf32>
    %c0_50 = arith.constant 0 : index
    %c0_51 = arith.constant 0 : index
    %49 = vector.load %arg17[%c0_50, %c0_51] : memref<8x8xf32, #tpu.memory_space<vmem>>, vector<8x8xf32>
    %c0_52 = arith.constant 0 : index
    %c0_53 = arith.constant 0 : index
    %50 = vector.load %arg18[%c0_52, %c0_53] : memref<8x8xf32, #tpu.memory_space<vmem>>, vector<8x8xf32>
    %c0_54 = arith.constant 0 : index
    %c0_55 = arith.constant 0 : index
    %51 = vector.load %arg19[%c0_54, %c0_55] : memref<64x64xf32, #tpu.memory_space<vmem>>, vector<64x64xf32>
    %c0_56 = arith.constant 0 : index
    %c0_57 = arith.constant 0 : index
    %52 = vector.load %arg20[%c0_56, %c0_57] : memref<64x64xf32, #tpu.memory_space<vmem>>, vector<64x64xf32>
    %c0_58 = arith.constant 0 : index
    %c0_59 = arith.constant 0 : index
    %53 = vector.load %arg21[%c0_58, %c0_59] : memref<64x64xf32, #tpu.memory_space<vmem>>, vector<64x64xf32>
    %c0_60 = arith.constant 0 : index
    %c0_61 = arith.constant 0 : index
    %54 = vector.load %arg22[%c0_60, %c0_61] : memref<1x64xf32, #tpu.memory_space<vmem>>, vector<1x64xf32>
    %cst_62 = arith.constant dense<0.000000e+00> : vector<8x64xf32>
    %55 = tpu.matmul %49, %48, %cst_62 {dimension_numbers = #tpu.dot_dimension_numbers<[1], [0], [0], [1], [0, 0, 1, 1], [], []>} : vector<8x8xf32>, vector<8x64xf32>, vector<8x64xf32> -> vector<8x64xf32>
    %cst_63 = arith.constant dense<0.000000e+00> : vector<8x64xf32>
    %56 = tpu.matmul %55, %51, %cst_63 {dimension_numbers = #tpu.dot_dimension_numbers<[1], [0], [0], [1], [0, 0, 1, 1], [], []>} : vector<8x64xf32>, vector<64x64xf32>, vector<8x64xf32> -> vector<8x64xf32>
    %cst_64 = arith.constant dense<0.000000e+00> : vector<8x64xf32>
    %57 = tpu.matmul %48, %52, %cst_64 {dimension_numbers = #tpu.dot_dimension_numbers<[1], [0], [0], [1], [0, 0, 1, 1], [], []>} : vector<8x64xf32>, vector<64x64xf32>, vector<8x64xf32> -> vector<8x64xf32>
    %58 = arith.addf %56, %57 : vector<8x64xf32>
    %cst_65 = arith.constant dense<0.000000e+00> : vector<8x64xf32>
    %59 = tpu.matmul %50, %48, %cst_65 {dimension_numbers = #tpu.dot_dimension_numbers<[1], [0], [0], [1], [0, 0, 1, 1], [], []>} : vector<8x8xf32>, vector<8x64xf32>, vector<8x64xf32> -> vector<8x64xf32>
    %cst_66 = arith.constant dense<0.000000e+00> : vector<8x64xf32>
    %60 = tpu.matmul %59, %53, %cst_66 {dimension_numbers = #tpu.dot_dimension_numbers<[1], [0], [0], [1], [0, 0, 1, 1], [], []>} : vector<8x64xf32>, vector<64x64xf32>, vector<8x64xf32> -> vector<8x64xf32>
    %61 = arith.addf %58, %60 : vector<8x64xf32>
    %62 = vector.broadcast %54 : vector<1x64xf32> to vector<8x64xf32>
    %63 = arith.addf %61, %62 : vector<8x64xf32>
    %cst_67 = arith.constant 0.000000e+00 : f32
    %64 = vector.broadcast %cst_67 : f32 to vector<8x64xf32>
    %65 = arith.maximumf %63, %64 : vector<8x64xf32>
    %c0_68 = arith.constant 0 : index
    %c0_69 = arith.constant 0 : index
    %66 = vector.load %arg23[%c0_68, %c0_69] : memref<64x64xf32, #tpu.memory_space<vmem>>, vector<64x64xf32>
    %c0_70 = arith.constant 0 : index
    %c0_71 = arith.constant 0 : index
    %67 = vector.load %arg24[%c0_70, %c0_71] : memref<64x64xf32, #tpu.memory_space<vmem>>, vector<64x64xf32>
    %c0_72 = arith.constant 0 : index
    %c0_73 = arith.constant 0 : index
    %68 = vector.load %arg25[%c0_72, %c0_73] : memref<64x64xf32, #tpu.memory_space<vmem>>, vector<64x64xf32>
    %c0_74 = arith.constant 0 : index
    %c0_75 = arith.constant 0 : index
    %69 = vector.load %arg26[%c0_74, %c0_75] : memref<1x64xf32, #tpu.memory_space<vmem>>, vector<1x64xf32>
    %cst_76 = arith.constant dense<0.000000e+00> : vector<8x64xf32>
    %70 = tpu.matmul %49, %65, %cst_76 {dimension_numbers = #tpu.dot_dimension_numbers<[1], [0], [0], [1], [0, 0, 1, 1], [], []>} : vector<8x8xf32>, vector<8x64xf32>, vector<8x64xf32> -> vector<8x64xf32>
    %cst_77 = arith.constant dense<0.000000e+00> : vector<8x64xf32>
    %71 = tpu.matmul %70, %66, %cst_77 {dimension_numbers = #tpu.dot_dimension_numbers<[1], [0], [0], [1], [0, 0, 1, 1], [], []>} : vector<8x64xf32>, vector<64x64xf32>, vector<8x64xf32> -> vector<8x64xf32>
    %cst_78 = arith.constant dense<0.000000e+00> : vector<8x64xf32>
    %72 = tpu.matmul %65, %67, %cst_78 {dimension_numbers = #tpu.dot_dimension_numbers<[1], [0], [0], [1], [0, 0, 1, 1], [], []>} : vector<8x64xf32>, vector<64x64xf32>, vector<8x64xf32> -> vector<8x64xf32>
    %73 = arith.addf %71, %72 : vector<8x64xf32>
    %cst_79 = arith.constant dense<0.000000e+00> : vector<8x64xf32>
    %74 = tpu.matmul %50, %65, %cst_79 {dimension_numbers = #tpu.dot_dimension_numbers<[1], [0], [0], [1], [0, 0, 1, 1], [], []>} : vector<8x8xf32>, vector<8x64xf32>, vector<8x64xf32> -> vector<8x64xf32>
    %cst_80 = arith.constant dense<0.000000e+00> : vector<8x64xf32>
    %75 = tpu.matmul %74, %68, %cst_80 {dimension_numbers = #tpu.dot_dimension_numbers<[1], [0], [0], [1], [0, 0, 1, 1], [], []>} : vector<8x64xf32>, vector<64x64xf32>, vector<8x64xf32> -> vector<8x64xf32>
    %76 = arith.addf %73, %75 : vector<8x64xf32>
    %77 = vector.broadcast %69 : vector<1x64xf32> to vector<8x64xf32>
    %78 = arith.addf %76, %77 : vector<8x64xf32>
    %cst_81 = arith.constant 0.000000e+00 : f32
    %79 = vector.broadcast %cst_81 : f32 to vector<8x64xf32>
    %80 = arith.maximumf %78, %79 : vector<8x64xf32>
    %c0_82 = arith.constant 0 : index
    %c0_83 = arith.constant 0 : index
    %c0_84 = arith.constant 0 : index
    %81 = vector.load %arg58[%c0_82, %c0_83, %c0_84] : memref<1x8x64xf32, #tpu.memory_space<vmem>>, vector<1x8x64xf32>
    %82 = vector.shape_cast %81 : vector<1x8x64xf32> to vector<8x64xf32>
    %83 = vector.shape_cast %80 : vector<8x64xf32> to vector<1x8x64xf32>
    tpu.vector_store %arg58[%c0_82, %c0_83, %c0_84], %83 {strides = array<i32>} : memref<1x8x64xf32, #tpu.memory_space<vmem>>, vector<1x8x64xf32>,
    %c0_85 = arith.constant 0 : index
    %c0_86 = arith.constant 0 : index
    %84 = vector.load %arg27[%c0_85, %c0_86] : memref<4x8xf32, #tpu.memory_space<vmem>>, vector<4x8xf32>
    %c0_87 = arith.constant 0 : index
    %c0_88 = arith.constant 0 : index
    %85 = vector.load %arg28[%c0_87, %c0_88] : memref<4x8xf32, #tpu.memory_space<vmem>>, vector<4x8xf32>
    %c0_89 = arith.constant 0 : index
    %c0_90 = arith.constant 0 : index
    %86 = vector.load %arg29[%c0_89, %c0_90] : memref<64x64xf32, #tpu.memory_space<vmem>>, vector<64x64xf32>
    %c0_91 = arith.constant 0 : index
    %c0_92 = arith.constant 0 : index
    %87 = vector.load %arg30[%c0_91, %c0_92] : memref<64x64xf32, #tpu.memory_space<vmem>>, vector<64x64xf32>
    %c0_93 = arith.constant 0 : index
    %c0_94 = arith.constant 0 : index
    %88 = vector.load %arg31[%c0_93, %c0_94] : memref<1x64xf32, #tpu.memory_space<vmem>>, vector<1x64xf32>
    %cst_95 = arith.constant dense<0.000000e+00> : vector<4x64xf32>
    %89 = tpu.matmul %84, %80, %cst_95 {dimension_numbers = #tpu.dot_dimension_numbers<[1], [0], [0], [1], [0, 0, 1, 1], [], []>} : vector<4x8xf32>, vector<8x64xf32>, vector<4x64xf32> -> vector<4x64xf32>
    %cst_96 = arith.constant dense<0.000000e+00> : vector<4x64xf32>
    %90 = tpu.matmul %89, %86, %cst_96 {dimension_numbers = #tpu.dot_dimension_numbers<[1], [0], [0], [1], [0, 0, 1, 1], [], []>} : vector<4x64xf32>, vector<64x64xf32>, vector<4x64xf32> -> vector<4x64xf32>
    %cst_97 = arith.constant dense<0.000000e+00> : vector<4x64xf32>
    %91 = tpu.matmul %85, %80, %cst_97 {dimension_numbers = #tpu.dot_dimension_numbers<[1], [0], [0], [1], [0, 0, 1, 1], [], []>} : vector<4x8xf32>, vector<8x64xf32>, vector<4x64xf32> -> vector<4x64xf32>
    %cst_98 = arith.constant dense<0.000000e+00> : vector<4x64xf32>
    %92 = tpu.matmul %91, %87, %cst_98 {dimension_numbers = #tpu.dot_dimension_numbers<[1], [0], [0], [1], [0, 0, 1, 1], [], []>} : vector<4x64xf32>, vector<64x64xf32>, vector<4x64xf32> -> vector<4x64xf32>
    %93 = arith.addf %90, %92 : vector<4x64xf32>
    %94 = vector.broadcast %88 : vector<1x64xf32> to vector<4x64xf32>
    %95 = arith.addf %93, %94 : vector<4x64xf32>
    %c0_99 = arith.constant 0 : index
    %c0_100 = arith.constant 0 : index
    %96 = vector.load %arg32[%c0_99, %c0_100] : memref<4x4xf32, #tpu.memory_space<vmem>>, vector<4x4xf32>
    %c0_101 = arith.constant 0 : index
    %c0_102 = arith.constant 0 : index
    %97 = vector.load %arg33[%c0_101, %c0_102] : memref<4x4xf32, #tpu.memory_space<vmem>>, vector<4x4xf32>
    %c0_103 = arith.constant 0 : index
    %c0_104 = arith.constant 0 : index
    %98 = vector.load %arg34[%c0_103, %c0_104] : memref<64x64xf32, #tpu.memory_space<vmem>>, vector<64x64xf32>
    %c0_105 = arith.constant 0 : index
    %c0_106 = arith.constant 0 : index
    %99 = vector.load %arg35[%c0_105, %c0_106] : memref<64x64xf32, #tpu.memory_space<vmem>>, vector<64x64xf32>
    %c0_107 = arith.constant 0 : index
    %c0_108 = arith.constant 0 : index
    %100 = vector.load %arg36[%c0_107, %c0_108] : memref<64x64xf32, #tpu.memory_space<vmem>>, vector<64x64xf32>
    %c0_109 = arith.constant 0 : index
    %c0_110 = arith.constant 0 : index
    %101 = vector.load %arg37[%c0_109, %c0_110] : memref<1x64xf32, #tpu.memory_space<vmem>>, vector<1x64xf32>
    %cst_111 = arith.constant dense<0.000000e+00> : vector<4x64xf32>
    %102 = tpu.matmul %96, %95, %cst_111 {dimension_numbers = #tpu.dot_dimension_numbers<[1], [0], [0], [1], [0, 0, 1, 1], [], []>} : vector<4x4xf32>, vector<4x64xf32>, vector<4x64xf32> -> vector<4x64xf32>
    %cst_112 = arith.constant dense<0.000000e+00> : vector<4x64xf32>
    %103 = tpu.matmul %102, %98, %cst_112 {dimension_numbers = #tpu.dot_dimension_numbers<[1], [0], [0], [1], [0, 0, 1, 1], [], []>} : vector<4x64xf32>, vector<64x64xf32>, vector<4x64xf32> -> vector<4x64xf32>
    %cst_113 = arith.constant dense<0.000000e+00> : vector<4x64xf32>
    %104 = tpu.matmul %95, %99, %cst_113 {dimension_numbers = #tpu.dot_dimension_numbers<[1], [0], [0], [1], [0, 0, 1, 1], [], []>} : vector<4x64xf32>, vector<64x64xf32>, vector<4x64xf32> -> vector<4x64xf32>
    %105 = arith.addf %103, %104 : vector<4x64xf32>
    %cst_114 = arith.constant dense<0.000000e+00> : vector<4x64xf32>
    %106 = tpu.matmul %97, %95, %cst_114 {dimension_numbers = #tpu.dot_dimension_numbers<[1], [0], [0], [1], [0, 0, 1, 1], [], []>} : vector<4x4xf32>, vector<4x64xf32>, vector<4x64xf32> -> vector<4x64xf32>
    %cst_115 = arith.constant dense<0.000000e+00> : vector<4x64xf32>
    %107 = tpu.matmul %106, %100, %cst_115 {dimension_numbers = #tpu.dot_dimension_numbers<[1], [0], [0], [1], [0, 0, 1, 1], [], []>} : vector<4x64xf32>, vector<64x64xf32>, vector<4x64xf32> -> vector<4x64xf32>
    %108 = arith.addf %105, %107 : vector<4x64xf32>
    %109 = vector.broadcast %101 : vector<1x64xf32> to vector<4x64xf32>
    %110 = arith.addf %108, %109 : vector<4x64xf32>
    %cst_116 = arith.constant 0.000000e+00 : f32
    %111 = vector.broadcast %cst_116 : f32 to vector<4x64xf32>
    %112 = arith.maximumf %110, %111 : vector<4x64xf32>
    %c0_117 = arith.constant 0 : index
    %c0_118 = arith.constant 0 : index
    %113 = vector.load %arg38[%c0_117, %c0_118] : memref<64x64xf32, #tpu.memory_space<vmem>>, vector<64x64xf32>
    %c0_119 = arith.constant 0 : index
    %c0_120 = arith.constant 0 : index
    %114 = vector.load %arg39[%c0_119, %c0_120] : memref<64x64xf32, #tpu.memory_space<vmem>>, vector<64x64xf32>
    %c0_121 = arith.constant 0 : index
    %c0_122 = arith.constant 0 : index
    %115 = vector.load %arg40[%c0_121, %c0_122] : memref<64x64xf32, #tpu.memory_space<vmem>>, vector<64x64xf32>
    %c0_123 = arith.constant 0 : index
    %c0_124 = arith.constant 0 : index
    %116 = vector.load %arg41[%c0_123, %c0_124] : memref<1x64xf32, #tpu.memory_space<vmem>>, vector<1x64xf32>
    %cst_125 = arith.constant dense<0.000000e+00> : vector<4x64xf32>
    %117 = tpu.matmul %96, %112, %cst_125 {dimension_numbers = #tpu.dot_dimension_numbers<[1], [0], [0], [1], [0, 0, 1, 1], [], []>} : vector<4x4xf32>, vector<4x64xf32>, vector<4x64xf32> -> vector<4x64xf32>
    %cst_126 = arith.constant dense<0.000000e+00> : vector<4x64xf32>
    %118 = tpu.matmul %117, %113, %cst_126 {dimension_numbers = #tpu.dot_dimension_numbers<[1], [0], [0], [1], [0, 0, 1, 1], [], []>} : vector<4x64xf32>, vector<64x64xf32>, vector<4x64xf32> -> vector<4x64xf32>
    %cst_127 = arith.constant dense<0.000000e+00> : vector<4x64xf32>
    %119 = tpu.matmul %112, %114, %cst_127 {dimension_numbers = #tpu.dot_dimension_numbers<[1], [0], [0], [1], [0, 0, 1, 1], [], []>} : vector<4x64xf32>, vector<64x64xf32>, vector<4x64xf32> -> vector<4x64xf32>
    %120 = arith.addf %118, %119 : vector<4x64xf32>
    %cst_128 = arith.constant dense<0.000000e+00> : vector<4x64xf32>
    %121 = tpu.matmul %97, %112, %cst_128 {dimension_numbers = #tpu.dot_dimension_numbers<[1], [0], [0], [1], [0, 0, 1, 1], [], []>} : vector<4x4xf32>, vector<4x64xf32>, vector<4x64xf32> -> vector<4x64xf32>
    %cst_129 = arith.constant dense<0.000000e+00> : vector<4x64xf32>
    %122 = tpu.matmul %121, %115, %cst_129 {dimension_numbers = #tpu.dot_dimension_numbers<[1], [0], [0], [1], [0, 0, 1, 1], [], []>} : vector<4x64xf32>, vector<64x64xf32>, vector<4x64xf32> -> vector<4x64xf32>
    %123 = arith.addf %120, %122 : vector<4x64xf32>
    %124 = vector.broadcast %116 : vector<1x64xf32> to vector<4x64xf32>
    %125 = arith.addf %123, %124 : vector<4x64xf32>
    %cst_130 = arith.constant 0.000000e+00 : f32
    %126 = vector.broadcast %cst_130 : f32 to vector<4x64xf32>
    %127 = arith.maximumf %125, %126 : vector<4x64xf32>
    %c0_131 = arith.constant 0 : index
    %c0_132 = arith.constant 0 : index
    %c0_133 = arith.constant 0 : index
    %128 = vector.load %arg59[%c0_131, %c0_132, %c0_133] : memref<1x4x64xf32, #tpu.memory_space<vmem>>, vector<1x4x64xf32>
    %129 = vector.shape_cast %128 : vector<1x4x64xf32> to vector<4x64xf32>
    %130 = vector.shape_cast %127 : vector<4x64xf32> to vector<1x4x64xf32>
    tpu.vector_store %arg59[%c0_131, %c0_132, %c0_133], %130 {strides = array<i32>} : memref<1x4x64xf32, #tpu.memory_space<vmem>>, vector<1x4x64xf32>,
    %c0_134 = arith.constant 0 : index
    %c0_135 = arith.constant 0 : index
    %131 = vector.load %arg42[%c0_134, %c0_135] : memref<2x4xf32, #tpu.memory_space<vmem>>, vector<2x4xf32>
    %c0_136 = arith.constant 0 : index
    %c0_137 = arith.constant 0 : index
    %132 = vector.load %arg43[%c0_136, %c0_137] : memref<2x4xf32, #tpu.memory_space<vmem>>, vector<2x4xf32>
    %c0_138 = arith.constant 0 : index
    %c0_139 = arith.constant 0 : index
    %133 = vector.load %arg44[%c0_138, %c0_139] : memref<64x64xf32, #tpu.memory_space<vmem>>, vector<64x64xf32>
    %c0_140 = arith.constant 0 : index
    %c0_141 = arith.constant 0 : index
    %134 = vector.load %arg45[%c0_140, %c0_141] : memref<64x64xf32, #tpu.memory_space<vmem>>, vector<64x64xf32>
    %c0_142 = arith.constant 0 : index
    %c0_143 = arith.constant 0 : index
    %135 = vector.load %arg46[%c0_142, %c0_143] : memref<1x64xf32, #tpu.memory_space<vmem>>, vector<1x64xf32>
    %cst_144 = arith.constant dense<0.000000e+00> : vector<2x64xf32>
    %136 = tpu.matmul %131, %127, %cst_144 {dimension_numbers = #tpu.dot_dimension_numbers<[1], [0], [0], [1], [0, 0, 1, 1], [], []>} : vector<2x4xf32>, vector<4x64xf32>, vector<2x64xf32> -> vector<2x64xf32>
    %cst_145 = arith.constant dense<0.000000e+00> : vector<2x64xf32>
    %137 = tpu.matmul %136, %133, %cst_145 {dimension_numbers = #tpu.dot_dimension_numbers<[1], [0], [0], [1], [0, 0, 1, 1], [], []>} : vector<2x64xf32>, vector<64x64xf32>, vector<2x64xf32> -> vector<2x64xf32>
    %cst_146 = arith.constant dense<0.000000e+00> : vector<2x64xf32>
    %138 = tpu.matmul %132, %127, %cst_146 {dimension_numbers = #tpu.dot_dimension_numbers<[1], [0], [0], [1], [0, 0, 1, 1], [], []>} : vector<2x4xf32>, vector<4x64xf32>, vector<2x64xf32> -> vector<2x64xf32>
    %cst_147 = arith.constant dense<0.000000e+00> : vector<2x64xf32>
    %139 = tpu.matmul %138, %134, %cst_147 {dimension_numbers = #tpu.dot_dimension_numbers<[1], [0], [0], [1], [0, 0, 1, 1], [], []>} : vector<2x64xf32>, vector<64x64xf32>, vector<2x64xf32> -> vector<2x64xf32>
    %140 = arith.addf %137, %139 : vector<2x64xf32>
    %141 = vector.broadcast %135 : vector<1x64xf32> to vector<2x64xf32>
    %142 = arith.addf %140, %141 : vector<2x64xf32>
    %c0_148 = arith.constant 0 : index
    %c0_149 = arith.constant 0 : index
    %143 = vector.load %arg47[%c0_148, %c0_149] : memref<2x2xf32, #tpu.memory_space<vmem>>, vector<2x2xf32>
    %c0_150 = arith.constant 0 : index
    %c0_151 = arith.constant 0 : index
    %144 = vector.load %arg48[%c0_150, %c0_151] : memref<2x2xf32, #tpu.memory_space<vmem>>, vector<2x2xf32>
    %c0_152 = arith.constant 0 : index
    %c0_153 = arith.constant 0 : index
    %145 = vector.load %arg49[%c0_152, %c0_153] : memref<64x64xf32, #tpu.memory_space<vmem>>, vector<64x64xf32>
    %c0_154 = arith.constant 0 : index
    %c0_155 = arith.constant 0 : index
    %146 = vector.load %arg50[%c0_154, %c0_155] : memref<64x64xf32, #tpu.memory_space<vmem>>, vector<64x64xf32>
    %c0_156 = arith.constant 0 : index
    %c0_157 = arith.constant 0 : index
    %147 = vector.load %arg51[%c0_156, %c0_157] : memref<64x64xf32, #tpu.memory_space<vmem>>, vector<64x64xf32>
    %c0_158 = arith.constant 0 : index
    %c0_159 = arith.constant 0 : index
    %148 = vector.load %arg52[%c0_158, %c0_159] : memref<1x64xf32, #tpu.memory_space<vmem>>, vector<1x64xf32>
    %cst_160 = arith.constant dense<0.000000e+00> : vector<2x64xf32>
    %149 = tpu.matmul %143, %142, %cst_160 {dimension_numbers = #tpu.dot_dimension_numbers<[1], [0], [0], [1], [0, 0, 1, 1], [], []>} : vector<2x2xf32>, vector<2x64xf32>, vector<2x64xf32> -> vector<2x64xf32>
    %cst_161 = arith.constant dense<0.000000e+00> : vector<2x64xf32>
    %150 = tpu.matmul %149, %145, %cst_161 {dimension_numbers = #tpu.dot_dimension_numbers<[1], [0], [0], [1], [0, 0, 1, 1], [], []>} : vector<2x64xf32>, vector<64x64xf32>, vector<2x64xf32> -> vector<2x64xf32>
    %cst_162 = arith.constant dense<0.000000e+00> : vector<2x64xf32>
    %151 = tpu.matmul %142, %146, %cst_162 {dimension_numbers = #tpu.dot_dimension_numbers<[1], [0], [0], [1], [0, 0, 1, 1], [], []>} : vector<2x64xf32>, vector<64x64xf32>, vector<2x64xf32> -> vector<2x64xf32>
    %152 = arith.addf %150, %151 : vector<2x64xf32>
    %cst_163 = arith.constant dense<0.000000e+00> : vector<2x64xf32>
    %153 = tpu.matmul %144, %142, %cst_163 {dimension_numbers = #tpu.dot_dimension_numbers<[1], [0], [0], [1], [0, 0, 1, 1], [], []>} : vector<2x2xf32>, vector<2x64xf32>, vector<2x64xf32> -> vector<2x64xf32>
    %cst_164 = arith.constant dense<0.000000e+00> : vector<2x64xf32>
    %154 = tpu.matmul %153, %147, %cst_164 {dimension_numbers = #tpu.dot_dimension_numbers<[1], [0], [0], [1], [0, 0, 1, 1], [], []>} : vector<2x64xf32>, vector<64x64xf32>, vector<2x64xf32> -> vector<2x64xf32>
    %155 = arith.addf %152, %154 : vector<2x64xf32>
    %156 = vector.broadcast %148 : vector<1x64xf32> to vector<2x64xf32>
    %157 = arith.addf %155, %156 : vector<2x64xf32>
    %cst_165 = arith.constant 0.000000e+00 : f32
    %158 = vector.broadcast %cst_165 : f32 to vector<2x64xf32>
    %159 = arith.maximumf %157, %158 : vector<2x64xf32>
    %c0_166 = arith.constant 0 : index
    %c0_167 = arith.constant 0 : index
    %160 = vector.load %arg53[%c0_166, %c0_167] : memref<64x64xf32, #tpu.memory_space<vmem>>, vector<64x64xf32>
    %c0_168 = arith.constant 0 : index
    %c0_169 = arith.constant 0 : index
    %161 = vector.load %arg54[%c0_168, %c0_169] : memref<64x64xf32, #tpu.memory_space<vmem>>, vector<64x64xf32>
    %c0_170 = arith.constant 0 : index
    %c0_171 = arith.constant 0 : index
    %162 = vector.load %arg55[%c0_170, %c0_171] : memref<64x64xf32, #tpu.memory_space<vmem>>, vector<64x64xf32>
    %c0_172 = arith.constant 0 : index
    %c0_173 = arith.constant 0 : index
    %163 = vector.load %arg56[%c0_172, %c0_173] : memref<1x64xf32, #tpu.memory_space<vmem>>, vector<1x64xf32>
    %cst_174 = arith.constant dense<0.000000e+00> : vector<2x64xf32>
    %164 = tpu.matmul %143, %159, %cst_174 {dimension_numbers = #tpu.dot_dimension_numbers<[1], [0], [0], [1], [0, 0, 1, 1], [], []>} : vector<2x2xf32>, vector<2x64xf32>, vector<2x64xf32> -> vector<2x64xf32>
    %cst_175 = arith.constant dense<0.000000e+00> : vector<2x64xf32>
    %165 = tpu.matmul %164, %160, %cst_175 {dimension_numbers = #tpu.dot_dimension_numbers<[1], [0], [0], [1], [0, 0, 1, 1], [], []>} : vector<2x64xf32>, vector<64x64xf32>, vector<2x64xf32> -> vector<2x64xf32>
    %cst_176 = arith.constant dense<0.000000e+00> : vector<2x64xf32>
    %166 = tpu.matmul %159, %161, %cst_176 {dimension_numbers = #tpu.dot_dimension_numbers<[1], [0], [0], [1], [0, 0, 1, 1], [], []>} : vector<2x64xf32>, vector<64x64xf32>, vector<2x64xf32> -> vector<2x64xf32>
    %167 = arith.addf %165, %166 : vector<2x64xf32>
    %cst_177 = arith.constant dense<0.000000e+00> : vector<2x64xf32>
    %168 = tpu.matmul %144, %159, %cst_177 {dimension_numbers = #tpu.dot_dimension_numbers<[1], [0], [0], [1], [0, 0, 1, 1], [], []>} : vector<2x2xf32>, vector<2x64xf32>, vector<2x64xf32> -> vector<2x64xf32>
    %cst_178 = arith.constant dense<0.000000e+00> : vector<2x64xf32>
    %169 = tpu.matmul %168, %162, %cst_178 {dimension_numbers = #tpu.dot_dimension_numbers<[1], [0], [0], [1], [0, 0, 1, 1], [], []>} : vector<2x64xf32>, vector<64x64xf32>, vector<2x64xf32> -> vector<2x64xf32>
    %170 = arith.addf %167, %169 : vector<2x64xf32>
    %171 = vector.broadcast %163 : vector<1x64xf32> to vector<2x64xf32>
    %172 = arith.addf %170, %171 : vector<2x64xf32>
    %cst_179 = arith.constant 0.000000e+00 : f32
    %173 = vector.broadcast %cst_179 : f32 to vector<2x64xf32>
    %174 = arith.maximumf %172, %173 : vector<2x64xf32>
    %c0_180 = arith.constant 0 : index
    %c0_181 = arith.constant 0 : index
    %c0_182 = arith.constant 0 : index
    %175 = vector.load %arg60[%c0_180, %c0_181, %c0_182] : memref<1x2x64xf32, #tpu.memory_space<vmem>>, vector<1x2x64xf32>
    %176 = vector.shape_cast %175 : vector<1x2x64xf32> to vector<2x64xf32>
    %177 = vector.shape_cast %174 : vector<2x64xf32> to vector<1x2x64xf32>
    tpu.vector_store %arg60[%c0_180, %c0_181, %c0_182], %177 {strides = array<i32>} : memref<1x2x64xf32, #tpu.memory_space<vmem>>, vector<1x2x64xf32>,
    return
  }
  func.func @transform_0(%arg0: i32) -> (i32, i32, i32) {
    %c0_i32 = arith.constant 0 : i32
    %c0_i32_0 = arith.constant 0 : i32
    %c0_i32_1 = arith.constant 0 : i32
    return %arg0, %c0_i32, %c0_i32_0 : i32, i32, i32
  }
  func.func @transform_1(%arg0: i32) -> (i32, i32) {
    %c0_i32 = arith.constant 0 : i32
    %c0_i32_0 = arith.constant 0 : i32
    %c0_i32_1 = arith.constant 0 : i32
    return %c0_i32, %c0_i32_0 : i32, i32
  }
  func.func @transform_2(%arg0: i32) -> (i32, i32) {
    %c0_i32 = arith.constant 0 : i32
    %c0_i32_0 = arith.constant 0 : i32
    %c0_i32_1 = arith.constant 0 : i32
    return %c0_i32, %c0_i32_0 : i32, i32
  }
  func.func @transform_3(%arg0: i32) -> (i32, i32) {
    %c0_i32 = arith.constant 0 : i32
    %c0_i32_0 = arith.constant 0 : i32
    %c0_i32_1 = arith.constant 0 : i32
    return %c0_i32, %c0_i32_0 : i32, i32
  }
  func.func @transform_4(%arg0: i32) -> (i32, i32) {
    %c0_i32 = arith.constant 0 : i32
    %c0_i32_0 = arith.constant 0 : i32
    %c0_i32_1 = arith.constant 0 : i32
    return %c0_i32, %c0_i32_0 : i32, i32
  }
  func.func @transform_5(%arg0: i32) -> (i32, i32) {
    %c0_i32 = arith.constant 0 : i32
    %c0_i32_0 = arith.constant 0 : i32
    %c0_i32_1 = arith.constant 0 : i32
    return %c0_i32, %c0_i32_0 : i32, i32
  }
  func.func @transform_6(%arg0: i32) -> (i32, i32) {
    %c0_i32 = arith.constant 0 : i32
    %c0_i32_0 = arith.constant 0 : i32
    %c0_i32_1 = arith.constant 0 : i32
    return %c0_i32, %c0_i32_0 : i32, i32
  }
  func.func @transform_7(%arg0: i32) -> (i32, i32) {
    %c0_i32 = arith.constant 0 : i32
    %c0_i32_0 = arith.constant 0 : i32
    %c0_i32_1 = arith.constant 0 : i32
    return %c0_i32, %c0_i32_0 : i32, i32
  }
  func.func @transform_8(%arg0: i32) -> (i32, i32) {
    %c0_i32 = arith.constant 0 : i32
    %c0_i32_0 = arith.constant 0 : i32
    %c0_i32_1 = arith.constant 0 : i32
    return %c0_i32, %c0_i32_0 : i32, i32
  }
  func.func @transform_9(%arg0: i32) -> (i32, i32) {
    %c0_i32 = arith.constant 0 : i32
    %c0_i32_0 = arith.constant 0 : i32
    %c0_i32_1 = arith.constant 0 : i32
    return %c0_i32, %c0_i32_0 : i32, i32
  }
  func.func @transform_10(%arg0: i32) -> (i32, i32) {
    %c0_i32 = arith.constant 0 : i32
    %c0_i32_0 = arith.constant 0 : i32
    %c0_i32_1 = arith.constant 0 : i32
    return %c0_i32, %c0_i32_0 : i32, i32
  }
  func.func @transform_11(%arg0: i32) -> (i32, i32) {
    %c0_i32 = arith.constant 0 : i32
    %c0_i32_0 = arith.constant 0 : i32
    %c0_i32_1 = arith.constant 0 : i32
    return %c0_i32, %c0_i32_0 : i32, i32
  }
  func.func @transform_12(%arg0: i32) -> (i32, i32) {
    %c0_i32 = arith.constant 0 : i32
    %c0_i32_0 = arith.constant 0 : i32
    %c0_i32_1 = arith.constant 0 : i32
    return %c0_i32, %c0_i32_0 : i32, i32
  }
  func.func @transform_13(%arg0: i32) -> (i32, i32) {
    %c0_i32 = arith.constant 0 : i32
    %c0_i32_0 = arith.constant 0 : i32
    %c0_i32_1 = arith.constant 0 : i32
    return %c0_i32, %c0_i32_0 : i32, i32
  }
  func.func @transform_14(%arg0: i32) -> (i32, i32) {
    %c0_i32 = arith.constant 0 : i32
    %c0_i32_0 = arith.constant 0 : i32
    %c0_i32_1 = arith.constant 0 : i32
    return %c0_i32, %c0_i32_0 : i32, i32
  }
  func.func @transform_15(%arg0: i32) -> (i32, i32) {
    %c0_i32 = arith.constant 0 : i32
    %c0_i32_0 = arith.constant 0 : i32
    %c0_i32_1 = arith.constant 0 : i32
    return %c0_i32, %c0_i32_0 : i32, i32
  }
  func.func @transform_16(%arg0: i32) -> (i32, i32) {
    %c0_i32 = arith.constant 0 : i32
    %c0_i32_0 = arith.constant 0 : i32
    %c0_i32_1 = arith.constant 0 : i32
    return %c0_i32, %c0_i32_0 : i32, i32
  }
  func.func @transform_17(%arg0: i32) -> (i32, i32) {
    %c0_i32 = arith.constant 0 : i32
    %c0_i32_0 = arith.constant 0 : i32
    %c0_i32_1 = arith.constant 0 : i32
    return %c0_i32, %c0_i32_0 : i32, i32
  }
  func.func @transform_18(%arg0: i32) -> (i32, i32) {
    %c0_i32 = arith.constant 0 : i32
    %c0_i32_0 = arith.constant 0 : i32
    %c0_i32_1 = arith.constant 0 : i32
    return %c0_i32, %c0_i32_0 : i32, i32
  }
  func.func @transform_19(%arg0: i32) -> (i32, i32) {
    %c0_i32 = arith.constant 0 : i32
    %c0_i32_0 = arith.constant 0 : i32
    %c0_i32_1 = arith.constant 0 : i32
    return %c0_i32, %c0_i32_0 : i32, i32
  }
  func.func @transform_20(%arg0: i32) -> (i32, i32) {
    %c0_i32 = arith.constant 0 : i32
    %c0_i32_0 = arith.constant 0 : i32
    %c0_i32_1 = arith.constant 0 : i32
    return %c0_i32, %c0_i32_0 : i32, i32
  }
  func.func @transform_21(%arg0: i32) -> (i32, i32) {
    %c0_i32 = arith.constant 0 : i32
    %c0_i32_0 = arith.constant 0 : i32
    %c0_i32_1 = arith.constant 0 : i32
    return %c0_i32, %c0_i32_0 : i32, i32
  }
  func.func @transform_22(%arg0: i32) -> (i32, i32) {
    %c0_i32 = arith.constant 0 : i32
    %c0_i32_0 = arith.constant 0 : i32
    %c0_i32_1 = arith.constant 0 : i32
    return %c0_i32, %c0_i32_0 : i32, i32
  }
  func.func @transform_23(%arg0: i32) -> (i32, i32) {
    %c0_i32 = arith.constant 0 : i32
    %c0_i32_0 = arith.constant 0 : i32
    %c0_i32_1 = arith.constant 0 : i32
    return %c0_i32, %c0_i32_0 : i32, i32
  }
  func.func @transform_24(%arg0: i32) -> (i32, i32) {
    %c0_i32 = arith.constant 0 : i32
    %c0_i32_0 = arith.constant 0 : i32
    %c0_i32_1 = arith.constant 0 : i32
    return %c0_i32, %c0_i32_0 : i32, i32
  }
  func.func @transform_25(%arg0: i32) -> (i32, i32) {
    %c0_i32 = arith.constant 0 : i32
    %c0_i32_0 = arith.constant 0 : i32
    %c0_i32_1 = arith.constant 0 : i32
    return %c0_i32, %c0_i32_0 : i32, i32
  }
  func.func @transform_26(%arg0: i32) -> (i32, i32) {
    %c0_i32 = arith.constant 0 : i32
    %c0_i32_0 = arith.constant 0 : i32
    %c0_i32_1 = arith.constant 0 : i32
    return %c0_i32, %c0_i32_0 : i32, i32
  }
  func.func @transform_27(%arg0: i32) -> (i32, i32) {
    %c0_i32 = arith.constant 0 : i32
    %c0_i32_0 = arith.constant 0 : i32
    %c0_i32_1 = arith.constant 0 : i32
    return %c0_i32, %c0_i32_0 : i32, i32
  }
  func.func @transform_28(%arg0: i32) -> (i32, i32) {
    %c0_i32 = arith.constant 0 : i32
    %c0_i32_0 = arith.constant 0 : i32
    %c0_i32_1 = arith.constant 0 : i32
    return %c0_i32, %c0_i32_0 : i32, i32
  }
  func.func @transform_29(%arg0: i32) -> (i32, i32) {
    %c0_i32 = arith.constant 0 : i32
    %c0_i32_0 = arith.constant 0 : i32
    %c0_i32_1 = arith.constant 0 : i32
    return %c0_i32, %c0_i32_0 : i32, i32
  }
  func.func @transform_30(%arg0: i32) -> (i32, i32) {
    %c0_i32 = arith.constant 0 : i32
    %c0_i32_0 = arith.constant 0 : i32
    %c0_i32_1 = arith.constant 0 : i32
    return %c0_i32, %c0_i32_0 : i32, i32
  }
  func.func @transform_31(%arg0: i32) -> (i32, i32) {
    %c0_i32 = arith.constant 0 : i32
    %c0_i32_0 = arith.constant 0 : i32
    %c0_i32_1 = arith.constant 0 : i32
    return %c0_i32, %c0_i32_0 : i32, i32
  }
  func.func @transform_32(%arg0: i32) -> (i32, i32) {
    %c0_i32 = arith.constant 0 : i32
    %c0_i32_0 = arith.constant 0 : i32
    %c0_i32_1 = arith.constant 0 : i32
    return %c0_i32, %c0_i32_0 : i32, i32
  }
  func.func @transform_33(%arg0: i32) -> (i32, i32) {
    %c0_i32 = arith.constant 0 : i32
    %c0_i32_0 = arith.constant 0 : i32
    %c0_i32_1 = arith.constant 0 : i32
    return %c0_i32, %c0_i32_0 : i32, i32
  }
  func.func @transform_34(%arg0: i32) -> (i32, i32) {
    %c0_i32 = arith.constant 0 : i32
    %c0_i32_0 = arith.constant 0 : i32
    %c0_i32_1 = arith.constant 0 : i32
    return %c0_i32, %c0_i32_0 : i32, i32
  }
  func.func @transform_35(%arg0: i32) -> (i32, i32) {
    %c0_i32 = arith.constant 0 : i32
    %c0_i32_0 = arith.constant 0 : i32
    %c0_i32_1 = arith.constant 0 : i32
    return %c0_i32, %c0_i32_0 : i32, i32
  }
  func.func @transform_36(%arg0: i32) -> (i32, i32) {
    %c0_i32 = arith.constant 0 : i32
    %c0_i32_0 = arith.constant 0 : i32
    %c0_i32_1 = arith.constant 0 : i32
    return %c0_i32, %c0_i32_0 : i32, i32
  }
  func.func @transform_37(%arg0: i32) -> (i32, i32) {
    %c0_i32 = arith.constant 0 : i32
    %c0_i32_0 = arith.constant 0 : i32
    %c0_i32_1 = arith.constant 0 : i32
    return %c0_i32, %c0_i32_0 : i32, i32
  }
  func.func @transform_38(%arg0: i32) -> (i32, i32) {
    %c0_i32 = arith.constant 0 : i32
    %c0_i32_0 = arith.constant 0 : i32
    %c0_i32_1 = arith.constant 0 : i32
    return %c0_i32, %c0_i32_0 : i32, i32
  }
  func.func @transform_39(%arg0: i32) -> (i32, i32) {
    %c0_i32 = arith.constant 0 : i32
    %c0_i32_0 = arith.constant 0 : i32
    %c0_i32_1 = arith.constant 0 : i32
    return %c0_i32, %c0_i32_0 : i32, i32
  }
  func.func @transform_40(%arg0: i32) -> (i32, i32) {
    %c0_i32 = arith.constant 0 : i32
    %c0_i32_0 = arith.constant 0 : i32
    %c0_i32_1 = arith.constant 0 : i32
    return %c0_i32, %c0_i32_0 : i32, i32
  }
  func.func @transform_41(%arg0: i32) -> (i32, i32) {
    %c0_i32 = arith.constant 0 : i32
    %c0_i32_0 = arith.constant 0 : i32
    %c0_i32_1 = arith.constant 0 : i32
    return %c0_i32, %c0_i32_0 : i32, i32
  }
  func.func @transform_42(%arg0: i32) -> (i32, i32) {
    %c0_i32 = arith.constant 0 : i32
    %c0_i32_0 = arith.constant 0 : i32
    %c0_i32_1 = arith.constant 0 : i32
    return %c0_i32, %c0_i32_0 : i32, i32
  }
  func.func @transform_43(%arg0: i32) -> (i32, i32) {
    %c0_i32 = arith.constant 0 : i32
    %c0_i32_0 = arith.constant 0 : i32
    %c0_i32_1 = arith.constant 0 : i32
    return %c0_i32, %c0_i32_0 : i32, i32
  }
  func.func @transform_44(%arg0: i32) -> (i32, i32) {
    %c0_i32 = arith.constant 0 : i32
    %c0_i32_0 = arith.constant 0 : i32
    %c0_i32_1 = arith.constant 0 : i32
    return %c0_i32, %c0_i32_0 : i32, i32
  }
  func.func @transform_45(%arg0: i32) -> (i32, i32) {
    %c0_i32 = arith.constant 0 : i32
    %c0_i32_0 = arith.constant 0 : i32
    %c0_i32_1 = arith.constant 0 : i32
    return %c0_i32, %c0_i32_0 : i32, i32
  }
  func.func @transform_46(%arg0: i32) -> (i32, i32) {
    %c0_i32 = arith.constant 0 : i32
    %c0_i32_0 = arith.constant 0 : i32
    %c0_i32_1 = arith.constant 0 : i32
    return %c0_i32, %c0_i32_0 : i32, i32
  }
  func.func @transform_47(%arg0: i32) -> (i32, i32) {
    %c0_i32 = arith.constant 0 : i32
    %c0_i32_0 = arith.constant 0 : i32
    %c0_i32_1 = arith.constant 0 : i32
    return %c0_i32, %c0_i32_0 : i32, i32
  }
  func.func @transform_48(%arg0: i32) -> (i32, i32) {
    %c0_i32 = arith.constant 0 : i32
    %c0_i32_0 = arith.constant 0 : i32
    %c0_i32_1 = arith.constant 0 : i32
    return %c0_i32, %c0_i32_0 : i32, i32
  }
  func.func @transform_49(%arg0: i32) -> (i32, i32) {
    %c0_i32 = arith.constant 0 : i32
    %c0_i32_0 = arith.constant 0 : i32
    %c0_i32_1 = arith.constant 0 : i32
    return %c0_i32, %c0_i32_0 : i32, i32
  }
  func.func @transform_50(%arg0: i32) -> (i32, i32) {
    %c0_i32 = arith.constant 0 : i32
    %c0_i32_0 = arith.constant 0 : i32
    %c0_i32_1 = arith.constant 0 : i32
    return %c0_i32, %c0_i32_0 : i32, i32
  }
  func.func @transform_51(%arg0: i32) -> (i32, i32) {
    %c0_i32 = arith.constant 0 : i32
    %c0_i32_0 = arith.constant 0 : i32
    %c0_i32_1 = arith.constant 0 : i32
    return %c0_i32, %c0_i32_0 : i32, i32
  }
  func.func @transform_52(%arg0: i32) -> (i32, i32) {
    %c0_i32 = arith.constant 0 : i32
    %c0_i32_0 = arith.constant 0 : i32
    %c0_i32_1 = arith.constant 0 : i32
    return %c0_i32, %c0_i32_0 : i32, i32
  }
  func.func @transform_53(%arg0: i32) -> (i32, i32) {
    %c0_i32 = arith.constant 0 : i32
    %c0_i32_0 = arith.constant 0 : i32
    %c0_i32_1 = arith.constant 0 : i32
    return %c0_i32, %c0_i32_0 : i32, i32
  }
  func.func @transform_54(%arg0: i32) -> (i32, i32) {
    %c0_i32 = arith.constant 0 : i32
    %c0_i32_0 = arith.constant 0 : i32
    %c0_i32_1 = arith.constant 0 : i32
    return %c0_i32, %c0_i32_0 : i32, i32
  }
  func.func @transform_55(%arg0: i32) -> (i32, i32) {
    %c0_i32 = arith.constant 0 : i32
    %c0_i32_0 = arith.constant 0 : i32
    %c0_i32_1 = arith.constant 0 : i32
    return %c0_i32, %c0_i32_0 : i32, i32
  }
  func.func @transform_56(%arg0: i32) -> (i32, i32, i32) {
    %c0_i32 = arith.constant 0 : i32
    %c0_i32_0 = arith.constant 0 : i32
    %c0_i32_1 = arith.constant 0 : i32
    return %arg0, %c0_i32, %c0_i32_0 : i32, i32, i32
  }
  func.func @transform_57(%arg0: i32) -> (i32, i32, i32) {
    %c0_i32 = arith.constant 0 : i32
    %c0_i32_0 = arith.constant 0 : i32
    %c0_i32_1 = arith.constant 0 : i32
    return %arg0, %c0_i32, %c0_i32_0 : i32, i32, i32
  }
  func.func @transform_58(%arg0: i32) -> (i32, i32, i32) {
    %c0_i32 = arith.constant 0 : i32
    %c0_i32_0 = arith.constant 0 : i32
    %c0_i32_1 = arith.constant 0 : i32
    return %arg0, %c0_i32, %c0_i32_0 : i32, i32, i32
  }
  func.func @transform_59(%arg0: i32) -> (i32, i32, i32) {
    %c0_i32 = arith.constant 0 : i32
    %c0_i32_0 = arith.constant 0 : i32
    %c0_i32_1 = arith.constant 0 : i32
    return %arg0, %c0_i32, %c0_i32_0 : i32, i32, i32
  }
}

</mosaic_0001>

<llo_original>
// kernel: tile.58
$region0: #{tile.58}
  #allocation0 [shape = 's32[1]{0}', space=sflag, size = 0x4, scoped, tag = 'scoped memory for tile.58']
  %s0 = inlined_call_operand.vmem [shape: f32[4], index: 0, kind: input, shape index: {}]
  %s1 = inlined_call_operand.vmem [shape: f32[16,4], index: 1, kind: output, shape index: {}]
  // Predicated region
  $region2: #{tile.58} parent=0 // pred_check
    _
  $region3: #{tile.58} parent=0 // pred_check_branch
    %3 = sbr.rel (0) target = $region5
  $region4: #{tile.58} parent=0 // pred_region
    _
  $region5: #{tile.58} parent=0 // pred_fallthru
    _
  %v4 = vld [vmem:[%s0] ss:$0 sm:$0xff]
  %5 = vst [vmem:[%s1] sm:$0xff] %v4
  %s6 = scalar_lea.vmem %s1, 8
  %7 = vst [vmem:[%s6] sm:$0xff] %v4

// kernel: tile.59
$region0: #{tile.59}
  %s0 = inlined_call_operand.vmem [shape: f32[16,4], index: 0, kind: input, shape index: {}]
  %s1 = inlined_call_operand.vmem [shape: f32[1,64], index: 1, kind: output, shape index: {}]
  $region1: #{tile.59} parent=0
    #allocation0 [shape = 'u8[4096]{0}', space=vmem, size = 0x1000, scoped, tag = 'scoped mem for output reshape']
    %v2 = vld [vmem:[%s0] sm:$0x1]
    %vm3 = vcmask 31744
    %4 = vst.msk [vmem:[#allocation0] sm:$0x1] %vm3, %v2
    %s5 = scalar_lea.vmem %s0, 15
    %v6 = vld [vmem:[%s5] sm:$0x1]
    %7 = vrot.lane.b32.xlu0 %v6, 60
    %v8 = vpop.permute.xlu0 %7
    %vm9 = vcmask 523744
    %10 = vst.msk [vmem:[#allocation0] sm:$0x1] %vm9, %v8
    %s11 = scalar_lea.vmem %s0, 14
    %v12 = vld [vmem:[%s11] sm:$0x1]
    %13 = vrot.lane.b32.xlu0 %v12, 56
    %v14 = vpop.permute.xlu0 %13
    %vm15 = vcmask 490944
    %16 = vst.msk [vmem:[#allocation0] sm:$0x1] %vm15, %v14
    %s17 = scalar_lea.vmem %s0, 13
    %v18 = vld [vmem:[%s17] sm:$0x1]
    %19 = vrot.lane.b32.xlu0 %v18, 52
    %v20 = vpop.permute.xlu0 %19
    %vm21 = vcmask 458144
    %22 = vst.msk [vmem:[#allocation0] sm:$0x1] %vm21, %v20
    %s23 = scalar_lea.vmem %s0, 12
    %v24 = vld [vmem:[%s23] sm:$0x1]
    %25 = vrot.lane.b32.xlu0 %v24, 48
    %v26 = vpop.permute.xlu0 %25
    %vm27 = vcmask 425344
    %28 = vst.msk [vmem:[#allocation0] sm:$0x1] %vm27, %v26
    %s29 = scalar_lea.vmem %s0, 11
    %v30 = vld [vmem:[%s29] sm:$0x1]
    %31 = vrot.lane.b32.xlu0 %v30, 44
    %v32 = vpop.permute.xlu0 %31
    %vm33 = vcmask 392544
    %34 = vst.msk [vmem:[#allocation0] sm:$0x1] %vm33, %v32
    %s35 = scalar_lea.vmem %s0, 10
    %v36 = vld [vmem:[%s35] sm:$0x1]
    %37 = vrot.lane.b32.xlu0 %v36, 40
    %v38 = vpop.permute.xlu0 %37
    %vm39 = vcmask 359744
    %40 = vst.msk [vmem:[#allocation0] sm:$0x1] %vm39, %v38
    %s41 = scalar_lea.vmem %s0, 9
    %v42 = vld [vmem:[%s41] sm:$0x1]
    %43 = vrot.lane.b32.xlu0 %v42, 36
    %v44 = vpop.permute.xlu0 %43
    %vm45 = vcmask 326944
    %46 = vst.msk [vmem:[#allocation0] sm:$0x1] %vm45, %v44
    %s47 = scalar_lea.vmem %s0, 8
    %v48 = vld [vmem:[%s47] sm:$0x1]
    %49 = vrot.lane.b32.xlu0 %v48, 32
    %v50 = vpop.permute.xlu0 %49
    %vm51 = vcmask 294144
    %52 = vst.msk [vmem:[#allocation0] sm:$0x1] %vm51, %v50
    %s53 = scalar_lea.vmem %s0, 7
    %v54 = vld [vmem:[%s53] sm:$0x1]
    %55 = vrot.lane.b32.xlu0 %v54, 28
    %v56 = vpop.permute.xlu0 %55
    %vm57 = vcmask 261344
    %58 = vst.msk [vmem:[#allocation0] sm:$0x1] %vm57, %v56
    %s59 = scalar_lea.vmem %s0, 6
    %v60 = vld [vmem:[%s59] sm:$0x1]
    %61 = vrot.lane.b32.xlu0 %v60, 24
    %v62 = vpop.permute.xlu0 %61
    %vm63 = vcmask 228544
    %64 = vst.msk [vmem:[#allocation0] sm:$0x1] %vm63, %v62
    %s65 = scalar_lea.vmem %s0, 5
    %v66 = vld [vmem:[%s65] sm:$0x1]
    %67 = vrot.lane.b32.xlu0 %v66, 20
    %v68 = vpop.permute.xlu0 %67
    %vm69 = vcmask 195744
    %70 = vst.msk [vmem:[#allocation0] sm:$0x1] %vm69, %v68
    %s71 = scalar_lea.vmem %s0, 4
    %v72 = vld [vmem:[%s71] sm:$0x1]
    %73 = vrot.lane.b32.xlu0 %v72, 16
    %v74 = vpop.permute.xlu0 %73
    %vm75 = vcmask 162944
    %76 = vst.msk [vmem:[#allocation0] sm:$0x1] %vm75, %v74
    %s77 = scalar_lea.vmem %s0, 3
    %v78 = vld [vmem:[%s77] sm:$0x1]
    %79 = vrot.lane.b32.xlu0 %v78, 12
    %v80 = vpop.permute.xlu0 %79
    %vm81 = vcmask 130144
    %82 = vst.msk [vmem:[#allocation0] sm:$0x1] %vm81, %v80
    %s83 = scalar_lea.vmem %s0, 2
    %v84 = vld [vmem:[%s83] sm:$0x1]
    %85 = vrot.lane.b32.xlu0 %v84, 8
    %v86 = vpop.permute.xlu0 %85
    %vm87 = vcmask 97344
    %88 = vst.msk [vmem:[#allocation0] sm:$0x1] %vm87, %v86
    %s89 = scalar_lea.vmem %s0, 1
    %v90 = vld [vmem:[%s89] sm:$0x1]
    %91 = vrot.lane.b32.xlu0 %v90, 4
    %v92 = vpop.permute.xlu0 %91
    %vm93 = vcmask 64544
    %94 = vst.msk [vmem:[#allocation0] sm:$0x1] %vm93, %v92
    %s96 = sshllo.u32 0, 1
    %v98 = vld [vmem:[#allocation0] sm:%s96]
    %s99 = sshllo.u32 0, 1
    %100 = vst [vmem:[%s1] sm:%s99] %v98

// kernel: tile.68
$region0: #{tile.68}
  #allocation0 [shape = 's32[1]{0}', space=sflag, size = 0x4, scoped, tag = 'scoped memory for tile.68']
  %s0 = inlined_call_operand.vmem [shape: f32[8], index: 0, kind: input, shape index: {}]
  %s1 = inlined_call_operand.vmem [shape: f32[8,8], index: 1, kind: output, shape index: {}]
  // Predicated region
  $region2: #{tile.68} parent=0 // pred_check
    _
  $region3: #{tile.68} parent=0 // pred_check_branch
    %3 = sbr.rel (0) target = $region5
  $region4: #{tile.68} parent=0 // pred_region
    _
  $region5: #{tile.68} parent=0 // pred_fallthru
    _
  %v4 = vld [vmem:[%s0] ss:$0 sm:$0xff]
  %5 = vst [vmem:[%s1] sm:$0xff] %v4

// kernel: tile.69
$region0: #{tile.69}
  %s0 = inlined_call_operand.vmem [shape: f32[8,8], index: 0, kind: input, shape index: {}]
  %s1 = inlined_call_operand.vmem [shape: f32[1,64], index: 1, kind: output, shape index: {}]
  $region1: #{tile.69} parent=0
    #allocation0 [shape = 'u8[4096]{0}', space=vmem, size = 0x1000, scoped, tag = 'scoped mem for output reshape']
    %v2 = vld [vmem:[%s0] sm:$0x1]
    %vm3 = vcmask 64512
    %4 = vst.msk [vmem:[#allocation0] sm:$0x1] %vm3, %v2
    %s5 = scalar_lea.vmem %s0, 7
    %v6 = vld [vmem:[%s5] sm:$0x1]
    %7 = vrot.lane.b32.xlu0 %v6, 56
    %v8 = vpop.permute.xlu0 %7
    %vm9 = vcmask 523712
    %10 = vst.msk [vmem:[#allocation0] sm:$0x1] %vm9, %v8
    %s11 = scalar_lea.vmem %s0, 6
    %v12 = vld [vmem:[%s11] sm:$0x1]
    %13 = vrot.lane.b32.xlu0 %v12, 48
    %v14 = vpop.permute.xlu0 %13
    %vm15 = vcmask 458112
    %16 = vst.msk [vmem:[#allocation0] sm:$0x1] %vm15, %v14
    %s17 = scalar_lea.vmem %s0, 5
    %v18 = vld [vmem:[%s17] sm:$0x1]
    %19 = vrot.lane.b32.xlu0 %v18, 40
    %v20 = vpop.permute.xlu0 %19
    %vm21 = vcmask 392512
    %22 = vst.msk [vmem:[#allocation0] sm:$0x1] %vm21, %v20
    %s23 = scalar_lea.vmem %s0, 4
    %v24 = vld [vmem:[%s23] sm:$0x1]
    %25 = vrot.lane.b32.xlu0 %v24, 32
    %v26 = vpop.permute.xlu0 %25
    %vm27 = vcmask 326912
    %28 = vst.msk [vmem:[#allocation0] sm:$0x1] %vm27, %v26
    %s29 = scalar_lea.vmem %s0, 3
    %v30 = vld [vmem:[%s29] sm:$0x1]
    %31 = vrot.lane.b32.xlu0 %v30, 24
    %v32 = vpop.permute.xlu0 %31
    %vm33 = vcmask 261312
    %34 = vst.msk [vmem:[#allocation0] sm:$0x1] %vm33, %v32
    %s35 = scalar_lea.vmem %s0, 2
    %v36 = vld [vmem:[%s35] sm:$0x1]
    %37 = vrot.lane.b32.xlu0 %v36, 16
    %v38 = vpop.permute.xlu0 %37
    %vm39 = vcmask 195712
    %40 = vst.msk [vmem:[#allocation0] sm:$0x1] %vm39, %v38
    %s41 = scalar_lea.vmem %s0, 1
    %v42 = vld [vmem:[%s41] sm:$0x1]
    %43 = vrot.lane.b32.xlu0 %v42, 8
    %v44 = vpop.permute.xlu0 %43
    %vm45 = vcmask 130112
    %46 = vst.msk [vmem:[#allocation0] sm:$0x1] %vm45, %v44
    %s48 = sshllo.u32 0, 1
    %v50 = vld [vmem:[#allocation0] sm:%s48]
    %s51 = sshllo.u32 0, 1
    %52 = vst [vmem:[%s1] sm:%s51] %v50

// kernel: tile.83
$region0: #{tile.83}
  #allocation0 [shape = 's32[1]{0}', space=sflag, size = 0x4, scoped, tag = 'scoped memory for tile.83']
  %s0 = inlined_call_operand.vmem [shape: f32[16], index: 0, kind: input, shape index: {}]
  %s1 = inlined_call_operand.vmem [shape: f32[4,16], index: 1, kind: output, shape index: {}]
  // Predicated region
  $region2: #{tile.83} parent=0 // pred_check
    _
  $region3: #{tile.83} parent=0 // pred_check_branch
    %3 = sbr.rel (0) target = $region5
  $region4: #{tile.83} parent=0 // pred_region
    _
  $region5: #{tile.83} parent=0 // pred_fallthru
    _
  %v4 = vld [vmem:[%s0] ss:$0 sm:$0xff]
  %5 = vst [vmem:[%s1] sm:$0xf] %v4

// kernel: tile.84
$region0: #{tile.84}
  %s0 = inlined_call_operand.vmem [shape: f32[4,16], index: 0, kind: input, shape index: {}]
  %s1 = inlined_call_operand.vmem [shape: f32[1,64], index: 1, kind: output, shape index: {}]
  $region1: #{tile.84} parent=0
    #allocation0 [shape = 'u8[4096]{0}', space=vmem, size = 0x1000, scoped, tag = 'scoped mem for output reshape']
    #allocation1 [shape = 'u8[4096]{0}', space=vmem, size = 0x1000, scoped, tag = 'scoped mem for input reshape']
    %s3 = sshllo.u32 0, 4
    %v4 = vld [vmem:[%s0] sm:%s3]
    %5 = vst [vmem:[#allocation1] sm:%s3] %v4
    %v6 = vld [vmem:[#allocation1] sm:$0x1]
    %vm7 = vcmask 130048
    %8 = vst.msk [vmem:[#allocation0] sm:$0x1] %vm7, %v6
    %s9 = scalar_lea.vmem [#allocation1], 3
    %v10 = vld [vmem:[%s9] sm:$0x1]
    %11 = vrot.lane.b32.xlu0 %v10, 48
    %v12 = vpop.permute.xlu0 %11
    %vm13 = vcmask 523648
    %14 = vst.msk [vmem:[#allocation0] sm:$0x1] %vm13, %v12
    %s15 = scalar_lea.vmem [#allocation1], 2
    %v16 = vld [vmem:[%s15] sm:$0x1]
    %17 = vrot.lane.b32.xlu0 %v16, 32
    %v18 = vpop.permute.xlu0 %17
    %vm19 = vcmask 392448
    %20 = vst.msk [vmem:[#allocation0] sm:$0x1] %vm19, %v18
    %s21 = scalar_lea.vmem [#allocation1], 1
    %v22 = vld [vmem:[%s21] sm:$0x1]
    %23 = vrot.lane.b32.xlu0 %v22, 16
    %v24 = vpop.permute.xlu0 %23
    %vm25 = vcmask 261248
    %26 = vst.msk [vmem:[#allocation0] sm:$0x1] %vm25, %v24
    %s28 = sshllo.u32 0, 1
    %v30 = vld [vmem:[#allocation0] sm:%s28]
    %s31 = sshllo.u32 0, 1
    %32 = vst [vmem:[%s1] sm:%s31] %v30

// kernel: tile.98
$region0: #{tile.98}
  #allocation0 [shape = 's32[1]{0}', space=sflag, size = 0x4, scoped, tag = 'scoped memory for tile.98']
  %s0 = inlined_call_operand.vmem [shape: f32[32], index: 0, kind: input, shape index: {}]
  %s1 = inlined_call_operand.vmem [shape: f32[2,32], index: 1, kind: output, shape index: {}]
  // Predicated region
  $region2: #{tile.98} parent=0 // pred_check
    _
  $region3: #{tile.98} parent=0 // pred_check_branch
    %3 = sbr.rel (0) target = $region5
  $region4: #{tile.98} parent=0 // pred_region
    _
  $region5: #{tile.98} parent=0 // pred_fallthru
    _
  %v4 = vld [vmem:[%s0] ss:$0 sm:$0xff]
  %5 = vst [vmem:[%s1] sm:$0x3] %v4

// kernel: tile.99
$region0: #{tile.99}
  %s0 = inlined_call_operand.vmem [shape: f32[2,32], index: 0, kind: input, shape index: {}]
  %s1 = inlined_call_operand.vmem [shape: f32[1,64], index: 1, kind: output, shape index: {}]
  $region1: #{tile.99} parent=0
    #allocation0 [shape = 'u8[4096]{0}', space=vmem, size = 0x1000, scoped, tag = 'scoped mem for output reshape']
    #allocation1 [shape = 'u8[4096]{0}', space=vmem, size = 0x1000, scoped, tag = 'scoped mem for input reshape']
    %s3 = sshllo.u32 0, 2
    %v4 = vld [vmem:[%s0] sm:%s3]
    %5 = vst [vmem:[#allocation1] sm:%s3] %v4
    %v6 = vld [vmem:[#allocation1] sm:$0x1]
    %vm7 = vcmask 261120
    %8 = vst.msk [vmem:[#allocation0] sm:$0x1] %vm7, %v6
    %s9 = scalar_lea.vmem [#allocation1], 1
    %v10 = vld [vmem:[%s9] sm:$0x1]
    %11 = vrot.lane.b32.xlu0 %v10, 32
    %v12 = vpop.permute.xlu0 %11
    %vm13 = vcmask 523520
    %14 = vst.msk [vmem:[#allocation0] sm:$0x1] %vm13, %v12
    %s16 = sshllo.u32 0, 1
    %v18 = vld [vmem:[#allocation0] sm:%s16]
    %s19 = sshllo.u32 0, 1
    %20 = vst [vmem:[%s1] sm:%s19] %v18

// kernel: discriminator_forward.1
$region0: #{discriminator_forward.1}
  #allocation0 [shape = 'u32[]', space=smem, size = 0x4, offset = 0x4, fixed_abs, tag = 'smem constant byte address 0x4 - core index']
  #allocation1 [shape = 'u32[144,128]{1,0:T(1,128)}', space=vmem, size = 0x12000, scoped, tag = 'internal scratch']
  %s0 = inlined_call_operand.smem [shape: u32[60], index: -1, kind: input, shape index: {}]
  %s1 = sld [smem:[%s0]]
  %s2 = scalar_lea.smem %s0, 1
  %s3 = sld [smem:[%s2]]
  %s4 = scalar_lea.smem %s0, 2
  %s5 = sld [smem:[%s4]]
  %s6 = scalar_lea.smem %s0, 3
  %s7 = sld [smem:[%s6]]
  %s8 = scalar_lea.smem %s0, 4
  %s9 = sld [smem:[%s8]]
  %s10 = scalar_lea.smem %s0, 5
  %s11 = sld [smem:[%s10]]
  %s12 = scalar_lea.smem %s0, 6
  %s13 = sld [smem:[%s12]]
  %s14 = scalar_lea.smem %s0, 7
  %s15 = sld [smem:[%s14]]
  %s16 = scalar_lea.smem %s0, 8
  %s17 = sld [smem:[%s16]]
  %s18 = scalar_lea.smem %s0, 9
  %s19 = sld [smem:[%s18]]
  %s20 = scalar_lea.smem %s0, 10
  %s21 = sld [smem:[%s20]]
  %s22 = scalar_lea.smem %s0, 11
  %s23 = sld [smem:[%s22]]
  %s24 = scalar_lea.smem %s0, 12
  %s25 = sld [smem:[%s24]]
  %s26 = scalar_lea.smem %s0, 13
  %s27 = sld [smem:[%s26]]
  %s28 = scalar_lea.smem %s0, 14
  %s29 = sld [smem:[%s28]]
  %s30 = scalar_lea.smem %s0, 15
  %s31 = sld [smem:[%s30]]
  %s32 = scalar_lea.smem %s0, 16
  %s33 = sld [smem:[%s32]]
  %s34 = scalar_lea.smem %s0, 17
  %s35 = sld [smem:[%s34]]
  %s36 = scalar_lea.smem %s0, 18
  %s37 = sld [smem:[%s36]]
  %s38 = scalar_lea.smem %s0, 19
  %s39 = sld [smem:[%s38]]
  %s40 = scalar_lea.smem %s0, 20
  %s41 = sld [smem:[%s40]]
  %s42 = scalar_lea.smem %s0, 21
  %s43 = sld [smem:[%s42]]
  %s44 = scalar_lea.smem %s0, 22
  %s45 = sld [smem:[%s44]]
  %s46 = scalar_lea.smem %s0, 23
  %s47 = sld [smem:[%s46]]
  %s48 = scalar_lea.smem %s0, 24
  %s49 = sld [smem:[%s48]]
  %s50 = scalar_lea.smem %s0, 25
  %s51 = sld [smem:[%s50]]
  %s52 = scalar_lea.smem %s0, 26
  %s53 = sld [smem:[%s52]]
  %s54 = scalar_lea.smem %s0, 27
  %s55 = sld [smem:[%s54]]
  %s56 = scalar_lea.smem %s0, 28
  %s57 = sld [smem:[%s56]]
  %s58 = scalar_lea.smem %s0, 29
  %s59 = sld [smem:[%s58]]
  %s60 = scalar_lea.smem %s0, 30
  %s61 = sld [smem:[%s60]]
  %s62 = scalar_lea.smem %s0, 31
  %s63 = sld [smem:[%s62]]
  %s64 = scalar_lea.smem %s0, 32
  %s65 = sld [smem:[%s64]]
  %s66 = scalar_lea.smem %s0, 33
  %s67 = sld [smem:[%s66]]
  %s68 = scalar_lea.smem %s0, 34
  %s69 = sld [smem:[%s68]]
  %s70 = scalar_lea.smem %s0, 35
  %s71 = sld [smem:[%s70]]
  %s72 = scalar_lea.smem %s0, 36
  %s73 = sld [smem:[%s72]]
  %s74 = scalar_lea.smem %s0, 37
  %s75 = sld [smem:[%s74]]
  %s76 = scalar_lea.smem %s0, 38
  %s77 = sld [smem:[%s76]]
  %s78 = scalar_lea.smem %s0, 39
  %s79 = sld [smem:[%s78]]
  %s80 = scalar_lea.smem %s0, 40
  %s81 = sld [smem:[%s80]]
  %s82 = scalar_lea.smem %s0, 41
  %s83 = sld [smem:[%s82]]
  %s84 = scalar_lea.smem %s0, 42
  %s85 = sld [smem:[%s84]]
  %s86 = scalar_lea.smem %s0, 43
  %s87 = sld [smem:[%s86]]
  %s88 = scalar_lea.smem %s0, 44
  %s89 = sld [smem:[%s88]]
  %s90 = scalar_lea.smem %s0, 45
  %s91 = sld [smem:[%s90]]
  %s92 = scalar_lea.smem %s0, 46
  %s93 = sld [smem:[%s92]]
  %s94 = scalar_lea.smem %s0, 47
  %s95 = sld [smem:[%s94]]
  %s96 = scalar_lea.smem %s0, 48
  %s97 = sld [smem:[%s96]]
  %s98 = scalar_lea.smem %s0, 49
  %s99 = sld [smem:[%s98]]
  %s100 = scalar_lea.smem %s0, 50
  %s101 = sld [smem:[%s100]]
  %s102 = scalar_lea.smem %s0, 51
  %s103 = sld [smem:[%s102]]
  %s104 = scalar_lea.smem %s0, 52
  %s105 = sld [smem:[%s104]]
  %s106 = scalar_lea.smem %s0, 53
  %s107 = sld [smem:[%s106]]
  %s108 = scalar_lea.smem %s0, 54
  %s109 = sld [smem:[%s108]]
  %s110 = scalar_lea.smem %s0, 55
  %s111 = sld [smem:[%s110]]
  %s112 = scalar_lea.smem %s0, 56
  %s113 = sld [smem:[%s112]]
  %s114 = scalar_lea.smem %s0, 57
  %s115 = sld [smem:[%s114]]
  %s116 = scalar_lea.smem %s0, 58
  %s117 = sld [smem:[%s116]]
  %s118 = scalar_lea.smem %s0, 59
  %s119 = sld [smem:[%s118]]
  %120 = xla_tuple %s113, %s115, %s117, %s119
  %s121 = sld [smem:[#allocation0]]
  $region281: #{discriminator_forward.1} parent=0
    _
  %s123 = ssub.s32 1, %s121
  %s124 = scalar_select 0, %s123, %s121
  loop: start=0, step=1, limit=4
  $region2: #{discriminator_forward.1} parent=0 // loop_pre_header
    _
  $region3: #{discriminator_forward.1} parent=0 // loop_header
    %s126 = sphi 0, %s130
    %p127 = scmp.ge.s32.totalorder %s126, 4
    %s136 = sphi 0, %s138
    %s139 = sphi 0, %s136
    %s140 = sphi 0, %s139
    %s156 = sphi 0, %s140
    %s160 = sphi 0, %s160
    %s162 = sphi 0, %s160
    %s163 = sphi 0, %s162
    %s177 = sphi 0, %s163
    %s181 = sphi 0, %s181
    %s183 = sphi 0, %s181
    %s184 = sphi 0, %s183
    %s198 = sphi 0, %s184
    %s202 = sphi 0, %s202
    %s204 = sphi 0, %s202
    %s205 = sphi 0, %s204
    %s219 = sphi 0, %s205
    %s223 = sphi 0, %s223
    %s225 = sphi 0, %s223
    %s226 = sphi 0, %s225
    %s240 = sphi 0, %s226
    %s244 = sphi 0, %s244
    %s246 = sphi 0, %s244
    %s247 = sphi 0, %s246
    %s261 = sphi 0, %s247
    %s265 = sphi 0, %s265
    %s267 = sphi 0, %s265
    %s268 = sphi 0, %s267
    %s282 = sphi 0, %s268
    %s286 = sphi 0, %s286
    %s288 = sphi 0, %s286
    %s289 = sphi 0, %s288
    %s303 = sphi 0, %s289
    %s307 = sphi 0, %s307
    %s309 = sphi 0, %s307
    %s310 = sphi 0, %s309
    %s324 = sphi 0, %s310
    %s328 = sphi 0, %s328
    %s330 = sphi 0, %s328
    %s331 = sphi 0, %s330
    %s345 = sphi 0, %s331
    %s349 = sphi 0, %s349
    %s351 = sphi 0, %s349
    %s352 = sphi 0, %s351
    %s366 = sphi 0, %s352
    %s370 = sphi 0, %s370
    %s372 = sphi 0, %s370
    %s373 = sphi 0, %s372
    %s387 = sphi 0, %s373
    %s391 = sphi 0, %s391
    %s393 = sphi 0, %s391
    %s394 = sphi 0, %s393
    %s408 = sphi 0, %s394
    %s412 = sphi 0, %s412
    %s414 = sphi 0, %s412
    %s415 = sphi 0, %s414
    %s429 = sphi 0, %s415
    %s433 = sphi 0, %s433
    %s435 = sphi 0, %s433
    %s436 = sphi 0, %s435
    %s450 = sphi 0, %s436
    %s454 = sphi 0, %s454
    %s456 = sphi 0, %s454
    %s457 = sphi 0, %s456
    %s471 = sphi 0, %s457
    %s475 = sphi 0, %s475
    %s477 = sphi 0, %s475
    %s478 = sphi 0, %s477
    %s492 = sphi 0, %s478
    %s496 = sphi 0, %s496
    %s498 = sphi 0, %s496
    %s499 = sphi 0, %s498
    %s513 = sphi 0, %s499
    %s517 = sphi 0, %s517
    %s519 = sphi 0, %s517
    %s520 = sphi 0, %s519
    %s534 = sphi 0, %s520
    %s538 = sphi 0, %s538
    %s540 = sphi 0, %s538
    %s541 = sphi 0, %s540
    %s555 = sphi 0, %s541
    %s559 = sphi 0, %s559
    %s561 = sphi 0, %s559
    %s562 = sphi 0, %s561
    %s576 = sphi 0, %s562
    %s580 = sphi 0, %s580
    %s582 = sphi 0, %s580
    %s583 = sphi 0, %s582
    %s597 = sphi 0, %s583
    %s601 = sphi 0, %s601
    %s603 = sphi 0, %s601
    %s604 = sphi 0, %s603
    %s618 = sphi 0, %s604
    %s622 = sphi 0, %s622
    %s624 = sphi 0, %s622
    %s625 = sphi 0, %s624
    %s639 = sphi 0, %s625
    %s643 = sphi 0, %s643
    %s645 = sphi 0, %s643
    %s646 = sphi 0, %s645
    %s660 = sphi 0, %s646
    %s664 = sphi 0, %s664
    %s666 = sphi 0, %s664
    %s667 = sphi 0, %s666
    %s681 = sphi 0, %s667
    %s685 = sphi 0, %s685
    %s687 = sphi 0, %s685
    %s688 = sphi 0, %s687
    %s702 = sphi 0, %s688
    %s706 = sphi 0, %s706
    %s708 = sphi 0, %s706
    %s709 = sphi 0, %s708
    %s723 = sphi 0, %s709
    %s727 = sphi 0, %s727
    %s729 = sphi 0, %s727
    %s730 = sphi 0, %s729
    %s744 = sphi 0, %s730
    %s748 = sphi 0, %s748
    %s750 = sphi 0, %s748
    %s751 = sphi 0, %s750
    %s765 = sphi 0, %s751
    %s769 = sphi 0, %s769
    %s771 = sphi 0, %s769
    %s772 = sphi 0, %s771
    %s786 = sphi 0, %s772
    %s790 = sphi 0, %s790
    %s792 = sphi 0, %s790
    %s793 = sphi 0, %s792
    %s807 = sphi 0, %s793
    %s811 = sphi 0, %s811
    %s813 = sphi 0, %s811
    %s814 = sphi 0, %s813
    %s828 = sphi 0, %s814
    %s832 = sphi 0, %s832
    %s834 = sphi 0, %s832
    %s835 = sphi 0, %s834
    %s849 = sphi 0, %s835
    %s853 = sphi 0, %s853
    %s855 = sphi 0, %s853
    %s856 = sphi 0, %s855
    %s870 = sphi 0, %s856
    %s874 = sphi 0, %s874
    %s876 = sphi 0, %s874
    %s877 = sphi 0, %s876
    %s891 = sphi 0, %s877
    %s895 = sphi 0, %s895
    %s897 = sphi 0, %s895
    %s898 = sphi 0, %s897
    %s912 = sphi 0, %s898
    %s916 = sphi 0, %s916
    %s918 = sphi 0, %s916
    %s919 = sphi 0, %s918
    %s933 = sphi 0, %s919
    %s937 = sphi 0, %s937
    %s939 = sphi 0, %s937
    %s940 = sphi 0, %s939
    %s954 = sphi 0, %s940
    %s958 = sphi 0, %s958
    %s960 = sphi 0, %s958
    %s961 = sphi 0, %s960
    %s975 = sphi 0, %s961
    %s979 = sphi 0, %s979
    %s981 = sphi 0, %s979
    %s982 = sphi 0, %s981
    %s996 = sphi 0, %s982
    %s1000 = sphi 0, %s1000
    %s1002 = sphi 0, %s1000
    %s1003 = sphi 0, %s1002
    %s1017 = sphi 0, %s1003
    %s1021 = sphi 0, %s1021
    %s1023 = sphi 0, %s1021
    %s1024 = sphi 0, %s1023
    %s1038 = sphi 0, %s1024
    %s1042 = sphi 0, %s1042
    %s1044 = sphi 0, %s1042
    %s1045 = sphi 0, %s1044
    %s1059 = sphi 0, %s1045
    %s1063 = sphi 0, %s1063
    %s1065 = sphi 0, %s1063
    %s1066 = sphi 0, %s1065
    %s1080 = sphi 0, %s1066
    %s1084 = sphi 0, %s1084
    %s1086 = sphi 0, %s1084
    %s1087 = sphi 0, %s1086
    %s1101 = sphi 0, %s1087
    %s1105 = sphi 0, %s1105
    %s1107 = sphi 0, %s1105
    %s1108 = sphi 0, %s1107
    %s1122 = sphi 0, %s1108
    %s1126 = sphi 0, %s1126
    %s1128 = sphi 0, %s1126
    %s1129 = sphi 0, %s1128
    %s1143 = sphi 0, %s1129
    %s1147 = sphi 0, %s1147
    %s1149 = sphi 0, %s1147
    %s1150 = sphi 0, %s1149
    %s1164 = sphi 0, %s1150
    %s1168 = sphi 0, %s1168
    %s1170 = sphi 0, %s1168
    %s1171 = sphi 0, %s1170
    %s1185 = sphi 0, %s1171
    %s1189 = sphi 0, %s1189
    %s1191 = sphi 0, %s1189
    %s1192 = sphi 0, %s1191
    %s1206 = sphi 0, %s1192
    %s1210 = sphi 0, %s1210
    %s1212 = sphi 0, %s1210
    %s1213 = sphi 0, %s1212
    %s1227 = sphi 0, %s1213
    %s1231 = sphi 0, %s1231
    %s1233 = sphi 0, %s1231
    %s1234 = sphi 0, %s1233
    %s1248 = sphi 0, %s1234
    %s1252 = sphi 0, %s1252
    %s1254 = sphi 0, %s1252
    %s1255 = sphi 0, %s1254
    %s1269 = sphi 0, %s1255
    %s1273 = sphi 0, %s1273
    %s1275 = sphi 0, %s1273
    %s1276 = sphi 0, %s1275
    %s1290 = sphi 0, %s1276
    %s1294 = sphi 0, %s1294
    %s1296 = sphi 0, %s1294
    %s1297 = sphi 0, %s1296
    %s1311 = sphi 0, %s1297
    %s1317 = sphi 0, %s1319
    %s1320 = sphi 0, %s1317
    %s1321 = sphi 0, %s1320
    %s1337 = sphi 0, %s1321
    %s1343 = sphi 0, %s1345
    %s1346 = sphi 0, %s1343
    %s1347 = sphi 0, %s1346
    %s1363 = sphi 0, %s1347
    %s1369 = sphi 0, %s1371
    %s1372 = sphi 0, %s1369
    %s1373 = sphi 0, %s1372
    %s1389 = sphi 0, %s1373
    %s1395 = sphi 0, %s1397
    %s1398 = sphi 0, %s1395
    %s1399 = sphi 0, %s1398
    %s1415 = sphi 0, %s1399
  $region4: #{discriminator_forward.1} parent=0 // loop_header_branch
    %129 = sbr.rel (%p127) target = $region8
  $region5: #{discriminator_forward.1} parent=0 // loop_body
    %s131 = ssub.s32 %s126, 1
    %s132 = ssub.s32 %s126, 2
    %s133 = sadd.s32 %s126, 1
    %s134 = ssub.s32 %s126, %s133
    %p135 = scmp.eq.s32.totalorder %s134, 0
    %s137 = sadd.s32 %s136, 1
    %s138 = scalar_select %p135, %s136, %s137
    %p141 = pneg %p135
    %p142 = scmp.eq.s32.totalorder %s126, 1
    %p143 = por %p141, %p142
    %p144 = scmp.ne.s32.totalorder %s136, %s139
    %p145 = scmp.eq.s32.totalorder %s126, 0
    %p146 = por %p144, %p145
    %p147 = scmp.ne.s32.totalorder %s136, %s139
    %p148 = scmp.eq.s32.totalorder %s131, 1
    %p149 = por %p147, %p148
    %p150 = scmp.ne.s32.totalorder %s139, %s140
    %p151 = scmp.eq.s32.totalorder %s131, 0
    %p152 = por %p150, %p151
    %p153 = scmp.ne.s32.totalorder %s139, %s140
    %p154 = scmp.eq.s32.totalorder %s132, 1
    %p155 = por %p153, %p154
    %p157 = scmp.ne.s32.totalorder %s140, %s156
    %p158 = scmp.eq.s32.totalorder %s132, 0
    %p159 = por %p157, %p158
    %s161 = sadd.s32 %s160, 1
    %p164 = scmp.eq.s32.totalorder %s126, 1
    %p165 = scmp.ne.s32.totalorder %s160, %s162
    %p166 = scmp.eq.s32.totalorder %s126, 0
    %p167 = por %p165, %p166
    %p168 = scmp.ne.s32.totalorder %s160, %s162
    %p169 = scmp.eq.s32.totalorder %s131, 1
    %p170 = por %p168, %p169
    %p171 = scmp.ne.s32.totalorder %s162, %s163
    %p172 = scmp.eq.s32.totalorder %s131, 0
    %p173 = por %p171, %p172
    %p174 = scmp.ne.s32.totalorder %s162, %s163
    %p175 = scmp.eq.s32.totalorder %s132, 1
    %p176 = por %p174, %p175
    %p178 = scmp.ne.s32.totalorder %s163, %s177
    %p179 = scmp.eq.s32.totalorder %s132, 0
    %p180 = por %p178, %p179
    %s182 = sadd.s32 %s181, 1
    %p185 = scmp.eq.s32.totalorder %s126, 1
    %p186 = scmp.ne.s32.totalorder %s181, %s183
    %p187 = scmp.eq.s32.totalorder %s126, 0
    %p188 = por %p186, %p187
    %p189 = scmp.ne.s32.totalorder %s181, %s183
    %p190 = scmp.eq.s32.totalorder %s131, 1
    %p191 = por %p189, %p190
    %p192 = scmp.ne.s32.totalorder %s183, %s184
    %p193 = scmp.eq.s32.totalorder %s131, 0
    %p194 = por %p192, %p193
    %p195 = scmp.ne.s32.totalorder %s183, %s184
    %p196 = scmp.eq.s32.totalorder %s132, 1
    %p197 = por %p195, %p196
    %p199 = scmp.ne.s32.totalorder %s184, %s198
    %p200 = scmp.eq.s32.totalorder %s132, 0
    %p201 = por %p199, %p200
    %s203 = sadd.s32 %s202, 1
    %p206 = scmp.eq.s32.totalorder %s126, 1
    %p207 = scmp.ne.s32.totalorder %s202, %s204
    %p208 = scmp.eq.s32.totalorder %s126, 0
    %p209 = por %p207, %p208
    %p210 = scmp.ne.s32.totalorder %s202, %s204
    %p211 = scmp.eq.s32.totalorder %s131, 1
    %p212 = por %p210, %p211
    %p213 = scmp.ne.s32.totalorder %s204, %s205
    %p214 = scmp.eq.s32.totalorder %s131, 0
    %p215 = por %p213, %p214
    %p216 = scmp.ne.s32.totalorder %s204, %s205
    %p217 = scmp.eq.s32.totalorder %s132, 1
    %p218 = por %p216, %p217
    %p220 = scmp.ne.s32.totalorder %s205, %s219
    %p221 = scmp.eq.s32.totalorder %s132, 0
    %p222 = por %p220, %p221
    %s224 = sadd.s32 %s223, 1
    %p227 = scmp.eq.s32.totalorder %s126, 1
    %p228 = scmp.ne.s32.totalorder %s223, %s225
    %p229 = scmp.eq.s32.totalorder %s126, 0
    %p230 = por %p228, %p229
    %p231 = scmp.ne.s32.totalorder %s223, %s225
    %p232 = scmp.eq.s32.totalorder %s131, 1
    %p233 = por %p231, %p232
    %p234 = scmp.ne.s32.totalorder %s225, %s226
    %p235 = scmp.eq.s32.totalorder %s131, 0
    %p236 = por %p234, %p235
    %p237 = scmp.ne.s32.totalorder %s225, %s226
    %p238 = scmp.eq.s32.totalorder %s132, 1
    %p239 = por %p237, %p238
    %p241 = scmp.ne.s32.totalorder %s226, %s240
    %p242 = scmp.eq.s32.totalorder %s132, 0
    %p243 = por %p241, %p242
    %s245 = sadd.s32 %s244, 1
    %p248 = scmp.eq.s32.totalorder %s126, 1
    %p249 = scmp.ne.s32.totalorder %s244, %s246
    %p250 = scmp.eq.s32.totalorder %s126, 0
    %p251 = por %p249, %p250
    %p252 = scmp.ne.s32.totalorder %s244, %s246
    %p253 = scmp.eq.s32.totalorder %s131, 1
    %p254 = por %p252, %p253
    %p255 = scmp.ne.s32.totalorder %s246, %s247
    %p256 = scmp.eq.s32.totalorder %s131, 0
    %p257 = por %p255, %p256
    %p258 = scmp.ne.s32.totalorder %s246, %s247
    %p259 = scmp.eq.s32.totalorder %s132, 1
    %p260 = por %p258, %p259
    %p262 = scmp.ne.s32.totalorder %s247, %s261
    %p263 = scmp.eq.s32.totalorder %s132, 0
    %p264 = por %p262, %p263
    %s266 = sadd.s32 %s265, 1
    %p269 = scmp.eq.s32.totalorder %s126, 1
    %p270 = scmp.ne.s32.totalorder %s265, %s267
    %p271 = scmp.eq.s32.totalorder %s126, 0
    %p272 = por %p270, %p271
    %p273 = scmp.ne.s32.totalorder %s265, %s267
    %p274 = scmp.eq.s32.totalorder %s131, 1
    %p275 = por %p273, %p274
    %p276 = scmp.ne.s32.totalorder %s267, %s268
    %p277 = scmp.eq.s32.totalorder %s131, 0
    %p278 = por %p276, %p277
    %p279 = scmp.ne.s32.totalorder %s267, %s268
    %p280 = scmp.eq.s32.totalorder %s132, 1
    %p281 = por %p279, %p280
    %p283 = scmp.ne.s32.totalorder %s268, %s282
    %p284 = scmp.eq.s32.totalorder %s132, 0
    %p285 = por %p283, %p284
    %s287 = sadd.s32 %s286, 1
    %p290 = scmp.eq.s32.totalorder %s126, 1
    %p291 = scmp.ne.s32.totalorder %s286, %s288
    %p292 = scmp.eq.s32.totalorder %s126, 0
    %p293 = por %p291, %p292
    %p294 = scmp.ne.s32.totalorder %s286, %s288
    %p295 = scmp.eq.s32.totalorder %s131, 1
    %p296 = por %p294, %p295
    %p297 = scmp.ne.s32.totalorder %s288, %s289
    %p298 = scmp.eq.s32.totalorder %s131, 0
    %p299 = por %p297, %p298
    %p300 = scmp.ne.s32.totalorder %s288, %s289
    %p301 = scmp.eq.s32.totalorder %s132, 1
    %p302 = por %p300, %p301
    %p304 = scmp.ne.s32.totalorder %s289, %s303
    %p305 = scmp.eq.s32.totalorder %s132, 0
    %p306 = por %p304, %p305
    %s308 = sadd.s32 %s307, 1
    %p311 = scmp.eq.s32.totalorder %s126, 1
    %p312 = scmp.ne.s32.totalorder %s307, %s309
    %p313 = scmp.eq.s32.totalorder %s126, 0
    %p314 = por %p312, %p313
    %p315 = scmp.ne.s32.totalorder %s307, %s309
    %p316 = scmp.eq.s32.totalorder %s131, 1
    %p317 = por %p315, %p316
    %p318 = scmp.ne.s32.totalorder %s309, %s310
    %p319 = scmp.eq.s32.totalorder %s131, 0
    %p320 = por %p318, %p319
    %p321 = scmp.ne.s32.totalorder %s309, %s310
    %p322 = scmp.eq.s32.totalorder %s132, 1
    %p323 = por %p321, %p322
    %p325 = scmp.ne.s32.totalorder %s310, %s324
    %p326 = scmp.eq.s32.totalorder %s132, 0
    %p327 = por %p325, %p326
    %s329 = sadd.s32 %s328, 1
    %p332 = scmp.eq.s32.totalorder %s126, 1
    %p333 = scmp.ne.s32.totalorder %s328, %s330
    %p334 = scmp.eq.s32.totalorder %s126, 0
    %p335 = por %p333, %p334
    %p336 = scmp.ne.s32.totalorder %s328, %s330
    %p337 = scmp.eq.s32.totalorder %s131, 1
    %p338 = por %p336, %p337
    %p339 = scmp.ne.s32.totalorder %s330, %s331
    %p340 = scmp.eq.s32.totalorder %s131, 0
    %p341 = por %p339, %p340
    %p342 = scmp.ne.s32.totalorder %s330, %s331
    %p343 = scmp.eq.s32.totalorder %s132, 1
    %p344 = por %p342, %p343
    %p346 = scmp.ne.s32.totalorder %s331, %s345
    %p347 = scmp.eq.s32.totalorder %s132, 0
    %p348 = por %p346, %p347
    %s350 = sadd.s32 %s349, 1
    %p353 = scmp.eq.s32.totalorder %s126, 1
    %p354 = scmp.ne.s32.totalorder %s349, %s351
    %p355 = scmp.eq.s32.totalorder %s126, 0
    %p356 = por %p354, %p355
    %p357 = scmp.ne.s32.totalorder %s349, %s351
    %p358 = scmp.eq.s32.totalorder %s131, 1
    %p359 = por %p357, %p358
    %p360 = scmp.ne.s32.totalorder %s351, %s352
    %p361 = scmp.eq.s32.totalorder %s131, 0
    %p362 = por %p360, %p361
    %p363 = scmp.ne.s32.totalorder %s351, %s352
    %p364 = scmp.eq.s32.totalorder %s132, 1
    %p365 = por %p363, %p364
    %p367 = scmp.ne.s32.totalorder %s352, %s366
    %p368 = scmp.eq.s32.totalorder %s132, 0
    %p369 = por %p367, %p368
    %s371 = sadd.s32 %s370, 1
    %p374 = scmp.eq.s32.totalorder %s126, 1
    %p375 = scmp.ne.s32.totalorder %s370, %s372
    %p376 = scmp.eq.s32.totalorder %s126, 0
    %p377 = por %p375, %p376
    %p378 = scmp.ne.s32.totalorder %s370, %s372
    %p379 = scmp.eq.s32.totalorder %s131, 1
    %p380 = por %p378, %p379
    %p381 = scmp.ne.s32.totalorder %s372, %s373
    %p382 = scmp.eq.s32.totalorder %s131, 0
    %p383 = por %p381, %p382
    %p384 = scmp.ne.s32.totalorder %s372, %s373
    %p385 = scmp.eq.s32.totalorder %s132, 1
    %p386 = por %p384, %p385
    %p388 = scmp.ne.s32.totalorder %s373, %s387
    %p389 = scmp.eq.s32.totalorder %s132, 0
    %p390 = por %p388, %p389
    %s392 = sadd.s32 %s391, 1
    %p395 = scmp.eq.s32.totalorder %s126, 1
    %p396 = scmp.ne.s32.totalorder %s391, %s393
    %p397 = scmp.eq.s32.totalorder %s126, 0
    %p398 = por %p396, %p397
    %p399 = scmp.ne.s32.totalorder %s391, %s393
    %p400 = scmp.eq.s32.totalorder %s131, 1
    %p401 = por %p399, %p400
    %p402 = scmp.ne.s32.totalorder %s393, %s394
    %p403 = scmp.eq.s32.totalorder %s131, 0
    %p404 = por %p402, %p403
    %p405 = scmp.ne.s32.totalorder %s393, %s394
    %p406 = scmp.eq.s32.totalorder %s132, 1
    %p407 = por %p405, %p406
    %p409 = scmp.ne.s32.totalorder %s394, %s408
    %p410 = scmp.eq.s32.totalorder %s132, 0
    %p411 = por %p409, %p410
    %s413 = sadd.s32 %s412, 1
    %p416 = scmp.eq.s32.totalorder %s126, 1
    %p417 = scmp.ne.s32.totalorder %s412, %s414
    %p418 = scmp.eq.s32.totalorder %s126, 0
    %p419 = por %p417, %p418
    %p420 = scmp.ne.s32.totalorder %s412, %s414
    %p421 = scmp.eq.s32.totalorder %s131, 1
    %p422 = por %p420, %p421
    %p423 = scmp.ne.s32.totalorder %s414, %s415
    %p424 = scmp.eq.s32.totalorder %s131, 0
    %p425 = por %p423, %p424
    %p426 = scmp.ne.s32.totalorder %s414, %s415
    %p427 = scmp.eq.s32.totalorder %s132, 1
    %p428 = por %p426, %p427
    %p430 = scmp.ne.s32.totalorder %s415, %s429
    %p431 = scmp.eq.s32.totalorder %s132, 0
    %p432 = por %p430, %p431
    %s434 = sadd.s32 %s433, 1
    %p437 = scmp.eq.s32.totalorder %s126, 1
    %p438 = scmp.ne.s32.totalorder %s433, %s435
    %p439 = scmp.eq.s32.totalorder %s126, 0
    %p440 = por %p438, %p439
    %p441 = scmp.ne.s32.totalorder %s433, %s435
    %p442 = scmp.eq.s32.totalorder %s131, 1
    %p443 = por %p441, %p442
    %p444 = scmp.ne.s32.totalorder %s435, %s436
    %p445 = scmp.eq.s32.totalorder %s131, 0
    %p446 = por %p444, %p445
    %p447 = scmp.ne.s32.totalorder %s435, %s436
    %p448 = scmp.eq.s32.totalorder %s132, 1
    %p449 = por %p447, %p448
    %p451 = scmp.ne.s32.totalorder %s436, %s450
    %p452 = scmp.eq.s32.totalorder %s132, 0
    %p453 = por %p451, %p452
    %s455 = sadd.s32 %s454, 1
    %p458 = scmp.eq.s32.totalorder %s126, 1
    %p459 = scmp.ne.s32.totalorder %s454, %s456
    %p460 = scmp.eq.s32.totalorder %s126, 0
    %p461 = por %p459, %p460
    %p462 = scmp.ne.s32.totalorder %s454, %s456
    %p463 = scmp.eq.s32.totalorder %s131, 1
    %p464 = por %p462, %p463
    %p465 = scmp.ne.s32.totalorder %s456, %s457
    %p466 = scmp.eq.s32.totalorder %s131, 0
    %p467 = por %p465, %p466
    %p468 = scmp.ne.s32.totalorder %s456, %s457
    %p469 = scmp.eq.s32.totalorder %s132, 1
    %p470 = por %p468, %p469
    %p472 = scmp.ne.s32.totalorder %s457, %s471
    %p473 = scmp.eq.s32.totalorder %s132, 0
    %p474 = por %p472, %p473
    %s476 = sadd.s32 %s475, 1
    %p479 = scmp.eq.s32.totalorder %s126, 1
    %p480 = scmp.ne.s32.totalorder %s475, %s477
    %p481 = scmp.eq.s32.totalorder %s126, 0
    %p482 = por %p480, %p481
    %p483 = scmp.ne.s32.totalorder %s475, %s477
    %p484 = scmp.eq.s32.totalorder %s131, 1
    %p485 = por %p483, %p484
    %p486 = scmp.ne.s32.totalorder %s477, %s478
    %p487 = scmp.eq.s32.totalorder %s131, 0
    %p488 = por %p486, %p487
    %p489 = scmp.ne.s32.totalorder %s477, %s478
    %p490 = scmp.eq.s32.totalorder %s132, 1
    %p491 = por %p489, %p490
    %p493 = scmp.ne.s32.totalorder %s478, %s492
    %p494 = scmp.eq.s32.totalorder %s132, 0
    %p495 = por %p493, %p494
    %s497 = sadd.s32 %s496, 1
    %p500 = scmp.eq.s32.totalorder %s126, 1
    %p501 = scmp.ne.s32.totalorder %s496, %s498
    %p502 = scmp.eq.s32.totalorder %s126, 0
    %p503 = por %p501, %p502
    %p504 = scmp.ne.s32.totalorder %s496, %s498
    %p505 = scmp.eq.s32.totalorder %s131, 1
    %p506 = por %p504, %p505
    %p507 = scmp.ne.s32.totalorder %s498, %s499
    %p508 = scmp.eq.s32.totalorder %s131, 0
    %p509 = por %p507, %p508
    %p510 = scmp.ne.s32.totalorder %s498, %s499
    %p511 = scmp.eq.s32.totalorder %s132, 1
    %p512 = por %p510, %p511
    %p514 = scmp.ne.s32.totalorder %s499, %s513
    %p515 = scmp.eq.s32.totalorder %s132, 0
    %p516 = por %p514, %p515
    %s518 = sadd.s32 %s517, 1
    %p521 = scmp.eq.s32.totalorder %s126, 1
    %p522 = scmp.ne.s32.totalorder %s517, %s519
    %p523 = scmp.eq.s32.totalorder %s126, 0
    %p524 = por %p522, %p523
    %p525 = scmp.ne.s32.totalorder %s517, %s519
    %p526 = scmp.eq.s32.totalorder %s131, 1
    %p527 = por %p525, %p526
    %p528 = scmp.ne.s32.totalorder %s519, %s520
    %p529 = scmp.eq.s32.totalorder %s131, 0
    %p530 = por %p528, %p529
    %p531 = scmp.ne.s32.totalorder %s519, %s520
    %p532 = scmp.eq.s32.totalorder %s132, 1
    %p533 = por %p531, %p532
    %p535 = scmp.ne.s32.totalorder %s520, %s534
    %p536 = scmp.eq.s32.totalorder %s132, 0
    %p537 = por %p535, %p536
    %s539 = sadd.s32 %s538, 1
    %p542 = scmp.eq.s32.totalorder %s126, 1
    %p543 = scmp.ne.s32.totalorder %s538, %s540
    %p544 = scmp.eq.s32.totalorder %s126, 0
    %p545 = por %p543, %p544
    %p546 = scmp.ne.s32.totalorder %s538, %s540
    %p547 = scmp.eq.s32.totalorder %s131, 1
    %p548 = por %p546, %p547
    %p549 = scmp.ne.s32.totalorder %s540, %s541
    %p550 = scmp.eq.s32.totalorder %s131, 0
    %p551 = por %p549, %p550
    %p552 = scmp.ne.s32.totalorder %s540, %s541
    %p553 = scmp.eq.s32.totalorder %s132, 1
    %p554 = por %p552, %p553
    %p556 = scmp.ne.s32.totalorder %s541, %s555
    %p557 = scmp.eq.s32.totalorder %s132, 0
    %p558 = por %p556, %p557
    %s560 = sadd.s32 %s559, 1
    %p563 = scmp.eq.s32.totalorder %s126, 1
    %p564 = scmp.ne.s32.totalorder %s559, %s561
    %p565 = scmp.eq.s32.totalorder %s126, 0
    %p566 = por %p564, %p565
    %p567 = scmp.ne.s32.totalorder %s559, %s561
    %p568 = scmp.eq.s32.totalorder %s131, 1
    %p569 = por %p567, %p568
    %p570 = scmp.ne.s32.totalorder %s561, %s562
    %p571 = scmp.eq.s32.totalorder %s131, 0
    %p572 = por %p570, %p571
    %p573 = scmp.ne.s32.totalorder %s561, %s562
    %p574 = scmp.eq.s32.totalorder %s132, 1
    %p575 = por %p573, %p574
    %p577 = scmp.ne.s32.totalorder %s562, %s576
    %p578 = scmp.eq.s32.totalorder %s132, 0
    %p579 = por %p577, %p578
    %s581 = sadd.s32 %s580, 1
    %p584 = scmp.eq.s32.totalorder %s126, 1
    %p585 = scmp.ne.s32.totalorder %s580, %s582
    %p586 = scmp.eq.s32.totalorder %s126, 0
    %p587 = por %p585, %p586
    %p588 = scmp.ne.s32.totalorder %s580, %s582
    %p589 = scmp.eq.s32.totalorder %s131, 1
    %p590 = por %p588, %p589
    %p591 = scmp.ne.s32.totalorder %s582, %s583
    %p592 = scmp.eq.s32.totalorder %s131, 0
    %p593 = por %p591, %p592
    %p594 = scmp.ne.s32.totalorder %s582, %s583
    %p595 = scmp.eq.s32.totalorder %s132, 1
    %p596 = por %p594, %p595
    %p598 = scmp.ne.s32.totalorder %s583, %s597
    %p599 = scmp.eq.s32.totalorder %s132, 0
    %p600 = por %p598, %p599
    %s602 = sadd.s32 %s601, 1
    %p605 = scmp.eq.s32.totalorder %s126, 1
    %p606 = scmp.ne.s32.totalorder %s601, %s603
    %p607 = scmp.eq.s32.totalorder %s126, 0
    %p608 = por %p606, %p607
    %p609 = scmp.ne.s32.totalorder %s601, %s603
    %p610 = scmp.eq.s32.totalorder %s131, 1
    %p611 = por %p609, %p610
    %p612 = scmp.ne.s32.totalorder %s603, %s604
    %p613 = scmp.eq.s32.totalorder %s131, 0
    %p614 = por %p612, %p613
    %p615 = scmp.ne.s32.totalorder %s603, %s604
    %p616 = scmp.eq.s32.totalorder %s132, 1
    %p617 = por %p615, %p616
    %p619 = scmp.ne.s32.totalorder %s604, %s618
    %p620 = scmp.eq.s32.totalorder %s132, 0
    %p621 = por %p619, %p620
    %s623 = sadd.s32 %s622, 1
    %p626 = scmp.eq.s32.totalorder %s126, 1
    %p627 = scmp.ne.s32.totalorder %s622, %s624
    %p628 = scmp.eq.s32.totalorder %s126, 0
    %p629 = por %p627, %p628
    %p630 = scmp.ne.s32.totalorder %s622, %s624
    %p631 = scmp.eq.s32.totalorder %s131, 1
    %p632 = por %p630, %p631
    %p633 = scmp.ne.s32.totalorder %s624, %s625
    %p634 = scmp.eq.s32.totalorder %s131, 0
    %p635 = por %p633, %p634
    %p636 = scmp.ne.s32.totalorder %s624, %s625
    %p637 = scmp.eq.s32.totalorder %s132, 1
    %p638 = por %p636, %p637
    %p640 = scmp.ne.s32.totalorder %s625, %s639
    %p641 = scmp.eq.s32.totalorder %s132, 0
    %p642 = por %p640, %p641
    %s644 = sadd.s32 %s643, 1
    %p647 = scmp.eq.s32.totalorder %s126, 1
    %p648 = scmp.ne.s32.totalorder %s643, %s645
    %p649 = scmp.eq.s32.totalorder %s126, 0
    %p650 = por %p648, %p649
    %p651 = scmp.ne.s32.totalorder %s643, %s645
    %p652 = scmp.eq.s32.totalorder %s131, 1
    %p653 = por %p651, %p652
    %p654 = scmp.ne.s32.totalorder %s645, %s646
    %p655 = scmp.eq.s32.totalorder %s131, 0
    %p656 = por %p654, %p655
    %p657 = scmp.ne.s32.totalorder %s645, %s646
    %p658 = scmp.eq.s32.totalorder %s132, 1
    %p659 = por %p657, %p658
    %p661 = scmp.ne.s32.totalorder %s646, %s660
    %p662 = scmp.eq.s32.totalorder %s132, 0
    %p663 = por %p661, %p662
    %s665 = sadd.s32 %s664, 1
    %p668 = scmp.eq.s32.totalorder %s126, 1
    %p669 = scmp.ne.s32.totalorder %s664, %s666
    %p670 = scmp.eq.s32.totalorder %s126, 0
    %p671 = por %p669, %p670
    %p672 = scmp.ne.s32.totalorder %s664, %s666
    %p673 = scmp.eq.s32.totalorder %s131, 1
    %p674 = por %p672, %p673
    %p675 = scmp.ne.s32.totalorder %s666, %s667
    %p676 = scmp.eq.s32.totalorder %s131, 0
    %p677 = por %p675, %p676
    %p678 = scmp.ne.s32.totalorder %s666, %s667
    %p679 = scmp.eq.s32.totalorder %s132, 1
    %p680 = por %p678, %p679
    %p682 = scmp.ne.s32.totalorder %s667, %s681
    %p683 = scmp.eq.s32.totalorder %s132, 0
    %p684 = por %p682, %p683
    %s686 = sadd.s32 %s685, 1
    %p689 = scmp.eq.s32.totalorder %s126, 1
    %p690 = scmp.ne.s32.totalorder %s685, %s687
    %p691 = scmp.eq.s32.totalorder %s126, 0
    %p692 = por %p690, %p691
    %p693 = scmp.ne.s32.totalorder %s685, %s687
    %p694 = scmp.eq.s32.totalorder %s131, 1
    %p695 = por %p693, %p694
    %p696 = scmp.ne.s32.totalorder %s687, %s688
    %p697 = scmp.eq.s32.totalorder %s131, 0
    %p698 = por %p696, %p697
    %p699 = scmp.ne.s32.totalorder %s687, %s688
    %p700 = scmp.eq.s32.totalorder %s132, 1
    %p701 = por %p699, %p700
    %p703 = scmp.ne.s32.totalorder %s688, %s702
    %p704 = scmp.eq.s32.totalorder %s132, 0
    %p705 = por %p703, %p704
    %s707 = sadd.s32 %s706, 1
    %p710 = scmp.eq.s32.totalorder %s126, 1
    %p711 = scmp.ne.s32.totalorder %s706, %s708
    %p712 = scmp.eq.s32.totalorder %s126, 0
    %p713 = por %p711, %p712
    %p714 = scmp.ne.s32.totalorder %s706, %s708
    %p715 = scmp.eq.s32.totalorder %s131, 1
    %p716 = por %p714, %p715
    %p717 = scmp.ne.s32.totalorder %s708, %s709
    %p718 = scmp.eq.s32.totalorder %s131, 0
    %p719 = por %p717, %p718
    %p720 = scmp.ne.s32.totalorder %s708, %s709
    %p721 = scmp.eq.s32.totalorder %s132, 1
    %p722 = por %p720, %p721
    %p724 = scmp.ne.s32.totalorder %s709, %s723
    %p725 = scmp.eq.s32.totalorder %s132, 0
    %p726 = por %p724, %p725
    %s728 = sadd.s32 %s727, 1
    %p731 = scmp.eq.s32.totalorder %s126, 1
    %p732 = scmp.ne.s32.totalorder %s727, %s729
    %p733 = scmp.eq.s32.totalorder %s126, 0
    %p734 = por %p732, %p733
    %p735 = scmp.ne.s32.totalorder %s727, %s729
    %p736 = scmp.eq.s32.totalorder %s131, 1
    %p737 = por %p735, %p736
    %p738 = scmp.ne.s32.totalorder %s729, %s730
    %p739 = scmp.eq.s32.totalorder %s131, 0
    %p740 = por %p738, %p739
    %p741 = scmp.ne.s32.totalorder %s729, %s730
    %p742 = scmp.eq.s32.totalorder %s132, 1
    %p743 = por %p741, %p742
    %p745 = scmp.ne.s32.totalorder %s730, %s744
    %p746 = scmp.eq.s32.totalorder %s132, 0
    %p747 = por %p745, %p746
    %s749 = sadd.s32 %s748, 1
    %p752 = scmp.eq.s32.totalorder %s126, 1
    %p753 = scmp.ne.s32.totalorder %s748, %s750
    %p754 = scmp.eq.s32.totalorder %s126, 0
    %p755 = por %p753, %p754
    %p756 = scmp.ne.s32.totalorder %s748, %s750
    %p757 = scmp.eq.s32.totalorder %s131, 1
    %p758 = por %p756, %p757
    %p759 = scmp.ne.s32.totalorder %s750, %s751
    %p760 = scmp.eq.s32.totalorder %s131, 0
    %p761 = por %p759, %p760
    %p762 = scmp.ne.s32.totalorder %s750, %s751
    %p763 = scmp.eq.s32.totalorder %s132, 1
    %p764 = por %p762, %p763
    %p766 = scmp.ne.s32.totalorder %s751, %s765
    %p767 = scmp.eq.s32.totalorder %s132, 0
    %p768 = por %p766, %p767
    %s770 = sadd.s32 %s769, 1
    %p773 = scmp.eq.s32.totalorder %s126, 1
    %p774 = scmp.ne.s32.totalorder %s769, %s771
    %p775 = scmp.eq.s32.totalorder %s126, 0
    %p776 = por %p774, %p775
    %p777 = scmp.ne.s32.totalorder %s769, %s771
    %p778 = scmp.eq.s32.totalorder %s131, 1
    %p779 = por %p777, %p778
    %p780 = scmp.ne.s32.totalorder %s771, %s772
    %p781 = scmp.eq.s32.totalorder %s131, 0
    %p782 = por %p780, %p781
    %p783 = scmp.ne.s32.totalorder %s771, %s772
    %p784 = scmp.eq.s32.totalorder %s132, 1
    %p785 = por %p783, %p784
    %p787 = scmp.ne.s32.totalorder %s772, %s786
    %p788 = scmp.eq.s32.totalorder %s132, 0
    %p789 = por %p787, %p788
    %s791 = sadd.s32 %s790, 1
    %p794 = scmp.eq.s32.totalorder %s126, 1
    %p795 = scmp.ne.s32.totalorder %s790, %s792
    %p796 = scmp.eq.s32.totalorder %s126, 0
    %p797 = por %p795, %p796
    %p798 = scmp.ne.s32.totalorder %s790, %s792
    %p799 = scmp.eq.s32.totalorder %s131, 1
    %p800 = por %p798, %p799
    %p801 = scmp.ne.s32.totalorder %s792, %s793
    %p802 = scmp.eq.s32.totalorder %s131, 0
    %p803 = por %p801, %p802
    %p804 = scmp.ne.s32.totalorder %s792, %s793
    %p805 = scmp.eq.s32.totalorder %s132, 1
    %p806 = por %p804, %p805
    %p808 = scmp.ne.s32.totalorder %s793, %s807
    %p809 = scmp.eq.s32.totalorder %s132, 0
    %p810 = por %p808, %p809
    %s812 = sadd.s32 %s811, 1
    %p815 = scmp.eq.s32.totalorder %s126, 1
    %p816 = scmp.ne.s32.totalorder %s811, %s813
    %p817 = scmp.eq.s32.totalorder %s126, 0
    %p818 = por %p816, %p817
    %p819 = scmp.ne.s32.totalorder %s811, %s813
    %p820 = scmp.eq.s32.totalorder %s131, 1
    %p821 = por %p819, %p820
    %p822 = scmp.ne.s32.totalorder %s813, %s814
    %p823 = scmp.eq.s32.totalorder %s131, 0
    %p824 = por %p822, %p823
    %p825 = scmp.ne.s32.totalorder %s813, %s814
    %p826 = scmp.eq.s32.totalorder %s132, 1
    %p827 = por %p825, %p826
    %p829 = scmp.ne.s32.totalorder %s814, %s828
    %p830 = scmp.eq.s32.totalorder %s132, 0
    %p831 = por %p829, %p830
    %s833 = sadd.s32 %s832, 1
    %p836 = scmp.eq.s32.totalorder %s126, 1
    %p837 = scmp.ne.s32.totalorder %s832, %s834
    %p838 = scmp.eq.s32.totalorder %s126, 0
    %p839 = por %p837, %p838
    %p840 = scmp.ne.s32.totalorder %s832, %s834
    %p841 = scmp.eq.s32.totalorder %s131, 1
    %p842 = por %p840, %p841
    %p843 = scmp.ne.s32.totalorder %s834, %s835
    %p844 = scmp.eq.s32.totalorder %s131, 0
    %p845 = por %p843, %p844
    %p846 = scmp.ne.s32.totalorder %s834, %s835
    %p847 = scmp.eq.s32.totalorder %s132, 1
    %p848 = por %p846, %p847
    %p850 = scmp.ne.s32.totalorder %s835, %s849
    %p851 = scmp.eq.s32.totalorder %s132, 0
    %p852 = por %p850, %p851
    %s854 = sadd.s32 %s853, 1
    %p857 = scmp.eq.s32.totalorder %s126, 1
    %p858 = scmp.ne.s32.totalorder %s853, %s855
    %p859 = scmp.eq.s32.totalorder %s126, 0
    %p860 = por %p858, %p859
    %p861 = scmp.ne.s32.totalorder %s853, %s855
    %p862 = scmp.eq.s32.totalorder %s131, 1
    %p863 = por %p861, %p862
    %p864 = scmp.ne.s32.totalorder %s855, %s856
    %p865 = scmp.eq.s32.totalorder %s131, 0
    %p866 = por %p864, %p865
    %p867 = scmp.ne.s32.totalorder %s855, %s856
    %p868 = scmp.eq.s32.totalorder %s132, 1
    %p869 = por %p867, %p868
    %p871 = scmp.ne.s32.totalorder %s856, %s870
    %p872 = scmp.eq.s32.totalorder %s132, 0
    %p873 = por %p871, %p872
    %s875 = sadd.s32 %s874, 1
    %p878 = scmp.eq.s32.totalorder %s126, 1
    %p879 = scmp.ne.s32.totalorder %s874, %s876
    %p880 = scmp.eq.s32.totalorder %s126, 0
    %p881 = por %p879, %p880
    %p882 = scmp.ne.s32.totalorder %s874, %s876
    %p883 = scmp.eq.s32.totalorder %s131, 1
    %p884 = por %p882, %p883
    %p885 = scmp.ne.s32.totalorder %s876, %s877
    %p886 = scmp.eq.s32.totalorder %s131, 0
    %p887 = por %p885, %p886
    %p888 = scmp.ne.s32.totalorder %s876, %s877
    %p889 = scmp.eq.s32.totalorder %s132, 1
    %p890 = por %p888, %p889
    %p892 = scmp.ne.s32.totalorder %s877, %s891
    %p893 = scmp.eq.s32.totalorder %s132, 0
    %p894 = por %p892, %p893
    %s896 = sadd.s32 %s895, 1
    %p899 = scmp.eq.s32.totalorder %s126, 1
    %p900 = scmp.ne.s32.totalorder %s895, %s897
    %p901 = scmp.eq.s32.totalorder %s126, 0
    %p902 = por %p900, %p901
    %p903 = scmp.ne.s32.totalorder %s895, %s897
    %p904 = scmp.eq.s32.totalorder %s131, 1
    %p905 = por %p903, %p904
    %p906 = scmp.ne.s32.totalorder %s897, %s898
    %p907 = scmp.eq.s32.totalorder %s131, 0
    %p908 = por %p906, %p907
    %p909 = scmp.ne.s32.totalorder %s897, %s898
    %p910 = scmp.eq.s32.totalorder %s132, 1
    %p911 = por %p909, %p910
    %p913 = scmp.ne.s32.totalorder %s898, %s912
    %p914 = scmp.eq.s32.totalorder %s132, 0
    %p915 = por %p913, %p914
    %s917 = sadd.s32 %s916, 1
    %p920 = scmp.eq.s32.totalorder %s126, 1
    %p921 = scmp.ne.s32.totalorder %s916, %s918
    %p922 = scmp.eq.s32.totalorder %s126, 0
    %p923 = por %p921, %p922
    %p924 = scmp.ne.s32.totalorder %s916, %s918
    %p925 = scmp.eq.s32.totalorder %s131, 1
    %p926 = por %p924, %p925
    %p927 = scmp.ne.s32.totalorder %s918, %s919
    %p928 = scmp.eq.s32.totalorder %s131, 0
    %p929 = por %p927, %p928
    %p930 = scmp.ne.s32.totalorder %s918, %s919
    %p931 = scmp.eq.s32.totalorder %s132, 1
    %p932 = por %p930, %p931
    %p934 = scmp.ne.s32.totalorder %s919, %s933
    %p935 = scmp.eq.s32.totalorder %s132, 0
    %p936 = por %p934, %p935
    %s938 = sadd.s32 %s937, 1
    %p941 = scmp.eq.s32.totalorder %s126, 1
    %p942 = scmp.ne.s32.totalorder %s937, %s939
    %p943 = scmp.eq.s32.totalorder %s126, 0
    %p944 = por %p942, %p943
    %p945 = scmp.ne.s32.totalorder %s937, %s939
    %p946 = scmp.eq.s32.totalorder %s131, 1
    %p947 = por %p945, %p946
    %p948 = scmp.ne.s32.totalorder %s939, %s940
    %p949 = scmp.eq.s32.totalorder %s131, 0
    %p950 = por %p948, %p949
    %p951 = scmp.ne.s32.totalorder %s939, %s940
    %p952 = scmp.eq.s32.totalorder %s132, 1
    %p953 = por %p951, %p952
    %p955 = scmp.ne.s32.totalorder %s940, %s954
    %p956 = scmp.eq.s32.totalorder %s132, 0
    %p957 = por %p955, %p956
    %s959 = sadd.s32 %s958, 1
    %p962 = scmp.eq.s32.totalorder %s126, 1
    %p963 = scmp.ne.s32.totalorder %s958, %s960
    %p964 = scmp.eq.s32.totalorder %s126, 0
    %p965 = por %p963, %p964
    %p966 = scmp.ne.s32.totalorder %s958, %s960
    %p967 = scmp.eq.s32.totalorder %s131, 1
    %p968 = por %p966, %p967
    %p969 = scmp.ne.s32.totalorder %s960, %s961
    %p970 = scmp.eq.s32.totalorder %s131, 0
    %p971 = por %p969, %p970
    %p972 = scmp.ne.s32.totalorder %s960, %s961
    %p973 = scmp.eq.s32.totalorder %s132, 1
    %p974 = por %p972, %p973
    %p976 = scmp.ne.s32.totalorder %s961, %s975
    %p977 = scmp.eq.s32.totalorder %s132, 0
    %p978 = por %p976, %p977
    %s980 = sadd.s32 %s979, 1
    %p983 = scmp.eq.s32.totalorder %s126, 1
    %p984 = scmp.ne.s32.totalorder %s979, %s981
    %p985 = scmp.eq.s32.totalorder %s126, 0
    %p986 = por %p984, %p985
    %p987 = scmp.ne.s32.totalorder %s979, %s981
    %p988 = scmp.eq.s32.totalorder %s131, 1
    %p989 = por %p987, %p988
    %p990 = scmp.ne.s32.totalorder %s981, %s982
    %p991 = scmp.eq.s32.totalorder %s131, 0
    %p992 = por %p990, %p991
    %p993 = scmp.ne.s32.totalorder %s981, %s982
    %p994 = scmp.eq.s32.totalorder %s132, 1
    %p995 = por %p993, %p994
    %p997 = scmp.ne.s32.totalorder %s982, %s996
    %p998 = scmp.eq.s32.totalorder %s132, 0
    %p999 = por %p997, %p998
    %s1001 = sadd.s32 %s1000, 1
    %p1004 = scmp.eq.s32.totalorder %s126, 1
    %p1005 = scmp.ne.s32.totalorder %s1000, %s1002
    %p1006 = scmp.eq.s32.totalorder %s126, 0
    %p1007 = por %p1005, %p1006
    %p1008 = scmp.ne.s32.totalorder %s1000, %s1002
    %p1009 = scmp.eq.s32.totalorder %s131, 1
    %p1010 = por %p1008, %p1009
    %p1011 = scmp.ne.s32.totalorder %s1002, %s1003
    %p1012 = scmp.eq.s32.totalorder %s131, 0
    %p1013 = por %p1011, %p1012
    %p1014 = scmp.ne.s32.totalorder %s1002, %s1003
    %p1015 = scmp.eq.s32.totalorder %s132, 1
    %p1016 = por %p1014, %p1015
    %p1018 = scmp.ne.s32.totalorder %s1003, %s1017
    %p1019 = scmp.eq.s32.totalorder %s132, 0
    %p1020 = por %p1018, %p1019
    %s1022 = sadd.s32 %s1021, 1
    %p1025 = scmp.eq.s32.totalorder %s126, 1
    %p1026 = scmp.ne.s32.totalorder %s1021, %s1023
    %p1027 = scmp.eq.s32.totalorder %s126, 0
    %p1028 = por %p1026, %p1027
    %p1029 = scmp.ne.s32.totalorder %s1021, %s1023
    %p1030 = scmp.eq.s32.totalorder %s131, 1
    %p1031 = por %p1029, %p1030
    %p1032 = scmp.ne.s32.totalorder %s1023, %s1024
    %p1033 = scmp.eq.s32.totalorder %s131, 0
    %p1034 = por %p1032, %p1033
    %p1035 = scmp.ne.s32.totalorder %s1023, %s1024
    %p1036 = scmp.eq.s32.totalorder %s132, 1
    %p1037 = por %p1035, %p1036
    %p1039 = scmp.ne.s32.totalorder %s1024, %s1038
    %p1040 = scmp.eq.s32.totalorder %s132, 0
    %p1041 = por %p1039, %p1040
    %s1043 = sadd.s32 %s1042, 1
    %p1046 = scmp.eq.s32.totalorder %s126, 1
    %p1047 = scmp.ne.s32.totalorder %s1042, %s1044
    %p1048 = scmp.eq.s32.totalorder %s126, 0
    %p1049 = por %p1047, %p1048
    %p1050 = scmp.ne.s32.totalorder %s1042, %s1044
    %p1051 = scmp.eq.s32.totalorder %s131, 1
    %p1052 = por %p1050, %p1051
    %p1053 = scmp.ne.s32.totalorder %s1044, %s1045
    %p1054 = scmp.eq.s32.totalorder %s131, 0
    %p1055 = por %p1053, %p1054
    %p1056 = scmp.ne.s32.totalorder %s1044, %s1045
    %p1057 = scmp.eq.s32.totalorder %s132, 1
    %p1058 = por %p1056, %p1057
    %p1060 = scmp.ne.s32.totalorder %s1045, %s1059
    %p1061 = scmp.eq.s32.totalorder %s132, 0
    %p1062 = por %p1060, %p1061
    %s1064 = sadd.s32 %s1063, 1
    %p1067 = scmp.eq.s32.totalorder %s126, 1
    %p1068 = scmp.ne.s32.totalorder %s1063, %s1065
    %p1069 = scmp.eq.s32.totalorder %s126, 0
    %p1070 = por %p1068, %p1069
    %p1071 = scmp.ne.s32.totalorder %s1063, %s1065
    %p1072 = scmp.eq.s32.totalorder %s131, 1
    %p1073 = por %p1071, %p1072
    %p1074 = scmp.ne.s32.totalorder %s1065, %s1066
    %p1075 = scmp.eq.s32.totalorder %s131, 0
    %p1076 = por %p1074, %p1075
    %p1077 = scmp.ne.s32.totalorder %s1065, %s1066
    %p1078 = scmp.eq.s32.totalorder %s132, 1
    %p1079 = por %p1077, %p1078
    %p1081 = scmp.ne.s32.totalorder %s1066, %s1080
    %p1082 = scmp.eq.s32.totalorder %s132, 0
    %p1083 = por %p1081, %p1082
    %s1085 = sadd.s32 %s1084, 1
    %p1088 = scmp.eq.s32.totalorder %s126, 1
    %p1089 = scmp.ne.s32.totalorder %s1084, %s1086
    %p1090 = scmp.eq.s32.totalorder %s126, 0
    %p1091 = por %p1089, %p1090
    %p1092 = scmp.ne.s32.totalorder %s1084, %s1086
    %p1093 = scmp.eq.s32.totalorder %s131, 1
    %p1094 = por %p1092, %p1093
    %p1095 = scmp.ne.s32.totalorder %s1086, %s1087
    %p1096 = scmp.eq.s32.totalorder %s131, 0
    %p1097 = por %p1095, %p1096
    %p1098 = scmp.ne.s32.totalorder %s1086, %s1087
    %p1099 = scmp.eq.s32.totalorder %s132, 1
    %p1100 = por %p1098, %p1099
    %p1102 = scmp.ne.s32.totalorder %s1087, %s1101
    %p1103 = scmp.eq.s32.totalorder %s132, 0
    %p1104 = por %p1102, %p1103
    %s1106 = sadd.s32 %s1105, 1
    %p1109 = scmp.eq.s32.totalorder %s126, 1
    %p1110 = scmp.ne.s32.totalorder %s1105, %s1107
    %p1111 = scmp.eq.s32.totalorder %s126, 0
    %p1112 = por %p1110, %p1111
    %p1113 = scmp.ne.s32.totalorder %s1105, %s1107
    %p1114 = scmp.eq.s32.totalorder %s131, 1
    %p1115 = por %p1113, %p1114
    %p1116 = scmp.ne.s32.totalorder %s1107, %s1108
    %p1117 = scmp.eq.s32.totalorder %s131, 0
    %p1118 = por %p1116, %p1117
    %p1119 = scmp.ne.s32.totalorder %s1107, %s1108
    %p1120 = scmp.eq.s32.totalorder %s132, 1
    %p1121 = por %p1119, %p1120
    %p1123 = scmp.ne.s32.totalorder %s1108, %s1122
    %p1124 = scmp.eq.s32.totalorder %s132, 0
    %p1125 = por %p1123, %p1124
    %s1127 = sadd.s32 %s1126, 1
    %p1130 = scmp.eq.s32.totalorder %s126, 1
    %p1131 = scmp.ne.s32.totalorder %s1126, %s1128
    %p1132 = scmp.eq.s32.totalorder %s126, 0
    %p1133 = por %p1131, %p1132
    %p1134 = scmp.ne.s32.totalorder %s1126, %s1128
    %p1135 = scmp.eq.s32.totalorder %s131, 1
    %p1136 = por %p1134, %p1135
    %p1137 = scmp.ne.s32.totalorder %s1128, %s1129
    %p1138 = scmp.eq.s32.totalorder %s131, 0
    %p1139 = por %p1137, %p1138
    %p1140 = scmp.ne.s32.totalorder %s1128, %s1129
    %p1141 = scmp.eq.s32.totalorder %s132, 1
    %p1142 = por %p1140, %p1141
    %p1144 = scmp.ne.s32.totalorder %s1129, %s1143
    %p1145 = scmp.eq.s32.totalorder %s132, 0
    %p1146 = por %p1144, %p1145
    %s1148 = sadd.s32 %s1147, 1
    %p1151 = scmp.eq.s32.totalorder %s126, 1
    %p1152 = scmp.ne.s32.totalorder %s1147, %s1149
    %p1153 = scmp.eq.s32.totalorder %s126, 0
    %p1154 = por %p1152, %p1153
    %p1155 = scmp.ne.s32.totalorder %s1147, %s1149
    %p1156 = scmp.eq.s32.totalorder %s131, 1
    %p1157 = por %p1155, %p1156
    %p1158 = scmp.ne.s32.totalorder %s1149, %s1150
    %p1159 = scmp.eq.s32.totalorder %s131, 0
    %p1160 = por %p1158, %p1159
    %p1161 = scmp.ne.s32.totalorder %s1149, %s1150
    %p1162 = scmp.eq.s32.totalorder %s132, 1
    %p1163 = por %p1161, %p1162
    %p1165 = scmp.ne.s32.totalorder %s1150, %s1164
    %p1166 = scmp.eq.s32.totalorder %s132, 0
    %p1167 = por %p1165, %p1166
    %s1169 = sadd.s32 %s1168, 1
    %p1172 = scmp.eq.s32.totalorder %s126, 1
    %p1173 = scmp.ne.s32.totalorder %s1168, %s1170
    %p1174 = scmp.eq.s32.totalorder %s126, 0
    %p1175 = por %p1173, %p1174
    %p1176 = scmp.ne.s32.totalorder %s1168, %s1170
    %p1177 = scmp.eq.s32.totalorder %s131, 1
    %p1178 = por %p1176, %p1177
    %p1179 = scmp.ne.s32.totalorder %s1170, %s1171
    %p1180 = scmp.eq.s32.totalorder %s131, 0
    %p1181 = por %p1179, %p1180
    %p1182 = scmp.ne.s32.totalorder %s1170, %s1171
    %p1183 = scmp.eq.s32.totalorder %s132, 1
    %p1184 = por %p1182, %p1183
    %p1186 = scmp.ne.s32.totalorder %s1171, %s1185
    %p1187 = scmp.eq.s32.totalorder %s132, 0
    %p1188 = por %p1186, %p1187
    %s1190 = sadd.s32 %s1189, 1
    %p1193 = scmp.eq.s32.totalorder %s126, 1
    %p1194 = scmp.ne.s32.totalorder %s1189, %s1191
    %p1195 = scmp.eq.s32.totalorder %s126, 0
    %p1196 = por %p1194, %p1195
    %p1197 = scmp.ne.s32.totalorder %s1189, %s1191
    %p1198 = scmp.eq.s32.totalorder %s131, 1
    %p1199 = por %p1197, %p1198
    %p1200 = scmp.ne.s32.totalorder %s1191, %s1192
    %p1201 = scmp.eq.s32.totalorder %s131, 0
    %p1202 = por %p1200, %p1201
    %p1203 = scmp.ne.s32.totalorder %s1191, %s1192
    %p1204 = scmp.eq.s32.totalorder %s132, 1
    %p1205 = por %p1203, %p1204
    %p1207 = scmp.ne.s32.totalorder %s1192, %s1206
    %p1208 = scmp.eq.s32.totalorder %s132, 0
    %p1209 = por %p1207, %p1208
    %s1211 = sadd.s32 %s1210, 1
    %p1214 = scmp.eq.s32.totalorder %s126, 1
    %p1215 = scmp.ne.s32.totalorder %s1210, %s1212
    %p1216 = scmp.eq.s32.totalorder %s126, 0
    %p1217 = por %p1215, %p1216
    %p1218 = scmp.ne.s32.totalorder %s1210, %s1212
    %p1219 = scmp.eq.s32.totalorder %s131, 1
    %p1220 = por %p1218, %p1219
    %p1221 = scmp.ne.s32.totalorder %s1212, %s1213
    %p1222 = scmp.eq.s32.totalorder %s131, 0
    %p1223 = por %p1221, %p1222
    %p1224 = scmp.ne.s32.totalorder %s1212, %s1213
    %p1225 = scmp.eq.s32.totalorder %s132, 1
    %p1226 = por %p1224, %p1225
    %p1228 = scmp.ne.s32.totalorder %s1213, %s1227
    %p1229 = scmp.eq.s32.totalorder %s132, 0
    %p1230 = por %p1228, %p1229
    %s1232 = sadd.s32 %s1231, 1
    %p1235 = scmp.eq.s32.totalorder %s126, 1
    %p1236 = scmp.ne.s32.totalorder %s1231, %s1233
    %p1237 = scmp.eq.s32.totalorder %s126, 0
    %p1238 = por %p1236, %p1237
    %p1239 = scmp.ne.s32.totalorder %s1231, %s1233
    %p1240 = scmp.eq.s32.totalorder %s131, 1
    %p1241 = por %p1239, %p1240
    %p1242 = scmp.ne.s32.totalorder %s1233, %s1234
    %p1243 = scmp.eq.s32.totalorder %s131, 0
    %p1244 = por %p1242, %p1243
    %p1245 = scmp.ne.s32.totalorder %s1233, %s1234
    %p1246 = scmp.eq.s32.totalorder %s132, 1
    %p1247 = por %p1245, %p1246
    %p1249 = scmp.ne.s32.totalorder %s1234, %s1248
    %p1250 = scmp.eq.s32.totalorder %s132, 0
    %p1251 = por %p1249, %p1250
    %s1253 = sadd.s32 %s1252, 1
    %p1256 = scmp.eq.s32.totalorder %s126, 1
    %p1257 = scmp.ne.s32.totalorder %s1252, %s1254
    %p1258 = scmp.eq.s32.totalorder %s126, 0
    %p1259 = por %p1257, %p1258
    %p1260 = scmp.ne.s32.totalorder %s1252, %s1254
    %p1261 = scmp.eq.s32.totalorder %s131, 1
    %p1262 = por %p1260, %p1261
    %p1263 = scmp.ne.s32.totalorder %s1254, %s1255
    %p1264 = scmp.eq.s32.totalorder %s131, 0
    %p1265 = por %p1263, %p1264
    %p1266 = scmp.ne.s32.totalorder %s1254, %s1255
    %p1267 = scmp.eq.s32.totalorder %s132, 1
    %p1268 = por %p1266, %p1267
    %p1270 = scmp.ne.s32.totalorder %s1255, %s1269
    %p1271 = scmp.eq.s32.totalorder %s132, 0
    %p1272 = por %p1270, %p1271
    %s1274 = sadd.s32 %s1273, 1
    %p1277 = scmp.eq.s32.totalorder %s126, 1
    %p1278 = scmp.ne.s32.totalorder %s1273, %s1275
    %p1279 = scmp.eq.s32.totalorder %s126, 0
    %p1280 = por %p1278, %p1279
    %p1281 = scmp.ne.s32.totalorder %s1273, %s1275
    %p1282 = scmp.eq.s32.totalorder %s131, 1
    %p1283 = por %p1281, %p1282
    %p1284 = scmp.ne.s32.totalorder %s1275, %s1276
    %p1285 = scmp.eq.s32.totalorder %s131, 0
    %p1286 = por %p1284, %p1285
    %p1287 = scmp.ne.s32.totalorder %s1275, %s1276
    %p1288 = scmp.eq.s32.totalorder %s132, 1
    %p1289 = por %p1287, %p1288
    %p1291 = scmp.ne.s32.totalorder %s1276, %s1290
    %p1292 = scmp.eq.s32.totalorder %s132, 0
    %p1293 = por %p1291, %p1292
    %s1295 = sadd.s32 %s1294, 1
    %p1298 = scmp.eq.s32.totalorder %s126, 1
    %p1299 = scmp.ne.s32.totalorder %s1294, %s1296
    %p1300 = scmp.eq.s32.totalorder %s126, 0
    %p1301 = por %p1299, %p1300
    %p1302 = scmp.ne.s32.totalorder %s1294, %s1296
    %p1303 = scmp.eq.s32.totalorder %s131, 1
    %p1304 = por %p1302, %p1303
    %p1305 = scmp.ne.s32.totalorder %s1296, %s1297
    %p1306 = scmp.eq.s32.totalorder %s131, 0
    %p1307 = por %p1305, %p1306
    %p1308 = scmp.ne.s32.totalorder %s1296, %s1297
    %p1309 = scmp.eq.s32.totalorder %s132, 1
    %p1310 = por %p1308, %p1309
    %p1312 = scmp.ne.s32.totalorder %s1297, %s1311
    %p1313 = scmp.eq.s32.totalorder %s132, 0
    %p1314 = por %p1312, %p1313
    %s1315 = ssub.s32 %s126, %s133
    %p1316 = scmp.eq.s32.totalorder %s1315, 0
    %s1318 = sadd.s32 %s1317, 1
    %s1319 = scalar_select %p1316, %s1317, %s1318
    %p1322 = pneg %p1316
    %p1323 = scmp.eq.s32.totalorder %s126, 1
    %p1324 = por %p1322, %p1323
    %p1325 = scmp.ne.s32.totalorder %s1317, %s1320
    %p1326 = scmp.eq.s32.totalorder %s126, 0
    %p1327 = por %p1325, %p1326
    %p1328 = scmp.ne.s32.totalorder %s1317, %s1320
    %p1329 = scmp.eq.s32.totalorder %s131, 1
    %p1330 = por %p1328, %p1329
    %p1331 = scmp.ne.s32.totalorder %s1320, %s1321
    %p1332 = scmp.eq.s32.totalorder %s131, 0
    %p1333 = por %p1331, %p1332
    %p1334 = scmp.ne.s32.totalorder %s1320, %s1321
    %p1335 = scmp.eq.s32.totalorder %s132, 1
    %p1336 = por %p1334, %p1335
    %p1338 = scmp.ne.s32.totalorder %s1321, %s1337
    %p1339 = scmp.eq.s32.totalorder %s132, 0
    %p1340 = por %p1338, %p1339
    %s1341 = ssub.s32 %s126, %s133
    %p1342 = scmp.eq.s32.totalorder %s1341, 0
    %s1344 = sadd.s32 %s1343, 1
    %s1345 = scalar_select %p1342, %s1343, %s1344
    %p1348 = pneg %p1342
    %p1349 = scmp.eq.s32.totalorder %s126, 1
    %p1350 = por %p1348, %p1349
    %p1351 = scmp.ne.s32.totalorder %s1343, %s1346
    %p1352 = scmp.eq.s32.totalorder %s126, 0
    %p1353 = por %p1351, %p1352
    %p1354 = scmp.ne.s32.totalorder %s1343, %s1346
    %p1355 = scmp.eq.s32.totalorder %s131, 1
    %p1356 = por %p1354, %p1355
    %p1357 = scmp.ne.s32.totalorder %s1346, %s1347
    %p1358 = scmp.eq.s32.totalorder %s131, 0
    %p1359 = por %p1357, %p1358
    %p1360 = scmp.ne.s32.totalorder %s1346, %s1347
    %p1361 = scmp.eq.s32.totalorder %s132, 1
    %p1362 = por %p1360, %p1361
    %p1364 = scmp.ne.s32.totalorder %s1347, %s1363
    %p1365 = scmp.eq.s32.totalorder %s132, 0
    %p1366 = por %p1364, %p1365
    %s1367 = ssub.s32 %s126, %s133
    %p1368 = scmp.eq.s32.totalorder %s1367, 0
    %s1370 = sadd.s32 %s1369, 1
    %s1371 = scalar_select %p1368, %s1369, %s1370
    %p1374 = pneg %p1368
    %p1375 = scmp.eq.s32.totalorder %s126, 1
    %p1376 = por %p1374, %p1375
    %p1377 = scmp.ne.s32.totalorder %s1369, %s1372
    %p1378 = scmp.eq.s32.totalorder %s126, 0
    %p1379 = por %p1377, %p1378
    %p1380 = scmp.ne.s32.totalorder %s1369, %s1372
    %p1381 = scmp.eq.s32.totalorder %s131, 1
    %p1382 = por %p1380, %p1381
    %p1383 = scmp.ne.s32.totalorder %s1372, %s1373
    %p1384 = scmp.eq.s32.totalorder %s131, 0
    %p1385 = por %p1383, %p1384
    %p1386 = scmp.ne.s32.totalorder %s1372, %s1373
    %p1387 = scmp.eq.s32.totalorder %s132, 1
    %p1388 = por %p1386, %p1387
    %p1390 = scmp.ne.s32.totalorder %s1373, %s1389
    %p1391 = scmp.eq.s32.totalorder %s132, 0
    %p1392 = por %p1390, %p1391
    %s1393 = ssub.s32 %s126, %s133
    %p1394 = scmp.eq.s32.totalorder %s1393, 0
    %s1396 = sadd.s32 %s1395, 1
    %s1397 = scalar_select %p1394, %s1395, %s1396
    %p1400 = pneg %p1394
    %p1401 = scmp.eq.s32.totalorder %s126, 1
    %p1402 = por %p1400, %p1401
    %p1403 = scmp.ne.s32.totalorder %s1395, %s1398
    %p1404 = scmp.eq.s32.totalorder %s126, 0
    %p1405 = por %p1403, %p1404
    %p1406 = scmp.ne.s32.totalorder %s1395, %s1398
    %p1407 = scmp.eq.s32.totalorder %s131, 1
    %p1408 = por %p1406, %p1407
    %p1409 = scmp.ne.s32.totalorder %s1398, %s1399
    %p1410 = scmp.eq.s32.totalorder %s131, 0
    %p1411 = por %p1409, %p1410
    %p1412 = scmp.ne.s32.totalorder %s1398, %s1399
    %p1413 = scmp.eq.s32.totalorder %s132, 1
    %p1414 = por %p1412, %p1413
    %p1416 = scmp.ne.s32.totalorder %s1399, %s1415
    %p1417 = scmp.eq.s32.totalorder %s132, 0
    %p1418 = por %p1416, %p1417
    %p1419 = scmp.le.s32.totalorder 1, %s126
    %p1420 = scmp.lt.s32.totalorder %s126, 3
    %p1421 = pnand %p1419, %p1420
    %p1422 = pneg %p1421
    // Predicated region
    $region9: #{discriminator_forward.1} parent=5 // pred_check
      _
    $region10: #{discriminator_forward.1} parent=5 // pred_check_branch
      %1424 = sbr.rel (%p1421) target = $region12
    $region11: #{discriminator_forward.1} parent=5 // pred_region
      %s1425 = ssub.s32 %s126, 1
      // Predicated region
      $region13: #{discriminator_forward.1} parent=11 // pred_check
        %p1426 = pneg %p173
      $region14: #{discriminator_forward.1} parent=11 // pred_check_branch
        %1428 = sbr.rel (%p1426) target = $region16
      $region15: #{discriminator_forward.1} parent=11 // pred_region
        _
      $region16: #{discriminator_forward.1} parent=11 // pred_fallthru
        _
      // Predicated region
      $region17: #{discriminator_forward.1} parent=11 // pred_check
        %p1429 = pneg %p194
      $region18: #{discriminator_forward.1} parent=11 // pred_check_branch
        %1431 = sbr.rel (%p1429) target = $region20
      $region19: #{discriminator_forward.1} parent=11 // pred_region
        _
      $region20: #{discriminator_forward.1} parent=11 // pred_fallthru
        _
      // Predicated region
      $region21: #{discriminator_forward.1} parent=11 // pred_check
        %p1432 = pneg %p215
      $region22: #{discriminator_forward.1} parent=11 // pred_check_branch
        %1434 = sbr.rel (%p1432) target = $region24
      $region23: #{discriminator_forward.1} parent=11 // pred_region
        _
      $region24: #{discriminator_forward.1} parent=11 // pred_fallthru
        _
      // Predicated region
      $region25: #{discriminator_forward.1} parent=11 // pred_check
        %p1435 = pneg %p236
      $region26: #{discriminator_forward.1} parent=11 // pred_check_branch
        %1437 = sbr.rel (%p1435) target = $region28
      $region27: #{discriminator_forward.1} parent=11 // pred_region
        _
      $region28: #{discriminator_forward.1} parent=11 // pred_fallthru
        _
      // Predicated region
      $region29: #{discriminator_forward.1} parent=11 // pred_check
        %p1438 = pneg %p257
      $region30: #{discriminator_forward.1} parent=11 // pred_check_branch
        %1440 = sbr.rel (%p1438) target = $region32
      $region31: #{discriminator_forward.1} parent=11 // pred_region
        _
      $region32: #{discriminator_forward.1} parent=11 // pred_fallthru
        _
      // Predicated region
      $region33: #{discriminator_forward.1} parent=11 // pred_check
        %p1441 = pneg %p278
      $region34: #{discriminator_forward.1} parent=11 // pred_check_branch
        %1443 = sbr.rel (%p1441) target = $region36
      $region35: #{discriminator_forward.1} parent=11 // pred_region
        _
      $region36: #{discriminator_forward.1} parent=11 // pred_fallthru
        _
      // Predicated region
      $region37: #{discriminator_forward.1} parent=11 // pred_check
        %p1444 = pneg %p299
      $region38: #{discriminator_forward.1} parent=11 // pred_check_branch
        %1446 = sbr.rel (%p1444) target = $region40
      $region39: #{discriminator_forward.1} parent=11 // pred_region
        _
      $region40: #{discriminator_forward.1} parent=11 // pred_fallthru
        _
      // Predicated region
      $region41: #{discriminator_forward.1} parent=11 // pred_check
        %p1447 = pneg %p320
      $region42: #{discriminator_forward.1} parent=11 // pred_check_branch
        %1449 = sbr.rel (%p1447) target = $region44
      $region43: #{discriminator_forward.1} parent=11 // pred_region
        _
      $region44: #{discriminator_forward.1} parent=11 // pred_fallthru
        _
      // Predicated region
      $region45: #{discriminator_forward.1} parent=11 // pred_check
        %p1450 = pneg %p341
      $region46: #{discriminator_forward.1} parent=11 // pred_check_branch
        %1452 = sbr.rel (%p1450) target = $region48
      $region47: #{discriminator_forward.1} parent=11 // pred_region
        _
      $region48: #{discriminator_forward.1} parent=11 // pred_fallthru
        _
      // Predicated region
      $region49: #{discriminator_forward.1} parent=11 // pred_check
        %p1453 = pneg %p362
      $region50: #{discriminator_forward.1} parent=11 // pred_check_branch
        %1455 = sbr.rel (%p1453) target = $region52
      $region51: #{discriminator_forward.1} parent=11 // pred_region
        _
      $region52: #{discriminator_forward.1} parent=11 // pred_fallthru
        _
      // Predicated region
      $region53: #{discriminator_forward.1} parent=11 // pred_check
        %p1456 = pneg %p383
      $region54: #{discriminator_forward.1} parent=11 // pred_check_branch
        %1458 = sbr.rel (%p1456) target = $region56
      $region55: #{discriminator_forward.1} parent=11 // pred_region
        _
      $region56: #{discriminator_forward.1} parent=11 // pred_fallthru
        _
      // Predicated region
      $region57: #{discriminator_forward.1} parent=11 // pred_check
        %p1459 = pneg %p404
      $region58: #{discriminator_forward.1} parent=11 // pred_check_branch
        %1461 = sbr.rel (%p1459) target = $region60
      $region59: #{discriminator_forward.1} parent=11 // pred_region
        _
      $region60: #{discriminator_forward.1} parent=11 // pred_fallthru
        _
      // Predicated region
      $region61: #{discriminator_forward.1} parent=11 // pred_check
        %p1462 = pneg %p425
      $region62: #{discriminator_forward.1} parent=11 // pred_check_branch
        %1464 = sbr.rel (%p1462) target = $region64
      $region63: #{discriminator_forward.1} parent=11 // pred_region
        _
      $region64: #{discriminator_forward.1} parent=11 // pred_fallthru
        _
      // Predicated region
      $region65: #{discriminator_forward.1} parent=11 // pred_check
        %p1465 = pneg %p446
      $region66: #{discriminator_forward.1} parent=11 // pred_check_branch
        %1467 = sbr.rel (%p1465) target = $region68
      $region67: #{discriminator_forward.1} parent=11 // pred_region
        _
      $region68: #{discriminator_forward.1} parent=11 // pred_fallthru
        _
      // Predicated region
      $region69: #{discriminator_forward.1} parent=11 // pred_check
        %p1468 = pneg %p467
      $region70: #{discriminator_forward.1} parent=11 // pred_check_branch
        %1470 = sbr.rel (%p1468) target = $region72
      $region71: #{discriminator_forward.1} parent=11 // pred_region
        _
      $region72: #{discriminator_forward.1} parent=11 // pred_fallthru
        _
      // Predicated region
      $region73: #{discriminator_forward.1} parent=11 // pred_check
        %p1471 = pneg %p488
      $region74: #{discriminator_forward.1} parent=11 // pred_check_branch
        %1473 = sbr.rel (%p1471) target = $region76
      $region75: #{discriminator_forward.1} parent=11 // pred_region
        _
      $region76: #{discriminator_forward.1} parent=11 // pred_fallthru
        _
      // Predicated region
      $region77: #{discriminator_forward.1} parent=11 // pred_check
        %p1474 = pneg %p509
      $region78: #{discriminator_forward.1} parent=11 // pred_check_branch
        %1476 = sbr.rel (%p1474) target = $region80
      $region79: #{discriminator_forward.1} parent=11 // pred_region
        _
      $region80: #{discriminator_forward.1} parent=11 // pred_fallthru
        _
      // Predicated region
      $region81: #{discriminator_forward.1} parent=11 // pred_check
        %p1477 = pneg %p530
      $region82: #{discriminator_forward.1} parent=11 // pred_check_branch
        %1479 = sbr.rel (%p1477) target = $region84
      $region83: #{discriminator_forward.1} parent=11 // pred_region
        _
      $region84: #{discriminator_forward.1} parent=11 // pred_fallthru
        _
      // Predicated region
      $region85: #{discriminator_forward.1} parent=11 // pred_check
        %p1480 = pneg %p551
      $region86: #{discriminator_forward.1} parent=11 // pred_check_branch
        %1482 = sbr.rel (%p1480) target = $region88
      $region87: #{discriminator_forward.1} parent=11 // pred_region
        _
      $region88: #{discriminator_forward.1} parent=11 // pred_fallthru
        _
      // Predicated region
      $region89: #{discriminator_forward.1} parent=11 // pred_check
        %p1483 = pneg %p572
      $region90: #{discriminator_forward.1} parent=11 // pred_check_branch
        %1485 = sbr.rel (%p1483) target = $region92
      $region91: #{discriminator_forward.1} parent=11 // pred_region
        _
      $region92: #{discriminator_forward.1} parent=11 // pred_fallthru
        _
      // Predicated region
      $region93: #{discriminator_forward.1} parent=11 // pred_check
        %p1486 = pneg %p593
      $region94: #{discriminator_forward.1} parent=11 // pred_check_branch
        %1488 = sbr.rel (%p1486) target = $region96
      $region95: #{discriminator_forward.1} parent=11 // pred_region
        _
      $region96: #{discriminator_forward.1} parent=11 // pred_fallthru
        _
      // Predicated region
      $region97: #{discriminator_forward.1} parent=11 // pred_check
        %p1489 = pneg %p614
      $region98: #{discriminator_forward.1} parent=11 // pred_check_branch
        %1491 = sbr.rel (%p1489) target = $region100
      $region99: #{discriminator_forward.1} parent=11 // pred_region
        _
      $region100: #{discriminator_forward.1} parent=11 // pred_fallthru
        _
      // Predicated region
      $region101: #{discriminator_forward.1} parent=11 // pred_check
        %p1492 = pneg %p635
      $region102: #{discriminator_forward.1} parent=11 // pred_check_branch
        %1494 = sbr.rel (%p1492) target = $region104
      $region103: #{discriminator_forward.1} parent=11 // pred_region
        _
      $region104: #{discriminator_forward.1} parent=11 // pred_fallthru
        _
      // Predicated region
      $region105: #{discriminator_forward.1} parent=11 // pred_check
        %p1495 = pneg %p656
      $region106: #{discriminator_forward.1} parent=11 // pred_check_branch
        %1497 = sbr.rel (%p1495) target = $region108
      $region107: #{discriminator_forward.1} parent=11 // pred_region
        _
      $region108: #{discriminator_forward.1} parent=11 // pred_fallthru
        _
      // Predicated region
      $region109: #{discriminator_forward.1} parent=11 // pred_check
        %p1498 = pneg %p677
      $region110: #{discriminator_forward.1} parent=11 // pred_check_branch
        %1500 = sbr.rel (%p1498) target = $region112
      $region111: #{discriminator_forward.1} parent=11 // pred_region
        _
      $region112: #{discriminator_forward.1} parent=11 // pred_fallthru
        _
      // Predicated region
      $region113: #{discriminator_forward.1} parent=11 // pred_check
        %p1501 = pneg %p698
      $region114: #{discriminator_forward.1} parent=11 // pred_check_branch
        %1503 = sbr.rel (%p1501) target = $region116
      $region115: #{discriminator_forward.1} parent=11 // pred_region
        _
      $region116: #{discriminator_forward.1} parent=11 // pred_fallthru
        _
      // Predicated region
      $region117: #{discriminator_forward.1} parent=11 // pred_check
        %p1504 = pneg %p719
      $region118: #{discriminator_forward.1} parent=11 // pred_check_branch
        %1506 = sbr.rel (%p1504) target = $region120
      $region119: #{discriminator_forward.1} parent=11 // pred_region
        _
      $region120: #{discriminator_forward.1} parent=11 // pred_fallthru
        _
      // Predicated region
      $region121: #{discriminator_forward.1} parent=11 // pred_check
        %p1507 = pneg %p740
      $region122: #{discriminator_forward.1} parent=11 // pred_check_branch
        %1509 = sbr.rel (%p1507) target = $region124
      $region123: #{discriminator_forward.1} parent=11 // pred_region
        _
      $region124: #{discriminator_forward.1} parent=11 // pred_fallthru
        _
      // Predicated region
      $region125: #{discriminator_forward.1} parent=11 // pred_check
        %p1510 = pneg %p761
      $region126: #{discriminator_forward.1} parent=11 // pred_check_branch
        %1512 = sbr.rel (%p1510) target = $region128
      $region127: #{discriminator_forward.1} parent=11 // pred_region
        _
      $region128: #{discriminator_forward.1} parent=11 // pred_fallthru
        _
      // Predicated region
      $region129: #{discriminator_forward.1} parent=11 // pred_check
        %p1513 = pneg %p782
      $region130: #{discriminator_forward.1} parent=11 // pred_check_branch
        %1515 = sbr.rel (%p1513) target = $region132
      $region131: #{discriminator_forward.1} parent=11 // pred_region
        _
      $region132: #{discriminator_forward.1} parent=11 // pred_fallthru
        _
      // Predicated region
      $region133: #{discriminator_forward.1} parent=11 // pred_check
        %p1516 = pneg %p803
      $region134: #{discriminator_forward.1} parent=11 // pred_check_branch
        %1518 = sbr.rel (%p1516) target = $region136
      $region135: #{discriminator_forward.1} parent=11 // pred_region
        _
      $region136: #{discriminator_forward.1} parent=11 // pred_fallthru
        _
      // Predicated region
      $region137: #{discriminator_forward.1} parent=11 // pred_check
        %p1519 = pneg %p824
      $region138: #{discriminator_forward.1} parent=11 // pred_check_branch
        %1521 = sbr.rel (%p1519) target = $region140
      $region139: #{discriminator_forward.1} parent=11 // pred_region
        _
      $region140: #{discriminator_forward.1} parent=11 // pred_fallthru
        _
      // Predicated region
      $region141: #{discriminator_forward.1} parent=11 // pred_check
        %p1522 = pneg %p845
      $region142: #{discriminator_forward.1} parent=11 // pred_check_branch
        %1524 = sbr.rel (%p1522) target = $region144
      $region143: #{discriminator_forward.1} parent=11 // pred_region
        _
      $region144: #{discriminator_forward.1} parent=11 // pred_fallthru
        _
      // Predicated region
      $region145: #{discriminator_forward.1} parent=11 // pred_check
        %p1525 = pneg %p866
      $region146: #{discriminator_forward.1} parent=11 // pred_check_branch
        %1527 = sbr.rel (%p1525) target = $region148
      $region147: #{discriminator_forward.1} parent=11 // pred_region
        _
      $region148: #{discriminator_forward.1} parent=11 // pred_fallthru
        _
      // Predicated region
      $region149: #{discriminator_forward.1} parent=11 // pred_check
        %p1528 = pneg %p887
      $region150: #{discriminator_forward.1} parent=11 // pred_check_branch
        %1530 = sbr.rel (%p1528) target = $region152
      $region151: #{discriminator_forward.1} parent=11 // pred_region
        _
      $region152: #{discriminator_forward.1} parent=11 // pred_fallthru
        _
      // Predicated region
      $region153: #{discriminator_forward.1} parent=11 // pred_check
        %p1531 = pneg %p908
      $region154: #{discriminator_forward.1} parent=11 // pred_check_branch
        %1533 = sbr.rel (%p1531) target = $region156
      $region155: #{discriminator_forward.1} parent=11 // pred_region
        _
      $region156: #{discriminator_forward.1} parent=11 // pred_fallthru
        _
      // Predicated region
      $region157: #{discriminator_forward.1} parent=11 // pred_check
        %p1534 = pneg %p929
      $region158: #{discriminator_forward.1} parent=11 // pred_check_branch
        %1536 = sbr.rel (%p1534) target = $region160
      $region159: #{discriminator_forward.1} parent=11 // pred_region
        _
      $region160: #{discriminator_forward.1} parent=11 // pred_fallthru
        _
      // Predicated region
      $region161: #{discriminator_forward.1} parent=11 // pred_check
        %p1537 = pneg %p950
      $region162: #{discriminator_forward.1} parent=11 // pred_check_branch
        %1539 = sbr.rel (%p1537) target = $region164
      $region163: #{discriminator_forward.1} parent=11 // pred_region
        _
      $region164: #{discriminator_forward.1} parent=11 // pred_fallthru
        _
      // Predicated region
      $region165: #{discriminator_forward.1} parent=11 // pred_check
        %p1540 = pneg %p971
      $region166: #{discriminator_forward.1} parent=11 // pred_check_branch
        %1542 = sbr.rel (%p1540) target = $region168
      $region167: #{discriminator_forward.1} parent=11 // pred_region
        _
      $region168: #{discriminator_forward.1} parent=11 // pred_fallthru
        _
      // Predicated region
      $region169: #{discriminator_forward.1} parent=11 // pred_check
        %p1543 = pneg %p992
      $region170: #{discriminator_forward.1} parent=11 // pred_check_branch
        %1545 = sbr.rel (%p1543) target = $region172
      $region171: #{discriminator_forward.1} parent=11 // pred_region
        _
      $region172: #{discriminator_forward.1} parent=11 // pred_fallthru
        _
      // Predicated region
      $region173: #{discriminator_forward.1} parent=11 // pred_check
        %p1546 = pneg %p1013
      $region174: #{discriminator_forward.1} parent=11 // pred_check_branch
        %1548 = sbr.rel (%p1546) target = $region176
      $region175: #{discriminator_forward.1} parent=11 // pred_region
        _
      $region176: #{discriminator_forward.1} parent=11 // pred_fallthru
        _
      // Predicated region
      $region177: #{discriminator_forward.1} parent=11 // pred_check
        %p1549 = pneg %p1034
      $region178: #{discriminator_forward.1} parent=11 // pred_check_branch
        %1551 = sbr.rel (%p1549) target = $region180
      $region179: #{discriminator_forward.1} parent=11 // pred_region
        _
      $region180: #{discriminator_forward.1} parent=11 // pred_fallthru
        _
      // Predicated region
      $region181: #{discriminator_forward.1} parent=11 // pred_check
        %p1552 = pneg %p1055
      $region182: #{discriminator_forward.1} parent=11 // pred_check_branch
        %1554 = sbr.rel (%p1552) target = $region184
      $region183: #{discriminator_forward.1} parent=11 // pred_region
        _
      $region184: #{discriminator_forward.1} parent=11 // pred_fallthru
        _
      // Predicated region
      $region185: #{discriminator_forward.1} parent=11 // pred_check
        %p1555 = pneg %p1076
      $region186: #{discriminator_forward.1} parent=11 // pred_check_branch
        %1557 = sbr.rel (%p1555) target = $region188
      $region187: #{discriminator_forward.1} parent=11 // pred_region
        _
      $region188: #{discriminator_forward.1} parent=11 // pred_fallthru
        _
      // Predicated region
      $region189: #{discriminator_forward.1} parent=11 // pred_check
        %p1558 = pneg %p1097
      $region190: #{discriminator_forward.1} parent=11 // pred_check_branch
        %1560 = sbr.rel (%p1558) target = $region192
      $region191: #{discriminator_forward.1} parent=11 // pred_region
        _
      $region192: #{discriminator_forward.1} parent=11 // pred_fallthru
        _
      // Predicated region
      $region193: #{discriminator_forward.1} parent=11 // pred_check
        %p1561 = pneg %p1118
      $region194: #{discriminator_forward.1} parent=11 // pred_check_branch
        %1563 = sbr.rel (%p1561) target = $region196
      $region195: #{discriminator_forward.1} parent=11 // pred_region
        _
      $region196: #{discriminator_forward.1} parent=11 // pred_fallthru
        _
      // Predicated region
      $region197: #{discriminator_forward.1} parent=11 // pred_check
        %p1564 = pneg %p1139
      $region198: #{discriminator_forward.1} parent=11 // pred_check_branch
        %1566 = sbr.rel (%p1564) target = $region200
      $region199: #{discriminator_forward.1} parent=11 // pred_region
        _
      $region200: #{discriminator_forward.1} parent=11 // pred_fallthru
        _
      // Predicated region
      $region201: #{discriminator_forward.1} parent=11 // pred_check
        %p1567 = pneg %p1160
      $region202: #{discriminator_forward.1} parent=11 // pred_check_branch
        %1569 = sbr.rel (%p1567) target = $region204
      $region203: #{discriminator_forward.1} parent=11 // pred_region
        _
      $region204: #{discriminator_forward.1} parent=11 // pred_fallthru
        _
      // Predicated region
      $region205: #{discriminator_forward.1} parent=11 // pred_check
        %p1570 = pneg %p1181
      $region206: #{discriminator_forward.1} parent=11 // pred_check_branch
        %1572 = sbr.rel (%p1570) target = $region208
      $region207: #{discriminator_forward.1} parent=11 // pred_region
        _
      $region208: #{discriminator_forward.1} parent=11 // pred_fallthru
        _
      // Predicated region
      $region209: #{discriminator_forward.1} parent=11 // pred_check
        %p1573 = pneg %p1202
      $region210: #{discriminator_forward.1} parent=11 // pred_check_branch
        %1575 = sbr.rel (%p1573) target = $region212
      $region211: #{discriminator_forward.1} parent=11 // pred_region
        _
      $region212: #{discriminator_forward.1} parent=11 // pred_fallthru
        _
      // Predicated region
      $region213: #{discriminator_forward.1} parent=11 // pred_check
        %p1576 = pneg %p1223
      $region214: #{discriminator_forward.1} parent=11 // pred_check_branch
        %1578 = sbr.rel (%p1576) target = $region216
      $region215: #{discriminator_forward.1} parent=11 // pred_region
        _
      $region216: #{discriminator_forward.1} parent=11 // pred_fallthru
        _
      // Predicated region
      $region217: #{discriminator_forward.1} parent=11 // pred_check
        %p1579 = pneg %p1244
      $region218: #{discriminator_forward.1} parent=11 // pred_check_branch
        %1581 = sbr.rel (%p1579) target = $region220
      $region219: #{discriminator_forward.1} parent=11 // pred_region
        _
      $region220: #{discriminator_forward.1} parent=11 // pred_fallthru
        _
      // Predicated region
      $region221: #{discriminator_forward.1} parent=11 // pred_check
        %p1582 = pneg %p1265
      $region222: #{discriminator_forward.1} parent=11 // pred_check_branch
        %1584 = sbr.rel (%p1582) target = $region224
      $region223: #{discriminator_forward.1} parent=11 // pred_region
        _
      $region224: #{discriminator_forward.1} parent=11 // pred_fallthru
        _
      // Predicated region
      $region225: #{discriminator_forward.1} parent=11 // pred_check
        %p1585 = pneg %p1286
      $region226: #{discriminator_forward.1} parent=11 // pred_check_branch
        %1587 = sbr.rel (%p1585) target = $region228
      $region227: #{discriminator_forward.1} parent=11 // pred_region
        _
      $region228: #{discriminator_forward.1} parent=11 // pred_fallthru
        _
      // Predicated region
      $region229: #{discriminator_forward.1} parent=11 // pred_check
        %p1588 = pneg %p1307
      $region230: #{discriminator_forward.1} parent=11 // pred_check_branch
        %1590 = sbr.rel (%p1588) target = $region232
      $region231: #{discriminator_forward.1} parent=11 // pred_region
        _
      $region232: #{discriminator_forward.1} parent=11 // pred_fallthru
        _
    $region12: #{discriminator_forward.1} parent=5 // pred_fallthru
      _
    %p1591 = scmp.lt.s32.totalorder %s126, 2
    // Predicated region
    $region233: #{discriminator_forward.1} parent=5 // pred_check
      %p1592 = pneg %p1591
    $region234: #{discriminator_forward.1} parent=5 // pred_check_branch
      %1594 = sbr.rel (%p1592) target = $region236
    $region235: #{discriminator_forward.1} parent=5 // pred_region
      // Predicated region
      $region237: #{discriminator_forward.1} parent=235 // pred_check
        %p1595 = pneg %p146
      $region238: #{discriminator_forward.1} parent=235 // pred_check_branch
        %1597 = sbr.rel (%p1595) target = $region240
      $region239: #{discriminator_forward.1} parent=235 // pred_region
        %p1598 = scmp.lt.s32.totalorder %s126, 1
        %s1599 = scalar_select %p1598, %s126, 1
        %s1600 = smul.addr %s1599, 2
        %s1601 = smul.addr %s1600, 8
        %s1602 = scalar_lea.vmem %s1, %s1601
      $region240: #{discriminator_forward.1} parent=235 // pred_fallthru
        _
    $region236: #{discriminator_forward.1} parent=5 // pred_fallthru
      _
    %p1603 = scmp.le.s32.totalorder 1, %s126
    %p1604 = scmp.lt.s32.totalorder %s126, 3
    %p1605 = pnand %p1603, %p1604
    %p1606 = pneg %p1605
    // Predicated region
    $region241: #{discriminator_forward.1} parent=5 // pred_check
      _
    $region242: #{discriminator_forward.1} parent=5 // pred_check_branch
      %1608 = sbr.rel (%p1605) target = $region244
    $region243: #{discriminator_forward.1} parent=5 // pred_region
      %s1609 = ssub.s32 %s126, 1
      %p1610 = scmp.lt.s32.totalorder %s131, 1
      %s1611 = scalar_select %p1610, %s131, 1
      %s1612 = smul.addr %s1611, 2
      %s1613 = smul.addr %s1612, 8
      %s1614 = scalar_lea.vmem %s1, %s1613
      %p1615 = pneg %p152
      %p1616 = pneg %p149
      %p1617 = pneg %p173
      %p1618 = pneg %p170
      %p1619 = pneg %p194
      %p1620 = pneg %p191
      %p1621 = pneg %p215
      %p1622 = pneg %p212
      %p1623 = pneg %p236
      %p1624 = pneg %p233
      %p1625 = pneg %p257
      %p1626 = pneg %p254
      %p1627 = pneg %p278
      %p1628 = pneg %p275
      %p1629 = pneg %p299
      %p1630 = pneg %p296
      %p1631 = pneg %p320
      %p1632 = pneg %p317
      %p1633 = pneg %p341
      %p1634 = pneg %p338
      %p1635 = pneg %p362
      %p1636 = pneg %p359
      %p1637 = pneg %p383
      %p1638 = pneg %p380
      %p1639 = pneg %p404
      %p1640 = pneg %p401
      %p1641 = pneg %p425
      %p1642 = pneg %p422
      %p1643 = pneg %p446
      %p1644 = pneg %p443
      %p1645 = pneg %p467
      %p1646 = pneg %p464
      %p1647 = pneg %p488
      %p1648 = pneg %p485
      %p1649 = pneg %p509
      %p1650 = pneg %p506
      %p1651 = pneg %p530
      %p1652 = pneg %p527
      %p1653 = pneg %p551
      %p1654 = pneg %p548
      %p1655 = pneg %p572
      %p1656 = pneg %p569
      %p1657 = pneg %p593
      %p1658 = pneg %p590
      %p1659 = pneg %p614
      %p1660 = pneg %p611
      %p1661 = pneg %p635
      %p1662 = pneg %p632
      %p1663 = pneg %p656
      %p1664 = pneg %p653
      %p1665 = pneg %p677
      %p1666 = pneg %p674
      %p1667 = pneg %p698
      %p1668 = pneg %p695
      %p1669 = pneg %p719
      %p1670 = pneg %p716
      %p1671 = pneg %p740
      %p1672 = pneg %p737
      %p1673 = pneg %p761
      %p1674 = pneg %p758
      %p1675 = pneg %p782
      %p1676 = pneg %p779
      %p1677 = pneg %p803
      %p1678 = pneg %p800
      %p1679 = pneg %p824
      %p1680 = pneg %p821
      %p1681 = pneg %p845
      %p1682 = pneg %p842
      %p1683 = pneg %p866
      %p1684 = pneg %p863
      %p1685 = pneg %p887
      %p1686 = pneg %p884
      %p1687 = pneg %p908
      %p1688 = pneg %p905
      %p1689 = pneg %p929
      %p1690 = pneg %p926
      %p1691 = pneg %p950
      %p1692 = pneg %p947
      %p1693 = pneg %p971
      %p1694 = pneg %p968
      %p1695 = pneg %p992
      %p1696 = pneg %p989
      %p1697 = pneg %p1013
      %p1698 = pneg %p1010
      %p1699 = pneg %p1034
      %p1700 = pneg %p1031
      %p1701 = pneg %p1055
      %p1702 = pneg %p1052
      %p1703 = pneg %p1076
      %p1704 = pneg %p1073
      %p1705 = pneg %p1097
      %p1706 = pneg %p1094
      %p1707 = pneg %p1118
      %p1708 = pneg %p1115
      %p1709 = pneg %p1139
      %p1710 = pneg %p1136
      %p1711 = pneg %p1160
      %p1712 = pneg %p1157
      %p1713 = pneg %p1181
      %p1714 = pneg %p1178
      %p1715 = pneg %p1202
      %p1716 = pneg %p1199
      %p1717 = pneg %p1223
      %p1718 = pneg %p1220
      %p1719 = pneg %p1244
      %p1720 = pneg %p1241
      %p1721 = pneg %p1265
      %p1722 = pneg %p1262
      %p1723 = pneg %p1286
      %p1724 = pneg %p1283
      %p1725 = pneg %p1307
      %p1726 = pneg %p1304
      %p1727 = pneg %p1333
      %p1728 = pneg %p1330
      %p1729 = scmp.lt.s32.totalorder %s131, 1
      %s1730 = scalar_select %p1729, %s131, 1
      %s1731 = smul.addr %s1730, 2
      %s1732 = smul.addr %s1731, 8
      %s1733 = scalar_lea.vmem %s113, %s1732
      %p1734 = pneg %p1359
      %p1735 = pneg %p1356
      %p1736 = scmp.lt.s32.totalorder %s131, 1
      %s1737 = scalar_select %p1736, %s131, 1
      %s1738 = smul.addr %s1737, 8
      %s1739 = scalar_lea.vmem %s115, %s1738
      %p1740 = pneg %p1385
      %p1741 = pneg %p1382
      %p1742 = scmp.lt.s32.totalorder %s131, 1
      %s1743 = scalar_select %p1742, %s131, 1
      %s1744 = smul.addr %s1743, 4
      %s1745 = scalar_lea.vmem %s117, %s1744
      %p1746 = pneg %p1411
      %p1747 = pneg %p1408
      %p1748 = scmp.lt.s32.totalorder %s131, 1
      %s1749 = scalar_select %p1748, %s131, 1
      %s1750 = smul.addr %s1749, 2
      %s1751 = scalar_lea.vmem %s119, %s1750
      %p1752 = scmp.lt.s32.totalorder %s131, 1
      %s1753 = scalar_select %p1752, %s131, 1
      %s1754 = smul.addr %s1753, 2
      %s1755 = smul.addr %s1754, 8
      %s1756 = scalar_lea.vmem %s1, %s1755
      %p1757 = scmp.lt.s32.totalorder %s131, 1
      %s1758 = scalar_select %p1757, %s131, 1
      %s1759 = smul.addr %s1758, 2
      %s1760 = smul.addr %s1759, 8
      %s1761 = scalar_lea.vmem %s113, %s1760
      %p1762 = scmp.lt.s32.totalorder %s131, 1
      %s1763 = scalar_select %p1762, %s131, 1
      %s1764 = smul.addr %s1763, 8
      %s1765 = scalar_lea.vmem %s115, %s1764
      %p1766 = scmp.lt.s32.totalorder %s131, 1
      %s1767 = scalar_select %p1766, %s131, 1
      %s1768 = smul.addr %s1767, 4
      %s1769 = scalar_lea.vmem %s117, %s1768
      %p1770 = scmp.lt.s32.totalorder %s131, 1
      %s1771 = scalar_select %p1770, %s131, 1
      %s1772 = smul.addr %s1771, 2
      %s1773 = scalar_lea.vmem %s119, %s1772
      %v1774 = vld [vmem:[%s1756] sm:$0xff]
      %v1775 = vld [vmem:[%s1756 + $0x8] sm:$0xff]
      %v1776 = vld [vmem:[%s3] sm:$0xff]
      %v1777 = vld [vmem:[%s3 + $0x8] sm:$0xff]
      %v1778 = vld [vmem:[%s5] sm:$0xff]
      %v1779 = vld [vmem:[%s5 + $0x8] sm:$0xff]
      %v1780 = vld [vmem:[%s7] sm:$0xff]
      %v1781 = vld [vmem:[%s7 + $0x8] sm:$0xff]
      %v1782 = vld [vmem:[%s7 + $0x10] sm:$0xff]
      %v1783 = vld [vmem:[%s7 + $0x18] sm:$0xff]
      %v1784 = vld [vmem:[%s7 + $0x20] sm:$0xff]
      %v1785 = vld [vmem:[%s7 + $0x28] sm:$0xff]
      %v1786 = vld [vmem:[%s7 + $0x30] sm:$0xff]
      %v1787 = vld [vmem:[%s7 + $0x38] sm:$0xff]
      %v1788 = vld [vmem:[%s9] sm:$0xff]
      %v1789 = vld [vmem:[%s9 + $0x8] sm:$0xff]
      %v1790 = vld [vmem:[%s9 + $0x10] sm:$0xff]
      %v1791 = vld [vmem:[%s9 + $0x18] sm:$0xff]
      %v1792 = vld [vmem:[%s9 + $0x20] sm:$0xff]
      %v1793 = vld [vmem:[%s9 + $0x28] sm:$0xff]
      %v1794 = vld [vmem:[%s9 + $0x30] sm:$0xff]
      %v1795 = vld [vmem:[%s9 + $0x38] sm:$0xff]
      %v1796 = vld [vmem:[%s11] sm:$0xff]
      %v1797 = vld [vmem:[%s11 + $0x8] sm:$0xff]
      %v1798 = vld [vmem:[%s11 + $0x10] sm:$0xff]
      %v1799 = vld [vmem:[%s11 + $0x18] sm:$0xff]
      %v1800 = vld [vmem:[%s11 + $0x20] sm:$0xff]
      %v1801 = vld [vmem:[%s11 + $0x28] sm:$0xff]
      %v1802 = vld [vmem:[%s11 + $0x30] sm:$0xff]
      %v1803 = vld [vmem:[%s11 + $0x38] sm:$0xff]
      %v1804 = vld [vmem:[%s13] sm:$0x1]
      %vm1805 = vcmask 130048
      %v1807 = vsel %vm1805, %v1776, 0
      %v1810 = vsel %vm1805, %v1777, 0
      %1812 = vmatprep.subr.mxu0 0.0
      %1813 = vmatpush1.msra.mxu0 %v1774
      %1814 = vmatprep.subr.mxu0 0.0
      %1815 = vmatpush1.msra.mxu0 %v1775
      %1816 = vmatprep.subr.mxu0 0.0
      %1817 = vmatpush1.msra.mxu0 0.0
      %1818 = vmatprep.subr.mxu0 0.0
      %1819 = vmatpush1.msra.mxu0 0.0
      %1820 = vmatprep.subr.mxu0 0.0
      %1821 = vmatpush1.msra.mxu0 0.0
      %1822 = vmatprep.subr.mxu0 0.0
      %1823 = vmatpush1.msra.mxu0 0.0
      %1824 = vmatprep.subr.mxu0 0.0
      %1825 = vmatpush1.msra.mxu0 0.0
      %1826 = vmatprep.subr.mxu0 0.0
      %1827 = vmatpush1.msra.mxu0 0.0
      %1828 = vmatprep.subr.mxu0 0.0
      %1829 = vmatpush1.msra.mxu0 0.0
      %1830 = vmatprep.subr.mxu0 0.0
      %1831 = vmatpush1.msra.mxu0 0.0
      %1832 = vmatprep.subr.mxu0 0.0
      %1833 = vmatpush1.msra.mxu0 0.0
      %1834 = vmatprep.subr.mxu0 0.0
      %1835 = vmatpush1.msra.mxu0 0.0
      %1836 = vmatprep.subr.mxu0 0.0
      %1837 = vmatpush1.msra.mxu0 0.0
      %1838 = vmatprep.subr.mxu0 0.0
      %1839 = vmatpush1.msra.mxu0 0.0
      %1840 = vmatprep.subr.mxu0 0.0
      %1841 = vmatpush1.msra.mxu0 0.0
      %1842 = vmatprep.subr.mxu0 0.0
      %1843 = vmatpush1.msra.mxu0 0.0
      %1844 = vmatprep.subr.mxu0 0.0
      %1845 = vmatpush1.msra.mxu0 0.0
      %1846 = vmatprep.subr.mxu0 0.0
      %1847 = vmatpush1.msra.mxu0 0.0
      %1848 = vmatprep.subr.mxu0 0.0
      %1849 = vmatpush1.msra.mxu0 0.0
      %1850 = vmatprep.subr.mxu0 0.0
      %1851 = vmatpush1.msra.mxu0 0.0
      %1852 = vmatprep.subr.mxu0 0.0
      %1853 = vmatpush1.msra.mxu0 0.0
      %1854 = vmatprep.subr.mxu0 0.0
      %1855 = vmatpush1.msra.mxu0 0.0
      %1856 = vmatprep.subr.mxu0 0.0
      %1857 = vmatpush1.msra.mxu0 0.0
      %1858 = vmatprep.subr.mxu0 0.0
      %1859 = vmatpush1.msra.mxu0 0.0
      %1860 = vmatprep.subr.mxu0 0.0
      %1861 = vmatpush1.msra.mxu0 0.0
      %1862 = vmatprep.subr.mxu0 0.0
      %1863 = vmatpush1.msra.mxu0 0.0
      %1864 = vmatprep.subr.mxu0 0.0
      %1865 = vmatpush1.msra.mxu0 0.0
      %1866 = vmatprep.subr.mxu0 0.0
      %1867 = vmatpush1.msra.mxu0 0.0
      %1868 = vmatprep.subr.mxu0 0.0
      %1869 = vmatpush1.msra.mxu0 0.0
      %1870 = vmatprep.subr.mxu0 0.0
      %1871 = vmatpush1.msra.mxu0 0.0
      %1872 = vmatprep.subr.mxu0 0.0
      %1873 = vmatpush1.msra.mxu0 0.0
      %1874 = vmatprep.subr.mxu0 0.0
      %1875 = vmatpush1.msra.mxu0 0.0
      %1876 = vmatprep.mubr.f32.mxu0 0.0
      %1877 = vmatmul.mubr.f32.gmra.mrb[0].mxu0 %v1807
      %v1878 = vpop.f32.mrb[0].mxu0
      %v1879 = vadd.f32 0.0, %v1878
      %v1880 = vpop.f32.mrb[0].mxu0
      %1881 = vmatprep.mubr.f32.mxu0 0.0
      %1882 = vmatmul.mubr.f32.gmra.mrb[0].mxu0 %v1810
      %v1883 = vpop.f32.mrb[0].mxu0
      %v1884 = vadd.f32 0.0, %v1883
      %v1885 = vpop.f32.mrb[0].mxu0
      %1886 = vdwg.mxu0
      %vm1887 = vcmask 523264
      %v1889 = vsel %vm1887, %v1774, 0
      %v1892 = vsel %vm1887, %v1775, 0
      %1894 = vmatprep.subr.mxu0 0.0
      %1895 = vmatpush1.msra.mxu0 %v1788
      %1896 = vmatprep.subr.mxu0 0.0
      %1897 = vmatpush1.msra.mxu0 %v1789
      %1898 = vmatprep.subr.mxu0 0.0
      %1899 = vmatpush1.msra.mxu0 %v1790
      %1900 = vmatprep.subr.mxu0 0.0
      %1901 = vmatpush1.msra.mxu0 %v1791
      %1902 = vmatprep.subr.mxu0 0.0
      %1903 = vmatpush1.msra.mxu0 %v1792
      %1904 = vmatprep.subr.mxu0 0.0
      %1905 = vmatpush1.msra.mxu0 %v1793
      %1906 = vmatprep.subr.mxu0 0.0
      %1907 = vmatpush1.msra.mxu0 %v1794
      %1908 = vmatprep.subr.mxu0 0.0
      %1909 = vmatpush1.msra.mxu0 %v1795
      %1910 = vmatprep.subr.mxu0 0.0
      %1911 = vmatpush1.msra.mxu0 0.0
      %1912 = vmatprep.subr.mxu0 0.0
      %1913 = vmatpush1.msra.mxu0 0.0
      %1914 = vmatprep.subr.mxu0 0.0
      %1915 = vmatpush1.msra.mxu0 0.0
      %1916 = vmatprep.subr.mxu0 0.0
      %1917 = vmatpush1.msra.mxu0 0.0
      %1918 = vmatprep.subr.mxu0 0.0
      %1919 = vmatpush1.msra.mxu0 0.0
      %1920 = vmatprep.subr.mxu0 0.0
      %1921 = vmatpush1.msra.mxu0 0.0
      %1922 = vmatprep.subr.mxu0 0.0
      %1923 = vmatpush1.msra.mxu0 0.0
      %1924 = vmatprep.subr.mxu0 0.0
      %1925 = vmatpush1.msra.mxu0 0.0
      %1926 = vmatprep.subr.mxu0 0.0
      %1927 = vmatpush1.msra.mxu0 0.0
      %1928 = vmatprep.subr.mxu0 0.0
      %1929 = vmatpush1.msra.mxu0 0.0
      %1930 = vmatprep.subr.mxu0 0.0
      %1931 = vmatpush1.msra.mxu0 0.0
      %1932 = vmatprep.subr.mxu0 0.0
      %1933 = vmatpush1.msra.mxu0 0.0
      %1934 = vmatprep.subr.mxu0 0.0
      %1935 = vmatpush1.msra.mxu0 0.0
      %1936 = vmatprep.subr.mxu0 0.0
      %1937 = vmatpush1.msra.mxu0 0.0
      %1938 = vmatprep.subr.mxu0 0.0
      %1939 = vmatpush1.msra.mxu0 0.0
      %1940 = vmatprep.subr.mxu0 0.0
      %1941 = vmatpush1.msra.mxu0 0.0
      %1942 = vmatprep.subr.mxu0 0.0
      %1943 = vmatpush1.msra.mxu0 0.0
      %1944 = vmatprep.subr.mxu0 0.0
      %1945 = vmatpush1.msra.mxu0 0.0
      %1946 = vmatprep.subr.mxu0 0.0
      %1947 = vmatpush1.msra.mxu0 0.0
      %1948 = vmatprep.subr.mxu0 0.0
      %1949 = vmatpush1.msra.mxu0 0.0
      %1950 = vmatprep.subr.mxu0 0.0
      %1951 = vmatpush1.msra.mxu0 0.0
      %1952 = vmatprep.subr.mxu0 0.0
      %1953 = vmatpush1.msra.mxu0 0.0
      %1954 = vmatprep.subr.mxu0 0.0
      %1955 = vmatpush1.msra.mxu0 0.0
      %1956 = vmatprep.subr.mxu0 0.0
      %1957 = vmatpush1.msra.mxu0 0.0
      %1958 = vmatprep.mubr.f32.mxu0 0.0
      %1959 = vmatmul.mubr.f32.gmra.mrb[0].mxu0 %v1889
      %v1960 = vpop.f32.mrb[0].mxu0
      %v1961 = vadd.f32 0.0, %v1960
      %v1962 = vpop.f32.mrb[0].mxu0
      %1963 = vmatprep.mubr.f32.mxu0 0.0
      %1964 = vmatmul.mubr.f32.gmra.mrb[0].mxu0 %v1892
      %v1965 = vpop.f32.mrb[0].mxu0
      %v1966 = vadd.f32 0.0, %v1965
      %v1967 = vpop.f32.mrb[0].mxu0
      %1968 = vdwg.mxu0
      %v1970 = vsel %vm1887, %v1879, 0
      %v1973 = vsel %vm1887, %v1884, 0
      %1975 = vmatprep.subr.mxu0 0.0
      %1976 = vmatpush1.msra.mxu0 %v1780
      %1977 = vmatprep.subr.mxu0 0.0
      %1978 = vmatpush1.msra.mxu0 %v1781
      %1979 = vmatprep.subr.mxu0 0.0
      %1980 = vmatpush1.msra.mxu0 %v1782
      %1981 = vmatprep.subr.mxu0 0.0
      %1982 = vmatpush1.msra.mxu0 %v1783
      %1983 = vmatprep.subr.mxu0 0.0
      %1984 = vmatpush1.msra.mxu0 %v1784
      %1985 = vmatprep.subr.mxu0 0.0
      %1986 = vmatpush1.msra.mxu0 %v1785
      %1987 = vmatprep.subr.mxu0 0.0
      %1988 = vmatpush1.msra.mxu0 %v1786
      %1989 = vmatprep.subr.mxu0 0.0
      %1990 = vmatpush1.msra.mxu0 %v1787
      %1991 = vmatprep.subr.mxu0 0.0
      %1992 = vmatpush1.msra.mxu0 0.0
      %1993 = vmatprep.subr.mxu0 0.0
      %1994 = vmatpush1.msra.mxu0 0.0
      %1995 = vmatprep.subr.mxu0 0.0
      %1996 = vmatpush1.msra.mxu0 0.0
      %1997 = vmatprep.subr.mxu0 0.0
      %1998 = vmatpush1.msra.mxu0 0.0
      %1999 = vmatprep.subr.mxu0 0.0
      %2000 = vmatpush1.msra.mxu0 0.0
      %2001 = vmatprep.subr.mxu0 0.0
      %2002 = vmatpush1.msra.mxu0 0.0
      %2003 = vmatprep.subr.mxu0 0.0
      %2004 = vmatpush1.msra.mxu0 0.0
      %2005 = vmatprep.subr.mxu0 0.0
      %2006 = vmatpush1.msra.mxu0 0.0
      %2007 = vmatprep.subr.mxu0 0.0
      %2008 = vmatpush1.msra.mxu0 0.0
      %2009 = vmatprep.subr.mxu0 0.0
      %2010 = vmatpush1.msra.mxu0 0.0
      %2011 = vmatprep.subr.mxu0 0.0
      %2012 = vmatpush1.msra.mxu0 0.0
      %2013 = vmatprep.subr.mxu0 0.0
      %2014 = vmatpush1.msra.mxu0 0.0
      %2015 = vmatprep.subr.mxu0 0.0
      %2016 = vmatpush1.msra.mxu0 0.0
      %2017 = vmatprep.subr.mxu0 0.0
      %2018 = vmatpush1.msra.mxu0 0.0
      %2019 = vmatprep.subr.mxu0 0.0
      %2020 = vmatpush1.msra.mxu0 0.0
      %2021 = vmatprep.subr.mxu0 0.0
      %2022 = vmatpush1.msra.mxu0 0.0
      %2023 = vmatprep.subr.mxu0 0.0
      %2024 = vmatpush1.msra.mxu0 0.0
      %2025 = vmatprep.subr.mxu0 0.0
      %2026 = vmatpush1.msra.mxu0 0.0
      %2027 = vmatprep.subr.mxu0 0.0
      %2028 = vmatpush1.msra.mxu0 0.0
      %2029 = vmatprep.subr.mxu0 0.0
      %2030 = vmatpush1.msra.mxu0 0.0
      %2031 = vmatprep.subr.mxu0 0.0
      %2032 = vmatpush1.msra.mxu0 0.0
      %2033 = vmatprep.subr.mxu0 0.0
      %2034 = vmatpush1.msra.mxu0 0.0
      %2035 = vmatprep.subr.mxu0 0.0
      %2036 = vmatpush1.msra.mxu0 0.0
      %2037 = vmatprep.subr.mxu0 0.0
      %2038 = vmatpush1.msra.mxu0 0.0
      %2039 = vmatprep.mubr.f32.mxu0 0.0
      %2040 = vmatmul.mubr.f32.gmra.mrb[0].mxu0 %v1970
      %v2041 = vpop.f32.mrb[0].mxu0
      %v2042 = vadd.f32 %v1961, %v2041
      %v2043 = vpop.f32.mrb[0].mxu0
      %2044 = vmatprep.mubr.f32.mxu0 0.0
      %2045 = vmatmul.mubr.f32.gmra.mrb[0].mxu0 %v1973
      %v2046 = vpop.f32.mrb[0].mxu0
      %v2047 = vadd.f32 %v1966, %v2046
      %v2048 = vpop.f32.mrb[0].mxu0
      %2049 = vdwg.mxu0
      %v2051 = vsel %vm1805, %v1778, 0
      %v2054 = vsel %vm1805, %v1779, 0
      %2056 = vmatprep.subr.mxu0 0.0
      %2057 = vmatpush1.msra.mxu0 %v1774
      %2058 = vmatprep.subr.mxu0 0.0
      %2059 = vmatpush1.msra.mxu0 %v1775
      %2060 = vmatprep.subr.mxu0 0.0
      %2061 = vmatpush1.msra.mxu0 0.0
      %2062 = vmatprep.subr.mxu0 0.0
      %2063 = vmatpush1.msra.mxu0 0.0
      %2064 = vmatprep.subr.mxu0 0.0
      %2065 = vmatpush1.msra.mxu0 0.0
      %2066 = vmatprep.subr.mxu0 0.0
      %2067 = vmatpush1.msra.mxu0 0.0
      %2068 = vmatprep.subr.mxu0 0.0
      %2069 = vmatpush1.msra.mxu0 0.0
      %2070 = vmatprep.subr.mxu0 0.0
      %2071 = vmatpush1.msra.mxu0 0.0
      %2072 = vmatprep.subr.mxu0 0.0
      %2073 = vmatpush1.msra.mxu0 0.0
      %2074 = vmatprep.subr.mxu0 0.0
      %2075 = vmatpush1.msra.mxu0 0.0
      %2076 = vmatprep.subr.mxu0 0.0
      %2077 = vmatpush1.msra.mxu0 0.0
      %2078 = vmatprep.subr.mxu0 0.0
      %2079 = vmatpush1.msra.mxu0 0.0
      %2080 = vmatprep.subr.mxu0 0.0
      %2081 = vmatpush1.msra.mxu0 0.0
      %2082 = vmatprep.subr.mxu0 0.0
      %2083 = vmatpush1.msra.mxu0 0.0
      %2084 = vmatprep.subr.mxu0 0.0
      %2085 = vmatpush1.msra.mxu0 0.0
      %2086 = vmatprep.subr.mxu0 0.0
      %2087 = vmatpush1.msra.mxu0 0.0
      %2088 = vmatprep.subr.mxu0 0.0
      %2089 = vmatpush1.msra.mxu0 0.0
      %2090 = vmatprep.subr.mxu0 0.0
      %2091 = vmatpush1.msra.mxu0 0.0
      %2092 = vmatprep.subr.mxu0 0.0
      %2093 = vmatpush1.msra.mxu0 0.0
      %2094 = vmatprep.subr.mxu0 0.0
      %2095 = vmatpush1.msra.mxu0 0.0
      %2096 = vmatprep.subr.mxu0 0.0
      %2097 = vmatpush1.msra.mxu0 0.0
      %2098 = vmatprep.subr.mxu0 0.0
      %2099 = vmatpush1.msra.mxu0 0.0
      %2100 = vmatprep.subr.mxu0 0.0
      %2101 = vmatpush1.msra.mxu0 0.0
      %2102 = vmatprep.subr.mxu0 0.0
      %2103 = vmatpush1.msra.mxu0 0.0
      %2104 = vmatprep.subr.mxu0 0.0
      %2105 = vmatpush1.msra.mxu0 0.0
      %2106 = vmatprep.subr.mxu0 0.0
      %2107 = vmatpush1.msra.mxu0 0.0
      %2108 = vmatprep.subr.mxu0 0.0
      %2109 = vmatpush1.msra.mxu0 0.0
      %2110 = vmatprep.subr.mxu0 0.0
      %2111 = vmatpush1.msra.mxu0 0.0
      %2112 = vmatprep.subr.mxu0 0.0
      %2113 = vmatpush1.msra.mxu0 0.0
      %2114 = vmatprep.subr.mxu0 0.0
      %2115 = vmatpush1.msra.mxu0 0.0
      %2116 = vmatprep.subr.mxu0 0.0
      %2117 = vmatpush1.msra.mxu0 0.0
      %2118 = vmatprep.subr.mxu0 0.0
      %2119 = vmatpush1.msra.mxu0 0.0
      %2120 = vmatprep.mubr.f32.mxu0 0.0
      %2121 = vmatmul.mubr.f32.gmra.mrb[0].mxu0 %v2051
      %v2122 = vpop.f32.mrb[0].mxu0
      %v2123 = vadd.f32 0.0, %v2122
      %v2124 = vpop.f32.mrb[0].mxu0
      %2125 = vmatprep.mubr.f32.mxu0 0.0
      %2126 = vmatmul.mubr.f32.gmra.mrb[0].mxu0 %v2054
      %v2127 = vpop.f32.mrb[0].mxu0
      %v2128 = vadd.f32 0.0, %v2127
      %v2129 = vpop.f32.mrb[0].mxu0
      %2130 = vdwg.mxu0
      %v2132 = vsel %vm1887, %v2123, 0
      %v2135 = vsel %vm1887, %v2128, 0
      %2137 = vmatprep.subr.mxu0 0.0
      %2138 = vmatpush1.msra.mxu0 %v1796
      %2139 = vmatprep.subr.mxu0 0.0
      %2140 = vmatpush1.msra.mxu0 %v1797
      %2141 = vmatprep.subr.mxu0 0.0
      %2142 = vmatpush1.msra.mxu0 %v1798
      %2143 = vmatprep.subr.mxu0 0.0
      %2144 = vmatpush1.msra.mxu0 %v1799
      %2145 = vmatprep.subr.mxu0 0.0
      %2146 = vmatpush1.msra.mxu0 %v1800
      %2147 = vmatprep.subr.mxu0 0.0
      %2148 = vmatpush1.msra.mxu0 %v1801
      %2149 = vmatprep.subr.mxu0 0.0
      %2150 = vmatpush1.msra.mxu0 %v1802
      %2151 = vmatprep.subr.mxu0 0.0
      %2152 = vmatpush1.msra.mxu0 %v1803
      %2153 = vmatprep.subr.mxu0 0.0
      %2154 = vmatpush1.msra.mxu0 0.0
      %2155 = vmatprep.subr.mxu0 0.0
      %2156 = vmatpush1.msra.mxu0 0.0
      %2157 = vmatprep.subr.mxu0 0.0
      %2158 = vmatpush1.msra.mxu0 0.0
      %2159 = vmatprep.subr.mxu0 0.0
      %2160 = vmatpush1.msra.mxu0 0.0
      %2161 = vmatprep.subr.mxu0 0.0
      %2162 = vmatpush1.msra.mxu0 0.0
      %2163 = vmatprep.subr.mxu0 0.0
      %2164 = vmatpush1.msra.mxu0 0.0
      %2165 = vmatprep.subr.mxu0 0.0
      %2166 = vmatpush1.msra.mxu0 0.0
      %2167 = vmatprep.subr.mxu0 0.0
      %2168 = vmatpush1.msra.mxu0 0.0
      %2169 = vmatprep.subr.mxu0 0.0
      %2170 = vmatpush1.msra.mxu0 0.0
      %2171 = vmatprep.subr.mxu0 0.0
      %2172 = vmatpush1.msra.mxu0 0.0
      %2173 = vmatprep.subr.mxu0 0.0
      %2174 = vmatpush1.msra.mxu0 0.0
      %2175 = vmatprep.subr.mxu0 0.0
      %2176 = vmatpush1.msra.mxu0 0.0
      %2177 = vmatprep.subr.mxu0 0.0
      %2178 = vmatpush1.msra.mxu0 0.0
      %2179 = vmatprep.subr.mxu0 0.0
      %2180 = vmatpush1.msra.mxu0 0.0
      %2181 = vmatprep.subr.mxu0 0.0
      %2182 = vmatpush1.msra.mxu0 0.0
      %2183 = vmatprep.subr.mxu0 0.0
      %2184 = vmatpush1.msra.mxu0 0.0
      %2185 = vmatprep.subr.mxu0 0.0
      %2186 = vmatpush1.msra.mxu0 0.0
      %2187 = vmatprep.subr.mxu0 0.0
      %2188 = vmatpush1.msra.mxu0 0.0
      %2189 = vmatprep.subr.mxu0 0.0
      %2190 = vmatpush1.msra.mxu0 0.0
      %2191 = vmatprep.subr.mxu0 0.0
      %2192 = vmatpush1.msra.mxu0 0.0
      %2193 = vmatprep.subr.mxu0 0.0
      %2194 = vmatpush1.msra.mxu0 0.0
      %2195 = vmatprep.subr.mxu0 0.0
      %2196 = vmatpush1.msra.mxu0 0.0
      %2197 = vmatprep.subr.mxu0 0.0
      %2198 = vmatpush1.msra.mxu0 0.0
      %2199 = vmatprep.subr.mxu0 0.0
      %2200 = vmatpush1.msra.mxu0 0.0
      %2201 = vmatprep.mubr.f32.mxu0 0.0
      %2202 = vmatmul.mubr.f32.gmra.mrb[0].mxu0 %v2132
      %v2203 = vpop.f32.mrb[0].mxu0
      %v2204 = vadd.f32 0.0, %v2203
      %v2205 = vpop.f32.mrb[0].mxu0
      %2206 = vmatprep.mubr.f32.mxu0 0.0
      %2207 = vmatmul.mubr.f32.gmra.mrb[0].mxu0 %v2135
      %v2208 = vpop.f32.mrb[0].mxu0
      %v2209 = vadd.f32 0.0, %v2208
      %v2210 = vpop.f32.mrb[0].mxu0
      %2211 = vdwg.mxu0
      %v2212 = vadd.f32 %v2042, %v2204
      %v2213 = vadd.f32 %v2047, %v2209
      %v2215 = vlaneseq
      %v2216 = vshrl.u32 %v2215, 7
      %v2217 = vsub.s32 0, %v2216
      %v2218 = vrot.slane %v1804, %v2217
      %v2220 = vadd.f32 %v2212, %v2218
      %v2221 = vadd.f32 %v2213, %v2218
      %v2222 = vmax.f32 %v2220, 0.0
      %v2223 = vmax.f32 %v2221, 0.0
      %v2224 = vld [vmem:[%s15] sm:$0xff]
      %v2225 = vld [vmem:[%s15 + $0x8] sm:$0xff]
      %v2226 = vld [vmem:[%s15 + $0x10] sm:$0xff]
      %v2227 = vld [vmem:[%s15 + $0x18] sm:$0xff]
      %v2228 = vld [vmem:[%s15 + $0x20] sm:$0xff]
      %v2229 = vld [vmem:[%s15 + $0x28] sm:$0xff]
      %v2230 = vld [vmem:[%s15 + $0x30] sm:$0xff]
      %v2231 = vld [vmem:[%s15 + $0x38] sm:$0xff]
      %v2232 = vld [vmem:[%s17] sm:$0xff]
      %v2233 = vld [vmem:[%s17 + $0x8] sm:$0xff]
      %v2234 = vld [vmem:[%s17 + $0x10] sm:$0xff]
      %v2235 = vld [vmem:[%s17 + $0x18] sm:$0xff]
      %v2236 = vld [vmem:[%s17 + $0x20] sm:$0xff]
      %v2237 = vld [vmem:[%s17 + $0x28] sm:$0xff]
      %v2238 = vld [vmem:[%s17 + $0x30] sm:$0xff]
      %v2239 = vld [vmem:[%s17 + $0x38] sm:$0xff]
      %v2240 = vld [vmem:[%s19] sm:$0xff]
      %v2241 = vld [vmem:[%s19 + $0x8] sm:$0xff]
      %v2242 = vld [vmem:[%s19 + $0x10] sm:$0xff]
      %v2243 = vld [vmem:[%s19 + $0x18] sm:$0xff]
      %v2244 = vld [vmem:[%s19 + $0x20] sm:$0xff]
      %v2245 = vld [vmem:[%s19 + $0x28] sm:$0xff]
      %v2246 = vld [vmem:[%s19 + $0x30] sm:$0xff]
      %v2247 = vld [vmem:[%s19 + $0x38] sm:$0xff]
      %v2248 = vld [vmem:[%s21] sm:$0x1]
      %2249 = vmatprep.subr.mxu0 0.0
      %2250 = vmatpush1.msra.mxu0 %v2222
      %2251 = vmatprep.subr.mxu0 0.0
      %2252 = vmatpush1.msra.mxu0 %v2223
      %2253 = vmatprep.subr.mxu0 0.0
      %2254 = vmatpush1.msra.mxu0 0.0
      %2255 = vmatprep.subr.mxu0 0.0
      %2256 = vmatpush1.msra.mxu0 0.0
      %2257 = vmatprep.subr.mxu0 0.0
      %2258 = vmatpush1.msra.mxu0 0.0
      %2259 = vmatprep.subr.mxu0 0.0
      %2260 = vmatpush1.msra.mxu0 0.0
      %2261 = vmatprep.subr.mxu0 0.0
      %2262 = vmatpush1.msra.mxu0 0.0
      %2263 = vmatprep.subr.mxu0 0.0
      %2264 = vmatpush1.msra.mxu0 0.0
      %2265 = vmatprep.subr.mxu0 0.0
      %2266 = vmatpush1.msra.mxu0 0.0
      %2267 = vmatprep.subr.mxu0 0.0
      %2268 = vmatpush1.msra.mxu0 0.0
      %2269 = vmatprep.subr.mxu0 0.0
      %2270 = vmatpush1.msra.mxu0 0.0
      %2271 = vmatprep.subr.mxu0 0.0
      %2272 = vmatpush1.msra.mxu0 0.0
      %2273 = vmatprep.subr.mxu0 0.0
      %2274 = vmatpush1.msra.mxu0 0.0
      %2275 = vmatprep.subr.mxu0 0.0
      %2276 = vmatpush1.msra.mxu0 0.0
      %2277 = vmatprep.subr.mxu0 0.0
      %2278 = vmatpush1.msra.mxu0 0.0
      %2279 = vmatprep.subr.mxu0 0.0
      %2280 = vmatpush1.msra.mxu0 0.0
      %2281 = vmatprep.subr.mxu0 0.0
      %2282 = vmatpush1.msra.mxu0 0.0
      %2283 = vmatprep.subr.mxu0 0.0
      %2284 = vmatpush1.msra.mxu0 0.0
      %2285 = vmatprep.subr.mxu0 0.0
      %2286 = vmatpush1.msra.mxu0 0.0
      %2287 = vmatprep.subr.mxu0 0.0
      %2288 = vmatpush1.msra.mxu0 0.0
      %2289 = vmatprep.subr.mxu0 0.0
      %2290 = vmatpush1.msra.mxu0 0.0
      %2291 = vmatprep.subr.mxu0 0.0
      %2292 = vmatpush1.msra.mxu0 0.0
      %2293 = vmatprep.subr.mxu0 0.0
      %2294 = vmatpush1.msra.mxu0 0.0
      %2295 = vmatprep.subr.mxu0 0.0
      %2296 = vmatpush1.msra.mxu0 0.0
      %2297 = vmatprep.subr.mxu0 0.0
      %2298 = vmatpush1.msra.mxu0 0.0
      %2299 = vmatprep.subr.mxu0 0.0
      %2300 = vmatpush1.msra.mxu0 0.0
      %2301 = vmatprep.subr.mxu0 0.0
      %2302 = vmatpush1.msra.mxu0 0.0
      %2303 = vmatprep.subr.mxu0 0.0
      %2304 = vmatpush1.msra.mxu0 0.0
      %2305 = vmatprep.subr.mxu0 0.0
      %2306 = vmatpush1.msra.mxu0 0.0
      %2307 = vmatprep.subr.mxu0 0.0
      %2308 = vmatpush1.msra.mxu0 0.0
      %2309 = vmatprep.subr.mxu0 0.0
      %2310 = vmatpush1.msra.mxu0 0.0
      %2311 = vmatprep.subr.mxu0 0.0
      %2312 = vmatpush1.msra.mxu0 0.0
      %2313 = vmatprep.mubr.f32.mxu0 0.0
      %2314 = vmatmul.mubr.f32.gmra.mrb[0].mxu0 %v1807
      %v2315 = vpop.f32.mrb[0].mxu0
      %v2316 = vadd.f32 0.0, %v2315
      %v2317 = vpop.f32.mrb[0].mxu0
      %2318 = vmatprep.mubr.f32.mxu0 0.0
      %2319 = vmatmul.mubr.f32.gmra.mrb[0].mxu0 %v1810
      %v2320 = vpop.f32.mrb[0].mxu0
      %v2321 = vadd.f32 0.0, %v2320
      %v2322 = vpop.f32.mrb[0].mxu0
      %2323 = vdwg.mxu0
      %v2325 = vsel %vm1887, %v2222, 0
      %v2328 = vsel %vm1887, %v2223, 0
      %2330 = vmatprep.subr.mxu0 0.0
      %2331 = vmatpush1.msra.mxu0 %v2232
      %2332 = vmatprep.subr.mxu0 0.0
      %2333 = vmatpush1.msra.mxu0 %v2233
      %2334 = vmatprep.subr.mxu0 0.0
      %2335 = vmatpush1.msra.mxu0 %v2234
      %2336 = vmatprep.subr.mxu0 0.0
      %2337 = vmatpush1.msra.mxu0 %v2235
      %2338 = vmatprep.subr.mxu0 0.0
      %2339 = vmatpush1.msra.mxu0 %v2236
      %2340 = vmatprep.subr.mxu0 0.0
      %2341 = vmatpush1.msra.mxu0 %v2237
      %2342 = vmatprep.subr.mxu0 0.0
      %2343 = vmatpush1.msra.mxu0 %v2238
      %2344 = vmatprep.subr.mxu0 0.0
      %2345 = vmatpush1.msra.mxu0 %v2239
      %2346 = vmatprep.subr.mxu0 0.0
      %2347 = vmatpush1.msra.mxu0 0.0
      %2348 = vmatprep.subr.mxu0 0.0
      %2349 = vmatpush1.msra.mxu0 0.0
      %2350 = vmatprep.subr.mxu0 0.0
      %2351 = vmatpush1.msra.mxu0 0.0
      %2352 = vmatprep.subr.mxu0 0.0
      %2353 = vmatpush1.msra.mxu0 0.0
      %2354 = vmatprep.subr.mxu0 0.0
      %2355 = vmatpush1.msra.mxu0 0.0
      %2356 = vmatprep.subr.mxu0 0.0
      %2357 = vmatpush1.msra.mxu0 0.0
      %2358 = vmatprep.subr.mxu0 0.0
      %2359 = vmatpush1.msra.mxu0 0.0
      %2360 = vmatprep.subr.mxu0 0.0
      %2361 = vmatpush1.msra.mxu0 0.0
      %2362 = vmatprep.subr.mxu0 0.0
      %2363 = vmatpush1.msra.mxu0 0.0
      %2364 = vmatprep.subr.mxu0 0.0
      %2365 = vmatpush1.msra.mxu0 0.0
      %2366 = vmatprep.subr.mxu0 0.0
      %2367 = vmatpush1.msra.mxu0 0.0
      %2368 = vmatprep.subr.mxu0 0.0
      %2369 = vmatpush1.msra.mxu0 0.0
      %2370 = vmatprep.subr.mxu0 0.0
      %2371 = vmatpush1.msra.mxu0 0.0
      %2372 = vmatprep.subr.mxu0 0.0
      %2373 = vmatpush1.msra.mxu0 0.0
      %2374 = vmatprep.subr.mxu0 0.0
      %2375 = vmatpush1.msra.mxu0 0.0
      %2376 = vmatprep.subr.mxu0 0.0
      %2377 = vmatpush1.msra.mxu0 0.0
      %2378 = vmatprep.subr.mxu0 0.0
      %2379 = vmatpush1.msra.mxu0 0.0
      %2380 = vmatprep.subr.mxu0 0.0
      %2381 = vmatpush1.msra.mxu0 0.0
      %2382 = vmatprep.subr.mxu0 0.0
      %2383 = vmatpush1.msra.mxu0 0.0
      %2384 = vmatprep.subr.mxu0 0.0
      %2385 = vmatpush1.msra.mxu0 0.0
      %2386 = vmatprep.subr.mxu0 0.0
      %2387 = vmatpush1.msra.mxu0 0.0
      %2388 = vmatprep.subr.mxu0 0.0
      %2389 = vmatpush1.msra.mxu0 0.0
      %2390 = vmatprep.subr.mxu0 0.0
      %2391 = vmatpush1.msra.mxu0 0.0
      %2392 = vmatprep.subr.mxu0 0.0
      %2393 = vmatpush1.msra.mxu0 0.0
      %2394 = vmatprep.mubr.f32.mxu0 0.0
      %2395 = vmatmul.mubr.f32.gmra.mrb[0].mxu0 %v2325
      %v2396 = vpop.f32.mrb[0].mxu0
      %v2397 = vadd.f32 0.0, %v2396
      %v2398 = vpop.f32.mrb[0].mxu0
      %2399 = vmatprep.mubr.f32.mxu0 0.0
      %2400 = vmatmul.mubr.f32.gmra.mrb[0].mxu0 %v2328
      %v2401 = vpop.f32.mrb[0].mxu0
      %v2402 = vadd.f32 0.0, %v2401
      %v2403 = vpop.f32.mrb[0].mxu0
      %2404 = vdwg.mxu0
      %v2406 = vsel %vm1887, %v2316, 0
      %v2409 = vsel %vm1887, %v2321, 0
      %2411 = vmatprep.subr.mxu0 0.0
      %2412 = vmatpush1.msra.mxu0 %v2224
      %2413 = vmatprep.subr.mxu0 0.0
      %2414 = vmatpush1.msra.mxu0 %v2225
      %2415 = vmatprep.subr.mxu0 0.0
      %2416 = vmatpush1.msra.mxu0 %v2226
      %2417 = vmatprep.subr.mxu0 0.0
      %2418 = vmatpush1.msra.mxu0 %v2227
      %2419 = vmatprep.subr.mxu0 0.0
      %2420 = vmatpush1.msra.mxu0 %v2228
      %2421 = vmatprep.subr.mxu0 0.0
      %2422 = vmatpush1.msra.mxu0 %v2229
      %2423 = vmatprep.subr.mxu0 0.0
      %2424 = vmatpush1.msra.mxu0 %v2230
      %2425 = vmatprep.subr.mxu0 0.0
      %2426 = vmatpush1.msra.mxu0 %v2231
      %2427 = vmatprep.subr.mxu0 0.0
      %2428 = vmatpush1.msra.mxu0 0.0
      %2429 = vmatprep.subr.mxu0 0.0
      %2430 = vmatpush1.msra.mxu0 0.0
      %2431 = vmatprep.subr.mxu0 0.0
      %2432 = vmatpush1.msra.mxu0 0.0
      %2433 = vmatprep.subr.mxu0 0.0
      %2434 = vmatpush1.msra.mxu0 0.0
      %2435 = vmatprep.subr.mxu0 0.0
      %2436 = vmatpush1.msra.mxu0 0.0
      %2437 = vmatprep.subr.mxu0 0.0
      %2438 = vmatpush1.msra.mxu0 0.0
      %2439 = vmatprep.subr.mxu0 0.0
      %2440 = vmatpush1.msra.mxu0 0.0
      %2441 = vmatprep.subr.mxu0 0.0
      %2442 = vmatpush1.msra.mxu0 0.0
      %2443 = vmatprep.subr.mxu0 0.0
      %2444 = vmatpush1.msra.mxu0 0.0
      %2445 = vmatprep.subr.mxu0 0.0
      %2446 = vmatpush1.msra.mxu0 0.0
      %2447 = vmatprep.subr.mxu0 0.0
      %2448 = vmatpush1.msra.mxu0 0.0
      %2449 = vmatprep.subr.mxu0 0.0
      %2450 = vmatpush1.msra.mxu0 0.0
      %2451 = vmatprep.subr.mxu0 0.0
      %2452 = vmatpush1.msra.mxu0 0.0
      %2453 = vmatprep.subr.mxu0 0.0
      %2454 = vmatpush1.msra.mxu0 0.0
      %2455 = vmatprep.subr.mxu0 0.0
      %2456 = vmatpush1.msra.mxu0 0.0
      %2457 = vmatprep.subr.mxu0 0.0
      %2458 = vmatpush1.msra.mxu0 0.0
      %2459 = vmatprep.subr.mxu0 0.0
      %2460 = vmatpush1.msra.mxu0 0.0
      %2461 = vmatprep.subr.mxu0 0.0
      %2462 = vmatpush1.msra.mxu0 0.0
      %2463 = vmatprep.subr.mxu0 0.0
      %2464 = vmatpush1.msra.mxu0 0.0
      %2465 = vmatprep.subr.mxu0 0.0
      %2466 = vmatpush1.msra.mxu0 0.0
      %2467 = vmatprep.subr.mxu0 0.0
      %2468 = vmatpush1.msra.mxu0 0.0
      %2469 = vmatprep.subr.mxu0 0.0
      %2470 = vmatpush1.msra.mxu0 0.0
      %2471 = vmatprep.subr.mxu0 0.0
      %2472 = vmatpush1.msra.mxu0 0.0
      %2473 = vmatprep.subr.mxu0 0.0
      %2474 = vmatpush1.msra.mxu0 0.0
      %2475 = vmatprep.mubr.f32.mxu0 0.0
      %2476 = vmatmul.mubr.f32.gmra.mrb[0].mxu0 %v2406
      %v2477 = vpop.f32.mrb[0].mxu0
      %v2478 = vadd.f32 %v2397, %v2477
      %v2479 = vpop.f32.mrb[0].mxu0
      %2480 = vmatprep.mubr.f32.mxu0 0.0
      %2481 = vmatmul.mubr.f32.gmra.mrb[0].mxu0 %v2409
      %v2482 = vpop.f32.mrb[0].mxu0
      %v2483 = vadd.f32 %v2402, %v2482
      %v2484 = vpop.f32.mrb[0].mxu0
      %2485 = vdwg.mxu0
      %2486 = vmatprep.subr.mxu0 0.0
      %2487 = vmatpush1.msra.mxu0 %v2222
      %2488 = vmatprep.subr.mxu0 0.0
      %2489 = vmatpush1.msra.mxu0 %v2223
      %2490 = vmatprep.subr.mxu0 0.0
      %2491 = vmatpush1.msra.mxu0 0.0
      %2492 = vmatprep.subr.mxu0 0.0
      %2493 = vmatpush1.msra.mxu0 0.0
      %2494 = vmatprep.subr.mxu0 0.0
      %2495 = vmatpush1.msra.mxu0 0.0
      %2496 = vmatprep.subr.mxu0 0.0
      %2497 = vmatpush1.msra.mxu0 0.0
      %2498 = vmatprep.subr.mxu0 0.0
      %2499 = vmatpush1.msra.mxu0 0.0
      %2500 = vmatprep.subr.mxu0 0.0
      %2501 = vmatpush1.msra.mxu0 0.0
      %2502 = vmatprep.subr.mxu0 0.0
      %2503 = vmatpush1.msra.mxu0 0.0
      %2504 = vmatprep.subr.mxu0 0.0
      %2505 = vmatpush1.msra.mxu0 0.0
      %2506 = vmatprep.subr.mxu0 0.0
      %2507 = vmatpush1.msra.mxu0 0.0
      %2508 = vmatprep.subr.mxu0 0.0
      %2509 = vmatpush1.msra.mxu0 0.0
      %2510 = vmatprep.subr.mxu0 0.0
      %2511 = vmatpush1.msra.mxu0 0.0
      %2512 = vmatprep.subr.mxu0 0.0
      %2513 = vmatpush1.msra.mxu0 0.0
      %2514 = vmatprep.subr.mxu0 0.0
      %2515 = vmatpush1.msra.mxu0 0.0
      %2516 = vmatprep.subr.mxu0 0.0
      %2517 = vmatpush1.msra.mxu0 0.0
      %2518 = vmatprep.subr.mxu0 0.0
      %2519 = vmatpush1.msra.mxu0 0.0
      %2520 = vmatprep.subr.mxu0 0.0
      %2521 = vmatpush1.msra.mxu0 0.0
      %2522 = vmatprep.subr.mxu0 0.0
      %2523 = vmatpush1.msra.mxu0 0.0
      %2524 = vmatprep.subr.mxu0 0.0
      %2525 = vmatpush1.msra.mxu0 0.0
      %2526 = vmatprep.subr.mxu0 0.0
      %2527 = vmatpush1.msra.mxu0 0.0
      %2528 = vmatprep.subr.mxu0 0.0
      %2529 = vmatpush1.msra.mxu0 0.0
      %2530 = vmatprep.subr.mxu0 0.0
      %2531 = vmatpush1.msra.mxu0 0.0
      %2532 = vmatprep.subr.mxu0 0.0
      %2533 = vmatpush1.msra.mxu0 0.0
      %2534 = vmatprep.subr.mxu0 0.0
      %2535 = vmatpush1.msra.mxu0 0.0
      %2536 = vmatprep.subr.mxu0 0.0
      %2537 = vmatpush1.msra.mxu0 0.0
      %2538 = vmatprep.subr.mxu0 0.0
      %2539 = vmatpush1.msra.mxu0 0.0
      %2540 = vmatprep.subr.mxu0 0.0
      %2541 = vmatpush1.msra.mxu0 0.0
      %2542 = vmatprep.subr.mxu0 0.0
      %2543 = vmatpush1.msra.mxu0 0.0
      %2544 = vmatprep.subr.mxu0 0.0
      %2545 = vmatpush1.msra.mxu0 0.0
      %2546 = vmatprep.subr.mxu0 0.0
      %2547 = vmatpush1.msra.mxu0 0.0
      %2548 = vmatprep.subr.mxu0 0.0
      %2549 = vmatpush1.msra.mxu0 0.0
      %2550 = vmatprep.mubr.f32.mxu0 0.0
      %2551 = vmatmul.mubr.f32.gmra.mrb[0].mxu0 %v2051
      %v2552 = vpop.f32.mrb[0].mxu0
      %v2553 = vadd.f32 0.0, %v2552
      %v2554 = vpop.f32.mrb[0].mxu0
      %2555 = vmatprep.mubr.f32.mxu0 0.0
      %2556 = vmatmul.mubr.f32.gmra.mrb[0].mxu0 %v2054
      %v2557 = vpop.f32.mrb[0].mxu0
      %v2558 = vadd.f32 0.0, %v2557
      %v2559 = vpop.f32.mrb[0].mxu0
      %2560 = vdwg.mxu0
      %v2562 = vsel %vm1887, %v2553, 0
      %v2565 = vsel %vm1887, %v2558, 0
      %2567 = vmatprep.subr.mxu0 0.0
      %2568 = vmatpush1.msra.mxu0 %v2240
      %2569 = vmatprep.subr.mxu0 0.0
      %2570 = vmatpush1.msra.mxu0 %v2241
      %2571 = vmatprep.subr.mxu0 0.0
      %2572 = vmatpush1.msra.mxu0 %v2242
      %2573 = vmatprep.subr.mxu0 0.0
      %2574 = vmatpush1.msra.mxu0 %v2243
      %2575 = vmatprep.subr.mxu0 0.0
      %2576 = vmatpush1.msra.mxu0 %v2244
      %2577 = vmatprep.subr.mxu0 0.0
      %2578 = vmatpush1.msra.mxu0 %v2245
      %2579 = vmatprep.subr.mxu0 0.0
      %2580 = vmatpush1.msra.mxu0 %v2246
      %2581 = vmatprep.subr.mxu0 0.0
      %2582 = vmatpush1.msra.mxu0 %v2247
      %2583 = vmatprep.subr.mxu0 0.0
      %2584 = vmatpush1.msra.mxu0 0.0
      %2585 = vmatprep.subr.mxu0 0.0
      %2586 = vmatpush1.msra.mxu0 0.0
      %2587 = vmatprep.subr.mxu0 0.0
      %2588 = vmatpush1.msra.mxu0 0.0
      %2589 = vmatprep.subr.mxu0 0.0
      %2590 = vmatpush1.msra.mxu0 0.0
      %2591 = vmatprep.subr.mxu0 0.0
      %2592 = vmatpush1.msra.mxu0 0.0
      %2593 = vmatprep.subr.mxu0 0.0
      %2594 = vmatpush1.msra.mxu0 0.0
      %2595 = vmatprep.subr.mxu0 0.0
      %2596 = vmatpush1.msra.mxu0 0.0
      %2597 = vmatprep.subr.mxu0 0.0
      %2598 = vmatpush1.msra.mxu0 0.0
      %2599 = vmatprep.subr.mxu0 0.0
      %2600 = vmatpush1.msra.mxu0 0.0
      %2601 = vmatprep.subr.mxu0 0.0
      %2602 = vmatpush1.msra.mxu0 0.0
      %2603 = vmatprep.subr.mxu0 0.0
      %2604 = vmatpush1.msra.mxu0 0.0
      %2605 = vmatprep.subr.mxu0 0.0
      %2606 = vmatpush1.msra.mxu0 0.0
      %2607 = vmatprep.subr.mxu0 0.0
      %2608 = vmatpush1.msra.mxu0 0.0
      %2609 = vmatprep.subr.mxu0 0.0
      %2610 = vmatpush1.msra.mxu0 0.0
      %2611 = vmatprep.subr.mxu0 0.0
      %2612 = vmatpush1.msra.mxu0 0.0
      %2613 = vmatprep.subr.mxu0 0.0
      %2614 = vmatpush1.msra.mxu0 0.0
      %2615 = vmatprep.subr.mxu0 0.0
      %2616 = vmatpush1.msra.mxu0 0.0
      %2617 = vmatprep.subr.mxu0 0.0
      %2618 = vmatpush1.msra.mxu0 0.0
      %2619 = vmatprep.subr.mxu0 0.0
      %2620 = vmatpush1.msra.mxu0 0.0
      %2621 = vmatprep.subr.mxu0 0.0
      %2622 = vmatpush1.msra.mxu0 0.0
      %2623 = vmatprep.subr.mxu0 0.0
      %2624 = vmatpush1.msra.mxu0 0.0
      %2625 = vmatprep.subr.mxu0 0.0
      %2626 = vmatpush1.msra.mxu0 0.0
      %2627 = vmatprep.subr.mxu0 0.0
      %2628 = vmatpush1.msra.mxu0 0.0
      %2629 = vmatprep.subr.mxu0 0.0
      %2630 = vmatpush1.msra.mxu0 0.0
      %2631 = vmatprep.mubr.f32.mxu0 0.0
      %2632 = vmatmul.mubr.f32.gmra.mrb[0].mxu0 %v2562
      %v2633 = vpop.f32.mrb[0].mxu0
      %v2634 = vadd.f32 0.0, %v2633
      %v2635 = vpop.f32.mrb[0].mxu0
      %2636 = vmatprep.mubr.f32.mxu0 0.0
      %2637 = vmatmul.mubr.f32.gmra.mrb[0].mxu0 %v2565
      %v2638 = vpop.f32.mrb[0].mxu0
      %v2639 = vadd.f32 0.0, %v2638
      %v2640 = vpop.f32.mrb[0].mxu0
      %2641 = vdwg.mxu0
      %v2642 = vadd.f32 %v2478, %v2634
      %v2643 = vadd.f32 %v2483, %v2639
      %v2645 = vlaneseq
      %v2646 = vshrl.u32 %v2645, 7
      %v2647 = vsub.s32 0, %v2646
      %v2648 = vrot.slane %v2248, %v2647
      %v2650 = vadd.f32 %v2642, %v2648
      %v2651 = vadd.f32 %v2643, %v2648
      %v2652 = vmax.f32 %v2650, 0.0
      %v2653 = vmax.f32 %v2651, 0.0
      %2654 = vst.msk [vmem:[%s1761] sm:$0xff] %vm1887, %v2652
      %2655 = vst.msk [vmem:[%s1761 + $0x8] sm:$0xff] %vm1887, %v2653
      %v2656 = vld [vmem:[%s23] sm:$0xff]
      %v2657 = vld [vmem:[%s25] sm:$0xff]
      %v2658 = vld [vmem:[%s27] sm:$0xff]
      %v2659 = vld [vmem:[%s27 + $0x8] sm:$0xff]
      %v2660 = vld [vmem:[%s27 + $0x10] sm:$0xff]
      %v2661 = vld [vmem:[%s27 + $0x18] sm:$0xff]
      %v2662 = vld [vmem:[%s27 + $0x20] sm:$0xff]
      %v2663 = vld [vmem:[%s27 + $0x28] sm:$0xff]
      %v2664 = vld [vmem:[%s27 + $0x30] sm:$0xff]
      %v2665 = vld [vmem:[%s27 + $0x38] sm:$0xff]
      %v2666 = vld [vmem:[%s29] sm:$0xff]
      %v2667 = vld [vmem:[%s29 + $0x8] sm:$0xff]
      %v2668 = vld [vmem:[%s29 + $0x10] sm:$0xff]
      %v2669 = vld [vmem:[%s29 + $0x18] sm:$0xff]
      %v2670 = vld [vmem:[%s29 + $0x20] sm:$0xff]
      %v2671 = vld [vmem:[%s29 + $0x28] sm:$0xff]
      %v2672 = vld [vmem:[%s29 + $0x30] sm:$0xff]
      %v2673 = vld [vmem:[%s29 + $0x38] sm:$0xff]
      %v2674 = vld [vmem:[%s31] sm:$0x1]
      %v2676 = vsel %vm1805, %v2656, 0
      %2678 = vmatprep.subr.mxu0 0.0
      %2679 = vmatpush1.msra.mxu0 %v2652
      %2680 = vmatprep.subr.mxu0 0.0
      %2681 = vmatpush1.msra.mxu0 %v2653
      %2682 = vmatprep.subr.mxu0 0.0
      %2683 = vmatpush1.msra.mxu0 0.0
      %2684 = vmatprep.subr.mxu0 0.0
      %2685 = vmatpush1.msra.mxu0 0.0
      %2686 = vmatprep.subr.mxu0 0.0
      %2687 = vmatpush1.msra.mxu0 0.0
      %2688 = vmatprep.subr.mxu0 0.0
      %2689 = vmatpush1.msra.mxu0 0.0
      %2690 = vmatprep.subr.mxu0 0.0
      %2691 = vmatpush1.msra.mxu0 0.0
      %2692 = vmatprep.subr.mxu0 0.0
      %2693 = vmatpush1.msra.mxu0 0.0
      %2694 = vmatprep.subr.mxu0 0.0
      %2695 = vmatpush1.msra.mxu0 0.0
      %2696 = vmatprep.subr.mxu0 0.0
      %2697 = vmatpush1.msra.mxu0 0.0
      %2698 = vmatprep.subr.mxu0 0.0
      %2699 = vmatpush1.msra.mxu0 0.0
      %2700 = vmatprep.subr.mxu0 0.0
      %2701 = vmatpush1.msra.mxu0 0.0
      %2702 = vmatprep.subr.mxu0 0.0
      %2703 = vmatpush1.msra.mxu0 0.0
      %2704 = vmatprep.subr.mxu0 0.0
      %2705 = vmatpush1.msra.mxu0 0.0
      %2706 = vmatprep.subr.mxu0 0.0
      %2707 = vmatpush1.msra.mxu0 0.0
      %2708 = vmatprep.subr.mxu0 0.0
      %2709 = vmatpush1.msra.mxu0 0.0
      %2710 = vmatprep.subr.mxu0 0.0
      %2711 = vmatpush1.msra.mxu0 0.0
      %2712 = vmatprep.subr.mxu0 0.0
      %2713 = vmatpush1.msra.mxu0 0.0
      %2714 = vmatprep.subr.mxu0 0.0
      %2715 = vmatpush1.msra.mxu0 0.0
      %2716 = vmatprep.subr.mxu0 0.0
      %2717 = vmatpush1.msra.mxu0 0.0
      %2718 = vmatprep.subr.mxu0 0.0
      %2719 = vmatpush1.msra.mxu0 0.0
      %2720 = vmatprep.subr.mxu0 0.0
      %2721 = vmatpush1.msra.mxu0 0.0
      %2722 = vmatprep.subr.mxu0 0.0
      %2723 = vmatpush1.msra.mxu0 0.0
      %2724 = vmatprep.subr.mxu0 0.0
      %2725 = vmatpush1.msra.mxu0 0.0
      %2726 = vmatprep.subr.mxu0 0.0
      %2727 = vmatpush1.msra.mxu0 0.0
      %2728 = vmatprep.subr.mxu0 0.0
      %2729 = vmatpush1.msra.mxu0 0.0
      %2730 = vmatprep.subr.mxu0 0.0
      %2731 = vmatpush1.msra.mxu0 0.0
      %2732 = vmatprep.subr.mxu0 0.0
      %2733 = vmatpush1.msra.mxu0 0.0
      %2734 = vmatprep.subr.mxu0 0.0
      %2735 = vmatpush1.msra.mxu0 0.0
      %2736 = vmatprep.subr.mxu0 0.0
      %2737 = vmatpush1.msra.mxu0 0.0
      %2738 = vmatprep.subr.mxu0 0.0
      %2739 = vmatpush1.msra.mxu0 0.0
      %2740 = vmatprep.subr.mxu0 0.0
      %2741 = vmatpush1.msra.mxu0 0.0
      %2742 = vmatprep.mubr.f32.mxu0 0.0
      %2743 = vmatmul.mubr.f32.gmra.mrb[0].mxu0 %v2676
      %v2744 = vpop.f32.mrb[0].mxu0
      %v2745 = vadd.f32 0.0, %v2744
      %v2746 = vpop.f32.mrb[0].mxu0
      %2747 = vdwg.mxu0
      %v2749 = vsel %vm1805, %v2657, 0
      %2751 = vmatprep.subr.mxu0 0.0
      %2752 = vmatpush1.msra.mxu0 %v2652
      %2753 = vmatprep.subr.mxu0 0.0
      %2754 = vmatpush1.msra.mxu0 %v2653
      %2755 = vmatprep.subr.mxu0 0.0
      %2756 = vmatpush1.msra.mxu0 0.0
      %2757 = vmatprep.subr.mxu0 0.0
      %2758 = vmatpush1.msra.mxu0 0.0
      %2759 = vmatprep.subr.mxu0 0.0
      %2760 = vmatpush1.msra.mxu0 0.0
      %2761 = vmatprep.subr.mxu0 0.0
      %2762 = vmatpush1.msra.mxu0 0.0
      %2763 = vmatprep.subr.mxu0 0.0
      %2764 = vmatpush1.msra.mxu0 0.0
      %2765 = vmatprep.subr.mxu0 0.0
      %2766 = vmatpush1.msra.mxu0 0.0
      %2767 = vmatprep.subr.mxu0 0.0
      %2768 = vmatpush1.msra.mxu0 0.0
      %2769 = vmatprep.subr.mxu0 0.0
      %2770 = vmatpush1.msra.mxu0 0.0
      %2771 = vmatprep.subr.mxu0 0.0
      %2772 = vmatpush1.msra.mxu0 0.0
      %2773 = vmatprep.subr.mxu0 0.0
      %2774 = vmatpush1.msra.mxu0 0.0
      %2775 = vmatprep.subr.mxu0 0.0
      %2776 = vmatpush1.msra.mxu0 0.0
      %2777 = vmatprep.subr.mxu0 0.0
      %2778 = vmatpush1.msra.mxu0 0.0
      %2779 = vmatprep.subr.mxu0 0.0
      %2780 = vmatpush1.msra.mxu0 0.0
      %2781 = vmatprep.subr.mxu0 0.0
      %2782 = vmatpush1.msra.mxu0 0.0
      %2783 = vmatprep.subr.mxu0 0.0
      %2784 = vmatpush1.msra.mxu0 0.0
      %2785 = vmatprep.subr.mxu0 0.0
      %2786 = vmatpush1.msra.mxu0 0.0
      %2787 = vmatprep.subr.mxu0 0.0
      %2788 = vmatpush1.msra.mxu0 0.0
      %2789 = vmatprep.subr.mxu0 0.0
      %2790 = vmatpush1.msra.mxu0 0.0
      %2791 = vmatprep.subr.mxu0 0.0
      %2792 = vmatpush1.msra.mxu0 0.0
      %2793 = vmatprep.subr.mxu0 0.0
      %2794 = vmatpush1.msra.mxu0 0.0
      %2795 = vmatprep.subr.mxu0 0.0
      %2796 = vmatpush1.msra.mxu0 0.0
      %2797 = vmatprep.subr.mxu0 0.0
      %2798 = vmatpush1.msra.mxu0 0.0
      %2799 = vmatprep.subr.mxu0 0.0
      %2800 = vmatpush1.msra.mxu0 0.0
      %2801 = vmatprep.subr.mxu0 0.0
      %2802 = vmatpush1.msra.mxu0 0.0
      %2803 = vmatprep.subr.mxu0 0.0
      %2804 = vmatpush1.msra.mxu0 0.0
      %2805 = vmatprep.subr.mxu0 0.0
      %2806 = vmatpush1.msra.mxu0 0.0
      %2807 = vmatprep.subr.mxu0 0.0
      %2808 = vmatpush1.msra.mxu0 0.0
      %2809 = vmatprep.subr.mxu0 0.0
      %2810 = vmatpush1.msra.mxu0 0.0
      %2811 = vmatprep.subr.mxu0 0.0
      %2812 = vmatpush1.msra.mxu0 0.0
      %2813 = vmatprep.subr.mxu0 0.0
      %2814 = vmatpush1.msra.mxu0 0.0
      %2815 = vmatprep.mubr.f32.mxu0 0.0
      %2816 = vmatmul.mubr.f32.gmra.mrb[0].mxu0 %v2749
      %v2817 = vpop.f32.mrb[0].mxu0
      %v2818 = vadd.f32 0.0, %v2817
      %v2819 = vpop.f32.mrb[0].mxu0
      %2820 = vdwg.mxu0
      %v2822 = vsel %vm1887, %v2818, 0
      %2824 = vmatprep.subr.mxu0 0.0
      %2825 = vmatpush1.msra.mxu0 %v2666
      %2826 = vmatprep.subr.mxu0 0.0
      %2827 = vmatpush1.msra.mxu0 %v2667
      %2828 = vmatprep.subr.mxu0 0.0
      %2829 = vmatpush1.msra.mxu0 %v2668
      %2830 = vmatprep.subr.mxu0 0.0
      %2831 = vmatpush1.msra.mxu0 %v2669
      %2832 = vmatprep.subr.mxu0 0.0
      %2833 = vmatpush1.msra.mxu0 %v2670
      %2834 = vmatprep.subr.mxu0 0.0
      %2835 = vmatpush1.msra.mxu0 %v2671
      %2836 = vmatprep.subr.mxu0 0.0
      %2837 = vmatpush1.msra.mxu0 %v2672
      %2838 = vmatprep.subr.mxu0 0.0
      %2839 = vmatpush1.msra.mxu0 %v2673
      %2840 = vmatprep.subr.mxu0 0.0
      %2841 = vmatpush1.msra.mxu0 0.0
      %2842 = vmatprep.subr.mxu0 0.0
      %2843 = vmatpush1.msra.mxu0 0.0
      %2844 = vmatprep.subr.mxu0 0.0
      %2845 = vmatpush1.msra.mxu0 0.0
      %2846 = vmatprep.subr.mxu0 0.0
      %2847 = vmatpush1.msra.mxu0 0.0
      %2848 = vmatprep.subr.mxu0 0.0
      %2849 = vmatpush1.msra.mxu0 0.0
      %2850 = vmatprep.subr.mxu0 0.0
      %2851 = vmatpush1.msra.mxu0 0.0
      %2852 = vmatprep.subr.mxu0 0.0
      %2853 = vmatpush1.msra.mxu0 0.0
      %2854 = vmatprep.subr.mxu0 0.0
      %2855 = vmatpush1.msra.mxu0 0.0
      %2856 = vmatprep.subr.mxu0 0.0
      %2857 = vmatpush1.msra.mxu0 0.0
      %2858 = vmatprep.subr.mxu0 0.0
      %2859 = vmatpush1.msra.mxu0 0.0
      %2860 = vmatprep.subr.mxu0 0.0
      %2861 = vmatpush1.msra.mxu0 0.0
      %2862 = vmatprep.subr.mxu0 0.0
      %2863 = vmatpush1.msra.mxu0 0.0
      %2864 = vmatprep.subr.mxu0 0.0
      %2865 = vmatpush1.msra.mxu0 0.0
      %2866 = vmatprep.subr.mxu0 0.0
      %2867 = vmatpush1.msra.mxu0 0.0
      %2868 = vmatprep.subr.mxu0 0.0
      %2869 = vmatpush1.msra.mxu0 0.0
      %2870 = vmatprep.subr.mxu0 0.0
      %2871 = vmatpush1.msra.mxu0 0.0
      %2872 = vmatprep.subr.mxu0 0.0
      %2873 = vmatpush1.msra.mxu0 0.0
      %2874 = vmatprep.subr.mxu0 0.0
      %2875 = vmatpush1.msra.mxu0 0.0
      %2876 = vmatprep.subr.mxu0 0.0
      %2877 = vmatpush1.msra.mxu0 0.0
      %2878 = vmatprep.subr.mxu0 0.0
      %2879 = vmatpush1.msra.mxu0 0.0
      %2880 = vmatprep.subr.mxu0 0.0
      %2881 = vmatpush1.msra.mxu0 0.0
      %2882 = vmatprep.subr.mxu0 0.0
      %2883 = vmatpush1.msra.mxu0 0.0
      %2884 = vmatprep.subr.mxu0 0.0
      %2885 = vmatpush1.msra.mxu0 0.0
      %2886 = vmatprep.subr.mxu0 0.0
      %2887 = vmatpush1.msra.mxu0 0.0
      %2888 = vmatprep.mubr.f32.mxu0 0.0
      %2889 = vmatmul.mubr.f32.gmra.mrb[0].mxu0 %v2822
      %v2890 = vpop.f32.mrb[0].mxu0
      %v2891 = vadd.f32 0.0, %v2890
      %v2892 = vpop.f32.mrb[0].mxu0
      %2893 = vdwg.mxu0
      %v2895 = vsel %vm1887, %v2745, 0
      %2897 = vmatprep.subr.mxu0 0.0
      %2898 = vmatpush1.msra.mxu0 %v2658
      %2899 = vmatprep.subr.mxu0 0.0
      %2900 = vmatpush1.msra.mxu0 %v2659
      %2901 = vmatprep.subr.mxu0 0.0
      %2902 = vmatpush1.msra.mxu0 %v2660
      %2903 = vmatprep.subr.mxu0 0.0
      %2904 = vmatpush1.msra.mxu0 %v2661
      %2905 = vmatprep.subr.mxu0 0.0
      %2906 = vmatpush1.msra.mxu0 %v2662
      %2907 = vmatprep.subr.mxu0 0.0
      %2908 = vmatpush1.msra.mxu0 %v2663
      %2909 = vmatprep.subr.mxu0 0.0
      %2910 = vmatpush1.msra.mxu0 %v2664
      %2911 = vmatprep.subr.mxu0 0.0
      %2912 = vmatpush1.msra.mxu0 %v2665
      %2913 = vmatprep.subr.mxu0 0.0
      %2914 = vmatpush1.msra.mxu0 0.0
      %2915 = vmatprep.subr.mxu0 0.0
      %2916 = vmatpush1.msra.mxu0 0.0
      %2917 = vmatprep.subr.mxu0 0.0
      %2918 = vmatpush1.msra.mxu0 0.0
      %2919 = vmatprep.subr.mxu0 0.0
      %2920 = vmatpush1.msra.mxu0 0.0
      %2921 = vmatprep.subr.mxu0 0.0
      %2922 = vmatpush1.msra.mxu0 0.0
      %2923 = vmatprep.subr.mxu0 0.0
      %2924 = vmatpush1.msra.mxu0 0.0
      %2925 = vmatprep.subr.mxu0 0.0
      %2926 = vmatpush1.msra.mxu0 0.0
      %2927 = vmatprep.subr.mxu0 0.0
      %2928 = vmatpush1.msra.mxu0 0.0
      %2929 = vmatprep.subr.mxu0 0.0
      %2930 = vmatpush1.msra.mxu0 0.0
      %2931 = vmatprep.subr.mxu0 0.0
      %2932 = vmatpush1.msra.mxu0 0.0
      %2933 = vmatprep.subr.mxu0 0.0
      %2934 = vmatpush1.msra.mxu0 0.0
      %2935 = vmatprep.subr.mxu0 0.0
      %2936 = vmatpush1.msra.mxu0 0.0
      %2937 = vmatprep.subr.mxu0 0.0
      %2938 = vmatpush1.msra.mxu0 0.0
      %2939 = vmatprep.subr.mxu0 0.0
      %2940 = vmatpush1.msra.mxu0 0.0
      %2941 = vmatprep.subr.mxu0 0.0
      %2942 = vmatpush1.msra.mxu0 0.0
      %2943 = vmatprep.subr.mxu0 0.0
      %2944 = vmatpush1.msra.mxu0 0.0
      %2945 = vmatprep.subr.mxu0 0.0
      %2946 = vmatpush1.msra.mxu0 0.0
      %2947 = vmatprep.subr.mxu0 0.0
      %2948 = vmatpush1.msra.mxu0 0.0
      %2949 = vmatprep.subr.mxu0 0.0
      %2950 = vmatpush1.msra.mxu0 0.0
      %2951 = vmatprep.subr.mxu0 0.0
      %2952 = vmatpush1.msra.mxu0 0.0
      %2953 = vmatprep.subr.mxu0 0.0
      %2954 = vmatpush1.msra.mxu0 0.0
      %2955 = vmatprep.subr.mxu0 0.0
      %2956 = vmatpush1.msra.mxu0 0.0
      %2957 = vmatprep.subr.mxu0 0.0
      %2958 = vmatpush1.msra.mxu0 0.0
      %2959 = vmatprep.subr.mxu0 0.0
      %2960 = vmatpush1.msra.mxu0 0.0
      %2961 = vmatprep.mubr.f32.mxu0 0.0
      %2962 = vmatmul.mubr.f32.gmra.mrb[0].mxu0 %v2895
      %v2963 = vpop.f32.mrb[0].mxu0
      %v2964 = vadd.f32 %v2891, %v2963
      %v2965 = vpop.f32.mrb[0].mxu0
      %2966 = vdwg.mxu0
      %v2968 = vlaneseq
      %v2969 = vshrl.u32 %v2968, 7
      %v2970 = vsub.s32 0, %v2969
      %v2971 = vrot.slane %v2674, %v2970
      %v2973 = vadd.f32 %v2964, %v2971
      %v2974 = vld [vmem:[%s33] sm:$0xff]
      %v2975 = vld [vmem:[%s35] sm:$0xff]
      %v2976 = vld [vmem:[%s37] sm:$0xff]
      %v2977 = vld [vmem:[%s37 + $0x8] sm:$0xff]
      %v2978 = vld [vmem:[%s37 + $0x10] sm:$0xff]
      %v2979 = vld [vmem:[%s37 + $0x18] sm:$0xff]
      %v2980 = vld [vmem:[%s37 + $0x20] sm:$0xff]
      %v2981 = vld [vmem:[%s37 + $0x28] sm:$0xff]
      %v2982 = vld [vmem:[%s37 + $0x30] sm:$0xff]
      %v2983 = vld [vmem:[%s37 + $0x38] sm:$0xff]
      %v2984 = vld [vmem:[%s39] sm:$0xff]
      %v2985 = vld [vmem:[%s39 + $0x8] sm:$0xff]
      %v2986 = vld [vmem:[%s39 + $0x10] sm:$0xff]
      %v2987 = vld [vmem:[%s39 + $0x18] sm:$0xff]
      %v2988 = vld [vmem:[%s39 + $0x20] sm:$0xff]
      %v2989 = vld [vmem:[%s39 + $0x28] sm:$0xff]
      %v2990 = vld [vmem:[%s39 + $0x30] sm:$0xff]
      %v2991 = vld [vmem:[%s39 + $0x38] sm:$0xff]
      %v2992 = vld [vmem:[%s41] sm:$0xff]
      %v2993 = vld [vmem:[%s41 + $0x8] sm:$0xff]
      %v2994 = vld [vmem:[%s41 + $0x10] sm:$0xff]
      %v2995 = vld [vmem:[%s41 + $0x18] sm:$0xff]
      %v2996 = vld [vmem:[%s41 + $0x20] sm:$0xff]
      %v2997 = vld [vmem:[%s41 + $0x28] sm:$0xff]
      %v2998 = vld [vmem:[%s41 + $0x30] sm:$0xff]
      %v2999 = vld [vmem:[%s41 + $0x38] sm:$0xff]
      %v3000 = vld [vmem:[%s43] sm:$0x1]
      %vm3001 = vcmask 64512
      %v3003 = vsel %vm3001, %v2974, 0
      %3005 = vmatprep.subr.mxu0 0.0
      %3006 = vmatpush1.msra.mxu0 %v2973
      %3007 = vmatprep.subr.mxu0 0.0
      %3008 = vmatpush1.msra.mxu0 0.0
      %3009 = vmatprep.subr.mxu0 0.0
      %3010 = vmatpush1.msra.mxu0 0.0
      %3011 = vmatprep.subr.mxu0 0.0
      %3012 = vmatpush1.msra.mxu0 0.0
      %3013 = vmatprep.subr.mxu0 0.0
      %3014 = vmatpush1.msra.mxu0 0.0
      %3015 = vmatprep.subr.mxu0 0.0
      %3016 = vmatpush1.msra.mxu0 0.0
      %3017 = vmatprep.subr.mxu0 0.0
      %3018 = vmatpush1.msra.mxu0 0.0
      %3019 = vmatprep.subr.mxu0 0.0
      %3020 = vmatpush1.msra.mxu0 0.0
      %3021 = vmatprep.subr.mxu0 0.0
      %3022 = vmatpush1.msra.mxu0 0.0
      %3023 = vmatprep.subr.mxu0 0.0
      %3024 = vmatpush1.msra.mxu0 0.0
      %3025 = vmatprep.subr.mxu0 0.0
      %3026 = vmatpush1.msra.mxu0 0.0
      %3027 = vmatprep.subr.mxu0 0.0
      %3028 = vmatpush1.msra.mxu0 0.0
      %3029 = vmatprep.subr.mxu0 0.0
      %3030 = vmatpush1.msra.mxu0 0.0
      %3031 = vmatprep.subr.mxu0 0.0
      %3032 = vmatpush1.msra.mxu0 0.0
      %3033 = vmatprep.subr.mxu0 0.0
      %3034 = vmatpush1.msra.mxu0 0.0
      %3035 = vmatprep.subr.mxu0 0.0
      %3036 = vmatpush1.msra.mxu0 0.0
      %3037 = vmatprep.subr.mxu0 0.0
      %3038 = vmatpush1.msra.mxu0 0.0
      %3039 = vmatprep.subr.mxu0 0.0
      %3040 = vmatpush1.msra.mxu0 0.0
      %3041 = vmatprep.subr.mxu0 0.0
      %3042 = vmatpush1.msra.mxu0 0.0
      %3043 = vmatprep.subr.mxu0 0.0
      %3044 = vmatpush1.msra.mxu0 0.0
      %3045 = vmatprep.subr.mxu0 0.0
      %3046 = vmatpush1.msra.mxu0 0.0
      %3047 = vmatprep.subr.mxu0 0.0
      %3048 = vmatpush1.msra.mxu0 0.0
      %3049 = vmatprep.subr.mxu0 0.0
      %3050 = vmatpush1.msra.mxu0 0.0
      %3051 = vmatprep.subr.mxu0 0.0
      %3052 = vmatpush1.msra.mxu0 0.0
      %3053 = vmatprep.subr.mxu0 0.0
      %3054 = vmatpush1.msra.mxu0 0.0
      %3055 = vmatprep.subr.mxu0 0.0
      %3056 = vmatpush1.msra.mxu0 0.0
      %3057 = vmatprep.subr.mxu0 0.0
      %3058 = vmatpush1.msra.mxu0 0.0
      %3059 = vmatprep.subr.mxu0 0.0
      %3060 = vmatpush1.msra.mxu0 0.0
      %3061 = vmatprep.subr.mxu0 0.0
      %3062 = vmatpush1.msra.mxu0 0.0
      %3063 = vmatprep.subr.mxu0 0.0
      %3064 = vmatpush1.msra.mxu0 0.0
      %3065 = vmatprep.subr.mxu0 0.0
      %3066 = vmatpush1.msra.mxu0 0.0
      %3067 = vmatprep.subr.mxu0 0.0
      %3068 = vmatpush1.msra.mxu0 0.0
      %3069 = vmatprep.mubr.f32.mxu0 0.0
      %3070 = vmatmul.mubr.f32.gmra.mrb[0].mxu0 %v3003
      %v3071 = vpop.f32.mrb[0].mxu0
      %v3072 = vadd.f32 0.0, %v3071
      %v3073 = vpop.f32.mrb[0].mxu0
      %3074 = vdwg.mxu0
      %v3076 = vsel %vm1887, %v2973, 0
      %3078 = vmatprep.subr.mxu0 0.0
      %3079 = vmatpush1.msra.mxu0 %v2984
      %3080 = vmatprep.subr.mxu0 0.0
      %3081 = vmatpush1.msra.mxu0 %v2985
      %3082 = vmatprep.subr.mxu0 0.0
      %3083 = vmatpush1.msra.mxu0 %v2986
      %3084 = vmatprep.subr.mxu0 0.0
      %3085 = vmatpush1.msra.mxu0 %v2987
      %3086 = vmatprep.subr.mxu0 0.0
      %3087 = vmatpush1.msra.mxu0 %v2988
      %3088 = vmatprep.subr.mxu0 0.0
      %3089 = vmatpush1.msra.mxu0 %v2989
      %3090 = vmatprep.subr.mxu0 0.0
      %3091 = vmatpush1.msra.mxu0 %v2990
      %3092 = vmatprep.subr.mxu0 0.0
      %3093 = vmatpush1.msra.mxu0 %v2991
      %3094 = vmatprep.subr.mxu0 0.0
      %3095 = vmatpush1.msra.mxu0 0.0
      %3096 = vmatprep.subr.mxu0 0.0
      %3097 = vmatpush1.msra.mxu0 0.0
      %3098 = vmatprep.subr.mxu0 0.0
      %3099 = vmatpush1.msra.mxu0 0.0
      %3100 = vmatprep.subr.mxu0 0.0
      %3101 = vmatpush1.msra.mxu0 0.0
      %3102 = vmatprep.subr.mxu0 0.0
      %3103 = vmatpush1.msra.mxu0 0.0
      %3104 = vmatprep.subr.mxu0 0.0
      %3105 = vmatpush1.msra.mxu0 0.0
      %3106 = vmatprep.subr.mxu0 0.0
      %3107 = vmatpush1.msra.mxu0 0.0
      %3108 = vmatprep.subr.mxu0 0.0
      %3109 = vmatpush1.msra.mxu0 0.0
      %3110 = vmatprep.subr.mxu0 0.0
      %3111 = vmatpush1.msra.mxu0 0.0
      %3112 = vmatprep.subr.mxu0 0.0
      %3113 = vmatpush1.msra.mxu0 0.0
      %3114 = vmatprep.subr.mxu0 0.0
      %3115 = vmatpush1.msra.mxu0 0.0
      %3116 = vmatprep.subr.mxu0 0.0
      %3117 = vmatpush1.msra.mxu0 0.0
      %3118 = vmatprep.subr.mxu0 0.0
      %3119 = vmatpush1.msra.mxu0 0.0
      %3120 = vmatprep.subr.mxu0 0.0
      %3121 = vmatpush1.msra.mxu0 0.0
      %3122 = vmatprep.subr.mxu0 0.0
      %3123 = vmatpush1.msra.mxu0 0.0
      %3124 = vmatprep.subr.mxu0 0.0
      %3125 = vmatpush1.msra.mxu0 0.0
      %3126 = vmatprep.subr.mxu0 0.0
      %3127 = vmatpush1.msra.mxu0 0.0
      %3128 = vmatprep.subr.mxu0 0.0
      %3129 = vmatpush1.msra.mxu0 0.0
      %3130 = vmatprep.subr.mxu0 0.0
      %3131 = vmatpush1.msra.mxu0 0.0
      %3132 = vmatprep.subr.mxu0 0.0
      %3133 = vmatpush1.msra.mxu0 0.0
      %3134 = vmatprep.subr.mxu0 0.0
      %3135 = vmatpush1.msra.mxu0 0.0
      %3136 = vmatprep.subr.mxu0 0.0
      %3137 = vmatpush1.msra.mxu0 0.0
      %3138 = vmatprep.subr.mxu0 0.0
      %3139 = vmatpush1.msra.mxu0 0.0
      %3140 = vmatprep.subr.mxu0 0.0
      %3141 = vmatpush1.msra.mxu0 0.0
      %3142 = vmatprep.mubr.f32.mxu0 0.0
      %3143 = vmatmul.mubr.f32.gmra.mrb[0].mxu0 %v3076
      %v3144 = vpop.f32.mrb[0].mxu0
      %v3145 = vadd.f32 0.0, %v3144
      %v3146 = vpop.f32.mrb[0].mxu0
      %3147 = vdwg.mxu0
      %v3149 = vsel %vm1887, %v3072, 0
      %3151 = vmatprep.subr.mxu0 0.0
      %3152 = vmatpush1.msra.mxu0 %v2976
      %3153 = vmatprep.subr.mxu0 0.0
      %3154 = vmatpush1.msra.mxu0 %v2977
      %3155 = vmatprep.subr.mxu0 0.0
      %3156 = vmatpush1.msra.mxu0 %v2978
      %3157 = vmatprep.subr.mxu0 0.0
      %3158 = vmatpush1.msra.mxu0 %v2979
      %3159 = vmatprep.subr.mxu0 0.0
      %3160 = vmatpush1.msra.mxu0 %v2980
      %3161 = vmatprep.subr.mxu0 0.0
      %3162 = vmatpush1.msra.mxu0 %v2981
      %3163 = vmatprep.subr.mxu0 0.0
      %3164 = vmatpush1.msra.mxu0 %v2982
      %3165 = vmatprep.subr.mxu0 0.0
      %3166 = vmatpush1.msra.mxu0 %v2983
      %3167 = vmatprep.subr.mxu0 0.0
      %3168 = vmatpush1.msra.mxu0 0.0
      %3169 = vmatprep.subr.mxu0 0.0
      %3170 = vmatpush1.msra.mxu0 0.0
      %3171 = vmatprep.subr.mxu0 0.0
      %3172 = vmatpush1.msra.mxu0 0.0
      %3173 = vmatprep.subr.mxu0 0.0
      %3174 = vmatpush1.msra.mxu0 0.0
      %3175 = vmatprep.subr.mxu0 0.0
      %3176 = vmatpush1.msra.mxu0 0.0
      %3177 = vmatprep.subr.mxu0 0.0
      %3178 = vmatpush1.msra.mxu0 0.0
      %3179 = vmatprep.subr.mxu0 0.0
      %3180 = vmatpush1.msra.mxu0 0.0
      %3181 = vmatprep.subr.mxu0 0.0
      %3182 = vmatpush1.msra.mxu0 0.0
      %3183 = vmatprep.subr.mxu0 0.0
      %3184 = vmatpush1.msra.mxu0 0.0
      %3185 = vmatprep.subr.mxu0 0.0
      %3186 = vmatpush1.msra.mxu0 0.0
      %3187 = vmatprep.subr.mxu0 0.0
      %3188 = vmatpush1.msra.mxu0 0.0
      %3189 = vmatprep.subr.mxu0 0.0
      %3190 = vmatpush1.msra.mxu0 0.0
      %3191 = vmatprep.subr.mxu0 0.0
      %3192 = vmatpush1.msra.mxu0 0.0
      %3193 = vmatprep.subr.mxu0 0.0
      %3194 = vmatpush1.msra.mxu0 0.0
      %3195 = vmatprep.subr.mxu0 0.0
      %3196 = vmatpush1.msra.mxu0 0.0
      %3197 = vmatprep.subr.mxu0 0.0
      %3198 = vmatpush1.msra.mxu0 0.0
      %3199 = vmatprep.subr.mxu0 0.0
      %3200 = vmatpush1.msra.mxu0 0.0
      %3201 = vmatprep.subr.mxu0 0.0
      %3202 = vmatpush1.msra.mxu0 0.0
      %3203 = vmatprep.subr.mxu0 0.0
      %3204 = vmatpush1.msra.mxu0 0.0
      %3205 = vmatprep.subr.mxu0 0.0
      %3206 = vmatpush1.msra.mxu0 0.0
      %3207 = vmatprep.subr.mxu0 0.0
      %3208 = vmatpush1.msra.mxu0 0.0
      %3209 = vmatprep.subr.mxu0 0.0
      %3210 = vmatpush1.msra.mxu0 0.0
      %3211 = vmatprep.subr.mxu0 0.0
      %3212 = vmatpush1.msra.mxu0 0.0
      %3213 = vmatprep.subr.mxu0 0.0
      %3214 = vmatpush1.msra.mxu0 0.0
      %3215 = vmatprep.mubr.f32.mxu0 0.0
      %3216 = vmatmul.mubr.f32.gmra.mrb[0].mxu0 %v3149
      %v3217 = vpop.f32.mrb[0].mxu0
      %v3218 = vadd.f32 %v3145, %v3217
      %v3219 = vpop.f32.mrb[0].mxu0
      %3220 = vdwg.mxu0
      %v3222 = vsel %vm3001, %v2975, 0
      %3224 = vmatprep.subr.mxu0 0.0
      %3225 = vmatpush1.msra.mxu0 %v2973
      %3226 = vmatprep.subr.mxu0 0.0
      %3227 = vmatpush1.msra.mxu0 0.0
      %3228 = vmatprep.subr.mxu0 0.0
      %3229 = vmatpush1.msra.mxu0 0.0
      %3230 = vmatprep.subr.mxu0 0.0
      %3231 = vmatpush1.msra.mxu0 0.0
      %3232 = vmatprep.subr.mxu0 0.0
      %3233 = vmatpush1.msra.mxu0 0.0
      %3234 = vmatprep.subr.mxu0 0.0
      %3235 = vmatpush1.msra.mxu0 0.0
      %3236 = vmatprep.subr.mxu0 0.0
      %3237 = vmatpush1.msra.mxu0 0.0
      %3238 = vmatprep.subr.mxu0 0.0
      %3239 = vmatpush1.msra.mxu0 0.0
      %3240 = vmatprep.subr.mxu0 0.0
      %3241 = vmatpush1.msra.mxu0 0.0
      %3242 = vmatprep.subr.mxu0 0.0
      %3243 = vmatpush1.msra.mxu0 0.0
      %3244 = vmatprep.subr.mxu0 0.0
      %3245 = vmatpush1.msra.mxu0 0.0
      %3246 = vmatprep.subr.mxu0 0.0
      %3247 = vmatpush1.msra.mxu0 0.0
      %3248 = vmatprep.subr.mxu0 0.0
      %3249 = vmatpush1.msra.mxu0 0.0
      %3250 = vmatprep.subr.mxu0 0.0
      %3251 = vmatpush1.msra.mxu0 0.0
      %3252 = vmatprep.subr.mxu0 0.0
      %3253 = vmatpush1.msra.mxu0 0.0
      %3254 = vmatprep.subr.mxu0 0.0
      %3255 = vmatpush1.msra.mxu0 0.0
      %3256 = vmatprep.subr.mxu0 0.0
      %3257 = vmatpush1.msra.mxu0 0.0
      %3258 = vmatprep.subr.mxu0 0.0
      %3259 = vmatpush1.msra.mxu0 0.0
      %3260 = vmatprep.subr.mxu0 0.0
      %3261 = vmatpush1.msra.mxu0 0.0
      %3262 = vmatprep.subr.mxu0 0.0
      %3263 = vmatpush1.msra.mxu0 0.0
      %3264 = vmatprep.subr.mxu0 0.0
      %3265 = vmatpush1.msra.mxu0 0.0
      %3266 = vmatprep.subr.mxu0 0.0
      %3267 = vmatpush1.msra.mxu0 0.0
      %3268 = vmatprep.subr.mxu0 0.0
      %3269 = vmatpush1.msra.mxu0 0.0
      %3270 = vmatprep.subr.mxu0 0.0
      %3271 = vmatpush1.msra.mxu0 0.0
      %3272 = vmatprep.subr.mxu0 0.0
      %3273 = vmatpush1.msra.mxu0 0.0
      %3274 = vmatprep.subr.mxu0 0.0
      %3275 = vmatpush1.msra.mxu0 0.0
      %3276 = vmatprep.subr.mxu0 0.0
      %3277 = vmatpush1.msra.mxu0 0.0
      %3278 = vmatprep.subr.mxu0 0.0
      %3279 = vmatpush1.msra.mxu0 0.0
      %3280 = vmatprep.subr.mxu0 0.0
      %3281 = vmatpush1.msra.mxu0 0.0
      %3282 = vmatprep.subr.mxu0 0.0
      %3283 = vmatpush1.msra.mxu0 0.0
      %3284 = vmatprep.subr.mxu0 0.0
      %3285 = vmatpush1.msra.mxu0 0.0
      %3286 = vmatprep.subr.mxu0 0.0
      %3287 = vmatpush1.msra.mxu0 0.0
      %3288 = vmatprep.mubr.f32.mxu0 0.0
      %3289 = vmatmul.mubr.f32.gmra.mrb[0].mxu0 %v3222
      %v3290 = vpop.f32.mrb[0].mxu0
      %v3291 = vadd.f32 0.0, %v3290
      %v3292 = vpop.f32.mrb[0].mxu0
      %3293 = vdwg.mxu0
      %v3295 = vsel %vm1887, %v3291, 0
      %3297 = vmatprep.subr.mxu0 0.0
      %3298 = vmatpush1.msra.mxu0 %v2992
      %3299 = vmatprep.subr.mxu0 0.0
      %3300 = vmatpush1.msra.mxu0 %v2993
      %3301 = vmatprep.subr.mxu0 0.0
      %3302 = vmatpush1.msra.mxu0 %v2994
      %3303 = vmatprep.subr.mxu0 0.0
      %3304 = vmatpush1.msra.mxu0 %v2995
      %3305 = vmatprep.subr.mxu0 0.0
      %3306 = vmatpush1.msra.mxu0 %v2996
      %3307 = vmatprep.subr.mxu0 0.0
      %3308 = vmatpush1.msra.mxu0 %v2997
      %3309 = vmatprep.subr.mxu0 0.0
      %3310 = vmatpush1.msra.mxu0 %v2998
      %3311 = vmatprep.subr.mxu0 0.0
      %3312 = vmatpush1.msra.mxu0 %v2999
      %3313 = vmatprep.subr.mxu0 0.0
      %3314 = vmatpush1.msra.mxu0 0.0
      %3315 = vmatprep.subr.mxu0 0.0
      %3316 = vmatpush1.msra.mxu0 0.0
      %3317 = vmatprep.subr.mxu0 0.0
      %3318 = vmatpush1.msra.mxu0 0.0
      %3319 = vmatprep.subr.mxu0 0.0
      %3320 = vmatpush1.msra.mxu0 0.0
      %3321 = vmatprep.subr.mxu0 0.0
      %3322 = vmatpush1.msra.mxu0 0.0
      %3323 = vmatprep.subr.mxu0 0.0
      %3324 = vmatpush1.msra.mxu0 0.0
      %3325 = vmatprep.subr.mxu0 0.0
      %3326 = vmatpush1.msra.mxu0 0.0
      %3327 = vmatprep.subr.mxu0 0.0
      %3328 = vmatpush1.msra.mxu0 0.0
      %3329 = vmatprep.subr.mxu0 0.0
      %3330 = vmatpush1.msra.mxu0 0.0
      %3331 = vmatprep.subr.mxu0 0.0
      %3332 = vmatpush1.msra.mxu0 0.0
      %3333 = vmatprep.subr.mxu0 0.0
      %3334 = vmatpush1.msra.mxu0 0.0
      %3335 = vmatprep.subr.mxu0 0.0
      %3336 = vmatpush1.msra.mxu0 0.0
      %3337 = vmatprep.subr.mxu0 0.0
      %3338 = vmatpush1.msra.mxu0 0.0
      %3339 = vmatprep.subr.mxu0 0.0
      %3340 = vmatpush1.msra.mxu0 0.0
      %3341 = vmatprep.subr.mxu0 0.0
      %3342 = vmatpush1.msra.mxu0 0.0
      %3343 = vmatprep.subr.mxu0 0.0
      %3344 = vmatpush1.msra.mxu0 0.0
      %3345 = vmatprep.subr.mxu0 0.0
      %3346 = vmatpush1.msra.mxu0 0.0
      %3347 = vmatprep.subr.mxu0 0.0
      %3348 = vmatpush1.msra.mxu0 0.0
      %3349 = vmatprep.subr.mxu0 0.0
      %3350 = vmatpush1.msra.mxu0 0.0
      %3351 = vmatprep.subr.mxu0 0.0
      %3352 = vmatpush1.msra.mxu0 0.0
      %3353 = vmatprep.subr.mxu0 0.0
      %3354 = vmatpush1.msra.mxu0 0.0
      %3355 = vmatprep.subr.mxu0 0.0
      %3356 = vmatpush1.msra.mxu0 0.0
      %3357 = vmatprep.subr.mxu0 0.0
      %3358 = vmatpush1.msra.mxu0 0.0
      %3359 = vmatprep.subr.mxu0 0.0
      %3360 = vmatpush1.msra.mxu0 0.0
      %3361 = vmatprep.mubr.f32.mxu0 0.0
      %3362 = vmatmul.mubr.f32.gmra.mrb[0].mxu0 %v3295
      %v3363 = vpop.f32.mrb[0].mxu0
      %v3364 = vadd.f32 0.0, %v3363
      %v3365 = vpop.f32.mrb[0].mxu0
      %3366 = vdwg.mxu0
      %v3367 = vadd.f32 %v3218, %v3364
      %v3369 = vlaneseq
      %v3370 = vshrl.u32 %v3369, 7
      %v3371 = vsub.s32 0, %v3370
      %v3372 = vrot.slane %v3000, %v3371
      %v3374 = vadd.f32 %v3367, %v3372
      %v3375 = vmax.f32 %v3374, 0.0
      %v3376 = vld [vmem:[%s45] sm:$0xff]
      %v3377 = vld [vmem:[%s45 + $0x8] sm:$0xff]
      %v3378 = vld [vmem:[%s45 + $0x10] sm:$0xff]
      %v3379 = vld [vmem:[%s45 + $0x18] sm:$0xff]
      %v3380 = vld [vmem:[%s45 + $0x20] sm:$0xff]
      %v3381 = vld [vmem:[%s45 + $0x28] sm:$0xff]
      %v3382 = vld [vmem:[%s45 + $0x30] sm:$0xff]
      %v3383 = vld [vmem:[%s45 + $0x38] sm:$0xff]
      %v3384 = vld [vmem:[%s47] sm:$0xff]
      %v3385 = vld [vmem:[%s47 + $0x8] sm:$0xff]
      %v3386 = vld [vmem:[%s47 + $0x10] sm:$0xff]
      %v3387 = vld [vmem:[%s47 + $0x18] sm:$0xff]
      %v3388 = vld [vmem:[%s47 + $0x20] sm:$0xff]
      %v3389 = vld [vmem:[%s47 + $0x28] sm:$0xff]
      %v3390 = vld [vmem:[%s47 + $0x30] sm:$0xff]
      %v3391 = vld [vmem:[%s47 + $0x38] sm:$0xff]
      %v3392 = vld [vmem:[%s49] sm:$0xff]
      %v3393 = vld [vmem:[%s49 + $0x8] sm:$0xff]
      %v3394 = vld [vmem:[%s49 + $0x10] sm:$0xff]
      %v3395 = vld [vmem:[%s49 + $0x18] sm:$0xff]
      %v3396 = vld [vmem:[%s49 + $0x20] sm:$0xff]
      %v3397 = vld [vmem:[%s49 + $0x28] sm:$0xff]
      %v3398 = vld [vmem:[%s49 + $0x30] sm:$0xff]
      %v3399 = vld [vmem:[%s49 + $0x38] sm:$0xff]
      %v3400 = vld [vmem:[%s51] sm:$0x1]
      %3401 = vmatprep.subr.mxu0 0.0
      %3402 = vmatpush1.msra.mxu0 %v3375
      %3403 = vmatprep.subr.mxu0 0.0
      %3404 = vmatpush1.msra.mxu0 0.0
      %3405 = vmatprep.subr.mxu0 0.0
      %3406 = vmatpush1.msra.mxu0 0.0
      %3407 = vmatprep.subr.mxu0 0.0
      %3408 = vmatpush1.msra.mxu0 0.0
      %3409 = vmatprep.subr.mxu0 0.0
      %3410 = vmatpush1.msra.mxu0 0.0
      %3411 = vmatprep.subr.mxu0 0.0
      %3412 = vmatpush1.msra.mxu0 0.0
      %3413 = vmatprep.subr.mxu0 0.0
      %3414 = vmatpush1.msra.mxu0 0.0
      %3415 = vmatprep.subr.mxu0 0.0
      %3416 = vmatpush1.msra.mxu0 0.0
      %3417 = vmatprep.subr.mxu0 0.0
      %3418 = vmatpush1.msra.mxu0 0.0
      %3419 = vmatprep.subr.mxu0 0.0
      %3420 = vmatpush1.msra.mxu0 0.0
      %3421 = vmatprep.subr.mxu0 0.0
      %3422 = vmatpush1.msra.mxu0 0.0
      %3423 = vmatprep.subr.mxu0 0.0
      %3424 = vmatpush1.msra.mxu0 0.0
      %3425 = vmatprep.subr.mxu0 0.0
      %3426 = vmatpush1.msra.mxu0 0.0
      %3427 = vmatprep.subr.mxu0 0.0
      %3428 = vmatpush1.msra.mxu0 0.0
      %3429 = vmatprep.subr.mxu0 0.0
      %3430 = vmatpush1.msra.mxu0 0.0
      %3431 = vmatprep.subr.mxu0 0.0
      %3432 = vmatpush1.msra.mxu0 0.0
      %3433 = vmatprep.subr.mxu0 0.0
      %3434 = vmatpush1.msra.mxu0 0.0
      %3435 = vmatprep.subr.mxu0 0.0
      %3436 = vmatpush1.msra.mxu0 0.0
      %3437 = vmatprep.subr.mxu0 0.0
      %3438 = vmatpush1.msra.mxu0 0.0
      %3439 = vmatprep.subr.mxu0 0.0
      %3440 = vmatpush1.msra.mxu0 0.0
      %3441 = vmatprep.subr.mxu0 0.0
      %3442 = vmatpush1.msra.mxu0 0.0
      %3443 = vmatprep.subr.mxu0 0.0
      %3444 = vmatpush1.msra.mxu0 0.0
      %3445 = vmatprep.subr.mxu0 0.0
      %3446 = vmatpush1.msra.mxu0 0.0
      %3447 = vmatprep.subr.mxu0 0.0
      %3448 = vmatpush1.msra.mxu0 0.0
      %3449 = vmatprep.subr.mxu0 0.0
      %3450 = vmatpush1.msra.mxu0 0.0
      %3451 = vmatprep.subr.mxu0 0.0
      %3452 = vmatpush1.msra.mxu0 0.0
      %3453 = vmatprep.subr.mxu0 0.0
      %3454 = vmatpush1.msra.mxu0 0.0
      %3455 = vmatprep.subr.mxu0 0.0
      %3456 = vmatpush1.msra.mxu0 0.0
      %3457 = vmatprep.subr.mxu0 0.0
      %3458 = vmatpush1.msra.mxu0 0.0
      %3459 = vmatprep.subr.mxu0 0.0
      %3460 = vmatpush1.msra.mxu0 0.0
      %3461 = vmatprep.subr.mxu0 0.0
      %3462 = vmatpush1.msra.mxu0 0.0
      %3463 = vmatprep.subr.mxu0 0.0
      %3464 = vmatpush1.msra.mxu0 0.0
      %3465 = vmatprep.mubr.f32.mxu0 0.0
      %3466 = vmatmul.mubr.f32.gmra.mrb[0].mxu0 %v3003
      %v3467 = vpop.f32.mrb[0].mxu0
      %v3468 = vadd.f32 0.0, %v3467
      %v3469 = vpop.f32.mrb[0].mxu0
      %3470 = vdwg.mxu0
      %v3472 = vsel %vm1887, %v3375, 0
      %3474 = vmatprep.subr.mxu0 0.0
      %3475 = vmatpush1.msra.mxu0 %v3384
      %3476 = vmatprep.subr.mxu0 0.0
      %3477 = vmatpush1.msra.mxu0 %v3385
      %3478 = vmatprep.subr.mxu0 0.0
      %3479 = vmatpush1.msra.mxu0 %v3386
      %3480 = vmatprep.subr.mxu0 0.0
      %3481 = vmatpush1.msra.mxu0 %v3387
      %3482 = vmatprep.subr.mxu0 0.0
      %3483 = vmatpush1.msra.mxu0 %v3388
      %3484 = vmatprep.subr.mxu0 0.0
      %3485 = vmatpush1.msra.mxu0 %v3389
      %3486 = vmatprep.subr.mxu0 0.0
      %3487 = vmatpush1.msra.mxu0 %v3390
      %3488 = vmatprep.subr.mxu0 0.0
      %3489 = vmatpush1.msra.mxu0 %v3391
      %3490 = vmatprep.subr.mxu0 0.0
      %3491 = vmatpush1.msra.mxu0 0.0
      %3492 = vmatprep.subr.mxu0 0.0
      %3493 = vmatpush1.msra.mxu0 0.0
      %3494 = vmatprep.subr.mxu0 0.0
      %3495 = vmatpush1.msra.mxu0 0.0
      %3496 = vmatprep.subr.mxu0 0.0
      %3497 = vmatpush1.msra.mxu0 0.0
      %3498 = vmatprep.subr.mxu0 0.0
      %3499 = vmatpush1.msra.mxu0 0.0
      %3500 = vmatprep.subr.mxu0 0.0
      %3501 = vmatpush1.msra.mxu0 0.0
      %3502 = vmatprep.subr.mxu0 0.0
      %3503 = vmatpush1.msra.mxu0 0.0
      %3504 = vmatprep.subr.mxu0 0.0
      %3505 = vmatpush1.msra.mxu0 0.0
      %3506 = vmatprep.subr.mxu0 0.0
      %3507 = vmatpush1.msra.mxu0 0.0
      %3508 = vmatprep.subr.mxu0 0.0
      %3509 = vmatpush1.msra.mxu0 0.0
      %3510 = vmatprep.subr.mxu0 0.0
      %3511 = vmatpush1.msra.mxu0 0.0
      %3512 = vmatprep.subr.mxu0 0.0
      %3513 = vmatpush1.msra.mxu0 0.0
      %3514 = vmatprep.subr.mxu0 0.0
      %3515 = vmatpush1.msra.mxu0 0.0
      %3516 = vmatprep.subr.mxu0 0.0
      %3517 = vmatpush1.msra.mxu0 0.0
      %3518 = vmatprep.subr.mxu0 0.0
      %3519 = vmatpush1.msra.mxu0 0.0
      %3520 = vmatprep.subr.mxu0 0.0
      %3521 = vmatpush1.msra.mxu0 0.0
      %3522 = vmatprep.subr.mxu0 0.0
      %3523 = vmatpush1.msra.mxu0 0.0
      %3524 = vmatprep.subr.mxu0 0.0
      %3525 = vmatpush1.msra.mxu0 0.0
      %3526 = vmatprep.subr.mxu0 0.0
      %3527 = vmatpush1.msra.mxu0 0.0
      %3528 = vmatprep.subr.mxu0 0.0
      %3529 = vmatpush1.msra.mxu0 0.0
      %3530 = vmatprep.subr.mxu0 0.0
      %3531 = vmatpush1.msra.mxu0 0.0
      %3532 = vmatprep.subr.mxu0 0.0
      %3533 = vmatpush1.msra.mxu0 0.0
      %3534 = vmatprep.subr.mxu0 0.0
      %3535 = vmatpush1.msra.mxu0 0.0
      %3536 = vmatprep.subr.mxu0 0.0
      %3537 = vmatpush1.msra.mxu0 0.0
      %3538 = vmatprep.mubr.f32.mxu0 0.0
      %3539 = vmatmul.mubr.f32.gmra.mrb[0].mxu0 %v3472
      %v3540 = vpop.f32.mrb[0].mxu0
      %v3541 = vadd.f32 0.0, %v3540
      %v3542 = vpop.f32.mrb[0].mxu0
      %3543 = vdwg.mxu0
      %v3545 = vsel %vm1887, %v3468, 0
      %3547 = vmatprep.subr.mxu0 0.0
      %3548 = vmatpush1.msra.mxu0 %v3376
      %3549 = vmatprep.subr.mxu0 0.0
      %3550 = vmatpush1.msra.mxu0 %v3377
      %3551 = vmatprep.subr.mxu0 0.0
      %3552 = vmatpush1.msra.mxu0 %v3378
      %3553 = vmatprep.subr.mxu0 0.0
      %3554 = vmatpush1.msra.mxu0 %v3379
      %3555 = vmatprep.subr.mxu0 0.0
      %3556 = vmatpush1.msra.mxu0 %v3380
      %3557 = vmatprep.subr.mxu0 0.0
      %3558 = vmatpush1.msra.mxu0 %v3381
      %3559 = vmatprep.subr.mxu0 0.0
      %3560 = vmatpush1.msra.mxu0 %v3382
      %3561 = vmatprep.subr.mxu0 0.0
      %3562 = vmatpush1.msra.mxu0 %v3383
      %3563 = vmatprep.subr.mxu0 0.0
      %3564 = vmatpush1.msra.mxu0 0.0
      %3565 = vmatprep.subr.mxu0 0.0
      %3566 = vmatpush1.msra.mxu0 0.0
      %3567 = vmatprep.subr.mxu0 0.0
      %3568 = vmatpush1.msra.mxu0 0.0
      %3569 = vmatprep.subr.mxu0 0.0
      %3570 = vmatpush1.msra.mxu0 0.0
      %3571 = vmatprep.subr.mxu0 0.0
      %3572 = vmatpush1.msra.mxu0 0.0
      %3573 = vmatprep.subr.mxu0 0.0
      %3574 = vmatpush1.msra.mxu0 0.0
      %3575 = vmatprep.subr.mxu0 0.0
      %3576 = vmatpush1.msra.mxu0 0.0
      %3577 = vmatprep.subr.mxu0 0.0
      %3578 = vmatpush1.msra.mxu0 0.0
      %3579 = vmatprep.subr.mxu0 0.0
      %3580 = vmatpush1.msra.mxu0 0.0
      %3581 = vmatprep.subr.mxu0 0.0
      %3582 = vmatpush1.msra.mxu0 0.0
      %3583 = vmatprep.subr.mxu0 0.0
      %3584 = vmatpush1.msra.mxu0 0.0
      %3585 = vmatprep.subr.mxu0 0.0
      %3586 = vmatpush1.msra.mxu0 0.0
      %3587 = vmatprep.subr.mxu0 0.0
      %3588 = vmatpush1.msra.mxu0 0.0
      %3589 = vmatprep.subr.mxu0 0.0
      %3590 = vmatpush1.msra.mxu0 0.0
      %3591 = vmatprep.subr.mxu0 0.0
      %3592 = vmatpush1.msra.mxu0 0.0
      %3593 = vmatprep.subr.mxu0 0.0
      %3594 = vmatpush1.msra.mxu0 0.0
      %3595 = vmatprep.subr.mxu0 0.0
      %3596 = vmatpush1.msra.mxu0 0.0
      %3597 = vmatprep.subr.mxu0 0.0
      %3598 = vmatpush1.msra.mxu0 0.0
      %3599 = vmatprep.subr.mxu0 0.0
      %3600 = vmatpush1.msra.mxu0 0.0
      %3601 = vmatprep.subr.mxu0 0.0
      %3602 = vmatpush1.msra.mxu0 0.0
      %3603 = vmatprep.subr.mxu0 0.0
      %3604 = vmatpush1.msra.mxu0 0.0
      %3605 = vmatprep.subr.mxu0 0.0
      %3606 = vmatpush1.msra.mxu0 0.0
      %3607 = vmatprep.subr.mxu0 0.0
      %3608 = vmatpush1.msra.mxu0 0.0
      %3609 = vmatprep.subr.mxu0 0.0
      %3610 = vmatpush1.msra.mxu0 0.0
      %3611 = vmatprep.mubr.f32.mxu0 0.0
      %3612 = vmatmul.mubr.f32.gmra.mrb[0].mxu0 %v3545
      %v3613 = vpop.f32.mrb[0].mxu0
      %v3614 = vadd.f32 %v3541, %v3613
      %v3615 = vpop.f32.mrb[0].mxu0
      %3616 = vdwg.mxu0
      %3617 = vmatprep.subr.mxu0 0.0
      %3618 = vmatpush1.msra.mxu0 %v3375
      %3619 = vmatprep.subr.mxu0 0.0
      %3620 = vmatpush1.msra.mxu0 0.0
      %3621 = vmatprep.subr.mxu0 0.0
      %3622 = vmatpush1.msra.mxu0 0.0
      %3623 = vmatprep.subr.mxu0 0.0
      %3624 = vmatpush1.msra.mxu0 0.0
      %3625 = vmatprep.subr.mxu0 0.0
      %3626 = vmatpush1.msra.mxu0 0.0
      %3627 = vmatprep.subr.mxu0 0.0
      %3628 = vmatpush1.msra.mxu0 0.0
      %3629 = vmatprep.subr.mxu0 0.0
      %3630 = vmatpush1.msra.mxu0 0.0
      %3631 = vmatprep.subr.mxu0 0.0
      %3632 = vmatpush1.msra.mxu0 0.0
      %3633 = vmatprep.subr.mxu0 0.0
      %3634 = vmatpush1.msra.mxu0 0.0
      %3635 = vmatprep.subr.mxu0 0.0
      %3636 = vmatpush1.msra.mxu0 0.0
      %3637 = vmatprep.subr.mxu0 0.0
      %3638 = vmatpush1.msra.mxu0 0.0
      %3639 = vmatprep.subr.mxu0 0.0
      %3640 = vmatpush1.msra.mxu0 0.0
      %3641 = vmatprep.subr.mxu0 0.0
      %3642 = vmatpush1.msra.mxu0 0.0
      %3643 = vmatprep.subr.mxu0 0.0
      %3644 = vmatpush1.msra.mxu0 0.0
      %3645 = vmatprep.subr.mxu0 0.0
      %3646 = vmatpush1.msra.mxu0 0.0
      %3647 = vmatprep.subr.mxu0 0.0
      %3648 = vmatpush1.msra.mxu0 0.0
      %3649 = vmatprep.subr.mxu0 0.0
      %3650 = vmatpush1.msra.mxu0 0.0
      %3651 = vmatprep.subr.mxu0 0.0
      %3652 = vmatpush1.msra.mxu0 0.0
      %3653 = vmatprep.subr.mxu0 0.0
      %3654 = vmatpush1.msra.mxu0 0.0
      %3655 = vmatprep.subr.mxu0 0.0
      %3656 = vmatpush1.msra.mxu0 0.0
      %3657 = vmatprep.subr.mxu0 0.0
      %3658 = vmatpush1.msra.mxu0 0.0
      %3659 = vmatprep.subr.mxu0 0.0
      %3660 = vmatpush1.msra.mxu0 0.0
      %3661 = vmatprep.subr.mxu0 0.0
      %3662 = vmatpush1.msra.mxu0 0.0
      %3663 = vmatprep.subr.mxu0 0.0
      %3664 = vmatpush1.msra.mxu0 0.0
      %3665 = vmatprep.subr.mxu0 0.0
      %3666 = vmatpush1.msra.mxu0 0.0
      %3667 = vmatprep.subr.mxu0 0.0
      %3668 = vmatpush1.msra.mxu0 0.0
      %3669 = vmatprep.subr.mxu0 0.0
      %3670 = vmatpush1.msra.mxu0 0.0
      %3671 = vmatprep.subr.mxu0 0.0
      %3672 = vmatpush1.msra.mxu0 0.0
      %3673 = vmatprep.subr.mxu0 0.0
      %3674 = vmatpush1.msra.mxu0 0.0
      %3675 = vmatprep.subr.mxu0 0.0
      %3676 = vmatpush1.msra.mxu0 0.0
      %3677 = vmatprep.subr.mxu0 0.0
      %3678 = vmatpush1.msra.mxu0 0.0
      %3679 = vmatprep.subr.mxu0 0.0
      %3680 = vmatpush1.msra.mxu0 0.0
      %3681 = vmatprep.mubr.f32.mxu0 0.0
      %3682 = vmatmul.mubr.f32.gmra.mrb[0].mxu0 %v3222
      %v3683 = vpop.f32.mrb[0].mxu0
      %v3684 = vadd.f32 0.0, %v3683
      %v3685 = vpop.f32.mrb[0].mxu0
      %3686 = vdwg.mxu0
      %v3688 = vsel %vm1887, %v3684, 0
      %3690 = vmatprep.subr.mxu0 0.0
      %3691 = vmatpush1.msra.mxu0 %v3392
      %3692 = vmatprep.subr.mxu0 0.0
      %3693 = vmatpush1.msra.mxu0 %v3393
      %3694 = vmatprep.subr.mxu0 0.0
      %3695 = vmatpush1.msra.mxu0 %v3394
      %3696 = vmatprep.subr.mxu0 0.0
      %3697 = vmatpush1.msra.mxu0 %v3395
      %3698 = vmatprep.subr.mxu0 0.0
      %3699 = vmatpush1.msra.mxu0 %v3396
      %3700 = vmatprep.subr.mxu0 0.0
      %3701 = vmatpush1.msra.mxu0 %v3397
      %3702 = vmatprep.subr.mxu0 0.0
      %3703 = vmatpush1.msra.mxu0 %v3398
      %3704 = vmatprep.subr.mxu0 0.0
      %3705 = vmatpush1.msra.mxu0 %v3399
      %3706 = vmatprep.subr.mxu0 0.0
      %3707 = vmatpush1.msra.mxu0 0.0
      %3708 = vmatprep.subr.mxu0 0.0
      %3709 = vmatpush1.msra.mxu0 0.0
      %3710 = vmatprep.subr.mxu0 0.0
      %3711 = vmatpush1.msra.mxu0 0.0
      %3712 = vmatprep.subr.mxu0 0.0
      %3713 = vmatpush1.msra.mxu0 0.0
      %3714 = vmatprep.subr.mxu0 0.0
      %3715 = vmatpush1.msra.mxu0 0.0
      %3716 = vmatprep.subr.mxu0 0.0
      %3717 = vmatpush1.msra.mxu0 0.0
      %3718 = vmatprep.subr.mxu0 0.0
      %3719 = vmatpush1.msra.mxu0 0.0
      %3720 = vmatprep.subr.mxu0 0.0
      %3721 = vmatpush1.msra.mxu0 0.0
      %3722 = vmatprep.subr.mxu0 0.0
      %3723 = vmatpush1.msra.mxu0 0.0
      %3724 = vmatprep.subr.mxu0 0.0
      %3725 = vmatpush1.msra.mxu0 0.0
      %3726 = vmatprep.subr.mxu0 0.0
      %3727 = vmatpush1.msra.mxu0 0.0
      %3728 = vmatprep.subr.mxu0 0.0
      %3729 = vmatpush1.msra.mxu0 0.0
      %3730 = vmatprep.subr.mxu0 0.0
      %3731 = vmatpush1.msra.mxu0 0.0
      %3732 = vmatprep.subr.mxu0 0.0
      %3733 = vmatpush1.msra.mxu0 0.0
      %3734 = vmatprep.subr.mxu0 0.0
      %3735 = vmatpush1.msra.mxu0 0.0
      %3736 = vmatprep.subr.mxu0 0.0
      %3737 = vmatpush1.msra.mxu0 0.0
      %3738 = vmatprep.subr.mxu0 0.0
      %3739 = vmatpush1.msra.mxu0 0.0
      %3740 = vmatprep.subr.mxu0 0.0
      %3741 = vmatpush1.msra.mxu0 0.0
      %3742 = vmatprep.subr.mxu0 0.0
      %3743 = vmatpush1.msra.mxu0 0.0
      %3744 = vmatprep.subr.mxu0 0.0
      %3745 = vmatpush1.msra.mxu0 0.0
      %3746 = vmatprep.subr.mxu0 0.0
      %3747 = vmatpush1.msra.mxu0 0.0
      %3748 = vmatprep.subr.mxu0 0.0
      %3749 = vmatpush1.msra.mxu0 0.0
      %3750 = vmatprep.subr.mxu0 0.0
      %3751 = vmatpush1.msra.mxu0 0.0
      %3752 = vmatprep.subr.mxu0 0.0
      %3753 = vmatpush1.msra.mxu0 0.0
      %3754 = vmatprep.mubr.f32.mxu0 0.0
      %3755 = vmatmul.mubr.f32.gmra.mrb[0].mxu0 %v3688
      %v3756 = vpop.f32.mrb[0].mxu0
      %v3757 = vadd.f32 0.0, %v3756
      %v3758 = vpop.f32.mrb[0].mxu0
      %3759 = vdwg.mxu0
      %v3760 = vadd.f32 %v3614, %v3757
      %v3762 = vlaneseq
      %v3763 = vshrl.u32 %v3762, 7
      %v3764 = vsub.s32 0, %v3763
      %v3765 = vrot.slane %v3400, %v3764
      %v3767 = vadd.f32 %v3760, %v3765
      %v3768 = vmax.f32 %v3767, 0.0
      %3769 = vst.msk [vmem:[%s1765] sm:$0xff] %vm1887, %v3768
      %v3770 = vld [vmem:[%s53] sm:$0xf]
      %v3771 = vld [vmem:[%s55] sm:$0xf]
      %v3772 = vld [vmem:[%s57] sm:$0xff]
      %v3773 = vld [vmem:[%s57 + $0x8] sm:$0xff]
      %v3774 = vld [vmem:[%s57 + $0x10] sm:$0xff]
      %v3775 = vld [vmem:[%s57 + $0x18] sm:$0xff]
      %v3776 = vld [vmem:[%s57 + $0x20] sm:$0xff]
      %v3777 = vld [vmem:[%s57 + $0x28] sm:$0xff]
      %v3778 = vld [vmem:[%s57 + $0x30] sm:$0xff]
      %v3779 = vld [vmem:[%s57 + $0x38] sm:$0xff]
      %v3780 = vld [vmem:[%s59] sm:$0xff]
      %v3781 = vld [vmem:[%s59 + $0x8] sm:$0xff]
      %v3782 = vld [vmem:[%s59 + $0x10] sm:$0xff]
      %v3783 = vld [vmem:[%s59 + $0x18] sm:$0xff]
      %v3784 = vld [vmem:[%s59 + $0x20] sm:$0xff]
      %v3785 = vld [vmem:[%s59 + $0x28] sm:$0xff]
      %v3786 = vld [vmem:[%s59 + $0x30] sm:$0xff]
      %v3787 = vld [vmem:[%s59 + $0x38] sm:$0xff]
      %v3788 = vld [vmem:[%s61] sm:$0x1]
      %v3790 = vsel %vm3001, %v3770, 0
      %3792 = vmatprep.subr.mxu0 0.0
      %3793 = vmatpush1.msra.mxu0 %v3768
      %3794 = vmatprep.subr.mxu0 0.0
      %3795 = vmatpush1.msra.mxu0 0.0
      %3796 = vmatprep.subr.mxu0 0.0
      %3797 = vmatpush1.msra.mxu0 0.0
      %3798 = vmatprep.subr.mxu0 0.0
      %3799 = vmatpush1.msra.mxu0 0.0
      %3800 = vmatprep.subr.mxu0 0.0
      %3801 = vmatpush1.msra.mxu0 0.0
      %3802 = vmatprep.subr.mxu0 0.0
      %3803 = vmatpush1.msra.mxu0 0.0
      %3804 = vmatprep.subr.mxu0 0.0
      %3805 = vmatpush1.msra.mxu0 0.0
      %3806 = vmatprep.subr.mxu0 0.0
      %3807 = vmatpush1.msra.mxu0 0.0
      %3808 = vmatprep.subr.mxu0 0.0
      %3809 = vmatpush1.msra.mxu0 0.0
      %3810 = vmatprep.subr.mxu0 0.0
      %3811 = vmatpush1.msra.mxu0 0.0
      %3812 = vmatprep.subr.mxu0 0.0
      %3813 = vmatpush1.msra.mxu0 0.0
      %3814 = vmatprep.subr.mxu0 0.0
      %3815 = vmatpush1.msra.mxu0 0.0
      %3816 = vmatprep.subr.mxu0 0.0
      %3817 = vmatpush1.msra.mxu0 0.0
      %3818 = vmatprep.subr.mxu0 0.0
      %3819 = vmatpush1.msra.mxu0 0.0
      %3820 = vmatprep.subr.mxu0 0.0
      %3821 = vmatpush1.msra.mxu0 0.0
      %3822 = vmatprep.subr.mxu0 0.0
      %3823 = vmatpush1.msra.mxu0 0.0
      %3824 = vmatprep.subr.mxu0 0.0
      %3825 = vmatpush1.msra.mxu0 0.0
      %3826 = vmatprep.subr.mxu0 0.0
      %3827 = vmatpush1.msra.mxu0 0.0
      %3828 = vmatprep.subr.mxu0 0.0
      %3829 = vmatpush1.msra.mxu0 0.0
      %3830 = vmatprep.subr.mxu0 0.0
      %3831 = vmatpush1.msra.mxu0 0.0
      %3832 = vmatprep.subr.mxu0 0.0
      %3833 = vmatpush1.msra.mxu0 0.0
      %3834 = vmatprep.subr.mxu0 0.0
      %3835 = vmatpush1.msra.mxu0 0.0
      %3836 = vmatprep.subr.mxu0 0.0
      %3837 = vmatpush1.msra.mxu0 0.0
      %3838 = vmatprep.subr.mxu0 0.0
      %3839 = vmatpush1.msra.mxu0 0.0
      %3840 = vmatprep.subr.mxu0 0.0
      %3841 = vmatpush1.msra.mxu0 0.0
      %3842 = vmatprep.subr.mxu0 0.0
      %3843 = vmatpush1.msra.mxu0 0.0
      %3844 = vmatprep.subr.mxu0 0.0
      %3845 = vmatpush1.msra.mxu0 0.0
      %3846 = vmatprep.subr.mxu0 0.0
      %3847 = vmatpush1.msra.mxu0 0.0
      %3848 = vmatprep.subr.mxu0 0.0
      %3849 = vmatpush1.msra.mxu0 0.0
      %3850 = vmatprep.subr.mxu0 0.0
      %3851 = vmatpush1.msra.mxu0 0.0
      %3852 = vmatprep.subr.mxu0 0.0
      %3853 = vmatpush1.msra.mxu0 0.0
      %3854 = vmatprep.subr.mxu0 0.0
      %3855 = vmatpush1.msra.mxu0 0.0
      %3856 = vmatprep.mubr.f32.mxu0 0.0
      %3857 = vmatmul.mubr.f32.gmra.mrb[0].mxu0 %v3790
      %v3858 = vpop.f32.mrb[0].mxu0
      %v3859 = vadd.f32 0.0, %v3858
      %v3860 = vpop.f32.mrb[0].mxu0
      %3861 = vdwg.mxu0
      %v3863 = vsel %vm3001, %v3771, 0
      %3865 = vmatprep.subr.mxu0 0.0
      %3866 = vmatpush1.msra.mxu0 %v3768
      %3867 = vmatprep.subr.mxu0 0.0
      %3868 = vmatpush1.msra.mxu0 0.0
      %3869 = vmatprep.subr.mxu0 0.0
      %3870 = vmatpush1.msra.mxu0 0.0
      %3871 = vmatprep.subr.mxu0 0.0
      %3872 = vmatpush1.msra.mxu0 0.0
      %3873 = vmatprep.subr.mxu0 0.0
      %3874 = vmatpush1.msra.mxu0 0.0
      %3875 = vmatprep.subr.mxu0 0.0
      %3876 = vmatpush1.msra.mxu0 0.0
      %3877 = vmatprep.subr.mxu0 0.0
      %3878 = vmatpush1.msra.mxu0 0.0
      %3879 = vmatprep.subr.mxu0 0.0
      %3880 = vmatpush1.msra.mxu0 0.0
      %3881 = vmatprep.subr.mxu0 0.0
      %3882 = vmatpush1.msra.mxu0 0.0
      %3883 = vmatprep.subr.mxu0 0.0
      %3884 = vmatpush1.msra.mxu0 0.0
      %3885 = vmatprep.subr.mxu0 0.0
      %3886 = vmatpush1.msra.mxu0 0.0
      %3887 = vmatprep.subr.mxu0 0.0
      %3888 = vmatpush1.msra.mxu0 0.0
      %3889 = vmatprep.subr.mxu0 0.0
      %3890 = vmatpush1.msra.mxu0 0.0
      %3891 = vmatprep.subr.mxu0 0.0
      %3892 = vmatpush1.msra.mxu0 0.0
      %3893 = vmatprep.subr.mxu0 0.0
      %3894 = vmatpush1.msra.mxu0 0.0
      %3895 = vmatprep.subr.mxu0 0.0
      %3896 = vmatpush1.msra.mxu0 0.0
      %3897 = vmatprep.subr.mxu0 0.0
      %3898 = vmatpush1.msra.mxu0 0.0
      %3899 = vmatprep.subr.mxu0 0.0
      %3900 = vmatpush1.msra.mxu0 0.0
      %3901 = vmatprep.subr.mxu0 0.0
      %3902 = vmatpush1.msra.mxu0 0.0
      %3903 = vmatprep.subr.mxu0 0.0
      %3904 = vmatpush1.msra.mxu0 0.0
      %3905 = vmatprep.subr.mxu0 0.0
      %3906 = vmatpush1.msra.mxu0 0.0
      %3907 = vmatprep.subr.mxu0 0.0
      %3908 = vmatpush1.msra.mxu0 0.0
      %3909 = vmatprep.subr.mxu0 0.0
      %3910 = vmatpush1.msra.mxu0 0.0
      %3911 = vmatprep.subr.mxu0 0.0
      %3912 = vmatpush1.msra.mxu0 0.0
      %3913 = vmatprep.subr.mxu0 0.0
      %3914 = vmatpush1.msra.mxu0 0.0
      %3915 = vmatprep.subr.mxu0 0.0
      %3916 = vmatpush1.msra.mxu0 0.0
      %3917 = vmatprep.subr.mxu0 0.0
      %3918 = vmatpush1.msra.mxu0 0.0
      %3919 = vmatprep.subr.mxu0 0.0
      %3920 = vmatpush1.msra.mxu0 0.0
      %3921 = vmatprep.subr.mxu0 0.0
      %3922 = vmatpush1.msra.mxu0 0.0
      %3923 = vmatprep.subr.mxu0 0.0
      %3924 = vmatpush1.msra.mxu0 0.0
      %3925 = vmatprep.subr.mxu0 0.0
      %3926 = vmatpush1.msra.mxu0 0.0
      %3927 = vmatprep.subr.mxu0 0.0
      %3928 = vmatpush1.msra.mxu0 0.0
      %3929 = vmatprep.mubr.f32.mxu0 0.0
      %3930 = vmatmul.mubr.f32.gmra.mrb[0].mxu0 %v3863
      %v3931 = vpop.f32.mrb[0].mxu0
      %v3932 = vadd.f32 0.0, %v3931
      %v3933 = vpop.f32.mrb[0].mxu0
      %3934 = vdwg.mxu0
      %v3936 = vsel %vm1887, %v3932, 0
      %3938 = vmatprep.subr.mxu0 0.0
      %3939 = vmatpush1.msra.mxu0 %v3780
      %3940 = vmatprep.subr.mxu0 0.0
      %3941 = vmatpush1.msra.mxu0 %v3781
      %3942 = vmatprep.subr.mxu0 0.0
      %3943 = vmatpush1.msra.mxu0 %v3782
      %3944 = vmatprep.subr.mxu0 0.0
      %3945 = vmatpush1.msra.mxu0 %v3783
      %3946 = vmatprep.subr.mxu0 0.0
      %3947 = vmatpush1.msra.mxu0 %v3784
      %3948 = vmatprep.subr.mxu0 0.0
      %3949 = vmatpush1.msra.mxu0 %v3785
      %3950 = vmatprep.subr.mxu0 0.0
      %3951 = vmatpush1.msra.mxu0 %v3786
      %3952 = vmatprep.subr.mxu0 0.0
      %3953 = vmatpush1.msra.mxu0 %v3787
      %3954 = vmatprep.subr.mxu0 0.0
      %3955 = vmatpush1.msra.mxu0 0.0
      %3956 = vmatprep.subr.mxu0 0.0
      %3957 = vmatpush1.msra.mxu0 0.0
      %3958 = vmatprep.subr.mxu0 0.0
      %3959 = vmatpush1.msra.mxu0 0.0
      %3960 = vmatprep.subr.mxu0 0.0
      %3961 = vmatpush1.msra.mxu0 0.0
      %3962 = vmatprep.subr.mxu0 0.0
      %3963 = vmatpush1.msra.mxu0 0.0
      %3964 = vmatprep.subr.mxu0 0.0
      %3965 = vmatpush1.msra.mxu0 0.0
      %3966 = vmatprep.subr.mxu0 0.0
      %3967 = vmatpush1.msra.mxu0 0.0
      %3968 = vmatprep.subr.mxu0 0.0
      %3969 = vmatpush1.msra.mxu0 0.0
      %3970 = vmatprep.subr.mxu0 0.0
      %3971 = vmatpush1.msra.mxu0 0.0
      %3972 = vmatprep.subr.mxu0 0.0
      %3973 = vmatpush1.msra.mxu0 0.0
      %3974 = vmatprep.subr.mxu0 0.0
      %3975 = vmatpush1.msra.mxu0 0.0
      %3976 = vmatprep.subr.mxu0 0.0
      %3977 = vmatpush1.msra.mxu0 0.0
      %3978 = vmatprep.subr.mxu0 0.0
      %3979 = vmatpush1.msra.mxu0 0.0
      %3980 = vmatprep.subr.mxu0 0.0
      %3981 = vmatpush1.msra.mxu0 0.0
      %3982 = vmatprep.subr.mxu0 0.0
      %3983 = vmatpush1.msra.mxu0 0.0
      %3984 = vmatprep.subr.mxu0 0.0
      %3985 = vmatpush1.msra.mxu0 0.0
      %3986 = vmatprep.subr.mxu0 0.0
      %3987 = vmatpush1.msra.mxu0 0.0
      %3988 = vmatprep.subr.mxu0 0.0
      %3989 = vmatpush1.msra.mxu0 0.0
      %3990 = vmatprep.subr.mxu0 0.0
      %3991 = vmatpush1.msra.mxu0 0.0
      %3992 = vmatprep.subr.mxu0 0.0
      %3993 = vmatpush1.msra.mxu0 0.0
      %3994 = vmatprep.subr.mxu0 0.0
      %3995 = vmatpush1.msra.mxu0 0.0
      %3996 = vmatprep.subr.mxu0 0.0
      %3997 = vmatpush1.msra.mxu0 0.0
      %3998 = vmatprep.subr.mxu0 0.0
      %3999 = vmatpush1.msra.mxu0 0.0
      %4000 = vmatprep.subr.mxu0 0.0
      %4001 = vmatpush1.msra.mxu0 0.0
      %4002 = vmatprep.mubr.f32.mxu0 0.0
      %4003 = vmatmul.mubr.f32.gmra.mrb[0].mxu0 %v3936
      %v4004 = vpop.f32.mrb[0].mxu0
      %v4005 = vadd.f32 0.0, %v4004
      %v4006 = vpop.f32.mrb[0].mxu0
      %4007 = vdwg.mxu0
      %v4009 = vsel %vm1887, %v3859, 0
      %4011 = vmatprep.subr.mxu0 0.0
      %4012 = vmatpush1.msra.mxu0 %v3772
      %4013 = vmatprep.subr.mxu0 0.0
      %4014 = vmatpush1.msra.mxu0 %v3773
      %4015 = vmatprep.subr.mxu0 0.0
      %4016 = vmatpush1.msra.mxu0 %v3774
      %4017 = vmatprep.subr.mxu0 0.0
      %4018 = vmatpush1.msra.mxu0 %v3775
      %4019 = vmatprep.subr.mxu0 0.0
      %4020 = vmatpush1.msra.mxu0 %v3776
      %4021 = vmatprep.subr.mxu0 0.0
      %4022 = vmatpush1.msra.mxu0 %v3777
      %4023 = vmatprep.subr.mxu0 0.0
      %4024 = vmatpush1.msra.mxu0 %v3778
      %4025 = vmatprep.subr.mxu0 0.0
      %4026 = vmatpush1.msra.mxu0 %v3779
      %4027 = vmatprep.subr.mxu0 0.0
      %4028 = vmatpush1.msra.mxu0 0.0
      %4029 = vmatprep.subr.mxu0 0.0
      %4030 = vmatpush1.msra.mxu0 0.0
      %4031 = vmatprep.subr.mxu0 0.0
      %4032 = vmatpush1.msra.mxu0 0.0
      %4033 = vmatprep.subr.mxu0 0.0
      %4034 = vmatpush1.msra.mxu0 0.0
      %4035 = vmatprep.subr.mxu0 0.0
      %4036 = vmatpush1.msra.mxu0 0.0
      %4037 = vmatprep.subr.mxu0 0.0
      %4038 = vmatpush1.msra.mxu0 0.0
      %4039 = vmatprep.subr.mxu0 0.0
      %4040 = vmatpush1.msra.mxu0 0.0
      %4041 = vmatprep.subr.mxu0 0.0
      %4042 = vmatpush1.msra.mxu0 0.0
      %4043 = vmatprep.subr.mxu0 0.0
      %4044 = vmatpush1.msra.mxu0 0.0
      %4045 = vmatprep.subr.mxu0 0.0
      %4046 = vmatpush1.msra.mxu0 0.0
      %4047 = vmatprep.subr.mxu0 0.0
      %4048 = vmatpush1.msra.mxu0 0.0
      %4049 = vmatprep.subr.mxu0 0.0
      %4050 = vmatpush1.msra.mxu0 0.0
      %4051 = vmatprep.subr.mxu0 0.0
      %4052 = vmatpush1.msra.mxu0 0.0
      %4053 = vmatprep.subr.mxu0 0.0
      %4054 = vmatpush1.msra.mxu0 0.0
      %4055 = vmatprep.subr.mxu0 0.0
      %4056 = vmatpush1.msra.mxu0 0.0
      %4057 = vmatprep.subr.mxu0 0.0
      %4058 = vmatpush1.msra.mxu0 0.0
      %4059 = vmatprep.subr.mxu0 0.0
      %4060 = vmatpush1.msra.mxu0 0.0
      %4061 = vmatprep.subr.mxu0 0.0
      %4062 = vmatpush1.msra.mxu0 0.0
      %4063 = vmatprep.subr.mxu0 0.0
      %4064 = vmatpush1.msra.mxu0 0.0
      %4065 = vmatprep.subr.mxu0 0.0
      %4066 = vmatpush1.msra.mxu0 0.0
      %4067 = vmatprep.subr.mxu0 0.0
      %4068 = vmatpush1.msra.mxu0 0.0
      %4069 = vmatprep.subr.mxu0 0.0
      %4070 = vmatpush1.msra.mxu0 0.0
      %4071 = vmatprep.subr.mxu0 0.0
      %4072 = vmatpush1.msra.mxu0 0.0
      %4073 = vmatprep.subr.mxu0 0.0
      %4074 = vmatpush1.msra.mxu0 0.0
      %4075 = vmatprep.mubr.f32.mxu0 0.0
      %4076 = vmatmul.mubr.f32.gmra.mrb[0].mxu0 %v4009
      %v4077 = vpop.f32.mrb[0].mxu0
      %v4078 = vadd.f32 %v4005, %v4077
      %v4079 = vpop.f32.mrb[0].mxu0
      %4080 = vdwg.mxu0
      %v4082 = vlaneseq
      %v4083 = vshrl.u32 %v4082, 7
      %v4084 = vsub.s32 0, %v4083
      %v4085 = vrot.slane %v3788, %v4084
      %v4087 = vadd.f32 %v4078, %v4085
      %v4088 = vld [vmem:[%s63] sm:$0xf]
      %v4089 = vld [vmem:[%s65] sm:$0xf]
      %v4090 = vld [vmem:[%s67] sm:$0xff]
      %v4091 = vld [vmem:[%s67 + $0x8] sm:$0xff]
      %v4092 = vld [vmem:[%s67 + $0x10] sm:$0xff]
      %v4093 = vld [vmem:[%s67 + $0x18] sm:$0xff]
      %v4094 = vld [vmem:[%s67 + $0x20] sm:$0xff]
      %v4095 = vld [vmem:[%s67 + $0x28] sm:$0xff]
      %v4096 = vld [vmem:[%s67 + $0x30] sm:$0xff]
      %v4097 = vld [vmem:[%s67 + $0x38] sm:$0xff]
      %v4098 = vld [vmem:[%s69] sm:$0xff]
      %v4099 = vld [vmem:[%s69 + $0x8] sm:$0xff]
      %v4100 = vld [vmem:[%s69 + $0x10] sm:$0xff]
      %v4101 = vld [vmem:[%s69 + $0x18] sm:$0xff]
      %v4102 = vld [vmem:[%s69 + $0x20] sm:$0xff]
      %v4103 = vld [vmem:[%s69 + $0x28] sm:$0xff]
      %v4104 = vld [vmem:[%s69 + $0x30] sm:$0xff]
      %v4105 = vld [vmem:[%s69 + $0x38] sm:$0xff]
      %v4106 = vld [vmem:[%s71] sm:$0xff]
      %v4107 = vld [vmem:[%s71 + $0x8] sm:$0xff]
      %v4108 = vld [vmem:[%s71 + $0x10] sm:$0xff]
      %v4109 = vld [vmem:[%s71 + $0x18] sm:$0xff]
      %v4110 = vld [vmem:[%s71 + $0x20] sm:$0xff]
      %v4111 = vld [vmem:[%s71 + $0x28] sm:$0xff]
      %v4112 = vld [vmem:[%s71 + $0x30] sm:$0xff]
      %v4113 = vld [vmem:[%s71 + $0x38] sm:$0xff]
      %v4114 = vld [vmem:[%s73] sm:$0x1]
      %vm4115 = vcmask 31744
      %v4117 = vsel %vm4115, %v4088, 0
      %vm4119 = vcmask 1043456
      %v4121 = vsel %vm4119, %v4087, 0
      %4123 = vmatprep.subr.mxu0 0.0
      %4124 = vmatpush1.msra.mxu0 %v4121
      %4125 = vmatprep.subr.mxu0 0.0
      %4126 = vmatpush1.msra.mxu0 0.0
      %4127 = vmatprep.subr.mxu0 0.0
      %4128 = vmatpush1.msra.mxu0 0.0
      %4129 = vmatprep.subr.mxu0 0.0
      %4130 = vmatpush1.msra.mxu0 0.0
      %4131 = vmatprep.subr.mxu0 0.0
      %4132 = vmatpush1.msra.mxu0 0.0
      %4133 = vmatprep.subr.mxu0 0.0
      %4134 = vmatpush1.msra.mxu0 0.0
      %4135 = vmatprep.subr.mxu0 0.0
      %4136 = vmatpush1.msra.mxu0 0.0
      %4137 = vmatprep.subr.mxu0 0.0
      %4138 = vmatpush1.msra.mxu0 0.0
      %4139 = vmatprep.subr.mxu0 0.0
      %4140 = vmatpush1.msra.mxu0 0.0
      %4141 = vmatprep.subr.mxu0 0.0
      %4142 = vmatpush1.msra.mxu0 0.0
      %4143 = vmatprep.subr.mxu0 0.0
      %4144 = vmatpush1.msra.mxu0 0.0
      %4145 = vmatprep.subr.mxu0 0.0
      %4146 = vmatpush1.msra.mxu0 0.0
      %4147 = vmatprep.subr.mxu0 0.0
      %4148 = vmatpush1.msra.mxu0 0.0
      %4149 = vmatprep.subr.mxu0 0.0
      %4150 = vmatpush1.msra.mxu0 0.0
      %4151 = vmatprep.subr.mxu0 0.0
      %4152 = vmatpush1.msra.mxu0 0.0
      %4153 = vmatprep.subr.mxu0 0.0
      %4154 = vmatpush1.msra.mxu0 0.0
      %4155 = vmatprep.subr.mxu0 0.0
      %4156 = vmatpush1.msra.mxu0 0.0
      %4157 = vmatprep.subr.mxu0 0.0
      %4158 = vmatpush1.msra.mxu0 0.0
      %4159 = vmatprep.subr.mxu0 0.0
      %4160 = vmatpush1.msra.mxu0 0.0
      %4161 = vmatprep.subr.mxu0 0.0
      %4162 = vmatpush1.msra.mxu0 0.0
      %4163 = vmatprep.subr.mxu0 0.0
      %4164 = vmatpush1.msra.mxu0 0.0
      %4165 = vmatprep.subr.mxu0 0.0
      %4166 = vmatpush1.msra.mxu0 0.0
      %4167 = vmatprep.subr.mxu0 0.0
      %4168 = vmatpush1.msra.mxu0 0.0
      %4169 = vmatprep.subr.mxu0 0.0
      %4170 = vmatpush1.msra.mxu0 0.0
      %4171 = vmatprep.subr.mxu0 0.0
      %4172 = vmatpush1.msra.mxu0 0.0
      %4173 = vmatprep.subr.mxu0 0.0
      %4174 = vmatpush1.msra.mxu0 0.0
      %4175 = vmatprep.subr.mxu0 0.0
      %4176 = vmatpush1.msra.mxu0 0.0
      %4177 = vmatprep.subr.mxu0 0.0
      %4178 = vmatpush1.msra.mxu0 0.0
      %4179 = vmatprep.subr.mxu0 0.0
      %4180 = vmatpush1.msra.mxu0 0.0
      %4181 = vmatprep.subr.mxu0 0.0
      %4182 = vmatpush1.msra.mxu0 0.0
      %4183 = vmatprep.subr.mxu0 0.0
      %4184 = vmatpush1.msra.mxu0 0.0
      %4185 = vmatprep.subr.mxu0 0.0
      %4186 = vmatpush1.msra.mxu0 0.0
      %4187 = vmatprep.mubr.f32.mxu0 0.0
      %4188 = vmatmul.mubr.f32.gmra.mrb[0].mxu0 %v4117
      %v4189 = vpop.f32.mrb[0].mxu0
      %v4190 = vadd.f32 0.0, %v4189
      %v4191 = vpop.f32.mrb[0].mxu0
      %4192 = vdwg.mxu0
      %v4193 = vsel %vm1887, %v4087, 0
      %4195 = vmatprep.subr.mxu0 0.0
      %4196 = vmatpush1.msra.mxu0 %v4098
      %4197 = vmatprep.subr.mxu0 0.0
      %4198 = vmatpush1.msra.mxu0 %v4099
      %4199 = vmatprep.subr.mxu0 0.0
      %4200 = vmatpush1.msra.mxu0 %v4100
      %4201 = vmatprep.subr.mxu0 0.0
      %4202 = vmatpush1.msra.mxu0 %v4101
      %4203 = vmatprep.subr.mxu0 0.0
      %4204 = vmatpush1.msra.mxu0 %v4102
      %4205 = vmatprep.subr.mxu0 0.0
      %4206 = vmatpush1.msra.mxu0 %v4103
      %4207 = vmatprep.subr.mxu0 0.0
      %4208 = vmatpush1.msra.mxu0 %v4104
      %4209 = vmatprep.subr.mxu0 0.0
      %4210 = vmatpush1.msra.mxu0 %v4105
      %4211 = vmatprep.subr.mxu0 0.0
      %4212 = vmatpush1.msra.mxu0 0.0
      %4213 = vmatprep.subr.mxu0 0.0
      %4214 = vmatpush1.msra.mxu0 0.0
      %4215 = vmatprep.subr.mxu0 0.0
      %4216 = vmatpush1.msra.mxu0 0.0
      %4217 = vmatprep.subr.mxu0 0.0
      %4218 = vmatpush1.msra.mxu0 0.0
      %4219 = vmatprep.subr.mxu0 0.0
      %4220 = vmatpush1.msra.mxu0 0.0
      %4221 = vmatprep.subr.mxu0 0.0
      %4222 = vmatpush1.msra.mxu0 0.0
      %4223 = vmatprep.subr.mxu0 0.0
      %4224 = vmatpush1.msra.mxu0 0.0
      %4225 = vmatprep.subr.mxu0 0.0
      %4226 = vmatpush1.msra.mxu0 0.0
      %4227 = vmatprep.subr.mxu0 0.0
      %4228 = vmatpush1.msra.mxu0 0.0
      %4229 = vmatprep.subr.mxu0 0.0
      %4230 = vmatpush1.msra.mxu0 0.0
      %4231 = vmatprep.subr.mxu0 0.0
      %4232 = vmatpush1.msra.mxu0 0.0
      %4233 = vmatprep.subr.mxu0 0.0
      %4234 = vmatpush1.msra.mxu0 0.0
      %4235 = vmatprep.subr.mxu0 0.0
      %4236 = vmatpush1.msra.mxu0 0.0
      %4237 = vmatprep.subr.mxu0 0.0
      %4238 = vmatpush1.msra.mxu0 0.0
      %4239 = vmatprep.subr.mxu0 0.0
      %4240 = vmatpush1.msra.mxu0 0.0
      %4241 = vmatprep.subr.mxu0 0.0
      %4242 = vmatpush1.msra.mxu0 0.0
      %4243 = vmatprep.subr.mxu0 0.0
      %4244 = vmatpush1.msra.mxu0 0.0
      %4245 = vmatprep.subr.mxu0 0.0
      %4246 = vmatpush1.msra.mxu0 0.0
      %4247 = vmatprep.subr.mxu0 0.0
      %4248 = vmatpush1.msra.mxu0 0.0
      %4249 = vmatprep.subr.mxu0 0.0
      %4250 = vmatpush1.msra.mxu0 0.0
      %4251 = vmatprep.subr.mxu0 0.0
      %4252 = vmatpush1.msra.mxu0 0.0
      %4253 = vmatprep.subr.mxu0 0.0
      %4254 = vmatpush1.msra.mxu0 0.0
      %4255 = vmatprep.subr.mxu0 0.0
      %4256 = vmatpush1.msra.mxu0 0.0
      %4257 = vmatprep.subr.mxu0 0.0
      %4258 = vmatpush1.msra.mxu0 0.0
      %4259 = vmatprep.mubr.f32.mxu0 0.0
      %4260 = vmatmul.mubr.f32.gmra.mrb[0].mxu0 %v4193
      %v4261 = vpop.f32.mrb[0].mxu0
      %v4262 = vadd.f32 0.0, %v4261
      %v4263 = vpop.f32.mrb[0].mxu0
      %4264 = vdwg.mxu0
      %v4266 = vsel %vm1887, %v4190, 0
      %4268 = vmatprep.subr.mxu0 0.0
      %4269 = vmatpush1.msra.mxu0 %v4090
      %4270 = vmatprep.subr.mxu0 0.0
      %4271 = vmatpush1.msra.mxu0 %v4091
      %4272 = vmatprep.subr.mxu0 0.0
      %4273 = vmatpush1.msra.mxu0 %v4092
      %4274 = vmatprep.subr.mxu0 0.0
      %4275 = vmatpush1.msra.mxu0 %v4093
      %4276 = vmatprep.subr.mxu0 0.0
      %4277 = vmatpush1.msra.mxu0 %v4094
      %4278 = vmatprep.subr.mxu0 0.0
      %4279 = vmatpush1.msra.mxu0 %v4095
      %4280 = vmatprep.subr.mxu0 0.0
      %4281 = vmatpush1.msra.mxu0 %v4096
      %4282 = vmatprep.subr.mxu0 0.0
      %4283 = vmatpush1.msra.mxu0 %v4097
      %4284 = vmatprep.subr.mxu0 0.0
      %4285 = vmatpush1.msra.mxu0 0.0
      %4286 = vmatprep.subr.mxu0 0.0
      %4287 = vmatpush1.msra.mxu0 0.0
      %4288 = vmatprep.subr.mxu0 0.0
      %4289 = vmatpush1.msra.mxu0 0.0
      %4290 = vmatprep.subr.mxu0 0.0
      %4291 = vmatpush1.msra.mxu0 0.0
      %4292 = vmatprep.subr.mxu0 0.0
      %4293 = vmatpush1.msra.mxu0 0.0
      %4294 = vmatprep.subr.mxu0 0.0
      %4295 = vmatpush1.msra.mxu0 0.0
      %4296 = vmatprep.subr.mxu0 0.0
      %4297 = vmatpush1.msra.mxu0 0.0
      %4298 = vmatprep.subr.mxu0 0.0
      %4299 = vmatpush1.msra.mxu0 0.0
      %4300 = vmatprep.subr.mxu0 0.0
      %4301 = vmatpush1.msra.mxu0 0.0
      %4302 = vmatprep.subr.mxu0 0.0
      %4303 = vmatpush1.msra.mxu0 0.0
      %4304 = vmatprep.subr.mxu0 0.0
      %4305 = vmatpush1.msra.mxu0 0.0
      %4306 = vmatprep.subr.mxu0 0.0
      %4307 = vmatpush1.msra.mxu0 0.0
      %4308 = vmatprep.subr.mxu0 0.0
      %4309 = vmatpush1.msra.mxu0 0.0
      %4310 = vmatprep.subr.mxu0 0.0
      %4311 = vmatpush1.msra.mxu0 0.0
      %4312 = vmatprep.subr.mxu0 0.0
      %4313 = vmatpush1.msra.mxu0 0.0
      %4314 = vmatprep.subr.mxu0 0.0
      %4315 = vmatpush1.msra.mxu0 0.0
      %4316 = vmatprep.subr.mxu0 0.0
      %4317 = vmatpush1.msra.mxu0 0.0
      %4318 = vmatprep.subr.mxu0 0.0
      %4319 = vmatpush1.msra.mxu0 0.0
      %4320 = vmatprep.subr.mxu0 0.0
      %4321 = vmatpush1.msra.mxu0 0.0
      %4322 = vmatprep.subr.mxu0 0.0
      %4323 = vmatpush1.msra.mxu0 0.0
      %4324 = vmatprep.subr.mxu0 0.0
      %4325 = vmatpush1.msra.mxu0 0.0
      %4326 = vmatprep.subr.mxu0 0.0
      %4327 = vmatpush1.msra.mxu0 0.0
      %4328 = vmatprep.subr.mxu0 0.0
      %4329 = vmatpush1.msra.mxu0 0.0
      %4330 = vmatprep.subr.mxu0 0.0
      %4331 = vmatpush1.msra.mxu0 0.0
      %4332 = vmatprep.mubr.f32.mxu0 0.0
      %4333 = vmatmul.mubr.f32.gmra.mrb[0].mxu0 %v4266
      %v4334 = vpop.f32.mrb[0].mxu0
      %v4335 = vadd.f32 %v4262, %v4334
      %v4336 = vpop.f32.mrb[0].mxu0
      %4337 = vdwg.mxu0
      %v4339 = vsel %vm4115, %v4089, 0
      %4341 = vmatprep.subr.mxu0 0.0
      %4342 = vmatpush1.msra.mxu0 %v4121
      %4343 = vmatprep.subr.mxu0 0.0
      %4344 = vmatpush1.msra.mxu0 0.0
      %4345 = vmatprep.subr.mxu0 0.0
      %4346 = vmatpush1.msra.mxu0 0.0
      %4347 = vmatprep.subr.mxu0 0.0
      %4348 = vmatpush1.msra.mxu0 0.0
      %4349 = vmatprep.subr.mxu0 0.0
      %4350 = vmatpush1.msra.mxu0 0.0
      %4351 = vmatprep.subr.mxu0 0.0
      %4352 = vmatpush1.msra.mxu0 0.0
      %4353 = vmatprep.subr.mxu0 0.0
      %4354 = vmatpush1.msra.mxu0 0.0
      %4355 = vmatprep.subr.mxu0 0.0
      %4356 = vmatpush1.msra.mxu0 0.0
      %4357 = vmatprep.subr.mxu0 0.0
      %4358 = vmatpush1.msra.mxu0 0.0
      %4359 = vmatprep.subr.mxu0 0.0
      %4360 = vmatpush1.msra.mxu0 0.0
      %4361 = vmatprep.subr.mxu0 0.0
      %4362 = vmatpush1.msra.mxu0 0.0
      %4363 = vmatprep.subr.mxu0 0.0
      %4364 = vmatpush1.msra.mxu0 0.0
      %4365 = vmatprep.subr.mxu0 0.0
      %4366 = vmatpush1.msra.mxu0 0.0
      %4367 = vmatprep.subr.mxu0 0.0
      %4368 = vmatpush1.msra.mxu0 0.0
      %4369 = vmatprep.subr.mxu0 0.0
      %4370 = vmatpush1.msra.mxu0 0.0
      %4371 = vmatprep.subr.mxu0 0.0
      %4372 = vmatpush1.msra.mxu0 0.0
      %4373 = vmatprep.subr.mxu0 0.0
      %4374 = vmatpush1.msra.mxu0 0.0
      %4375 = vmatprep.subr.mxu0 0.0
      %4376 = vmatpush1.msra.mxu0 0.0
      %4377 = vmatprep.subr.mxu0 0.0
      %4378 = vmatpush1.msra.mxu0 0.0
      %4379 = vmatprep.subr.mxu0 0.0
      %4380 = vmatpush1.msra.mxu0 0.0
      %4381 = vmatprep.subr.mxu0 0.0
      %4382 = vmatpush1.msra.mxu0 0.0
      %4383 = vmatprep.subr.mxu0 0.0
      %4384 = vmatpush1.msra.mxu0 0.0
      %4385 = vmatprep.subr.mxu0 0.0
      %4386 = vmatpush1.msra.mxu0 0.0
      %4387 = vmatprep.subr.mxu0 0.0
      %4388 = vmatpush1.msra.mxu0 0.0
      %4389 = vmatprep.subr.mxu0 0.0
      %4390 = vmatpush1.msra.mxu0 0.0
      %4391 = vmatprep.subr.mxu0 0.0
      %4392 = vmatpush1.msra.mxu0 0.0
      %4393 = vmatprep.subr.mxu0 0.0
      %4394 = vmatpush1.msra.mxu0 0.0
      %4395 = vmatprep.subr.mxu0 0.0
      %4396 = vmatpush1.msra.mxu0 0.0
      %4397 = vmatprep.subr.mxu0 0.0
      %4398 = vmatpush1.msra.mxu0 0.0
      %4399 = vmatprep.subr.mxu0 0.0
      %4400 = vmatpush1.msra.mxu0 0.0
      %4401 = vmatprep.subr.mxu0 0.0
      %4402 = vmatpush1.msra.mxu0 0.0
      %4403 = vmatprep.subr.mxu0 0.0
      %4404 = vmatpush1.msra.mxu0 0.0
      %4405 = vmatprep.mubr.f32.mxu0 0.0
      %4406 = vmatmul.mubr.f32.gmra.mrb[0].mxu0 %v4339
      %v4407 = vpop.f32.mrb[0].mxu0
      %v4408 = vadd.f32 0.0, %v4407
      %v4409 = vpop.f32.mrb[0].mxu0
      %4410 = vdwg.mxu0
      %v4412 = vsel %vm1887, %v4408, 0
      %4414 = vmatprep.subr.mxu0 0.0
      %4415 = vmatpush1.msra.mxu0 %v4106
      %4416 = vmatprep.subr.mxu0 0.0
      %4417 = vmatpush1.msra.mxu0 %v4107
      %4418 = vmatprep.subr.mxu0 0.0
      %4419 = vmatpush1.msra.mxu0 %v4108
      %4420 = vmatprep.subr.mxu0 0.0
      %4421 = vmatpush1.msra.mxu0 %v4109
      %4422 = vmatprep.subr.mxu0 0.0
      %4423 = vmatpush1.msra.mxu0 %v4110
      %4424 = vmatprep.subr.mxu0 0.0
      %4425 = vmatpush1.msra.mxu0 %v4111
      %4426 = vmatprep.subr.mxu0 0.0
      %4427 = vmatpush1.msra.mxu0 %v4112
      %4428 = vmatprep.subr.mxu0 0.0
      %4429 = vmatpush1.msra.mxu0 %v4113
      %4430 = vmatprep.subr.mxu0 0.0
      %4431 = vmatpush1.msra.mxu0 0.0
      %4432 = vmatprep.subr.mxu0 0.0
      %4433 = vmatpush1.msra.mxu0 0.0
      %4434 = vmatprep.subr.mxu0 0.0
      %4435 = vmatpush1.msra.mxu0 0.0
      %4436 = vmatprep.subr.mxu0 0.0
      %4437 = vmatpush1.msra.mxu0 0.0
      %4438 = vmatprep.subr.mxu0 0.0
      %4439 = vmatpush1.msra.mxu0 0.0
      %4440 = vmatprep.subr.mxu0 0.0
      %4441 = vmatpush1.msra.mxu0 0.0
      %4442 = vmatprep.subr.mxu0 0.0
      %4443 = vmatpush1.msra.mxu0 0.0
      %4444 = vmatprep.subr.mxu0 0.0
      %4445 = vmatpush1.msra.mxu0 0.0
      %4446 = vmatprep.subr.mxu0 0.0
      %4447 = vmatpush1.msra.mxu0 0.0
      %4448 = vmatprep.subr.mxu0 0.0
      %4449 = vmatpush1.msra.mxu0 0.0
      %4450 = vmatprep.subr.mxu0 0.0
      %4451 = vmatpush1.msra.mxu0 0.0
      %4452 = vmatprep.subr.mxu0 0.0
      %4453 = vmatpush1.msra.mxu0 0.0
      %4454 = vmatprep.subr.mxu0 0.0
      %4455 = vmatpush1.msra.mxu0 0.0
      %4456 = vmatprep.subr.mxu0 0.0
      %4457 = vmatpush1.msra.mxu0 0.0
      %4458 = vmatprep.subr.mxu0 0.0
      %4459 = vmatpush1.msra.mxu0 0.0
      %4460 = vmatprep.subr.mxu0 0.0
      %4461 = vmatpush1.msra.mxu0 0.0
      %4462 = vmatprep.subr.mxu0 0.0
      %4463 = vmatpush1.msra.mxu0 0.0
      %4464 = vmatprep.subr.mxu0 0.0
      %4465 = vmatpush1.msra.mxu0 0.0
      %4466 = vmatprep.subr.mxu0 0.0
      %4467 = vmatpush1.msra.mxu0 0.0
      %4468 = vmatprep.subr.mxu0 0.0
      %4469 = vmatpush1.msra.mxu0 0.0
      %4470 = vmatprep.subr.mxu0 0.0
      %4471 = vmatpush1.msra.mxu0 0.0
      %4472 = vmatprep.subr.mxu0 0.0
      %4473 = vmatpush1.msra.mxu0 0.0
      %4474 = vmatprep.subr.mxu0 0.0
      %4475 = vmatpush1.msra.mxu0 0.0
      %4476 = vmatprep.subr.mxu0 0.0
      %4477 = vmatpush1.msra.mxu0 0.0
      %4478 = vmatprep.mubr.f32.mxu0 0.0
      %4479 = vmatmul.mubr.f32.gmra.mrb[0].mxu0 %v4412
      %v4480 = vpop.f32.mrb[0].mxu0
      %v4481 = vadd.f32 0.0, %v4480
      %v4482 = vpop.f32.mrb[0].mxu0
      %4483 = vdwg.mxu0
      %v4484 = vadd.f32 %v4335, %v4481
      %v4486 = vlaneseq
      %v4487 = vshrl.u32 %v4486, 7
      %v4488 = vsub.s32 0, %v4487
      %v4489 = vrot.slane %v4114, %v4488
      %v4491 = vadd.f32 %v4484, %v4489
      %v4492 = vmax.f32 %v4491, 0.0
      %v4493 = vld [vmem:[%s75] sm:$0xff]
      %v4494 = vld [vmem:[%s75 + $0x8] sm:$0xff]
      %v4495 = vld [vmem:[%s75 + $0x10] sm:$0xff]
      %v4496 = vld [vmem:[%s75 + $0x18] sm:$0xff]
      %v4497 = vld [vmem:[%s75 + $0x20] sm:$0xff]
      %v4498 = vld [vmem:[%s75 + $0x28] sm:$0xff]
      %v4499 = vld [vmem:[%s75 + $0x30] sm:$0xff]
      %v4500 = vld [vmem:[%s75 + $0x38] sm:$0xff]
      %v4501 = vld [vmem:[%s77] sm:$0xff]
      %v4502 = vld [vmem:[%s77 + $0x8] sm:$0xff]
      %v4503 = vld [vmem:[%s77 + $0x10] sm:$0xff]
      %v4504 = vld [vmem:[%s77 + $0x18] sm:$0xff]
      %v4505 = vld [vmem:[%s77 + $0x20] sm:$0xff]
      %v4506 = vld [vmem:[%s77 + $0x28] sm:$0xff]
      %v4507 = vld [vmem:[%s77 + $0x30] sm:$0xff]
      %v4508 = vld [vmem:[%s77 + $0x38] sm:$0xff]
      %v4509 = vld [vmem:[%s79] sm:$0xff]
      %v4510 = vld [vmem:[%s79 + $0x8] sm:$0xff]
      %v4511 = vld [vmem:[%s79 + $0x10] sm:$0xff]
      %v4512 = vld [vmem:[%s79 + $0x18] sm:$0xff]
      %v4513 = vld [vmem:[%s79 + $0x20] sm:$0xff]
      %v4514 = vld [vmem:[%s79 + $0x28] sm:$0xff]
      %v4515 = vld [vmem:[%s79 + $0x30] sm:$0xff]
      %v4516 = vld [vmem:[%s79 + $0x38] sm:$0xff]
      %v4517 = vld [vmem:[%s81] sm:$0x1]
      %v4519 = vsel %vm4119, %v4492, 0
      %4521 = vmatprep.subr.mxu0 0.0
      %4522 = vmatpush1.msra.mxu0 %v4519
      %4523 = vmatprep.subr.mxu0 0.0
      %4524 = vmatpush1.msra.mxu0 0.0
      %4525 = vmatprep.subr.mxu0 0.0
      %4526 = vmatpush1.msra.mxu0 0.0
      %4527 = vmatprep.subr.mxu0 0.0
      %4528 = vmatpush1.msra.mxu0 0.0
      %4529 = vmatprep.subr.mxu0 0.0
      %4530 = vmatpush1.msra.mxu0 0.0
      %4531 = vmatprep.subr.mxu0 0.0
      %4532 = vmatpush1.msra.mxu0 0.0
      %4533 = vmatprep.subr.mxu0 0.0
      %4534 = vmatpush1.msra.mxu0 0.0
      %4535 = vmatprep.subr.mxu0 0.0
      %4536 = vmatpush1.msra.mxu0 0.0
      %4537 = vmatprep.subr.mxu0 0.0
      %4538 = vmatpush1.msra.mxu0 0.0
      %4539 = vmatprep.subr.mxu0 0.0
      %4540 = vmatpush1.msra.mxu0 0.0
      %4541 = vmatprep.subr.mxu0 0.0
      %4542 = vmatpush1.msra.mxu0 0.0
      %4543 = vmatprep.subr.mxu0 0.0
      %4544 = vmatpush1.msra.mxu0 0.0
      %4545 = vmatprep.subr.mxu0 0.0
      %4546 = vmatpush1.msra.mxu0 0.0
      %4547 = vmatprep.subr.mxu0 0.0
      %4548 = vmatpush1.msra.mxu0 0.0
      %4549 = vmatprep.subr.mxu0 0.0
      %4550 = vmatpush1.msra.mxu0 0.0
      %4551 = vmatprep.subr.mxu0 0.0
      %4552 = vmatpush1.msra.mxu0 0.0
      %4553 = vmatprep.subr.mxu0 0.0
      %4554 = vmatpush1.msra.mxu0 0.0
      %4555 = vmatprep.subr.mxu0 0.0
      %4556 = vmatpush1.msra.mxu0 0.0
      %4557 = vmatprep.subr.mxu0 0.0
      %4558 = vmatpush1.msra.mxu0 0.0
      %4559 = vmatprep.subr.mxu0 0.0
      %4560 = vmatpush1.msra.mxu0 0.0
      %4561 = vmatprep.subr.mxu0 0.0
      %4562 = vmatpush1.msra.mxu0 0.0
      %4563 = vmatprep.subr.mxu0 0.0
      %4564 = vmatpush1.msra.mxu0 0.0
      %4565 = vmatprep.subr.mxu0 0.0
      %4566 = vmatpush1.msra.mxu0 0.0
      %4567 = vmatprep.subr.mxu0 0.0
      %4568 = vmatpush1.msra.mxu0 0.0
      %4569 = vmatprep.subr.mxu0 0.0
      %4570 = vmatpush1.msra.mxu0 0.0
      %4571 = vmatprep.subr.mxu0 0.0
      %4572 = vmatpush1.msra.mxu0 0.0
      %4573 = vmatprep.subr.mxu0 0.0
      %4574 = vmatpush1.msra.mxu0 0.0
      %4575 = vmatprep.subr.mxu0 0.0
      %4576 = vmatpush1.msra.mxu0 0.0
      %4577 = vmatprep.subr.mxu0 0.0
      %4578 = vmatpush1.msra.mxu0 0.0
      %4579 = vmatprep.subr.mxu0 0.0
      %4580 = vmatpush1.msra.mxu0 0.0
      %4581 = vmatprep.subr.mxu0 0.0
      %4582 = vmatpush1.msra.mxu0 0.0
      %4583 = vmatprep.subr.mxu0 0.0
      %4584 = vmatpush1.msra.mxu0 0.0
      %4585 = vmatprep.mubr.f32.mxu0 0.0
      %4586 = vmatmul.mubr.f32.gmra.mrb[0].mxu0 %v4117
      %v4587 = vpop.f32.mrb[0].mxu0
      %v4588 = vadd.f32 0.0, %v4587
      %v4589 = vpop.f32.mrb[0].mxu0
      %4590 = vdwg.mxu0
      %v4591 = vsel %vm1887, %v4492, 0
      %4593 = vmatprep.subr.mxu0 0.0
      %4594 = vmatpush1.msra.mxu0 %v4501
      %4595 = vmatprep.subr.mxu0 0.0
      %4596 = vmatpush1.msra.mxu0 %v4502
      %4597 = vmatprep.subr.mxu0 0.0
      %4598 = vmatpush1.msra.mxu0 %v4503
      %4599 = vmatprep.subr.mxu0 0.0
      %4600 = vmatpush1.msra.mxu0 %v4504
      %4601 = vmatprep.subr.mxu0 0.0
      %4602 = vmatpush1.msra.mxu0 %v4505
      %4603 = vmatprep.subr.mxu0 0.0
      %4604 = vmatpush1.msra.mxu0 %v4506
      %4605 = vmatprep.subr.mxu0 0.0
      %4606 = vmatpush1.msra.mxu0 %v4507
      %4607 = vmatprep.subr.mxu0 0.0
      %4608 = vmatpush1.msra.mxu0 %v4508
      %4609 = vmatprep.subr.mxu0 0.0
      %4610 = vmatpush1.msra.mxu0 0.0
      %4611 = vmatprep.subr.mxu0 0.0
      %4612 = vmatpush1.msra.mxu0 0.0
      %4613 = vmatprep.subr.mxu0 0.0
      %4614 = vmatpush1.msra.mxu0 0.0
      %4615 = vmatprep.subr.mxu0 0.0
      %4616 = vmatpush1.msra.mxu0 0.0
      %4617 = vmatprep.subr.mxu0 0.0
      %4618 = vmatpush1.msra.mxu0 0.0
      %4619 = vmatprep.subr.mxu0 0.0
      %4620 = vmatpush1.msra.mxu0 0.0
      %4621 = vmatprep.subr.mxu0 0.0
      %4622 = vmatpush1.msra.mxu0 0.0
      %4623 = vmatprep.subr.mxu0 0.0
      %4624 = vmatpush1.msra.mxu0 0.0
      %4625 = vmatprep.subr.mxu0 0.0
      %4626 = vmatpush1.msra.mxu0 0.0
      %4627 = vmatprep.subr.mxu0 0.0
      %4628 = vmatpush1.msra.mxu0 0.0
      %4629 = vmatprep.subr.mxu0 0.0
      %4630 = vmatpush1.msra.mxu0 0.0
      %4631 = vmatprep.subr.mxu0 0.0
      %4632 = vmatpush1.msra.mxu0 0.0
      %4633 = vmatprep.subr.mxu0 0.0
      %4634 = vmatpush1.msra.mxu0 0.0
      %4635 = vmatprep.subr.mxu0 0.0
      %4636 = vmatpush1.msra.mxu0 0.0
      %4637 = vmatprep.subr.mxu0 0.0
      %4638 = vmatpush1.msra.mxu0 0.0
      %4639 = vmatprep.subr.mxu0 0.0
      %4640 = vmatpush1.msra.mxu0 0.0
      %4641 = vmatprep.subr.mxu0 0.0
      %4642 = vmatpush1.msra.mxu0 0.0
      %4643 = vmatprep.subr.mxu0 0.0
      %4644 = vmatpush1.msra.mxu0 0.0
      %4645 = vmatprep.subr.mxu0 0.0
      %4646 = vmatpush1.msra.mxu0 0.0
      %4647 = vmatprep.subr.mxu0 0.0
      %4648 = vmatpush1.msra.mxu0 0.0
      %4649 = vmatprep.subr.mxu0 0.0
      %4650 = vmatpush1.msra.mxu0 0.0
      %4651 = vmatprep.subr.mxu0 0.0
      %4652 = vmatpush1.msra.mxu0 0.0
      %4653 = vmatprep.subr.mxu0 0.0
      %4654 = vmatpush1.msra.mxu0 0.0
      %4655 = vmatprep.subr.mxu0 0.0
      %4656 = vmatpush1.msra.mxu0 0.0
      %4657 = vmatprep.mubr.f32.mxu0 0.0
      %4658 = vmatmul.mubr.f32.gmra.mrb[0].mxu0 %v4591
      %v4659 = vpop.f32.mrb[0].mxu0
      %v4660 = vadd.f32 0.0, %v4659
      %v4661 = vpop.f32.mrb[0].mxu0
      %4662 = vdwg.mxu0
      %v4664 = vsel %vm1887, %v4588, 0
      %4666 = vmatprep.subr.mxu0 0.0
      %4667 = vmatpush1.msra.mxu0 %v4493
      %4668 = vmatprep.subr.mxu0 0.0
      %4669 = vmatpush1.msra.mxu0 %v4494
      %4670 = vmatprep.subr.mxu0 0.0
      %4671 = vmatpush1.msra.mxu0 %v4495
      %4672 = vmatprep.subr.mxu0 0.0
      %4673 = vmatpush1.msra.mxu0 %v4496
      %4674 = vmatprep.subr.mxu0 0.0
      %4675 = vmatpush1.msra.mxu0 %v4497
      %4676 = vmatprep.subr.mxu0 0.0
      %4677 = vmatpush1.msra.mxu0 %v4498
      %4678 = vmatprep.subr.mxu0 0.0
      %4679 = vmatpush1.msra.mxu0 %v4499
      %4680 = vmatprep.subr.mxu0 0.0
      %4681 = vmatpush1.msra.mxu0 %v4500
      %4682 = vmatprep.subr.mxu0 0.0
      %4683 = vmatpush1.msra.mxu0 0.0
      %4684 = vmatprep.subr.mxu0 0.0
      %4685 = vmatpush1.msra.mxu0 0.0
      %4686 = vmatprep.subr.mxu0 0.0
      %4687 = vmatpush1.msra.mxu0 0.0
      %4688 = vmatprep.subr.mxu0 0.0
      %4689 = vmatpush1.msra.mxu0 0.0
      %4690 = vmatprep.subr.mxu0 0.0
      %4691 = vmatpush1.msra.mxu0 0.0
      %4692 = vmatprep.subr.mxu0 0.0
      %4693 = vmatpush1.msra.mxu0 0.0
      %4694 = vmatprep.subr.mxu0 0.0
      %4695 = vmatpush1.msra.mxu0 0.0
      %4696 = vmatprep.subr.mxu0 0.0
      %4697 = vmatpush1.msra.mxu0 0.0
      %4698 = vmatprep.subr.mxu0 0.0
      %4699 = vmatpush1.msra.mxu0 0.0
      %4700 = vmatprep.subr.mxu0 0.0
      %4701 = vmatpush1.msra.mxu0 0.0
      %4702 = vmatprep.subr.mxu0 0.0
      %4703 = vmatpush1.msra.mxu0 0.0
      %4704 = vmatprep.subr.mxu0 0.0
      %4705 = vmatpush1.msra.mxu0 0.0
      %4706 = vmatprep.subr.mxu0 0.0
      %4707 = vmatpush1.msra.mxu0 0.0
      %4708 = vmatprep.subr.mxu0 0.0
      %4709 = vmatpush1.msra.mxu0 0.0
      %4710 = vmatprep.subr.mxu0 0.0
      %4711 = vmatpush1.msra.mxu0 0.0
      %4712 = vmatprep.subr.mxu0 0.0
      %4713 = vmatpush1.msra.mxu0 0.0
      %4714 = vmatprep.subr.mxu0 0.0
      %4715 = vmatpush1.msra.mxu0 0.0
      %4716 = vmatprep.subr.mxu0 0.0
      %4717 = vmatpush1.msra.mxu0 0.0
      %4718 = vmatprep.subr.mxu0 0.0
      %4719 = vmatpush1.msra.mxu0 0.0
      %4720 = vmatprep.subr.mxu0 0.0
      %4721 = vmatpush1.msra.mxu0 0.0
      %4722 = vmatprep.subr.mxu0 0.0
      %4723 = vmatpush1.msra.mxu0 0.0
      %4724 = vmatprep.subr.mxu0 0.0
      %4725 = vmatpush1.msra.mxu0 0.0
      %4726 = vmatprep.subr.mxu0 0.0
      %4727 = vmatpush1.msra.mxu0 0.0
      %4728 = vmatprep.subr.mxu0 0.0
      %4729 = vmatpush1.msra.mxu0 0.0
      %4730 = vmatprep.mubr.f32.mxu0 0.0
      %4731 = vmatmul.mubr.f32.gmra.mrb[0].mxu0 %v4664
      %v4732 = vpop.f32.mrb[0].mxu0
      %v4733 = vadd.f32 %v4660, %v4732
      %v4734 = vpop.f32.mrb[0].mxu0
      %4735 = vdwg.mxu0
      %4736 = vmatprep.subr.mxu0 0.0
      %4737 = vmatpush1.msra.mxu0 %v4519
      %4738 = vmatprep.subr.mxu0 0.0
      %4739 = vmatpush1.msra.mxu0 0.0
      %4740 = vmatprep.subr.mxu0 0.0
      %4741 = vmatpush1.msra.mxu0 0.0
      %4742 = vmatprep.subr.mxu0 0.0
      %4743 = vmatpush1.msra.mxu0 0.0
      %4744 = vmatprep.subr.mxu0 0.0
      %4745 = vmatpush1.msra.mxu0 0.0
      %4746 = vmatprep.subr.mxu0 0.0
      %4747 = vmatpush1.msra.mxu0 0.0
      %4748 = vmatprep.subr.mxu0 0.0
      %4749 = vmatpush1.msra.mxu0 0.0
      %4750 = vmatprep.subr.mxu0 0.0
      %4751 = vmatpush1.msra.mxu0 0.0
      %4752 = vmatprep.subr.mxu0 0.0
      %4753 = vmatpush1.msra.mxu0 0.0
      %4754 = vmatprep.subr.mxu0 0.0
      %4755 = vmatpush1.msra.mxu0 0.0
      %4756 = vmatprep.subr.mxu0 0.0
      %4757 = vmatpush1.msra.mxu0 0.0
      %4758 = vmatprep.subr.mxu0 0.0
      %4759 = vmatpush1.msra.mxu0 0.0
      %4760 = vmatprep.subr.mxu0 0.0
      %4761 = vmatpush1.msra.mxu0 0.0
      %4762 = vmatprep.subr.mxu0 0.0
      %4763 = vmatpush1.msra.mxu0 0.0
      %4764 = vmatprep.subr.mxu0 0.0
      %4765 = vmatpush1.msra.mxu0 0.0
      %4766 = vmatprep.subr.mxu0 0.0
      %4767 = vmatpush1.msra.mxu0 0.0
      %4768 = vmatprep.subr.mxu0 0.0
      %4769 = vmatpush1.msra.mxu0 0.0
      %4770 = vmatprep.subr.mxu0 0.0
      %4771 = vmatpush1.msra.mxu0 0.0
      %4772 = vmatprep.subr.mxu0 0.0
      %4773 = vmatpush1.msra.mxu0 0.0
      %4774 = vmatprep.subr.mxu0 0.0
      %4775 = vmatpush1.msra.mxu0 0.0
      %4776 = vmatprep.subr.mxu0 0.0
      %4777 = vmatpush1.msra.mxu0 0.0
      %4778 = vmatprep.subr.mxu0 0.0
      %4779 = vmatpush1.msra.mxu0 0.0
      %4780 = vmatprep.subr.mxu0 0.0
      %4781 = vmatpush1.msra.mxu0 0.0
      %4782 = vmatprep.subr.mxu0 0.0
      %4783 = vmatpush1.msra.mxu0 0.0
      %4784 = vmatprep.subr.mxu0 0.0
      %4785 = vmatpush1.msra.mxu0 0.0
      %4786 = vmatprep.subr.mxu0 0.0
      %4787 = vmatpush1.msra.mxu0 0.0
      %4788 = vmatprep.subr.mxu0 0.0
      %4789 = vmatpush1.msra.mxu0 0.0
      %4790 = vmatprep.subr.mxu0 0.0
      %4791 = vmatpush1.msra.mxu0 0.0
      %4792 = vmatprep.subr.mxu0 0.0
      %4793 = vmatpush1.msra.mxu0 0.0
      %4794 = vmatprep.subr.mxu0 0.0
      %4795 = vmatpush1.msra.mxu0 0.0
      %4796 = vmatprep.subr.mxu0 0.0
      %4797 = vmatpush1.msra.mxu0 0.0
      %4798 = vmatprep.subr.mxu0 0.0
      %4799 = vmatpush1.msra.mxu0 0.0
      %4800 = vmatprep.mubr.f32.mxu0 0.0
      %4801 = vmatmul.mubr.f32.gmra.mrb[0].mxu0 %v4339
      %v4802 = vpop.f32.mrb[0].mxu0
      %v4803 = vadd.f32 0.0, %v4802
      %v4804 = vpop.f32.mrb[0].mxu0
      %4805 = vdwg.mxu0
      %v4807 = vsel %vm1887, %v4803, 0
      %4809 = vmatprep.subr.mxu0 0.0
      %4810 = vmatpush1.msra.mxu0 %v4509
      %4811 = vmatprep.subr.mxu0 0.0
      %4812 = vmatpush1.msra.mxu0 %v4510
      %4813 = vmatprep.subr.mxu0 0.0
      %4814 = vmatpush1.msra.mxu0 %v4511
      %4815 = vmatprep.subr.mxu0 0.0
      %4816 = vmatpush1.msra.mxu0 %v4512
      %4817 = vmatprep.subr.mxu0 0.0
      %4818 = vmatpush1.msra.mxu0 %v4513
      %4819 = vmatprep.subr.mxu0 0.0
      %4820 = vmatpush1.msra.mxu0 %v4514
      %4821 = vmatprep.subr.mxu0 0.0
      %4822 = vmatpush1.msra.mxu0 %v4515
      %4823 = vmatprep.subr.mxu0 0.0
      %4824 = vmatpush1.msra.mxu0 %v4516
      %4825 = vmatprep.subr.mxu0 0.0
      %4826 = vmatpush1.msra.mxu0 0.0
      %4827 = vmatprep.subr.mxu0 0.0
      %4828 = vmatpush1.msra.mxu0 0.0
      %4829 = vmatprep.subr.mxu0 0.0
      %4830 = vmatpush1.msra.mxu0 0.0
      %4831 = vmatprep.subr.mxu0 0.0
      %4832 = vmatpush1.msra.mxu0 0.0
      %4833 = vmatprep.subr.mxu0 0.0
      %4834 = vmatpush1.msra.mxu0 0.0
      %4835 = vmatprep.subr.mxu0 0.0
      %4836 = vmatpush1.msra.mxu0 0.0
      %4837 = vmatprep.subr.mxu0 0.0
      %4838 = vmatpush1.msra.mxu0 0.0
      %4839 = vmatprep.subr.mxu0 0.0
      %4840 = vmatpush1.msra.mxu0 0.0
      %4841 = vmatprep.subr.mxu0 0.0
      %4842 = vmatpush1.msra.mxu0 0.0
      %4843 = vmatprep.subr.mxu0 0.0
      %4844 = vmatpush1.msra.mxu0 0.0
      %4845 = vmatprep.subr.mxu0 0.0
      %4846 = vmatpush1.msra.mxu0 0.0
      %4847 = vmatprep.subr.mxu0 0.0
      %4848 = vmatpush1.msra.mxu0 0.0
      %4849 = vmatprep.subr.mxu0 0.0
      %4850 = vmatpush1.msra.mxu0 0.0
      %4851 = vmatprep.subr.mxu0 0.0
      %4852 = vmatpush1.msra.mxu0 0.0
      %4853 = vmatprep.subr.mxu0 0.0
      %4854 = vmatpush1.msra.mxu0 0.0
      %4855 = vmatprep.subr.mxu0 0.0
      %4856 = vmatpush1.msra.mxu0 0.0
      %4857 = vmatprep.subr.mxu0 0.0
      %4858 = vmatpush1.msra.mxu0 0.0
      %4859 = vmatprep.subr.mxu0 0.0
      %4860 = vmatpush1.msra.mxu0 0.0
      %4861 = vmatprep.subr.mxu0 0.0
      %4862 = vmatpush1.msra.mxu0 0.0
      %4863 = vmatprep.subr.mxu0 0.0
      %4864 = vmatpush1.msra.mxu0 0.0
      %4865 = vmatprep.subr.mxu0 0.0
      %4866 = vmatpush1.msra.mxu0 0.0
      %4867 = vmatprep.subr.mxu0 0.0
      %4868 = vmatpush1.msra.mxu0 0.0
      %4869 = vmatprep.subr.mxu0 0.0
      %4870 = vmatpush1.msra.mxu0 0.0
      %4871 = vmatprep.subr.mxu0 0.0
      %4872 = vmatpush1.msra.mxu0 0.0
      %4873 = vmatprep.mubr.f32.mxu0 0.0
      %4874 = vmatmul.mubr.f32.gmra.mrb[0].mxu0 %v4807
      %v4875 = vpop.f32.mrb[0].mxu0
      %v4876 = vadd.f32 0.0, %v4875
      %v4877 = vpop.f32.mrb[0].mxu0
      %4878 = vdwg.mxu0
      %v4879 = vadd.f32 %v4733, %v4876
      %v4881 = vlaneseq
      %v4882 = vshrl.u32 %v4881, 7
      %v4883 = vsub.s32 0, %v4882
      %v4884 = vrot.slane %v4517, %v4883
      %v4886 = vadd.f32 %v4879, %v4884
      %v4887 = vmax.f32 %v4886, 0.0
      %vm4888 = vcmask 519168
      %4889 = vst.msk [vmem:[%s1769] sm:$0xf] %vm4888, %v4887
      %v4890 = vld [vmem:[%s83] sm:$0x3]
      %v4891 = vld [vmem:[%s85] sm:$0x3]
      %v4892 = vld [vmem:[%s87] sm:$0xff]
      %v4893 = vld [vmem:[%s87 + $0x8] sm:$0xff]
      %v4894 = vld [vmem:[%s87 + $0x10] sm:$0xff]
      %v4895 = vld [vmem:[%s87 + $0x18] sm:$0xff]
      %v4896 = vld [vmem:[%s87 + $0x20] sm:$0xff]
      %v4897 = vld [vmem:[%s87 + $0x28] sm:$0xff]
      %v4898 = vld [vmem:[%s87 + $0x30] sm:$0xff]
      %v4899 = vld [vmem:[%s87 + $0x38] sm:$0xff]
      %v4900 = vld [vmem:[%s89] sm:$0xff]
      %v4901 = vld [vmem:[%s89 + $0x8] sm:$0xff]
      %v4902 = vld [vmem:[%s89 + $0x10] sm:$0xff]
      %v4903 = vld [vmem:[%s89 + $0x18] sm:$0xff]
      %v4904 = vld [vmem:[%s89 + $0x20] sm:$0xff]
      %v4905 = vld [vmem:[%s89 + $0x28] sm:$0xff]
      %v4906 = vld [vmem:[%s89 + $0x30] sm:$0xff]
      %v4907 = vld [vmem:[%s89 + $0x38] sm:$0xff]
      %v4908 = vld [vmem:[%s91] sm:$0x1]
      %v4910 = vsel %vm4115, %v4890, 0
      %v4913 = vsel %vm4119, %v4887, 0
      %4915 = vmatprep.subr.mxu0 0.0
      %4916 = vmatpush1.msra.mxu0 %v4913
      %4917 = vmatprep.subr.mxu0 0.0
      %4918 = vmatpush1.msra.mxu0 0.0
      %4919 = vmatprep.subr.mxu0 0.0
      %4920 = vmatpush1.msra.mxu0 0.0
      %4921 = vmatprep.subr.mxu0 0.0
      %4922 = vmatpush1.msra.mxu0 0.0
      %4923 = vmatprep.subr.mxu0 0.0
      %4924 = vmatpush1.msra.mxu0 0.0
      %4925 = vmatprep.subr.mxu0 0.0
      %4926 = vmatpush1.msra.mxu0 0.0
      %4927 = vmatprep.subr.mxu0 0.0
      %4928 = vmatpush1.msra.mxu0 0.0
      %4929 = vmatprep.subr.mxu0 0.0
      %4930 = vmatpush1.msra.mxu0 0.0
      %4931 = vmatprep.subr.mxu0 0.0
      %4932 = vmatpush1.msra.mxu0 0.0
      %4933 = vmatprep.subr.mxu0 0.0
      %4934 = vmatpush1.msra.mxu0 0.0
      %4935 = vmatprep.subr.mxu0 0.0
      %4936 = vmatpush1.msra.mxu0 0.0
      %4937 = vmatprep.subr.mxu0 0.0
      %4938 = vmatpush1.msra.mxu0 0.0
      %4939 = vmatprep.subr.mxu0 0.0
      %4940 = vmatpush1.msra.mxu0 0.0
      %4941 = vmatprep.subr.mxu0 0.0
      %4942 = vmatpush1.msra.mxu0 0.0
      %4943 = vmatprep.subr.mxu0 0.0
      %4944 = vmatpush1.msra.mxu0 0.0
      %4945 = vmatprep.subr.mxu0 0.0
      %4946 = vmatpush1.msra.mxu0 0.0
      %4947 = vmatprep.subr.mxu0 0.0
      %4948 = vmatpush1.msra.mxu0 0.0
      %4949 = vmatprep.subr.mxu0 0.0
      %4950 = vmatpush1.msra.mxu0 0.0
      %4951 = vmatprep.subr.mxu0 0.0
      %4952 = vmatpush1.msra.mxu0 0.0
      %4953 = vmatprep.subr.mxu0 0.0
      %4954 = vmatpush1.msra.mxu0 0.0
      %4955 = vmatprep.subr.mxu0 0.0
      %4956 = vmatpush1.msra.mxu0 0.0
      %4957 = vmatprep.subr.mxu0 0.0
      %4958 = vmatpush1.msra.mxu0 0.0
      %4959 = vmatprep.subr.mxu0 0.0
      %4960 = vmatpush1.msra.mxu0 0.0
      %4961 = vmatprep.subr.mxu0 0.0
      %4962 = vmatpush1.msra.mxu0 0.0
      %4963 = vmatprep.subr.mxu0 0.0
      %4964 = vmatpush1.msra.mxu0 0.0
      %4965 = vmatprep.subr.mxu0 0.0
      %4966 = vmatpush1.msra.mxu0 0.0
      %4967 = vmatprep.subr.mxu0 0.0
      %4968 = vmatpush1.msra.mxu0 0.0
      %4969 = vmatprep.subr.mxu0 0.0
      %4970 = vmatpush1.msra.mxu0 0.0
      %4971 = vmatprep.subr.mxu0 0.0
      %4972 = vmatpush1.msra.mxu0 0.0
      %4973 = vmatprep.subr.mxu0 0.0
      %4974 = vmatpush1.msra.mxu0 0.0
      %4975 = vmatprep.subr.mxu0 0.0
      %4976 = vmatpush1.msra.mxu0 0.0
      %4977 = vmatprep.subr.mxu0 0.0
      %4978 = vmatpush1.msra.mxu0 0.0
      %4979 = vmatprep.mubr.f32.mxu0 0.0
      %4980 = vmatmul.mubr.f32.gmra.mrb[0].mxu0 %v4910
      %v4981 = vpop.f32.mrb[0].mxu0
      %v4982 = vadd.f32 0.0, %v4981
      %v4983 = vpop.f32.mrb[0].mxu0
      %4984 = vdwg.mxu0
      %v4986 = vsel %vm4115, %v4891, 0
      %4988 = vmatprep.subr.mxu0 0.0
      %4989 = vmatpush1.msra.mxu0 %v4913
      %4990 = vmatprep.subr.mxu0 0.0
      %4991 = vmatpush1.msra.mxu0 0.0
      %4992 = vmatprep.subr.mxu0 0.0
      %4993 = vmatpush1.msra.mxu0 0.0
      %4994 = vmatprep.subr.mxu0 0.0
      %4995 = vmatpush1.msra.mxu0 0.0
      %4996 = vmatprep.subr.mxu0 0.0
      %4997 = vmatpush1.msra.mxu0 0.0
      %4998 = vmatprep.subr.mxu0 0.0
      %4999 = vmatpush1.msra.mxu0 0.0
      %5000 = vmatprep.subr.mxu0 0.0
      %5001 = vmatpush1.msra.mxu0 0.0
      %5002 = vmatprep.subr.mxu0 0.0
      %5003 = vmatpush1.msra.mxu0 0.0
      %5004 = vmatprep.subr.mxu0 0.0
      %5005 = vmatpush1.msra.mxu0 0.0
      %5006 = vmatprep.subr.mxu0 0.0
      %5007 = vmatpush1.msra.mxu0 0.0
      %5008 = vmatprep.subr.mxu0 0.0
      %5009 = vmatpush1.msra.mxu0 0.0
      %5010 = vmatprep.subr.mxu0 0.0
      %5011 = vmatpush1.msra.mxu0 0.0
      %5012 = vmatprep.subr.mxu0 0.0
      %5013 = vmatpush1.msra.mxu0 0.0
      %5014 = vmatprep.subr.mxu0 0.0
      %5015 = vmatpush1.msra.mxu0 0.0
      %5016 = vmatprep.subr.mxu0 0.0
      %5017 = vmatpush1.msra.mxu0 0.0
      %5018 = vmatprep.subr.mxu0 0.0
      %5019 = vmatpush1.msra.mxu0 0.0
      %5020 = vmatprep.subr.mxu0 0.0
      %5021 = vmatpush1.msra.mxu0 0.0
      %5022 = vmatprep.subr.mxu0 0.0
      %5023 = vmatpush1.msra.mxu0 0.0
      %5024 = vmatprep.subr.mxu0 0.0
      %5025 = vmatpush1.msra.mxu0 0.0
      %5026 = vmatprep.subr.mxu0 0.0
      %5027 = vmatpush1.msra.mxu0 0.0
      %5028 = vmatprep.subr.mxu0 0.0
      %5029 = vmatpush1.msra.mxu0 0.0
      %5030 = vmatprep.subr.mxu0 0.0
      %5031 = vmatpush1.msra.mxu0 0.0
      %5032 = vmatprep.subr.mxu0 0.0
      %5033 = vmatpush1.msra.mxu0 0.0
      %5034 = vmatprep.subr.mxu0 0.0
      %5035 = vmatpush1.msra.mxu0 0.0
      %5036 = vmatprep.subr.mxu0 0.0
      %5037 = vmatpush1.msra.mxu0 0.0
      %5038 = vmatprep.subr.mxu0 0.0
      %5039 = vmatpush1.msra.mxu0 0.0
      %5040 = vmatprep.subr.mxu0 0.0
      %5041 = vmatpush1.msra.mxu0 0.0
      %5042 = vmatprep.subr.mxu0 0.0
      %5043 = vmatpush1.msra.mxu0 0.0
      %5044 = vmatprep.subr.mxu0 0.0
      %5045 = vmatpush1.msra.mxu0 0.0
      %5046 = vmatprep.subr.mxu0 0.0
      %5047 = vmatpush1.msra.mxu0 0.0
      %5048 = vmatprep.subr.mxu0 0.0
      %5049 = vmatpush1.msra.mxu0 0.0
      %5050 = vmatprep.subr.mxu0 0.0
      %5051 = vmatpush1.msra.mxu0 0.0
      %5052 = vmatprep.mubr.f32.mxu0 0.0
      %5053 = vmatmul.mubr.f32.gmra.mrb[0].mxu0 %v4986
      %v5054 = vpop.f32.mrb[0].mxu0
      %v5055 = vadd.f32 0.0, %v5054
      %v5056 = vpop.f32.mrb[0].mxu0
      %5057 = vdwg.mxu0
      %v5059 = vsel %vm1887, %v5055, 0
      %5061 = vmatprep.subr.mxu0 0.0
      %5062 = vmatpush1.msra.mxu0 %v4900
      %5063 = vmatprep.subr.mxu0 0.0
      %5064 = vmatpush1.msra.mxu0 %v4901
      %5065 = vmatprep.subr.mxu0 0.0
      %5066 = vmatpush1.msra.mxu0 %v4902
      %5067 = vmatprep.subr.mxu0 0.0
      %5068 = vmatpush1.msra.mxu0 %v4903
      %5069 = vmatprep.subr.mxu0 0.0
      %5070 = vmatpush1.msra.mxu0 %v4904
      %5071 = vmatprep.subr.mxu0 0.0
      %5072 = vmatpush1.msra.mxu0 %v4905
      %5073 = vmatprep.subr.mxu0 0.0
      %5074 = vmatpush1.msra.mxu0 %v4906
      %5075 = vmatprep.subr.mxu0 0.0
      %5076 = vmatpush1.msra.mxu0 %v4907
      %5077 = vmatprep.subr.mxu0 0.0
      %5078 = vmatpush1.msra.mxu0 0.0
      %5079 = vmatprep.subr.mxu0 0.0
      %5080 = vmatpush1.msra.mxu0 0.0
      %5081 = vmatprep.subr.mxu0 0.0
      %5082 = vmatpush1.msra.mxu0 0.0
      %5083 = vmatprep.subr.mxu0 0.0
      %5084 = vmatpush1.msra.mxu0 0.0
      %5085 = vmatprep.subr.mxu0 0.0
      %5086 = vmatpush1.msra.mxu0 0.0
      %5087 = vmatprep.subr.mxu0 0.0
      %5088 = vmatpush1.msra.mxu0 0.0
      %5089 = vmatprep.subr.mxu0 0.0
      %5090 = vmatpush1.msra.mxu0 0.0
      %5091 = vmatprep.subr.mxu0 0.0
      %5092 = vmatpush1.msra.mxu0 0.0
      %5093 = vmatprep.subr.mxu0 0.0
      %5094 = vmatpush1.msra.mxu0 0.0
      %5095 = vmatprep.subr.mxu0 0.0
      %5096 = vmatpush1.msra.mxu0 0.0
      %5097 = vmatprep.subr.mxu0 0.0
      %5098 = vmatpush1.msra.mxu0 0.0
      %5099 = vmatprep.subr.mxu0 0.0
      %5100 = vmatpush1.msra.mxu0 0.0
      %5101 = vmatprep.subr.mxu0 0.0
      %5102 = vmatpush1.msra.mxu0 0.0
      %5103 = vmatprep.subr.mxu0 0.0
      %5104 = vmatpush1.msra.mxu0 0.0
      %5105 = vmatprep.subr.mxu0 0.0
      %5106 = vmatpush1.msra.mxu0 0.0
      %5107 = vmatprep.subr.mxu0 0.0
      %5108 = vmatpush1.msra.mxu0 0.0
      %5109 = vmatprep.subr.mxu0 0.0
      %5110 = vmatpush1.msra.mxu0 0.0
      %5111 = vmatprep.subr.mxu0 0.0
      %5112 = vmatpush1.msra.mxu0 0.0
      %5113 = vmatprep.subr.mxu0 0.0
      %5114 = vmatpush1.msra.mxu0 0.0
      %5115 = vmatprep.subr.mxu0 0.0
      %5116 = vmatpush1.msra.mxu0 0.0
      %5117 = vmatprep.subr.mxu0 0.0
      %5118 = vmatpush1.msra.mxu0 0.0
      %5119 = vmatprep.subr.mxu0 0.0
      %5120 = vmatpush1.msra.mxu0 0.0
      %5121 = vmatprep.subr.mxu0 0.0
      %5122 = vmatpush1.msra.mxu0 0.0
      %5123 = vmatprep.subr.mxu0 0.0
      %5124 = vmatpush1.msra.mxu0 0.0
      %5125 = vmatprep.mubr.f32.mxu0 0.0
      %5126 = vmatmul.mubr.f32.gmra.mrb[0].mxu0 %v5059
      %v5127 = vpop.f32.mrb[0].mxu0
      %v5128 = vadd.f32 0.0, %v5127
      %v5129 = vpop.f32.mrb[0].mxu0
      %5130 = vdwg.mxu0
      %v5132 = vsel %vm1887, %v4982, 0
      %5134 = vmatprep.subr.mxu0 0.0
      %5135 = vmatpush1.msra.mxu0 %v4892
      %5136 = vmatprep.subr.mxu0 0.0
      %5137 = vmatpush1.msra.mxu0 %v4893
      %5138 = vmatprep.subr.mxu0 0.0
      %5139 = vmatpush1.msra.mxu0 %v4894
      %5140 = vmatprep.subr.mxu0 0.0
      %5141 = vmatpush1.msra.mxu0 %v4895
      %5142 = vmatprep.subr.mxu0 0.0
      %5143 = vmatpush1.msra.mxu0 %v4896
      %5144 = vmatprep.subr.mxu0 0.0
      %5145 = vmatpush1.msra.mxu0 %v4897
      %5146 = vmatprep.subr.mxu0 0.0
      %5147 = vmatpush1.msra.mxu0 %v4898
      %5148 = vmatprep.subr.mxu0 0.0
      %5149 = vmatpush1.msra.mxu0 %v4899
      %5150 = vmatprep.subr.mxu0 0.0
      %5151 = vmatpush1.msra.mxu0 0.0
      %5152 = vmatprep.subr.mxu0 0.0
      %5153 = vmatpush1.msra.mxu0 0.0
      %5154 = vmatprep.subr.mxu0 0.0
      %5155 = vmatpush1.msra.mxu0 0.0
      %5156 = vmatprep.subr.mxu0 0.0
      %5157 = vmatpush1.msra.mxu0 0.0
      %5158 = vmatprep.subr.mxu0 0.0
      %5159 = vmatpush1.msra.mxu0 0.0
      %5160 = vmatprep.subr.mxu0 0.0
      %5161 = vmatpush1.msra.mxu0 0.0
      %5162 = vmatprep.subr.mxu0 0.0
      %5163 = vmatpush1.msra.mxu0 0.0
      %5164 = vmatprep.subr.mxu0 0.0
      %5165 = vmatpush1.msra.mxu0 0.0
      %5166 = vmatprep.subr.mxu0 0.0
      %5167 = vmatpush1.msra.mxu0 0.0
      %5168 = vmatprep.subr.mxu0 0.0
      %5169 = vmatpush1.msra.mxu0 0.0
      %5170 = vmatprep.subr.mxu0 0.0
      %5171 = vmatpush1.msra.mxu0 0.0
      %5172 = vmatprep.subr.mxu0 0.0
      %5173 = vmatpush1.msra.mxu0 0.0
      %5174 = vmatprep.subr.mxu0 0.0
      %5175 = vmatpush1.msra.mxu0 0.0
      %5176 = vmatprep.subr.mxu0 0.0
      %5177 = vmatpush1.msra.mxu0 0.0
      %5178 = vmatprep.subr.mxu0 0.0
      %5179 = vmatpush1.msra.mxu0 0.0
      %5180 = vmatprep.subr.mxu0 0.0
      %5181 = vmatpush1.msra.mxu0 0.0
      %5182 = vmatprep.subr.mxu0 0.0
      %5183 = vmatpush1.msra.mxu0 0.0
      %5184 = vmatprep.subr.mxu0 0.0
      %5185 = vmatpush1.msra.mxu0 0.0
      %5186 = vmatprep.subr.mxu0 0.0
      %5187 = vmatpush1.msra.mxu0 0.0
      %5188 = vmatprep.subr.mxu0 0.0
      %5189 = vmatpush1.msra.mxu0 0.0
      %5190 = vmatprep.subr.mxu0 0.0
      %5191 = vmatpush1.msra.mxu0 0.0
      %5192 = vmatprep.subr.mxu0 0.0
      %5193 = vmatpush1.msra.mxu0 0.0
      %5194 = vmatprep.subr.mxu0 0.0
      %5195 = vmatpush1.msra.mxu0 0.0
      %5196 = vmatprep.subr.mxu0 0.0
      %5197 = vmatpush1.msra.mxu0 0.0
      %5198 = vmatprep.mubr.f32.mxu0 0.0
      %5199 = vmatmul.mubr.f32.gmra.mrb[0].mxu0 %v5132
      %v5200 = vpop.f32.mrb[0].mxu0
      %v5201 = vadd.f32 %v5128, %v5200
      %v5202 = vpop.f32.mrb[0].mxu0
      %5203 = vdwg.mxu0
      %v5205 = vlaneseq
      %v5206 = vshrl.u32 %v5205, 7
      %v5207 = vsub.s32 0, %v5206
      %v5208 = vrot.slane %v4908, %v5207
      %v5210 = vadd.f32 %v5201, %v5208
      %v5211 = vld [vmem:[%s93] sm:$0x3]
      %v5212 = vld [vmem:[%s95] sm:$0x3]
      %v5213 = vld [vmem:[%s97] sm:$0xff]
      %v5214 = vld [vmem:[%s97 + $0x8] sm:$0xff]
      %v5215 = vld [vmem:[%s97 + $0x10] sm:$0xff]
      %v5216 = vld [vmem:[%s97 + $0x18] sm:$0xff]
      %v5217 = vld [vmem:[%s97 + $0x20] sm:$0xff]
      %v5218 = vld [vmem:[%s97 + $0x28] sm:$0xff]
      %v5219 = vld [vmem:[%s97 + $0x30] sm:$0xff]
      %v5220 = vld [vmem:[%s97 + $0x38] sm:$0xff]
      %v5221 = vld [vmem:[%s99] sm:$0xff]
      %v5222 = vld [vmem:[%s99 + $0x8] sm:$0xff]
      %v5223 = vld [vmem:[%s99 + $0x10] sm:$0xff]
      %v5224 = vld [vmem:[%s99 + $0x18] sm:$0xff]
      %v5225 = vld [vmem:[%s99 + $0x20] sm:$0xff]
      %v5226 = vld [vmem:[%s99 + $0x28] sm:$0xff]
      %v5227 = vld [vmem:[%s99 + $0x30] sm:$0xff]
      %v5228 = vld [vmem:[%s99 + $0x38] sm:$0xff]
      %v5229 = vld [vmem:[%s101] sm:$0xff]
      %v5230 = vld [vmem:[%s101 + $0x8] sm:$0xff]
      %v5231 = vld [vmem:[%s101 + $0x10] sm:$0xff]
      %v5232 = vld [vmem:[%s101 + $0x18] sm:$0xff]
      %v5233 = vld [vmem:[%s101 + $0x20] sm:$0xff]
      %v5234 = vld [vmem:[%s101 + $0x28] sm:$0xff]
      %v5235 = vld [vmem:[%s101 + $0x30] sm:$0xff]
      %v5236 = vld [vmem:[%s101 + $0x38] sm:$0xff]
      %v5237 = vld [vmem:[%s103] sm:$0x1]
      %vm5238 = vcmask 15360
      %v5240 = vsel %vm5238, %v5211, 0
      %vm5242 = vcmask 1041408
      %v5244 = vsel %vm5242, %v5210, 0
      %5246 = vmatprep.subr.mxu0 0.0
      %5247 = vmatpush1.msra.mxu0 %v5244
      %5248 = vmatprep.subr.mxu0 0.0
      %5249 = vmatpush1.msra.mxu0 0.0
      %5250 = vmatprep.subr.mxu0 0.0
      %5251 = vmatpush1.msra.mxu0 0.0
      %5252 = vmatprep.subr.mxu0 0.0
      %5253 = vmatpush1.msra.mxu0 0.0
      %5254 = vmatprep.subr.mxu0 0.0
      %5255 = vmatpush1.msra.mxu0 0.0
      %5256 = vmatprep.subr.mxu0 0.0
      %5257 = vmatpush1.msra.mxu0 0.0
      %5258 = vmatprep.subr.mxu0 0.0
      %5259 = vmatpush1.msra.mxu0 0.0
      %5260 = vmatprep.subr.mxu0 0.0
      %5261 = vmatpush1.msra.mxu0 0.0
      %5262 = vmatprep.subr.mxu0 0.0
      %5263 = vmatpush1.msra.mxu0 0.0
      %5264 = vmatprep.subr.mxu0 0.0
      %5265 = vmatpush1.msra.mxu0 0.0
      %5266 = vmatprep.subr.mxu0 0.0
      %5267 = vmatpush1.msra.mxu0 0.0
      %5268 = vmatprep.subr.mxu0 0.0
      %5269 = vmatpush1.msra.mxu0 0.0
      %5270 = vmatprep.subr.mxu0 0.0
      %5271 = vmatpush1.msra.mxu0 0.0
      %5272 = vmatprep.subr.mxu0 0.0
      %5273 = vmatpush1.msra.mxu0 0.0
      %5274 = vmatprep.subr.mxu0 0.0
      %5275 = vmatpush1.msra.mxu0 0.0
      %5276 = vmatprep.subr.mxu0 0.0
      %5277 = vmatpush1.msra.mxu0 0.0
      %5278 = vmatprep.subr.mxu0 0.0
      %5279 = vmatpush1.msra.mxu0 0.0
      %5280 = vmatprep.subr.mxu0 0.0
      %5281 = vmatpush1.msra.mxu0 0.0
      %5282 = vmatprep.subr.mxu0 0.0
      %5283 = vmatpush1.msra.mxu0 0.0
      %5284 = vmatprep.subr.mxu0 0.0
      %5285 = vmatpush1.msra.mxu0 0.0
      %5286 = vmatprep.subr.mxu0 0.0
      %5287 = vmatpush1.msra.mxu0 0.0
      %5288 = vmatprep.subr.mxu0 0.0
      %5289 = vmatpush1.msra.mxu0 0.0
      %5290 = vmatprep.subr.mxu0 0.0
      %5291 = vmatpush1.msra.mxu0 0.0
      %5292 = vmatprep.subr.mxu0 0.0
      %5293 = vmatpush1.msra.mxu0 0.0
      %5294 = vmatprep.subr.mxu0 0.0
      %5295 = vmatpush1.msra.mxu0 0.0
      %5296 = vmatprep.subr.mxu0 0.0
      %5297 = vmatpush1.msra.mxu0 0.0
      %5298 = vmatprep.subr.mxu0 0.0
      %5299 = vmatpush1.msra.mxu0 0.0
      %5300 = vmatprep.subr.mxu0 0.0
      %5301 = vmatpush1.msra.mxu0 0.0
      %5302 = vmatprep.subr.mxu0 0.0
      %5303 = vmatpush1.msra.mxu0 0.0
      %5304 = vmatprep.subr.mxu0 0.0
      %5305 = vmatpush1.msra.mxu0 0.0
      %5306 = vmatprep.subr.mxu0 0.0
      %5307 = vmatpush1.msra.mxu0 0.0
      %5308 = vmatprep.subr.mxu0 0.0
      %5309 = vmatpush1.msra.mxu0 0.0
      %5310 = vmatprep.mubr.f32.mxu0 0.0
      %5311 = vmatmul.mubr.f32.gmra.mrb[0].mxu0 %v5240
      %v5312 = vpop.f32.mrb[0].mxu0
      %v5313 = vadd.f32 0.0, %v5312
      %v5314 = vpop.f32.mrb[0].mxu0
      %5315 = vdwg.mxu0
      %v5316 = vsel %vm1887, %v5210, 0
      %5318 = vmatprep.subr.mxu0 0.0
      %5319 = vmatpush1.msra.mxu0 %v5221
      %5320 = vmatprep.subr.mxu0 0.0
      %5321 = vmatpush1.msra.mxu0 %v5222
      %5322 = vmatprep.subr.mxu0 0.0
      %5323 = vmatpush1.msra.mxu0 %v5223
      %5324 = vmatprep.subr.mxu0 0.0
      %5325 = vmatpush1.msra.mxu0 %v5224
      %5326 = vmatprep.subr.mxu0 0.0
      %5327 = vmatpush1.msra.mxu0 %v5225
      %5328 = vmatprep.subr.mxu0 0.0
      %5329 = vmatpush1.msra.mxu0 %v5226
      %5330 = vmatprep.subr.mxu0 0.0
      %5331 = vmatpush1.msra.mxu0 %v5227
      %5332 = vmatprep.subr.mxu0 0.0
      %5333 = vmatpush1.msra.mxu0 %v5228
      %5334 = vmatprep.subr.mxu0 0.0
      %5335 = vmatpush1.msra.mxu0 0.0
      %5336 = vmatprep.subr.mxu0 0.0
      %5337 = vmatpush1.msra.mxu0 0.0
      %5338 = vmatprep.subr.mxu0 0.0
      %5339 = vmatpush1.msra.mxu0 0.0
      %5340 = vmatprep.subr.mxu0 0.0
      %5341 = vmatpush1.msra.mxu0 0.0
      %5342 = vmatprep.subr.mxu0 0.0
      %5343 = vmatpush1.msra.mxu0 0.0
      %5344 = vmatprep.subr.mxu0 0.0
      %5345 = vmatpush1.msra.mxu0 0.0
      %5346 = vmatprep.subr.mxu0 0.0
      %5347 = vmatpush1.msra.mxu0 0.0
      %5348 = vmatprep.subr.mxu0 0.0
      %5349 = vmatpush1.msra.mxu0 0.0
      %5350 = vmatprep.subr.mxu0 0.0
      %5351 = vmatpush1.msra.mxu0 0.0
      %5352 = vmatprep.subr.mxu0 0.0
      %5353 = vmatpush1.msra.mxu0 0.0
      %5354 = vmatprep.subr.mxu0 0.0
      %5355 = vmatpush1.msra.mxu0 0.0
      %5356 = vmatprep.subr.mxu0 0.0
      %5357 = vmatpush1.msra.mxu0 0.0
      %5358 = vmatprep.subr.mxu0 0.0
      %5359 = vmatpush1.msra.mxu0 0.0
      %5360 = vmatprep.subr.mxu0 0.0
      %5361 = vmatpush1.msra.mxu0 0.0
      %5362 = vmatprep.subr.mxu0 0.0
      %5363 = vmatpush1.msra.mxu0 0.0
      %5364 = vmatprep.subr.mxu0 0.0
      %5365 = vmatpush1.msra.mxu0 0.0
      %5366 = vmatprep.subr.mxu0 0.0
      %5367 = vmatpush1.msra.mxu0 0.0
      %5368 = vmatprep.subr.mxu0 0.0
      %5369 = vmatpush1.msra.mxu0 0.0
      %5370 = vmatprep.subr.mxu0 0.0
      %5371 = vmatpush1.msra.mxu0 0.0
      %5372 = vmatprep.subr.mxu0 0.0
      %5373 = vmatpush1.msra.mxu0 0.0
      %5374 = vmatprep.subr.mxu0 0.0
      %5375 = vmatpush1.msra.mxu0 0.0
      %5376 = vmatprep.subr.mxu0 0.0
      %5377 = vmatpush1.msra.mxu0 0.0
      %5378 = vmatprep.subr.mxu0 0.0
      %5379 = vmatpush1.msra.mxu0 0.0
      %5380 = vmatprep.subr.mxu0 0.0
      %5381 = vmatpush1.msra.mxu0 0.0
      %5382 = vmatprep.mubr.f32.mxu0 0.0
      %5383 = vmatmul.mubr.f32.gmra.mrb[0].mxu0 %v5316
      %v5384 = vpop.f32.mrb[0].mxu0
      %v5385 = vadd.f32 0.0, %v5384
      %v5386 = vpop.f32.mrb[0].mxu0
      %5387 = vdwg.mxu0
      %v5389 = vsel %vm1887, %v5313, 0
      %5391 = vmatprep.subr.mxu0 0.0
      %5392 = vmatpush1.msra.mxu0 %v5213
      %5393 = vmatprep.subr.mxu0 0.0
      %5394 = vmatpush1.msra.mxu0 %v5214
      %5395 = vmatprep.subr.mxu0 0.0
      %5396 = vmatpush1.msra.mxu0 %v5215
      %5397 = vmatprep.subr.mxu0 0.0
      %5398 = vmatpush1.msra.mxu0 %v5216
      %5399 = vmatprep.subr.mxu0 0.0
      %5400 = vmatpush1.msra.mxu0 %v5217
      %5401 = vmatprep.subr.mxu0 0.0
      %5402 = vmatpush1.msra.mxu0 %v5218
      %5403 = vmatprep.subr.mxu0 0.0
      %5404 = vmatpush1.msra.mxu0 %v5219
      %5405 = vmatprep.subr.mxu0 0.0
      %5406 = vmatpush1.msra.mxu0 %v5220
      %5407 = vmatprep.subr.mxu0 0.0
      %5408 = vmatpush1.msra.mxu0 0.0
      %5409 = vmatprep.subr.mxu0 0.0
      %5410 = vmatpush1.msra.mxu0 0.0
      %5411 = vmatprep.subr.mxu0 0.0
      %5412 = vmatpush1.msra.mxu0 0.0
      %5413 = vmatprep.subr.mxu0 0.0
      %5414 = vmatpush1.msra.mxu0 0.0
      %5415 = vmatprep.subr.mxu0 0.0
      %5416 = vmatpush1.msra.mxu0 0.0
      %5417 = vmatprep.subr.mxu0 0.0
      %5418 = vmatpush1.msra.mxu0 0.0
      %5419 = vmatprep.subr.mxu0 0.0
      %5420 = vmatpush1.msra.mxu0 0.0
      %5421 = vmatprep.subr.mxu0 0.0
      %5422 = vmatpush1.msra.mxu0 0.0
      %5423 = vmatprep.subr.mxu0 0.0
      %5424 = vmatpush1.msra.mxu0 0.0
      %5425 = vmatprep.subr.mxu0 0.0
      %5426 = vmatpush1.msra.mxu0 0.0
      %5427 = vmatprep.subr.mxu0 0.0
      %5428 = vmatpush1.msra.mxu0 0.0
      %5429 = vmatprep.subr.mxu0 0.0
      %5430 = vmatpush1.msra.mxu0 0.0
      %5431 = vmatprep.subr.mxu0 0.0
      %5432 = vmatpush1.msra.mxu0 0.0
      %5433 = vmatprep.subr.mxu0 0.0
      %5434 = vmatpush1.msra.mxu0 0.0
      %5435 = vmatprep.subr.mxu0 0.0
      %5436 = vmatpush1.msra.mxu0 0.0
      %5437 = vmatprep.subr.mxu0 0.0
      %5438 = vmatpush1.msra.mxu0 0.0
      %5439 = vmatprep.subr.mxu0 0.0
      %5440 = vmatpush1.msra.mxu0 0.0
      %5441 = vmatprep.subr.mxu0 0.0
      %5442 = vmatpush1.msra.mxu0 0.0
      %5443 = vmatprep.subr.mxu0 0.0
      %5444 = vmatpush1.msra.mxu0 0.0
      %5445 = vmatprep.subr.mxu0 0.0
      %5446 = vmatpush1.msra.mxu0 0.0
      %5447 = vmatprep.subr.mxu0 0.0
      %5448 = vmatpush1.msra.mxu0 0.0
      %5449 = vmatprep.subr.mxu0 0.0
      %5450 = vmatpush1.msra.mxu0 0.0
      %5451 = vmatprep.subr.mxu0 0.0
      %5452 = vmatpush1.msra.mxu0 0.0
      %5453 = vmatprep.subr.mxu0 0.0
      %5454 = vmatpush1.msra.mxu0 0.0
      %5455 = vmatprep.mubr.f32.mxu0 0.0
      %5456 = vmatmul.mubr.f32.gmra.mrb[0].mxu0 %v5389
      %v5457 = vpop.f32.mrb[0].mxu0
      %v5458 = vadd.f32 %v5385, %v5457
      %v5459 = vpop.f32.mrb[0].mxu0
      %5460 = vdwg.mxu0
      %v5462 = vsel %vm5238, %v5212, 0
      %5464 = vmatprep.subr.mxu0 0.0
      %5465 = vmatpush1.msra.mxu0 %v5244
      %5466 = vmatprep.subr.mxu0 0.0
      %5467 = vmatpush1.msra.mxu0 0.0
      %5468 = vmatprep.subr.mxu0 0.0
      %5469 = vmatpush1.msra.mxu0 0.0
      %5470 = vmatprep.subr.mxu0 0.0
      %5471 = vmatpush1.msra.mxu0 0.0
      %5472 = vmatprep.subr.mxu0 0.0
      %5473 = vmatpush1.msra.mxu0 0.0
      %5474 = vmatprep.subr.mxu0 0.0
      %5475 = vmatpush1.msra.mxu0 0.0
      %5476 = vmatprep.subr.mxu0 0.0
      %5477 = vmatpush1.msra.mxu0 0.0
      %5478 = vmatprep.subr.mxu0 0.0
      %5479 = vmatpush1.msra.mxu0 0.0
      %5480 = vmatprep.subr.mxu0 0.0
      %5481 = vmatpush1.msra.mxu0 0.0
      %5482 = vmatprep.subr.mxu0 0.0
      %5483 = vmatpush1.msra.mxu0 0.0
      %5484 = vmatprep.subr.mxu0 0.0
      %5485 = vmatpush1.msra.mxu0 0.0
      %5486 = vmatprep.subr.mxu0 0.0
      %5487 = vmatpush1.msra.mxu0 0.0
      %5488 = vmatprep.subr.mxu0 0.0
      %5489 = vmatpush1.msra.mxu0 0.0
      %5490 = vmatprep.subr.mxu0 0.0
      %5491 = vmatpush1.msra.mxu0 0.0
      %5492 = vmatprep.subr.mxu0 0.0
      %5493 = vmatpush1.msra.mxu0 0.0
      %5494 = vmatprep.subr.mxu0 0.0
      %5495 = vmatpush1.msra.mxu0 0.0
      %5496 = vmatprep.subr.mxu0 0.0
      %5497 = vmatpush1.msra.mxu0 0.0
      %5498 = vmatprep.subr.mxu0 0.0
      %5499 = vmatpush1.msra.mxu0 0.0
      %5500 = vmatprep.subr.mxu0 0.0
      %5501 = vmatpush1.msra.mxu0 0.0
      %5502 = vmatprep.subr.mxu0 0.0
      %5503 = vmatpush1.msra.mxu0 0.0
      %5504 = vmatprep.subr.mxu0 0.0
      %5505 = vmatpush1.msra.mxu0 0.0
      %5506 = vmatprep.subr.mxu0 0.0
      %5507 = vmatpush1.msra.mxu0 0.0
      %5508 = vmatprep.subr.mxu0 0.0
      %5509 = vmatpush1.msra.mxu0 0.0
      %5510 = vmatprep.subr.mxu0 0.0
      %5511 = vmatpush1.msra.mxu0 0.0
      %5512 = vmatprep.subr.mxu0 0.0
      %5513 = vmatpush1.msra.mxu0 0.0
      %5514 = vmatprep.subr.mxu0 0.0
      %5515 = vmatpush1.msra.mxu0 0.0
      %5516 = vmatprep.subr.mxu0 0.0
      %5517 = vmatpush1.msra.mxu0 0.0
      %5518 = vmatprep.subr.mxu0 0.0
      %5519 = vmatpush1.msra.mxu0 0.0
      %5520 = vmatprep.subr.mxu0 0.0
      %5521 = vmatpush1.msra.mxu0 0.0
      %5522 = vmatprep.subr.mxu0 0.0
      %5523 = vmatpush1.msra.mxu0 0.0
      %5524 = vmatprep.subr.mxu0 0.0
      %5525 = vmatpush1.msra.mxu0 0.0
      %5526 = vmatprep.subr.mxu0 0.0
      %5527 = vmatpush1.msra.mxu0 0.0
      %5528 = vmatprep.mubr.f32.mxu0 0.0
      %5529 = vmatmul.mubr.f32.gmra.mrb[0].mxu0 %v5462
      %v5530 = vpop.f32.mrb[0].mxu0
      %v5531 = vadd.f32 0.0, %v5530
      %v5532 = vpop.f32.mrb[0].mxu0
      %5533 = vdwg.mxu0
      %v5535 = vsel %vm1887, %v5531, 0
      %5537 = vmatprep.subr.mxu0 0.0
      %5538 = vmatpush1.msra.mxu0 %v5229
      %5539 = vmatprep.subr.mxu0 0.0
      %5540 = vmatpush1.msra.mxu0 %v5230
      %5541 = vmatprep.subr.mxu0 0.0
      %5542 = vmatpush1.msra.mxu0 %v5231
      %5543 = vmatprep.subr.mxu0 0.0
      %5544 = vmatpush1.msra.mxu0 %v5232
      %5545 = vmatprep.subr.mxu0 0.0
      %5546 = vmatpush1.msra.mxu0 %v5233
      %5547 = vmatprep.subr.mxu0 0.0
      %5548 = vmatpush1.msra.mxu0 %v5234
      %5549 = vmatprep.subr.mxu0 0.0
      %5550 = vmatpush1.msra.mxu0 %v5235
      %5551 = vmatprep.subr.mxu0 0.0
      %5552 = vmatpush1.msra.mxu0 %v5236
      %5553 = vmatprep.subr.mxu0 0.0
      %5554 = vmatpush1.msra.mxu0 0.0
      %5555 = vmatprep.subr.mxu0 0.0
      %5556 = vmatpush1.msra.mxu0 0.0
      %5557 = vmatprep.subr.mxu0 0.0
      %5558 = vmatpush1.msra.mxu0 0.0
      %5559 = vmatprep.subr.mxu0 0.0
      %5560 = vmatpush1.msra.mxu0 0.0
      %5561 = vmatprep.subr.mxu0 0.0
      %5562 = vmatpush1.msra.mxu0 0.0
      %5563 = vmatprep.subr.mxu0 0.0
      %5564 = vmatpush1.msra.mxu0 0.0
      %5565 = vmatprep.subr.mxu0 0.0
      %5566 = vmatpush1.msra.mxu0 0.0
      %5567 = vmatprep.subr.mxu0 0.0
      %5568 = vmatpush1.msra.mxu0 0.0
      %5569 = vmatprep.subr.mxu0 0.0
      %5570 = vmatpush1.msra.mxu0 0.0
      %5571 = vmatprep.subr.mxu0 0.0
      %5572 = vmatpush1.msra.mxu0 0.0
      %5573 = vmatprep.subr.mxu0 0.0
      %5574 = vmatpush1.msra.mxu0 0.0
      %5575 = vmatprep.subr.mxu0 0.0
      %5576 = vmatpush1.msra.mxu0 0.0
      %5577 = vmatprep.subr.mxu0 0.0
      %5578 = vmatpush1.msra.mxu0 0.0
      %5579 = vmatprep.subr.mxu0 0.0
      %5580 = vmatpush1.msra.mxu0 0.0
      %5581 = vmatprep.subr.mxu0 0.0
      %5582 = vmatpush1.msra.mxu0 0.0
      %5583 = vmatprep.subr.mxu0 0.0
      %5584 = vmatpush1.msra.mxu0 0.0
      %5585 = vmatprep.subr.mxu0 0.0
      %5586 = vmatpush1.msra.mxu0 0.0
      %5587 = vmatprep.subr.mxu0 0.0
      %5588 = vmatpush1.msra.mxu0 0.0
      %5589 = vmatprep.subr.mxu0 0.0
      %5590 = vmatpush1.msra.mxu0 0.0
      %5591 = vmatprep.subr.mxu0 0.0
      %5592 = vmatpush1.msra.mxu0 0.0
      %5593 = vmatprep.subr.mxu0 0.0
      %5594 = vmatpush1.msra.mxu0 0.0
      %5595 = vmatprep.subr.mxu0 0.0
      %5596 = vmatpush1.msra.mxu0 0.0
      %5597 = vmatprep.subr.mxu0 0.0
      %5598 = vmatpush1.msra.mxu0 0.0
      %5599 = vmatprep.subr.mxu0 0.0
      %5600 = vmatpush1.msra.mxu0 0.0
      %5601 = vmatprep.mubr.f32.mxu0 0.0
      %5602 = vmatmul.mubr.f32.gmra.mrb[0].mxu0 %v5535
      %v5603 = vpop.f32.mrb[0].mxu0
      %v5604 = vadd.f32 0.0, %v5603
      %v5605 = vpop.f32.mrb[0].mxu0
      %5606 = vdwg.mxu0
      %v5607 = vadd.f32 %v5458, %v5604
      %v5609 = vlaneseq
      %v5610 = vshrl.u32 %v5609, 7
      %v5611 = vsub.s32 0, %v5610
      %v5612 = vrot.slane %v5237, %v5611
      %v5614 = vadd.f32 %v5607, %v5612
      %v5615 = vmax.f32 %v5614, 0.0
      %v5616 = vld [vmem:[%s105] sm:$0xff]
      %v5617 = vld [vmem:[%s105 + $0x8] sm:$0xff]
      %v5618 = vld [vmem:[%s105 + $0x10] sm:$0xff]
      %v5619 = vld [vmem:[%s105 + $0x18] sm:$0xff]
      %v5620 = vld [vmem:[%s105 + $0x20] sm:$0xff]
      %v5621 = vld [vmem:[%s105 + $0x28] sm:$0xff]
      %v5622 = vld [vmem:[%s105 + $0x30] sm:$0xff]
      %v5623 = vld [vmem:[%s105 + $0x38] sm:$0xff]
      %v5624 = vld [vmem:[%s107] sm:$0xff]
      %v5625 = vld [vmem:[%s107 + $0x8] sm:$0xff]
      %v5626 = vld [vmem:[%s107 + $0x10] sm:$0xff]
      %v5627 = vld [vmem:[%s107 + $0x18] sm:$0xff]
      %v5628 = vld [vmem:[%s107 + $0x20] sm:$0xff]
      %v5629 = vld [vmem:[%s107 + $0x28] sm:$0xff]
      %v5630 = vld [vmem:[%s107 + $0x30] sm:$0xff]
      %v5631 = vld [vmem:[%s107 + $0x38] sm:$0xff]
      %v5632 = vld [vmem:[%s109] sm:$0xff]
      %v5633 = vld [vmem:[%s109 + $0x8] sm:$0xff]
      %v5634 = vld [vmem:[%s109 + $0x10] sm:$0xff]
      %v5635 = vld [vmem:[%s109 + $0x18] sm:$0xff]
      %v5636 = vld [vmem:[%s109 + $0x20] sm:$0xff]
      %v5637 = vld [vmem:[%s109 + $0x28] sm:$0xff]
      %v5638 = vld [vmem:[%s109 + $0x30] sm:$0xff]
      %v5639 = vld [vmem:[%s109 + $0x38] sm:$0xff]
      %v5640 = vld [vmem:[%s111] sm:$0x1]
      %v5642 = vsel %vm5242, %v5615, 0
      %5644 = vmatprep.subr.mxu0 0.0
      %5645 = vmatpush1.msra.mxu0 %v5642
      %5646 = vmatprep.subr.mxu0 0.0
      %5647 = vmatpush1.msra.mxu0 0.0
      %5648 = vmatprep.subr.mxu0 0.0
      %5649 = vmatpush1.msra.mxu0 0.0
      %5650 = vmatprep.subr.mxu0 0.0
      %5651 = vmatpush1.msra.mxu0 0.0
      %5652 = vmatprep.subr.mxu0 0.0
      %5653 = vmatpush1.msra.mxu0 0.0
      %5654 = vmatprep.subr.mxu0 0.0
      %5655 = vmatpush1.msra.mxu0 0.0
      %5656 = vmatprep.subr.mxu0 0.0
      %5657 = vmatpush1.msra.mxu0 0.0
      %5658 = vmatprep.subr.mxu0 0.0
      %5659 = vmatpush1.msra.mxu0 0.0
      %5660 = vmatprep.subr.mxu0 0.0
      %5661 = vmatpush1.msra.mxu0 0.0
      %5662 = vmatprep.subr.mxu0 0.0
      %5663 = vmatpush1.msra.mxu0 0.0
      %5664 = vmatprep.subr.mxu0 0.0
      %5665 = vmatpush1.msra.mxu0 0.0
      %5666 = vmatprep.subr.mxu0 0.0
      %5667 = vmatpush1.msra.mxu0 0.0
      %5668 = vmatprep.subr.mxu0 0.0
      %5669 = vmatpush1.msra.mxu0 0.0
      %5670 = vmatprep.subr.mxu0 0.0
      %5671 = vmatpush1.msra.mxu0 0.0
      %5672 = vmatprep.subr.mxu0 0.0
      %5673 = vmatpush1.msra.mxu0 0.0
      %5674 = vmatprep.subr.mxu0 0.0
      %5675 = vmatpush1.msra.mxu0 0.0
      %5676 = vmatprep.subr.mxu0 0.0
      %5677 = vmatpush1.msra.mxu0 0.0
      %5678 = vmatprep.subr.mxu0 0.0
      %5679 = vmatpush1.msra.mxu0 0.0
      %5680 = vmatprep.subr.mxu0 0.0
      %5681 = vmatpush1.msra.mxu0 0.0
      %5682 = vmatprep.subr.mxu0 0.0
      %5683 = vmatpush1.msra.mxu0 0.0
      %5684 = vmatprep.subr.mxu0 0.0
      %5685 = vmatpush1.msra.mxu0 0.0
      %5686 = vmatprep.subr.mxu0 0.0
      %5687 = vmatpush1.msra.mxu0 0.0
      %5688 = vmatprep.subr.mxu0 0.0
      %5689 = vmatpush1.msra.mxu0 0.0
      %5690 = vmatprep.subr.mxu0 0.0
      %5691 = vmatpush1.msra.mxu0 0.0
      %5692 = vmatprep.subr.mxu0 0.0
      %5693 = vmatpush1.msra.mxu0 0.0
      %5694 = vmatprep.subr.mxu0 0.0
      %5695 = vmatpush1.msra.mxu0 0.0
      %5696 = vmatprep.subr.mxu0 0.0
      %5697 = vmatpush1.msra.mxu0 0.0
      %5698 = vmatprep.subr.mxu0 0.0
      %5699 = vmatpush1.msra.mxu0 0.0
      %5700 = vmatprep.subr.mxu0 0.0
      %5701 = vmatpush1.msra.mxu0 0.0
      %5702 = vmatprep.subr.mxu0 0.0
      %5703 = vmatpush1.msra.mxu0 0.0
      %5704 = vmatprep.subr.mxu0 0.0
      %5705 = vmatpush1.msra.mxu0 0.0
      %5706 = vmatprep.subr.mxu0 0.0
      %5707 = vmatpush1.msra.mxu0 0.0
      %5708 = vmatprep.mubr.f32.mxu0 0.0
      %5709 = vmatmul.mubr.f32.gmra.mrb[0].mxu0 %v5240
      %v5710 = vpop.f32.mrb[0].mxu0
      %v5711 = vadd.f32 0.0, %v5710
      %v5712 = vpop.f32.mrb[0].mxu0
      %5713 = vdwg.mxu0
      %v5714 = vsel %vm1887, %v5615, 0
      %5716 = vmatprep.subr.mxu0 0.0
      %5717 = vmatpush1.msra.mxu0 %v5624
      %5718 = vmatprep.subr.mxu0 0.0
      %5719 = vmatpush1.msra.mxu0 %v5625
      %5720 = vmatprep.subr.mxu0 0.0
      %5721 = vmatpush1.msra.mxu0 %v5626
      %5722 = vmatprep.subr.mxu0 0.0
      %5723 = vmatpush1.msra.mxu0 %v5627
      %5724 = vmatprep.subr.mxu0 0.0
      %5725 = vmatpush1.msra.mxu0 %v5628
      %5726 = vmatprep.subr.mxu0 0.0
      %5727 = vmatpush1.msra.mxu0 %v5629
      %5728 = vmatprep.subr.mxu0 0.0
      %5729 = vmatpush1.msra.mxu0 %v5630
      %5730 = vmatprep.subr.mxu0 0.0
      %5731 = vmatpush1.msra.mxu0 %v5631
      %5732 = vmatprep.subr.mxu0 0.0
      %5733 = vmatpush1.msra.mxu0 0.0
      %5734 = vmatprep.subr.mxu0 0.0
      %5735 = vmatpush1.msra.mxu0 0.0
      %5736 = vmatprep.subr.mxu0 0.0
      %5737 = vmatpush1.msra.mxu0 0.0
      %5738 = vmatprep.subr.mxu0 0.0
      %5739 = vmatpush1.msra.mxu0 0.0
      %5740 = vmatprep.subr.mxu0 0.0
      %5741 = vmatpush1.msra.mxu0 0.0
      %5742 = vmatprep.subr.mxu0 0.0
      %5743 = vmatpush1.msra.mxu0 0.0
      %5744 = vmatprep.subr.mxu0 0.0
      %5745 = vmatpush1.msra.mxu0 0.0
      %5746 = vmatprep.subr.mxu0 0.0
      %5747 = vmatpush1.msra.mxu0 0.0
      %5748 = vmatprep.subr.mxu0 0.0
      %5749 = vmatpush1.msra.mxu0 0.0
      %5750 = vmatprep.subr.mxu0 0.0
      %5751 = vmatpush1.msra.mxu0 0.0
      %5752 = vmatprep.subr.mxu0 0.0
      %5753 = vmatpush1.msra.mxu0 0.0
      %5754 = vmatprep.subr.mxu0 0.0
      %5755 = vmatpush1.msra.mxu0 0.0
      %5756 = vmatprep.subr.mxu0 0.0
      %5757 = vmatpush1.msra.mxu0 0.0
      %5758 = vmatprep.subr.mxu0 0.0
      %5759 = vmatpush1.msra.mxu0 0.0
      %5760 = vmatprep.subr.mxu0 0.0
      %5761 = vmatpush1.msra.mxu0 0.0
      %5762 = vmatprep.subr.mxu0 0.0
      %5763 = vmatpush1.msra.mxu0 0.0
      %5764 = vmatprep.subr.mxu0 0.0
      %5765 = vmatpush1.msra.mxu0 0.0
      %5766 = vmatprep.subr.mxu0 0.0
      %5767 = vmatpush1.msra.mxu0 0.0
      %5768 = vmatprep.subr.mxu0 0.0
      %5769 = vmatpush1.msra.mxu0 0.0
      %5770 = vmatprep.subr.mxu0 0.0
      %5771 = vmatpush1.msra.mxu0 0.0
      %5772 = vmatprep.subr.mxu0 0.0
      %5773 = vmatpush1.msra.mxu0 0.0
      %5774 = vmatprep.subr.mxu0 0.0
      %5775 = vmatpush1.msra.mxu0 0.0
      %5776 = vmatprep.subr.mxu0 0.0
      %5777 = vmatpush1.msra.mxu0 0.0
      %5778 = vmatprep.subr.mxu0 0.0
      %5779 = vmatpush1.msra.mxu0 0.0
      %5780 = vmatprep.mubr.f32.mxu0 0.0
      %5781 = vmatmul.mubr.f32.gmra.mrb[0].mxu0 %v5714
      %v5782 = vpop.f32.mrb[0].mxu0
      %v5783 = vadd.f32 0.0, %v5782
      %v5784 = vpop.f32.mrb[0].mxu0
      %5785 = vdwg.mxu0
      %v5787 = vsel %vm1887, %v5711, 0
      %5789 = vmatprep.subr.mxu0 0.0
      %5790 = vmatpush1.msra.mxu0 %v5616
      %5791 = vmatprep.subr.mxu0 0.0
      %5792 = vmatpush1.msra.mxu0 %v5617
      %5793 = vmatprep.subr.mxu0 0.0
      %5794 = vmatpush1.msra.mxu0 %v5618
      %5795 = vmatprep.subr.mxu0 0.0
      %5796 = vmatpush1.msra.mxu0 %v5619
      %5797 = vmatprep.subr.mxu0 0.0
      %5798 = vmatpush1.msra.mxu0 %v5620
      %5799 = vmatprep.subr.mxu0 0.0
      %5800 = vmatpush1.msra.mxu0 %v5621
      %5801 = vmatprep.subr.mxu0 0.0
      %5802 = vmatpush1.msra.mxu0 %v5622
      %5803 = vmatprep.subr.mxu0 0.0
      %5804 = vmatpush1.msra.mxu0 %v5623
      %5805 = vmatprep.subr.mxu0 0.0
      %5806 = vmatpush1.msra.mxu0 0.0
      %5807 = vmatprep.subr.mxu0 0.0
      %5808 = vmatpush1.msra.mxu0 0.0
      %5809 = vmatprep.subr.mxu0 0.0
      %5810 = vmatpush1.msra.mxu0 0.0
      %5811 = vmatprep.subr.mxu0 0.0
      %5812 = vmatpush1.msra.mxu0 0.0
      %5813 = vmatprep.subr.mxu0 0.0
      %5814 = vmatpush1.msra.mxu0 0.0
      %5815 = vmatprep.subr.mxu0 0.0
      %5816 = vmatpush1.msra.mxu0 0.0
      %5817 = vmatprep.subr.mxu0 0.0
      %5818 = vmatpush1.msra.mxu0 0.0
      %5819 = vmatprep.subr.mxu0 0.0
      %5820 = vmatpush1.msra.mxu0 0.0
      %5821 = vmatprep.subr.mxu0 0.0
      %5822 = vmatpush1.msra.mxu0 0.0
      %5823 = vmatprep.subr.mxu0 0.0
      %5824 = vmatpush1.msra.mxu0 0.0
      %5825 = vmatprep.subr.mxu0 0.0
      %5826 = vmatpush1.msra.mxu0 0.0
      %5827 = vmatprep.subr.mxu0 0.0
      %5828 = vmatpush1.msra.mxu0 0.0
      %5829 = vmatprep.subr.mxu0 0.0
      %5830 = vmatpush1.msra.mxu0 0.0
      %5831 = vmatprep.subr.mxu0 0.0
      %5832 = vmatpush1.msra.mxu0 0.0
      %5833 = vmatprep.subr.mxu0 0.0
      %5834 = vmatpush1.msra.mxu0 0.0
      %5835 = vmatprep.subr.mxu0 0.0
      %5836 = vmatpush1.msra.mxu0 0.0
      %5837 = vmatprep.subr.mxu0 0.0
      %5838 = vmatpush1.msra.mxu0 0.0
      %5839 = vmatprep.subr.mxu0 0.0
      %5840 = vmatpush1.msra.mxu0 0.0
      %5841 = vmatprep.subr.mxu0 0.0
      %5842 = vmatpush1.msra.mxu0 0.0
      %5843 = vmatprep.subr.mxu0 0.0
      %5844 = vmatpush1.msra.mxu0 0.0
      %5845 = vmatprep.subr.mxu0 0.0
      %5846 = vmatpush1.msra.mxu0 0.0
      %5847 = vmatprep.subr.mxu0 0.0
      %5848 = vmatpush1.msra.mxu0 0.0
      %5849 = vmatprep.subr.mxu0 0.0
      %5850 = vmatpush1.msra.mxu0 0.0
      %5851 = vmatprep.subr.mxu0 0.0
      %5852 = vmatpush1.msra.mxu0 0.0
      %5853 = vmatprep.mubr.f32.mxu0 0.0
      %5854 = vmatmul.mubr.f32.gmra.mrb[0].mxu0 %v5787
      %v5855 = vpop.f32.mrb[0].mxu0
      %v5856 = vadd.f32 %v5783, %v5855
      %v5857 = vpop.f32.mrb[0].mxu0
      %5858 = vdwg.mxu0
      %5859 = vmatprep.subr.mxu0 0.0
      %5860 = vmatpush1.msra.mxu0 %v5642
      %5861 = vmatprep.subr.mxu0 0.0
      %5862 = vmatpush1.msra.mxu0 0.0
      %5863 = vmatprep.subr.mxu0 0.0
      %5864 = vmatpush1.msra.mxu0 0.0
      %5865 = vmatprep.subr.mxu0 0.0
      %5866 = vmatpush1.msra.mxu0 0.0
      %5867 = vmatprep.subr.mxu0 0.0
      %5868 = vmatpush1.msra.mxu0 0.0
      %5869 = vmatprep.subr.mxu0 0.0
      %5870 = vmatpush1.msra.mxu0 0.0
      %5871 = vmatprep.subr.mxu0 0.0
      %5872 = vmatpush1.msra.mxu0 0.0
      %5873 = vmatprep.subr.mxu0 0.0
      %5874 = vmatpush1.msra.mxu0 0.0
      %5875 = vmatprep.subr.mxu0 0.0
      %5876 = vmatpush1.msra.mxu0 0.0
      %5877 = vmatprep.subr.mxu0 0.0
      %5878 = vmatpush1.msra.mxu0 0.0
      %5879 = vmatprep.subr.mxu0 0.0
      %5880 = vmatpush1.msra.mxu0 0.0
      %5881 = vmatprep.subr.mxu0 0.0
      %5882 = vmatpush1.msra.mxu0 0.0
      %5883 = vmatprep.subr.mxu0 0.0
      %5884 = vmatpush1.msra.mxu0 0.0
      %5885 = vmatprep.subr.mxu0 0.0
      %5886 = vmatpush1.msra.mxu0 0.0
      %5887 = vmatprep.subr.mxu0 0.0
      %5888 = vmatpush1.msra.mxu0 0.0
      %5889 = vmatprep.subr.mxu0 0.0
      %5890 = vmatpush1.msra.mxu0 0.0
      %5891 = vmatprep.subr.mxu0 0.0
      %5892 = vmatpush1.msra.mxu0 0.0
      %5893 = vmatprep.subr.mxu0 0.0
      %5894 = vmatpush1.msra.mxu0 0.0
      %5895 = vmatprep.subr.mxu0 0.0
      %5896 = vmatpush1.msra.mxu0 0.0
      %5897 = vmatprep.subr.mxu0 0.0
      %5898 = vmatpush1.msra.mxu0 0.0
      %5899 = vmatprep.subr.mxu0 0.0
      %5900 = vmatpush1.msra.mxu0 0.0
      %5901 = vmatprep.subr.mxu0 0.0
      %5902 = vmatpush1.msra.mxu0 0.0
      %5903 = vmatprep.subr.mxu0 0.0
      %5904 = vmatpush1.msra.mxu0 0.0
      %5905 = vmatprep.subr.mxu0 0.0
      %5906 = vmatpush1.msra.mxu0 0.0
      %5907 = vmatprep.subr.mxu0 0.0
      %5908 = vmatpush1.msra.mxu0 0.0
      %5909 = vmatprep.subr.mxu0 0.0
      %5910 = vmatpush1.msra.mxu0 0.0
      %5911 = vmatprep.subr.mxu0 0.0
      %5912 = vmatpush1.msra.mxu0 0.0
      %5913 = vmatprep.subr.mxu0 0.0
      %5914 = vmatpush1.msra.mxu0 0.0
      %5915 = vmatprep.subr.mxu0 0.0
      %5916 = vmatpush1.msra.mxu0 0.0
      %5917 = vmatprep.subr.mxu0 0.0
      %5918 = vmatpush1.msra.mxu0 0.0
      %5919 = vmatprep.subr.mxu0 0.0
      %5920 = vmatpush1.msra.mxu0 0.0
      %5921 = vmatprep.subr.mxu0 0.0
      %5922 = vmatpush1.msra.mxu0 0.0
      %5923 = vmatprep.mubr.f32.mxu0 0.0
      %5924 = vmatmul.mubr.f32.gmra.mrb[0].mxu0 %v5462
      %v5925 = vpop.f32.mrb[0].mxu0
      %v5926 = vadd.f32 0.0, %v5925
      %v5927 = vpop.f32.mrb[0].mxu0
      %5928 = vdwg.mxu0
      %v5930 = vsel %vm1887, %v5926, 0
      %5932 = vmatprep.subr.mxu0 0.0
      %5933 = vmatpush1.msra.mxu0 %v5632
      %5934 = vmatprep.subr.mxu0 0.0
      %5935 = vmatpush1.msra.mxu0 %v5633
      %5936 = vmatprep.subr.mxu0 0.0
      %5937 = vmatpush1.msra.mxu0 %v5634
      %5938 = vmatprep.subr.mxu0 0.0
      %5939 = vmatpush1.msra.mxu0 %v5635
      %5940 = vmatprep.subr.mxu0 0.0
      %5941 = vmatpush1.msra.mxu0 %v5636
      %5942 = vmatprep.subr.mxu0 0.0
      %5943 = vmatpush1.msra.mxu0 %v5637
      %5944 = vmatprep.subr.mxu0 0.0
      %5945 = vmatpush1.msra.mxu0 %v5638
      %5946 = vmatprep.subr.mxu0 0.0
      %5947 = vmatpush1.msra.mxu0 %v5639
      %5948 = vmatprep.subr.mxu0 0.0
      %5949 = vmatpush1.msra.mxu0 0.0
      %5950 = vmatprep.subr.mxu0 0.0
      %5951 = vmatpush1.msra.mxu0 0.0
      %5952 = vmatprep.subr.mxu0 0.0
      %5953 = vmatpush1.msra.mxu0 0.0
      %5954 = vmatprep.subr.mxu0 0.0
      %5955 = vmatpush1.msra.mxu0 0.0
      %5956 = vmatprep.subr.mxu0 0.0
      %5957 = vmatpush1.msra.mxu0 0.0
      %5958 = vmatprep.subr.mxu0 0.0
      %5959 = vmatpush1.msra.mxu0 0.0
      %5960 = vmatprep.subr.mxu0 0.0
      %5961 = vmatpush1.msra.mxu0 0.0
      %5962 = vmatprep.subr.mxu0 0.0
      %5963 = vmatpush1.msra.mxu0 0.0
      %5964 = vmatprep.subr.mxu0 0.0
      %5965 = vmatpush1.msra.mxu0 0.0
      %5966 = vmatprep.subr.mxu0 0.0
      %5967 = vmatpush1.msra.mxu0 0.0
      %5968 = vmatprep.subr.mxu0 0.0
      %5969 = vmatpush1.msra.mxu0 0.0
      %5970 = vmatprep.subr.mxu0 0.0
      %5971 = vmatpush1.msra.mxu0 0.0
      %5972 = vmatprep.subr.mxu0 0.0
      %5973 = vmatpush1.msra.mxu0 0.0
      %5974 = vmatprep.subr.mxu0 0.0
      %5975 = vmatpush1.msra.mxu0 0.0
      %5976 = vmatprep.subr.mxu0 0.0
      %5977 = vmatpush1.msra.mxu0 0.0
      %5978 = vmatprep.subr.mxu0 0.0
      %5979 = vmatpush1.msra.mxu0 0.0
      %5980 = vmatprep.subr.mxu0 0.0
      %5981 = vmatpush1.msra.mxu0 0.0
      %5982 = vmatprep.subr.mxu0 0.0
      %5983 = vmatpush1.msra.mxu0 0.0
      %5984 = vmatprep.subr.mxu0 0.0
      %5985 = vmatpush1.msra.mxu0 0.0
      %5986 = vmatprep.subr.mxu0 0.0
      %5987 = vmatpush1.msra.mxu0 0.0
      %5988 = vmatprep.subr.mxu0 0.0
      %5989 = vmatpush1.msra.mxu0 0.0
      %5990 = vmatprep.subr.mxu0 0.0
      %5991 = vmatpush1.msra.mxu0 0.0
      %5992 = vmatprep.subr.mxu0 0.0
      %5993 = vmatpush1.msra.mxu0 0.0
      %5994 = vmatprep.subr.mxu0 0.0
      %5995 = vmatpush1.msra.mxu0 0.0
      %5996 = vmatprep.mubr.f32.mxu0 0.0
      %5997 = vmatmul.mubr.f32.gmra.mrb[0].mxu0 %v5930
      %v5998 = vpop.f32.mrb[0].mxu0
      %v5999 = vadd.f32 0.0, %v5998
      %v6000 = vpop.f32.mrb[0].mxu0
      %6001 = vdwg.mxu0
      %v6002 = vadd.f32 %v5856, %v5999
      %v6004 = vlaneseq
      %v6005 = vshrl.u32 %v6004, 7
      %v6006 = vsub.s32 0, %v6005
      %v6007 = vrot.slane %v5640, %v6006
      %v6009 = vadd.f32 %v6002, %v6007
      %v6010 = vmax.f32 %v6009, 0.0
      %vm6011 = vcmask 517120
      %6012 = vst.msk [vmem:[%s1773] sm:$0x3] %vm6011, %v6010
      %p6013 = scmp.lt.s32.totalorder %s131, 1
      %s6014 = scalar_select %p6013, %s131, 1
      %s6015 = smul.addr %s6014, 2
      %s6016 = smul.addr %s6015, 8
      %s6017 = scalar_lea.vmem %s113, %s6016
      %p6018 = scmp.lt.s32.totalorder %s131, 1
      %s6019 = scalar_select %p6018, %s131, 1
      %s6020 = smul.addr %s6019, 8
      %s6021 = scalar_lea.vmem %s115, %s6020
      %p6022 = scmp.lt.s32.totalorder %s131, 1
      %s6023 = scalar_select %p6022, %s131, 1
      %s6024 = smul.addr %s6023, 4
      %s6025 = scalar_lea.vmem %s117, %s6024
      %p6026 = scmp.lt.s32.totalorder %s131, 1
      %s6027 = scalar_select %p6026, %s131, 1
      %s6028 = smul.addr %s6027, 2
      %s6029 = scalar_lea.vmem %s119, %s6028
      // Predicated region
      $region245: #{discriminator_forward.1} parent=243 // pred_check
        %p6030 = pneg %p1330
      $region246: #{discriminator_forward.1} parent=243 // pred_check_branch
        %6032 = sbr.rel (%p6030) target = $region248
      $region247: #{discriminator_forward.1} parent=243 // pred_region
        _
      $region248: #{discriminator_forward.1} parent=243 // pred_fallthru
        _
      // Predicated region
      $region249: #{discriminator_forward.1} parent=243 // pred_check
        %p6033 = pneg %p1356
      $region250: #{discriminator_forward.1} parent=243 // pred_check_branch
        %6035 = sbr.rel (%p6033) target = $region252
      $region251: #{discriminator_forward.1} parent=243 // pred_region
        _
      $region252: #{discriminator_forward.1} parent=243 // pred_fallthru
        _
      // Predicated region
      $region253: #{discriminator_forward.1} parent=243 // pred_check
        %p6036 = pneg %p1382
      $region254: #{discriminator_forward.1} parent=243 // pred_check_branch
        %6038 = sbr.rel (%p6036) target = $region256
      $region255: #{discriminator_forward.1} parent=243 // pred_region
        _
      $region256: #{discriminator_forward.1} parent=243 // pred_fallthru
        _
      // Predicated region
      $region257: #{discriminator_forward.1} parent=243 // pred_check
        %p6039 = pneg %p1408
      $region258: #{discriminator_forward.1} parent=243 // pred_check_branch
        %6041 = sbr.rel (%p6039) target = $region260
      $region259: #{discriminator_forward.1} parent=243 // pred_region
        _
      $region260: #{discriminator_forward.1} parent=243 // pred_fallthru
        _
    $region244: #{discriminator_forward.1} parent=5 // pred_fallthru
      _
    %p6042 = scmp.le.s32.totalorder 2, %s126
    // Predicated region
    $region261: #{discriminator_forward.1} parent=5 // pred_check
      %p6043 = pneg %p6042
    $region262: #{discriminator_forward.1} parent=5 // pred_check_branch
      %6045 = sbr.rel (%p6043) target = $region264
    $region263: #{discriminator_forward.1} parent=5 // pred_region
      %s6046 = ssub.s32 %s126, 2
      // Predicated region
      $region265: #{discriminator_forward.1} parent=263 // pred_check
        %p6047 = pneg %p1336
      $region266: #{discriminator_forward.1} parent=263 // pred_check_branch
        %6049 = sbr.rel (%p6047) target = $region268
      $region267: #{discriminator_forward.1} parent=263 // pred_region
        %p6050 = scmp.lt.s32.totalorder %s132, 1
        %s6051 = scalar_select %p6050, %s132, 1
        %s6052 = smul.addr %s6051, 2
        %s6053 = smul.addr %s6052, 8
        %s6054 = scalar_lea.vmem %s113, %s6053
      $region268: #{discriminator_forward.1} parent=263 // pred_fallthru
        _
      // Predicated region
      $region269: #{discriminator_forward.1} parent=263 // pred_check
        %p6055 = pneg %p1362
      $region270: #{discriminator_forward.1} parent=263 // pred_check_branch
        %6057 = sbr.rel (%p6055) target = $region272
      $region271: #{discriminator_forward.1} parent=263 // pred_region
        %p6058 = scmp.lt.s32.totalorder %s132, 1
        %s6059 = scalar_select %p6058, %s132, 1
        %s6060 = smul.addr %s6059, 8
        %s6061 = scalar_lea.vmem %s115, %s6060
      $region272: #{discriminator_forward.1} parent=263 // pred_fallthru
        _
      // Predicated region
      $region273: #{discriminator_forward.1} parent=263 // pred_check
        %p6062 = pneg %p1388
      $region274: #{discriminator_forward.1} parent=263 // pred_check_branch
        %6064 = sbr.rel (%p6062) target = $region276
      $region275: #{discriminator_forward.1} parent=263 // pred_region
        %p6065 = scmp.lt.s32.totalorder %s132, 1
        %s6066 = scalar_select %p6065, %s132, 1
        %s6067 = smul.addr %s6066, 4
        %s6068 = scalar_lea.vmem %s117, %s6067
      $region276: #{discriminator_forward.1} parent=263 // pred_fallthru
        _
      // Predicated region
      $region277: #{discriminator_forward.1} parent=263 // pred_check
        %p6069 = pneg %p1414
      $region278: #{discriminator_forward.1} parent=263 // pred_check_branch
        %6071 = sbr.rel (%p6069) target = $region280
      $region279: #{discriminator_forward.1} parent=263 // pred_region
        %p6072 = scmp.lt.s32.totalorder %s132, 1
        %s6073 = scalar_select %p6072, %s132, 1
        %s6074 = smul.addr %s6073, 2
        %s6075 = scalar_lea.vmem %s119, %s6074
      $region280: #{discriminator_forward.1} parent=263 // pred_fallthru
        _
    $region264: #{discriminator_forward.1} parent=5 // pred_fallthru
      _
  $region6: #{discriminator_forward.1} parent=0 // loop_footer
    %s130 = sadd.s32 1, %s126
  $region7: #{discriminator_forward.1} parent=0 // loop_footer_branch
    %125 = sbr.rel target = $region3
  $region8: #{discriminator_forward.1} parent=0 // loop_exit
    _

</llo_original>
